<compile_context>
chip_gen: v7x
topology: tpu7x:2x2x1
jax: 0.10.0
libtpu: 0.0.40
codegen_flags: <defaults>
</compile_context>

<pallas_src>
import math

import jax
import jax.numpy as jnp
import numpy as np
from jax import lax
from jax.experimental import pallas as pl
from jax.experimental.pallas import tpu as pltpu


def _vmem_budget_bytes():
    """~85% of this generation's physical VMEM (v5e/v6e 128 MiB, v7x 64 MiB)."""
    try:
        cap = int(pltpu.get_tpu_info().vmem_capacity_bytes)
    except Exception:
        cap = 64 * 1024 * 1024        # conservative fallback (v7x-sized)
    return int(cap * 0.85)


def _make_kernel(H, NH, DH, TQ, eps1, eps2):
    scale = 1.0 / math.sqrt(DH)       # norm_factor = sqrt(head_dim), q_scaling = 1
    NEG = -1e30                       # scores stay in f32, so -1e30 is safe

    def kernel(x_ref, ln1_ref, wqkv_ref, bqkv_ref, wo_ref,
               ln2_ref, w12_ref, wc_ref, cos_ref, sinm_ref,
               out_ref, k_ref, v_ref):
        cdt = x_ref.dtype                     # MXU operand dtype (bf16 in prod)
        t = pl.program_id(1)
        row0 = pl.multiple_of(t * TQ, TQ)     # first sequence position of tile

        xf = x_ref[0].astype(jnp.float32)     # [TQ, H]; f32 for norm / residual

        def rmsnorm(v, w, eps):               # stats in f32 (VPU/EUP)
            ms = jnp.mean(v * v, axis=-1, keepdims=True)
            return v * lax.rsqrt(ms + eps) * w

        # ---- ln_1 + QKV projection (qkv bias=True in QWenAttention) ---------
        h = rmsnorm(xf, ln1_ref[...].astype(jnp.float32), eps1)
        qkv = jnp.dot(h.astype(cdt), wqkv_ref[...],          # bf16 x bf16 MXU
                      preferred_element_type=jnp.float32)
        qkv = qkv + bqkv_ref[...].astype(jnp.float32)        # [TQ, 3H] f32

        # ---- head split + GPT-NeoX RoPE, vectorized across all heads --------
        # [TQ, NH*DH] -> [NH, TQ, DH]: NH static lane slices stacked on a new
        # leading (major) axis; every op below then covers all heads at once.
        def split_heads(x2d):
            return jnp.stack(
                [x2d[:, hh * DH:(hh + 1) * DH] for hh in range(NH)], axis=0)

        cosb = cos_ref[...][None]             # [1, TQ, DH] f32
        sinb = sinm_ref[...][None]            # rotate-half sign pre-folded in

        def rope(th):                         # [NH, TQ, DH] f32
            if DH % 128 == 0:                 # production head dims: XLU roll
                rot = pltpu.roll(th, DH // 2, axis=-1)
            else:                             # toy head dim: plain slice swap
                rot = jnp.concatenate([th[..., DH // 2:], th[..., :DH // 2]],
                                      axis=-1)
            return th * cosb + rot * sinb

        q_h = (rope(split_heads(qkv[:, :H])) * scale).astype(cdt)  # fold 1/sqrt
        k_h = rope(split_heads(qkv[:, H:2 * H])).astype(cdt)
        v_h = split_heads(qkv[:, 2 * H:3 * H]).astype(cdt)

        # Append this tile's K/V rows to the per-batch head-major cache.  The
        # flash loop below only reads KV tiles 0..t-1, which this batch already
        # wrote (batch is the outer grid axis, the query-tile axis is sequential
        # / "arbitrary"), so no zero-init of the cache is needed and un-written
        # rows are never touched.
        # TODO(synk): at production S*H keep K/V in HBM (memory_space=pl.ANY)
        # and double-buffer [TQ,DH] tiles with pltpu.make_async_copy; the
        # (NH,S,DH) VMEM scratch only fits toy / short-sequence configs.
        k_ref[:, pl.ds(row0, TQ), :] = k_h
        v_ref[:, pl.ds(row0, TQ), :] = v_h

        # ---- causal flash attention over KV tiles 0..t -----------------------
        def online_update(sc, carry, v_t):    # sc: [NH, TQ, TK] f32
            m, l, acc = carry
            m_new = jnp.maximum(m, sc.max(axis=-1, keepdims=True))
            alpha = jnp.exp(m - m_new)
            p = jnp.exp(sc - m_new)
            l_new = alpha * l + p.sum(axis=-1, keepdims=True)
            acc_new = alpha * acc + jnp.einsum(
                'hqk,hkd->hqd', p.astype(cdt), v_t,
                preferred_element_type=jnp.float32)
            return m_new, l_new, acc_new

        def kv_body(kv, carry):               # off-diagonal tiles: no mask
            off = pl.multiple_of(kv * TQ, TQ)
            k_t = k_ref[:, pl.ds(off, TQ), :]
            v_t = v_ref[:, pl.ds(off, TQ), :]
            sc = jnp.einsum('hqd,hkd->hqk', q_h, k_t,
                            preferred_element_type=jnp.float32)
            return online_update(sc, carry, v_t)

        init = (jnp.full((NH, TQ, 1), -jnp.inf, jnp.float32),
                jnp.zeros((NH, TQ, 1), jnp.float32),
                jnp.zeros((NH, TQ, DH), jnp.float32))
        m_i, l_i, acc = lax.fori_loop(0, t, kv_body, init)

        # Diagonal tile: fixed [TQ,TQ] causal mask (no row0-dependent iotas);
        # its K/V are still live in registers, so skip the cache round-trip.
        diag = (lax.broadcasted_iota(jnp.int32, (TQ, TQ), 1)
                <= lax.broadcasted_iota(jnp.int32, (TQ, TQ), 0))
        sc_d = jnp.einsum('hqd,hkd->hqk', q_h, k_h,
                          preferred_element_type=jnp.float32)
        sc_d = jnp.where(diag[None], sc_d, NEG)
        m_i, l_i, acc = online_update(sc_d, (m_i, l_i, acc), v_h)

        # ---- merge heads + single fused output projection (dense, bias=False)
        ctx = acc * pl.reciprocal(l_i, approx=True)           # [NH, TQ, DH] f32
        ctx2 = jnp.concatenate([ctx[hh] for hh in range(NH)], axis=-1)  # [TQ,H]
        attn = jnp.dot(ctx2.astype(cdt), wo_ref[...],
                       preferred_element_type=jnp.float32)

        h1 = xf + attn                                        # residual (f32)

        # ---- ln_2 + QWenMLP: c_proj(w1(x) * silu(w2(x))), all bias=False -----
        g = rmsnorm(h1, ln2_ref[...].astype(jnp.float32), eps2)
        a12 = jnp.dot(g.astype(cdt), w12_ref[...],            # packed [H, 2F]
                      preferred_element_type=jnp.float32)
        F = a12.shape[-1] // 2
        a1, a2 = a12[:, :F], a12[:, F:]
        inter = a1 * (a2 * jax.nn.sigmoid(a2))                # silu in f32 (EUP)
        mlp = jnp.dot(inter.astype(cdt), wc_ref[...],
                      preferred_element_type=jnp.float32)
        # TODO(synk): at production F (~11k) stream w12/wc in F-chunks instead of
        # materializing the full [TQ, 2F] f32 activation, and tile wqkv/wo/w12/wc
        # over K/N grid axes so they need not be whole-resident in VMEM.

        out_ref[0] = (h1 + mlp).astype(out_ref.dtype)

    return kernel


def qwen_block_forward(x, params, num_heads, rotary_base=10000.0,
                       rms_norm_eps=1e-6, q_tile=128):
    B, S, H = x.shape
    assert H % num_heads == 0
    DH = H // num_heads
    TQ = min(q_tile, S)
    assert S % TQ == 0 and TQ % 8 == 0
    NT = S // TQ
    F = params["w1"].shape[1]
    dt = x.dtype

    # GPT-NeoX rotary tables (rotary_embedding_percentage = 1.0 -> full head
    # dim); the rotate-half sign is pre-folded into `sinm`.
    inv_freq = 1.0 / (rotary_base ** (jnp.arange(0, DH, 2, dtype=jnp.float32) / DH))
    freqs = jnp.outer(jnp.arange(S, dtype=jnp.float32), inv_freq)     # [S, DH/2]
    cos = jnp.cos(jnp.concatenate([freqs, freqs], axis=-1))           # [S, DH]
    sin_half = jnp.sin(freqs)
    sinm = jnp.concatenate([-sin_half, sin_half], axis=-1)            # [S, DH]

    # pack the two MLP up-projections into one wide matmul
    w12 = jnp.concatenate([params["w1"], params["w2"]], axis=1)       # [H, 2F]

    kernel = _make_kernel(H, num_heads, DH, TQ, rms_norm_eps, rms_norm_eps)
    resident = lambda b, t: (0, 0)    # weights stay resident in VMEM across grid

    def run(single_buffer_weights):
        if single_buffer_weights:
            # constant-index blocks are never re-DMA'd -> one buffer is enough
            wspec = lambda shp: pl.BlockSpec(shp, resident,
                                             pipeline_mode=pl.Buffered(1))
        else:
            wspec = lambda shp: pl.BlockSpec(shp, resident)
        return pl.pallas_call(
            kernel,
            out_shape=jax.ShapeDtypeStruct((B, S, H), dt),
            grid_spec=pltpu.PrefetchScalarGridSpec(
                num_scalar_prefetch=0,
                grid=(B, NT),
                in_specs=[
                    pl.BlockSpec((1, TQ, H), lambda b, t: (b, t, 0)),  # x tile
                    wspec((1, H)),            # ln_1 weight
                    wspec((H, 3 * H)),        # qkv weight
                    wspec((1, 3 * H)),        # qkv bias
                    wspec((H, H)),            # dense (attn out) weight
                    wspec((1, H)),            # ln_2 weight
                    wspec((H, 2 * F)),        # w1|w2 packed
                    wspec((F, H)),            # c_proj weight
                    pl.BlockSpec((TQ, DH), lambda b, t: (t, 0)),       # rope cos
                    pl.BlockSpec((TQ, DH), lambda b, t: (t, 0)),       # rope +/- sin
                ],
                out_specs=pl.BlockSpec((1, TQ, H), lambda b, t: (b, t, 0)),
                scratch_shapes=[pltpu.VMEM((num_heads, S, DH), dt),   # K cache
                                pltpu.VMEM((num_heads, S, DH), dt)],  # V cache
            ),
            # batch axis -> megacore-parallel; query-tile axis must stay
            # sequential ("arbitrary") because the K/V cache is carried across it.
            # TODO(synk): for B=1 on v7x add a parallel head/KV grid axis so the
            # second TensorCore is not idle.
            compiler_params=pltpu.CompilerParams(
                dimension_semantics=("parallel", "arbitrary"),
                vmem_limit_bytes=_vmem_budget_bytes()),
        )(x, params["ln1_w"], params["wqkv"], params["bqkv"], params["wo"],
          params["ln2_w"], w12, params["wc"], cos, sinm)

    try:
        return jax.block_until_ready(run(True))
    except Exception:
        # this jax build rejected pl.Buffered(1) -> fall back to default buffering
        return run(False)


def ref_forward(x, p, num_heads, rotary_base=10000.0, eps=1e-6):
    """Pure-JAX f32 reference of the same math (sanity check)."""
    B, S, H = x.shape
    DH = H // num_heads

    def rms(v, w):
        return v * lax.rsqrt(jnp.mean(v * v, -1, keepdims=True) + eps) * w

    h = rms(x, p["ln1_w"][0])
    qkv = h @ p["wqkv"] + p["bqkv"][0]
    q, k, v = jnp.split(qkv, 3, axis=-1)

    inv_freq = 1.0 / (rotary_base ** (jnp.arange(0, DH, 2, dtype=jnp.float32) / DH))
    pos = jnp.arange(S, dtype=jnp.float32)
    emb = jnp.concatenate([jnp.outer(pos, inv_freq)] * 2, axis=-1)
    cos = jnp.cos(emb)[None, :, None, :]
    sin = jnp.sin(emb)[None, :, None, :]

    def heads(t):
        return t.reshape(B, S, num_heads, DH)

    def rope(t):
        t = heads(t)
        t1, t2 = t[..., :DH // 2], t[..., DH // 2:]
        return t * cos + jnp.concatenate([-t2, t1], axis=-1) * sin

    qh, kh, vh = rope(q), rope(k), heads(v)
    sc = jnp.einsum("bqhd,bkhd->bhqk", qh, kh) / math.sqrt(DH)
    mask = jnp.tril(jnp.ones((S, S), dtype=bool))
    sc = jnp.where(mask, sc, -1e30)
    pr = jax.nn.softmax(sc, axis=-1)
    ctx = jnp.einsum("bhqk,bkhd->bqhd", pr, vh).reshape(B, S, H)
    h1 = x + ctx @ p["wo"]
    g = rms(h1, p["ln2_w"][0])
    a1, a2 = g @ p["w1"], g @ p["w2"]
    return h1 + (a1 * jax.nn.silu(a2)) @ p["wc"]


if __name__ == "__main__":
    # small but structurally faithful config:
    # hidden=128, heads=4 (head_dim=32), seq=64, batch=2,
    # mlp_hidden_size = 4*hidden -> QWenMLP ffn = mlp_hidden_size // 2 = 256
    B, S, H, NH = 2, 64, 128, 4
    F = (H * 4) // 2

    key = jax.random.PRNGKey(0)
    ks = jax.random.split(key, 9)
    sc = 0.05
    params = {
        "ln1_w": 1.0 + 0.1 * jax.random.normal(ks[0], (1, H), jnp.float32),
        "wqkv":  sc * jax.random.normal(ks[1], (H, 3 * H), jnp.float32),
        "bqkv":  sc * jax.random.normal(ks[2], (1, 3 * H), jnp.float32),
        "wo":    sc * jax.random.normal(ks[3], (H, H), jnp.float32),
        "ln2_w": 1.0 + 0.1 * jax.random.normal(ks[4], (1, H), jnp.float32),
        "w1":    sc * jax.random.normal(ks[5], (H, F), jnp.float32),
        "w2":    sc * jax.random.normal(ks[6], (H, F), jnp.float32),
        "wc":    sc * jax.random.normal(ks[7], (F, H), jnp.float32),
    }
    x = jax.random.normal(ks[8], (B, S, H), jnp.float32)

    # --- f32 run, q_tile=32 -> 2 query tiles: exercises the carried K/V cache
    #     and the flash loop over previous KV tiles; checked vs pure-JAX ref ---
    out32 = jax.block_until_ready(qwen_block_forward(x, params, NH, q_tile=32))
    assert out32.shape == (B, S, H)
    ref32 = ref_forward(x, params, NH)
    np.testing.assert_allclose(np.asarray(out32), np.asarray(ref32),
                               rtol=2e-2, atol=2e-2)

    # --- bfloat16 run at the default (large) query tile: production dtype path ---
    params_bf = {k: v.astype(jnp.bfloat16) for k, v in params.items()}
    x_bf = x.astype(jnp.bfloat16)
    out_bf = jax.block_until_ready(qwen_block_forward(x_bf, params_bf, NH))
    assert out_bf.shape == (B, S, H) and out_bf.dtype == jnp.bfloat16
    ref_bf = ref_forward(x_bf.astype(jnp.float32),
                         {k: v.astype(jnp.float32) for k, v in params_bf.items()},
                         NH)
    np.testing.assert_allclose(np.asarray(out_bf.astype(jnp.float32)),
                               np.asarray(ref_bf), rtol=5e-2, atol=5e-2)

    # TODO(synk): KV-cache / paged-attention runtime params, beam
    # cache_indirection, int8 KV quant scales, dynamic-NTK / logn attention
    # scaling and the TP all-reduce workspace of the gpt_attention plugin are
    # runtime features with no meaning in this single-call context-phase kernel.
    print("KERNEL_OK")
</pallas_src>

<mosaic_0001>
module attributes {stable_mosaic.version = 11 : i64} {
  func.func @kernel(%arg0: i32, %arg1: i32, %arg2: memref<1x32x128xf32, #tpu.memory_space<vmem>>, %arg3: memref<1x128xf32, #tpu.memory_space<vmem>>, %arg4: memref<128x384xf32, #tpu.memory_space<vmem>>, %arg5: memref<1x384xf32, #tpu.memory_space<vmem>>, %arg6: memref<128x128xf32, #tpu.memory_space<vmem>>, %arg7: memref<1x128xf32, #tpu.memory_space<vmem>>, %arg8: memref<128x512xf32, #tpu.memory_space<vmem>>, %arg9: memref<256x128xf32, #tpu.memory_space<vmem>>, %arg10: memref<32x32xf32, #tpu.memory_space<vmem>>, %arg11: memref<32x32xf32, #tpu.memory_space<vmem>>, %arg12: memref<1x32x128xf32, #tpu.memory_space<vmem>>, %arg13: memref<4x64x32xf32, #tpu.memory_space<vmem>>, %arg14: memref<4x64x32xf32, #tpu.memory_space<vmem>>) attributes {dimension_semantics = [#tpu.dimension_semantics<parallel>, #tpu.dimension_semantics<arbitrary>], iteration_bounds = array<i64: 2, 2>, scalar_prefetch = 0 : i64, scratch_operands = 2 : i64, tpu.core_type = #tpu.core_type<tc>, window_params = [{transform_indices = @transform_0, window_bounds = array<i64: 1, 32, 128>}, {pipeline_mode = #tpu.pipeline_mode<synchronous>, transform_indices = @transform_1, window_bounds = array<i64: 1, 128>}, {pipeline_mode = #tpu.pipeline_mode<synchronous>, transform_indices = @transform_2, window_bounds = array<i64: 128, 384>}, {pipeline_mode = #tpu.pipeline_mode<synchronous>, transform_indices = @transform_3, window_bounds = array<i64: 1, 384>}, {pipeline_mode = #tpu.pipeline_mode<synchronous>, transform_indices = @transform_4, window_bounds = array<i64: 128, 128>}, {pipeline_mode = #tpu.pipeline_mode<synchronous>, transform_indices = @transform_5, window_bounds = array<i64: 1, 128>}, {pipeline_mode = #tpu.pipeline_mode<synchronous>, transform_indices = @transform_6, window_bounds = array<i64: 128, 512>}, {pipeline_mode = #tpu.pipeline_mode<synchronous>, transform_indices = @transform_7, window_bounds = array<i64: 256, 128>}, {transform_indices = @transform_8, window_bounds = array<i64: 32, 32>}, {transform_indices = @transform_9, window_bounds = array<i64: 32, 32>}, {transform_indices = @transform_10, window_bounds = array<i64: 1, 32, 128>}]} {
    %c32_i32 = arith.constant 32 : i32
    %0 = arith.muli %arg1, %c32_i32 : i32
    %1 = tpu.assume_multiple %0, 32 : i32
    %c0 = arith.constant 0 : index
    %c0_0 = arith.constant 0 : index
    %c0_1 = arith.constant 0 : index
    %2 = vector.load %arg2[%c0, %c0_0, %c0_1] : memref<1x32x128xf32, #tpu.memory_space<vmem>>, vector<1x32x128xf32>
    %3 = vector.shape_cast %2 : vector<1x32x128xf32> to vector<32x128xf32>
    %c0_2 = arith.constant 0 : index
    %c0_3 = arith.constant 0 : index
    %4 = vector.load %arg3[%c0_2, %c0_3] : memref<1x128xf32, #tpu.memory_space<vmem>>, vector<1x128xf32>
    %5 = arith.mulf %3, %3 : vector<32x128xf32>
    %cst = arith.constant dense<0.000000e+00> : vector<32xf32>
    %6 = vector.multi_reduction <add>, %5, %cst [1] : vector<32x128xf32> to vector<32xf32>
    %7 = vector.shape_cast %6 : vector<32xf32> to vector<32x1xf32>
    %cst_4 = arith.constant 1.280000e+02 : f32
    %8 = vector.broadcast %cst_4 : f32 to vector<32x1xf32>
    %9 = arith.divf %7, %8 : vector<32x1xf32>
    %cst_5 = arith.constant 9.99999997E-7 : f32
    %10 = vector.broadcast %cst_5 : f32 to vector<32x1xf32>
    %11 = arith.addf %9, %10 : vector<32x1xf32>
    %12 = math.rsqrt %11 : vector<32x1xf32>
    %13 = vector.broadcast %12 : vector<32x1xf32> to vector<32x128xf32>
    %14 = arith.mulf %3, %13 : vector<32x128xf32>
    %15 = vector.broadcast %4 : vector<1x128xf32> to vector<32x128xf32>
    %16 = arith.mulf %14, %15 : vector<32x128xf32>
    %c0_6 = arith.constant 0 : index
    %c0_7 = arith.constant 0 : index
    %17 = vector.load %arg4[%c0_6, %c0_7] : memref<128x384xf32, #tpu.memory_space<vmem>>, vector<128x384xf32>
    %cst_8 = arith.constant dense<0.000000e+00> : vector<32x384xf32>
    %18 = tpu.matmul %16, %17, %cst_8 {dimension_numbers = #tpu.dot_dimension_numbers<[1], [0], [0], [1], [0, 0, 1, 1], [], []>} : vector<32x128xf32>, vector<128x384xf32>, vector<32x384xf32> -> vector<32x384xf32>
    %c0_9 = arith.constant 0 : index
    %c0_10 = arith.constant 0 : index
    %19 = vector.load %arg5[%c0_9, %c0_10] : memref<1x384xf32, #tpu.memory_space<vmem>>, vector<1x384xf32>
    %20 = vector.broadcast %19 : vector<1x384xf32> to vector<32x384xf32>
    %21 = arith.addf %18, %20 : vector<32x384xf32>
    %c0_11 = arith.constant 0 : index
    %c0_12 = arith.constant 0 : index
    %22 = vector.load %arg10[%c0_11, %c0_12] : memref<32x32xf32, #tpu.memory_space<vmem>>, vector<32x32xf32>
    %23 = vector.shape_cast %22 : vector<32x32xf32> to vector<1x32x32xf32>
    %c0_13 = arith.constant 0 : index
    %c0_14 = arith.constant 0 : index
    %24 = vector.load %arg11[%c0_13, %c0_14] : memref<32x32xf32, #tpu.memory_space<vmem>>, vector<32x32xf32>
    %25 = vector.shape_cast %24 : vector<32x32xf32> to vector<1x32x32xf32>
    %26 = vector.extract_strided_slice %21 {offsets = [0, 0], sizes = [32, 128], strides = [1, 1]} : vector<32x384xf32> to vector<32x128xf32>
    %27 = vector.extract_strided_slice %26 {offsets = [0, 0], sizes = [32, 32], strides = [1, 1]} : vector<32x128xf32> to vector<32x32xf32>
    %28 = vector.extract_strided_slice %26 {offsets = [0, 32], sizes = [32, 32], strides = [1, 1]} : vector<32x128xf32> to vector<32x32xf32>
    %29 = vector.extract_strided_slice %26 {offsets = [0, 64], sizes = [32, 32], strides = [1, 1]} : vector<32x128xf32> to vector<32x32xf32>
    %30 = vector.extract_strided_slice %26 {offsets = [0, 96], sizes = [32, 32], strides = [1, 1]} : vector<32x128xf32> to vector<32x32xf32>
    %31 = vector.shape_cast %27 : vector<32x32xf32> to vector<1x32x32xf32>
    %32 = vector.shape_cast %28 : vector<32x32xf32> to vector<1x32x32xf32>
    %33 = vector.shape_cast %29 : vector<32x32xf32> to vector<1x32x32xf32>
    %34 = vector.shape_cast %30 : vector<32x32xf32> to vector<1x32x32xf32>
    %35 = tpu.concatenate %31, %32, %33, %34 in 0 : vector<1x32x32xf32>, vector<1x32x32xf32>, vector<1x32x32xf32>, vector<1x32x32xf32> -> vector<4x32x32xf32>
    %36 = vector.extract_strided_slice %35 {offsets = [0, 0, 16], sizes = [4, 32, 16], strides = [1, 1, 1]} : vector<4x32x32xf32> to vector<4x32x16xf32>
    %37 = vector.extract_strided_slice %35 {offsets = [0, 0, 0], sizes = [4, 32, 16], strides = [1, 1, 1]} : vector<4x32x32xf32> to vector<4x32x16xf32>
    %38 = tpu.concatenate %36, %37 in 2 : vector<4x32x16xf32>, vector<4x32x16xf32> -> vector<4x32x32xf32>
    %39 = vector.broadcast %23 : vector<1x32x32xf32> to vector<4x32x32xf32>
    %40 = arith.mulf %35, %39 : vector<4x32x32xf32>
    %41 = vector.broadcast %25 : vector<1x32x32xf32> to vector<4x32x32xf32>
    %42 = arith.mulf %38, %41 : vector<4x32x32xf32>
    %43 = arith.addf %40, %42 : vector<4x32x32xf32>
    %cst_15 = arith.constant 0.176776692 : f32
    %44 = vector.broadcast %cst_15 : f32 to vector<4x32x32xf32>
    %45 = arith.mulf %43, %44 : vector<4x32x32xf32>
    %46 = vector.extract_strided_slice %21 {offsets = [0, 128], sizes = [32, 128], strides = [1, 1]} : vector<32x384xf32> to vector<32x128xf32>
    %47 = vector.extract_strided_slice %46 {offsets = [0, 0], sizes = [32, 32], strides = [1, 1]} : vector<32x128xf32> to vector<32x32xf32>
    %48 = vector.extract_strided_slice %46 {offsets = [0, 32], sizes = [32, 32], strides = [1, 1]} : vector<32x128xf32> to vector<32x32xf32>
    %49 = vector.extract_strided_slice %46 {offsets = [0, 64], sizes = [32, 32], strides = [1, 1]} : vector<32x128xf32> to vector<32x32xf32>
    %50 = vector.extract_strided_slice %46 {offsets = [0, 96], sizes = [32, 32], strides = [1, 1]} : vector<32x128xf32> to vector<32x32xf32>
    %51 = vector.shape_cast %47 : vector<32x32xf32> to vector<1x32x32xf32>
    %52 = vector.shape_cast %48 : vector<32x32xf32> to vector<1x32x32xf32>
    %53 = vector.shape_cast %49 : vector<32x32xf32> to vector<1x32x32xf32>
    %54 = vector.shape_cast %50 : vector<32x32xf32> to vector<1x32x32xf32>
    %55 = tpu.concatenate %51, %52, %53, %54 in 0 : vector<1x32x32xf32>, vector<1x32x32xf32>, vector<1x32x32xf32>, vector<1x32x32xf32> -> vector<4x32x32xf32>
    %56 = vector.extract_strided_slice %55 {offsets = [0, 0, 16], sizes = [4, 32, 16], strides = [1, 1, 1]} : vector<4x32x32xf32> to vector<4x32x16xf32>
    %57 = vector.extract_strided_slice %55 {offsets = [0, 0, 0], sizes = [4, 32, 16], strides = [1, 1, 1]} : vector<4x32x32xf32> to vector<4x32x16xf32>
    %58 = tpu.concatenate %56, %57 in 2 : vector<4x32x16xf32>, vector<4x32x16xf32> -> vector<4x32x32xf32>
    %59 = vector.broadcast %23 : vector<1x32x32xf32> to vector<4x32x32xf32>
    %60 = arith.mulf %55, %59 : vector<4x32x32xf32>
    %61 = vector.broadcast %25 : vector<1x32x32xf32> to vector<4x32x32xf32>
    %62 = arith.mulf %58, %61 : vector<4x32x32xf32>
    %63 = arith.addf %60, %62 : vector<4x32x32xf32>
    %64 = vector.extract_strided_slice %21 {offsets = [0, 256], sizes = [32, 128], strides = [1, 1]} : vector<32x384xf32> to vector<32x128xf32>
    %65 = vector.extract_strided_slice %64 {offsets = [0, 0], sizes = [32, 32], strides = [1, 1]} : vector<32x128xf32> to vector<32x32xf32>
    %66 = vector.extract_strided_slice %64 {offsets = [0, 32], sizes = [32, 32], strides = [1, 1]} : vector<32x128xf32> to vector<32x32xf32>
    %67 = vector.extract_strided_slice %64 {offsets = [0, 64], sizes = [32, 32], strides = [1, 1]} : vector<32x128xf32> to vector<32x32xf32>
    %68 = vector.extract_strided_slice %64 {offsets = [0, 96], sizes = [32, 32], strides = [1, 1]} : vector<32x128xf32> to vector<32x32xf32>
    %69 = vector.shape_cast %65 : vector<32x32xf32> to vector<1x32x32xf32>
    %70 = vector.shape_cast %66 : vector<32x32xf32> to vector<1x32x32xf32>
    %71 = vector.shape_cast %67 : vector<32x32xf32> to vector<1x32x32xf32>
    %72 = vector.shape_cast %68 : vector<32x32xf32> to vector<1x32x32xf32>
    %73 = tpu.concatenate %69, %70, %71, %72 in 0 : vector<1x32x32xf32>, vector<1x32x32xf32>, vector<1x32x32xf32>, vector<1x32x32xf32> -> vector<4x32x32xf32>
    %c0_16 = arith.constant 0 : index
    %74 = arith.index_cast %1 : i32 to index
    %c0_17 = arith.constant 0 : index
    %75 = vector.load %arg13[%c0_16, %74, %c0_17] : memref<4x64x32xf32, #tpu.memory_space<vmem>>, vector<4x32x32xf32>
    tpu.vector_store %arg13[%c0_16, %74, %c0_17], %63 {strides = array<i32>} : memref<4x64x32xf32, #tpu.memory_space<vmem>>, vector<4x32x32xf32>,
    %c0_18 = arith.constant 0 : index
    %76 = arith.index_cast %1 : i32 to index
    %c0_19 = arith.constant 0 : index
    %77 = vector.load %arg14[%c0_18, %76, %c0_19] : memref<4x64x32xf32, #tpu.memory_space<vmem>>, vector<4x32x32xf32>
    tpu.vector_store %arg14[%c0_18, %76, %c0_19], %73 {strides = array<i32>} : memref<4x64x32xf32, #tpu.memory_space<vmem>>, vector<4x32x32xf32>,
    %cst_20 = arith.constant 0xFF800000 : f32
    %78 = vector.broadcast %cst_20 : f32 to vector<4x32x1xf32>
    %cst_21 = arith.constant 0.000000e+00 : f32
    %79 = vector.broadcast %cst_21 : f32 to vector<4x32x1xf32>
    %cst_22 = arith.constant 0.000000e+00 : f32
    %80 = vector.broadcast %cst_22 : f32 to vector<4x32x32xf32>
    %c0_i32 = arith.constant 0 : i32
    %81 = arith.subi %arg1, %c0_i32 : i32
    %82 = arith.addi %c0_i32, %81 : i32
    %c1_i32 = arith.constant 1 : i32
    %83:3 = scf.for %arg15 = %c0_i32 to %82 step %c1_i32 iter_args(%arg16 = %78, %arg17 = %79, %arg18 = %80) -> (vector<4x32x1xf32>, vector<4x32x1xf32>, vector<4x32x32xf32>)  : i32 {
      %c32_i32_46 = arith.constant 32 : i32
      %154 = arith.muli %arg15, %c32_i32_46 : i32
      %155 = tpu.assume_multiple %154, 32 : i32
      %c0_47 = arith.constant 0 : index
      %156 = arith.index_cast %155 : i32 to index
      %c0_48 = arith.constant 0 : index
      %157 = vector.load %arg13[%c0_47, %156, %c0_48] : memref<4x64x32xf32, #tpu.memory_space<vmem>>, vector<4x32x32xf32>
      %c0_49 = arith.constant 0 : index
      %158 = arith.index_cast %155 : i32 to index
      %c0_50 = arith.constant 0 : index
      %159 = vector.load %arg14[%c0_49, %158, %c0_50] : memref<4x64x32xf32, #tpu.memory_space<vmem>>, vector<4x32x32xf32>
      "tpu.trace_start"() <{level = 10 : i32, message = "hqd,hkd->hqk"}> : () -> ()
      %cst_51 = arith.constant dense<0.000000e+00> : vector<4x32x32xf32>
      %160 = tpu.matmul %45, %157, %cst_51 {dimension_numbers = #tpu.dot_dimension_numbers<[2], [2], [1], [1], [0, 0, 0, 1, 1, 1], [0], [0]>} : vector<4x32x32xf32>, vector<4x32x32xf32>, vector<4x32x32xf32> -> vector<4x32x32xf32>
      "tpu.trace_stop"() : () -> ()
      %cst_52 = arith.constant dense<0xFF800000> : vector<4x32xf32>
      %161 = vector.multi_reduction <maximumf>, %160, %cst_52 [2] : vector<4x32x32xf32> to vector<4x32xf32>
      %162 = vector.shape_cast %161 : vector<4x32xf32> to vector<4x32x1xf32>
      %163 = arith.maximumf %arg16, %162 : vector<4x32x1xf32>
      %164 = arith.subf %arg16, %163 : vector<4x32x1xf32>
      %165 = math.exp %164 : vector<4x32x1xf32>
      %166 = vector.broadcast %163 : vector<4x32x1xf32> to vector<4x32x32xf32>
      %167 = arith.subf %160, %166 : vector<4x32x32xf32>
      %168 = math.exp %167 : vector<4x32x32xf32>
      %169 = arith.mulf %165, %arg17 : vector<4x32x1xf32>
      %cst_53 = arith.constant dense<0.000000e+00> : vector<4x32xf32>
      %170 = vector.multi_reduction <add>, %168, %cst_53 [2] : vector<4x32x32xf32> to vector<4x32xf32>
      %171 = vector.shape_cast %170 : vector<4x32xf32> to vector<4x32x1xf32>
      %172 = arith.addf %169, %171 : vector<4x32x1xf32>
      %173 = vector.broadcast %165 : vector<4x32x1xf32> to vector<4x32x32xf32>
      %174 = arith.mulf %173, %arg18 : vector<4x32x32xf32>
      "tpu.trace_start"() <{level = 10 : i32, message = "hqk,hkd->hqd"}> : () -> ()
      %cst_54 = arith.constant dense<0.000000e+00> : vector<4x32x32xf32>
      %175 = tpu.matmul %168, %159, %cst_54 {dimension_numbers = #tpu.dot_dimension_numbers<[2], [1], [1], [2], [0, 0, 0, 1, 1, 2], [0], [0]>} : vector<4x32x32xf32>, vector<4x32x32xf32>, vector<4x32x32xf32> -> vector<4x32x32xf32>
      "tpu.trace_stop"() : () -> ()
      %176 = arith.addf %174, %175 : vector<4x32x32xf32>
      scf.yield %163, %172, %176 : vector<4x32x1xf32>, vector<4x32x1xf32>, vector<4x32x32xf32>
    }
    %84 = tpu.iota {dimensions = array<i32: 1>} : vector<32x32xi32>
    %85 = tpu.iota {dimensions = array<i32: 0>} : vector<32x32xi32>
    %86 = arith.cmpi sle, %84, %85 : vector<32x32xi32>
    "tpu.trace_start"() <{level = 10 : i32, message = "hqd,hkd->hqk"}> : () -> ()
    %cst_23 = arith.constant dense<0.000000e+00> : vector<4x32x32xf32>
    %87 = tpu.matmul %45, %63, %cst_23 {dimension_numbers = #tpu.dot_dimension_numbers<[2], [2], [1], [1], [0, 0, 0, 1, 1, 1], [0], [0]>} : vector<4x32x32xf32>, vector<4x32x32xf32>, vector<4x32x32xf32> -> vector<4x32x32xf32>
    "tpu.trace_stop"() : () -> ()
    %88 = vector.shape_cast %86 : vector<32x32xi1> to vector<1x32x32xi1>
    %cst_24 = arith.constant -1.000000e+30 : f32
    %89 = vector.shape_cast %88 : vector<1x32x32xi1> to vector<1x32x32xi1>
    %90 = vector.broadcast %89 : vector<1x32x32xi1> to vector<4x32x32xi1>
    %91 = vector.broadcast %cst_24 : f32 to vector<4x32x32xf32>
    %92 = arith.select %90, %87, %91 : vector<4x32x32xi1>, vector<4x32x32xf32>
    %cst_25 = arith.constant dense<0xFF800000> : vector<4x32xf32>
    %93 = vector.multi_reduction <maximumf>, %92, %cst_25 [2] : vector<4x32x32xf32> to vector<4x32xf32>
    %94 = vector.shape_cast %93 : vector<4x32xf32> to vector<4x32x1xf32>
    %95 = arith.maximumf %83#0, %94 : vector<4x32x1xf32>
    %96 = arith.subf %83#0, %95 : vector<4x32x1xf32>
    %97 = math.exp %96 : vector<4x32x1xf32>
    %98 = vector.broadcast %95 : vector<4x32x1xf32> to vector<4x32x32xf32>
    %99 = arith.subf %92, %98 : vector<4x32x32xf32>
    %100 = math.exp %99 : vector<4x32x32xf32>
    %101 = arith.mulf %97, %83#1 : vector<4x32x1xf32>
    %cst_26 = arith.constant dense<0.000000e+00> : vector<4x32xf32>
    %102 = vector.multi_reduction <add>, %100, %cst_26 [2] : vector<4x32x32xf32> to vector<4x32xf32>
    %103 = vector.shape_cast %102 : vector<4x32xf32> to vector<4x32x1xf32>
    %104 = arith.addf %101, %103 : vector<4x32x1xf32>
    %105 = vector.broadcast %97 : vector<4x32x1xf32> to vector<4x32x32xf32>
    %106 = arith.mulf %105, %83#2 : vector<4x32x32xf32>
    "tpu.trace_start"() <{level = 10 : i32, message = "hqk,hkd->hqd"}> : () -> ()
    %cst_27 = arith.constant dense<0.000000e+00> : vector<4x32x32xf32>
    %107 = tpu.matmul %100, %73, %cst_27 {dimension_numbers = #tpu.dot_dimension_numbers<[2], [1], [1], [2], [0, 0, 0, 1, 1, 2], [0], [0]>} : vector<4x32x32xf32>, vector<4x32x32xf32>, vector<4x32x32xf32> -> vector<4x32x32xf32>
    "tpu.trace_stop"() : () -> ()
    %108 = arith.addf %106, %107 : vector<4x32x32xf32>
    %109 = tpu.reciprocal %104 {approx = true} : vector<4x32x1xf32> -> vector<4x32x1xf32>
    %110 = vector.broadcast %109 : vector<4x32x1xf32> to vector<4x32x32xf32>
    %111 = arith.mulf %108, %110 : vector<4x32x32xf32>
    %112 = vector.extract_strided_slice %111 {offsets = [0, 0, 0], sizes = [1, 32, 32], strides = [1, 1, 1]} : vector<4x32x32xf32> to vector<1x32x32xf32>
    %113 = vector.shape_cast %112 : vector<1x32x32xf32> to vector<32x32xf32>
    %114 = vector.extract_strided_slice %111 {offsets = [1, 0, 0], sizes = [1, 32, 32], strides = [1, 1, 1]} : vector<4x32x32xf32> to vector<1x32x32xf32>
    %115 = vector.shape_cast %114 : vector<1x32x32xf32> to vector<32x32xf32>
    %116 = vector.extract_strided_slice %111 {offsets = [2, 0, 0], sizes = [1, 32, 32], strides = [1, 1, 1]} : vector<4x32x32xf32> to vector<1x32x32xf32>
    %117 = vector.shape_cast %116 : vector<1x32x32xf32> to vector<32x32xf32>
    %118 = vector.extract_strided_slice %111 {offsets = [3, 0, 0], sizes = [1, 32, 32], strides = [1, 1, 1]} : vector<4x32x32xf32> to vector<1x32x32xf32>
    %119 = vector.shape_cast %118 : vector<1x32x32xf32> to vector<32x32xf32>
    %120 = tpu.concatenate %113, %115, %117, %119 in 1 : vector<32x32xf32>, vector<32x32xf32>, vector<32x32xf32>, vector<32x32xf32> -> vector<32x128xf32>
    %c0_28 = arith.constant 0 : index
    %c0_29 = arith.constant 0 : index
    %121 = vector.load %arg6[%c0_28, %c0_29] : memref<128x128xf32, #tpu.memory_space<vmem>>, vector<128x128xf32>
    %cst_30 = arith.constant dense<0.000000e+00> : vector<32x128xf32>
    %122 = tpu.matmul %120, %121, %cst_30 {dimension_numbers = #tpu.dot_dimension_numbers<[1], [0], [0], [1], [0, 0, 1, 1], [], []>} : vector<32x128xf32>, vector<128x128xf32>, vector<32x128xf32> -> vector<32x128xf32>
    %123 = arith.addf %3, %122 : vector<32x128xf32>
    %c0_31 = arith.constant 0 : index
    %c0_32 = arith.constant 0 : index
    %124 = vector.load %arg7[%c0_31, %c0_32] : memref<1x128xf32, #tpu.memory_space<vmem>>, vector<1x128xf32>
    %125 = arith.mulf %123, %123 : vector<32x128xf32>
    %cst_33 = arith.constant dense<0.000000e+00> : vector<32xf32>
    %126 = vector.multi_reduction <add>, %125, %cst_33 [1] : vector<32x128xf32> to vector<32xf32>
    %127 = vector.shape_cast %126 : vector<32xf32> to vector<32x1xf32>
    %cst_34 = arith.constant 1.280000e+02 : f32
    %128 = vector.broadcast %cst_34 : f32 to vector<32x1xf32>
    %129 = arith.divf %127, %128 : vector<32x1xf32>
    %cst_35 = arith.constant 9.99999997E-7 : f32
    %130 = vector.broadcast %cst_35 : f32 to vector<32x1xf32>
    %131 = arith.addf %129, %130 : vector<32x1xf32>
    %132 = math.rsqrt %131 : vector<32x1xf32>
    %133 = vector.broadcast %132 : vector<32x1xf32> to vector<32x128xf32>
    %134 = arith.mulf %123, %133 : vector<32x128xf32>
    %135 = vector.broadcast %124 : vector<1x128xf32> to vector<32x128xf32>
    %136 = arith.mulf %134, %135 : vector<32x128xf32>
    %c0_36 = arith.constant 0 : index
    %c0_37 = arith.constant 0 : index
    %137 = vector.load %arg8[%c0_36, %c0_37] : memref<128x512xf32, #tpu.memory_space<vmem>>, vector<128x512xf32>
    %cst_38 = arith.constant dense<0.000000e+00> : vector<32x512xf32>
    %138 = tpu.matmul %136, %137, %cst_38 {dimension_numbers = #tpu.dot_dimension_numbers<[1], [0], [0], [1], [0, 0, 1, 1], [], []>} : vector<32x128xf32>, vector<128x512xf32>, vector<32x512xf32> -> vector<32x512xf32>
    %139 = vector.extract_strided_slice %138 {offsets = [0, 0], sizes = [32, 256], strides = [1, 1]} : vector<32x512xf32> to vector<32x256xf32>
    %140 = vector.extract_strided_slice %138 {offsets = [0, 256], sizes = [32, 256], strides = [1, 1]} : vector<32x512xf32> to vector<32x256xf32>
    %141 = arith.negf %140 : vector<32x256xf32>
    %142 = math.exp %141 : vector<32x256xf32>
    %cst_39 = arith.constant 1.000000e+00 : f32
    %143 = vector.broadcast %cst_39 : f32 to vector<32x256xf32>
    %144 = arith.addf %143, %142 : vector<32x256xf32>
    %145 = arith.divf %143, %144 : vector<32x256xf32>
    %146 = arith.mulf %140, %145 : vector<32x256xf32>
    %147 = arith.mulf %139, %146 : vector<32x256xf32>
    %c0_40 = arith.constant 0 : index
    %c0_41 = arith.constant 0 : index
    %148 = vector.load %arg9[%c0_40, %c0_41] : memref<256x128xf32, #tpu.memory_space<vmem>>, vector<256x128xf32>
    %cst_42 = arith.constant dense<0.000000e+00> : vector<32x128xf32>
    %149 = tpu.matmul %147, %148, %cst_42 {dimension_numbers = #tpu.dot_dimension_numbers<[1], [0], [0], [1], [0, 0, 1, 1], [], []>} : vector<32x256xf32>, vector<256x128xf32>, vector<32x128xf32> -> vector<32x128xf32>
    %150 = arith.addf %123, %149 : vector<32x128xf32>
    %c0_43 = arith.constant 0 : index
    %c0_44 = arith.constant 0 : index
    %c0_45 = arith.constant 0 : index
    %151 = vector.load %arg12[%c0_43, %c0_44, %c0_45] : memref<1x32x128xf32, #tpu.memory_space<vmem>>, vector<1x32x128xf32>
    %152 = vector.shape_cast %151 : vector<1x32x128xf32> to vector<32x128xf32>
    %153 = vector.shape_cast %150 : vector<32x128xf32> to vector<1x32x128xf32>
    tpu.vector_store %arg12[%c0_43, %c0_44, %c0_45], %153 {strides = array<i32>} : memref<1x32x128xf32, #tpu.memory_space<vmem>>, vector<1x32x128xf32>,
    return
  }
  func.func @transform_0(%arg0: i32, %arg1: i32) -> (i32, i32, i32) {
    %c0_i32 = arith.constant 0 : i32
    %c0_i32_0 = arith.constant 0 : i32
    return %arg0, %arg1, %c0_i32 : i32, i32, i32
  }
  func.func @transform_1(%arg0: i32, %arg1: i32) -> (i32, i32) {
    %c0_i32 = arith.constant 0 : i32
    %c0_i32_0 = arith.constant 0 : i32
    %c0_i32_1 = arith.constant 0 : i32
    return %c0_i32, %c0_i32_0 : i32, i32
  }
  func.func @transform_2(%arg0: i32, %arg1: i32) -> (i32, i32) {
    %c0_i32 = arith.constant 0 : i32
    %c0_i32_0 = arith.constant 0 : i32
    %c0_i32_1 = arith.constant 0 : i32
    return %c0_i32, %c0_i32_0 : i32, i32
  }
  func.func @transform_3(%arg0: i32, %arg1: i32) -> (i32, i32) {
    %c0_i32 = arith.constant 0 : i32
    %c0_i32_0 = arith.constant 0 : i32
    %c0_i32_1 = arith.constant 0 : i32
    return %c0_i32, %c0_i32_0 : i32, i32
  }
  func.func @transform_4(%arg0: i32, %arg1: i32) -> (i32, i32) {
    %c0_i32 = arith.constant 0 : i32
    %c0_i32_0 = arith.constant 0 : i32
    %c0_i32_1 = arith.constant 0 : i32
    return %c0_i32, %c0_i32_0 : i32, i32
  }
  func.func @transform_5(%arg0: i32, %arg1: i32) -> (i32, i32) {
    %c0_i32 = arith.constant 0 : i32
    %c0_i32_0 = arith.constant 0 : i32
    %c0_i32_1 = arith.constant 0 : i32
    return %c0_i32, %c0_i32_0 : i32, i32
  }
  func.func @transform_6(%arg0: i32, %arg1: i32) -> (i32, i32) {
    %c0_i32 = arith.constant 0 : i32
    %c0_i32_0 = arith.constant 0 : i32
    %c0_i32_1 = arith.constant 0 : i32
    return %c0_i32, %c0_i32_0 : i32, i32
  }
  func.func @transform_7(%arg0: i32, %arg1: i32) -> (i32, i32) {
    %c0_i32 = arith.constant 0 : i32
    %c0_i32_0 = arith.constant 0 : i32
    %c0_i32_1 = arith.constant 0 : i32
    return %c0_i32, %c0_i32_0 : i32, i32
  }
  func.func @transform_8(%arg0: i32, %arg1: i32) -> (i32, i32) {
    %c0_i32 = arith.constant 0 : i32
    %c0_i32_0 = arith.constant 0 : i32
    return %arg1, %c0_i32 : i32, i32
  }
  func.func @transform_9(%arg0: i32, %arg1: i32) -> (i32, i32) {
    %c0_i32 = arith.constant 0 : i32
    %c0_i32_0 = arith.constant 0 : i32
    return %arg1, %c0_i32 : i32, i32
  }
  func.func @transform_10(%arg0: i32, %arg1: i32) -> (i32, i32, i32) {
    %c0_i32 = arith.constant 0 : i32
    %c0_i32_0 = arith.constant 0 : i32
    return %arg0, %arg1, %c0_i32 : i32, i32, i32
  }
}

module attributes {stable_mosaic.version = 11 : i64} {
  func.func @kernel(%arg0: i32, %arg1: i32, %arg2: memref<1x32x128xf32, #tpu.memory_space<vmem>>, %arg3: memref<1x128xf32, #tpu.memory_space<vmem>>, %arg4: memref<128x384xf32, #tpu.memory_space<vmem>>, %arg5: memref<1x384xf32, #tpu.memory_space<vmem>>, %arg6: memref<128x128xf32, #tpu.memory_space<vmem>>, %arg7: memref<1x128xf32, #tpu.memory_space<vmem>>, %arg8: memref<128x512xf32, #tpu.memory_space<vmem>>, %arg9: memref<256x128xf32, #tpu.memory_space<vmem>>, %arg10: memref<32x32xf32, #tpu.memory_space<vmem>>, %arg11: memref<32x32xf32, #tpu.memory_space<vmem>>, %arg12: memref<1x32x128xf32, #tpu.memory_space<vmem>>, %arg13: memref<4x64x32xf32, #tpu.memory_space<vmem>>, %arg14: memref<4x64x32xf32, #tpu.memory_space<vmem>>) attributes {dimension_semantics = [#tpu.dimension_semantics<parallel>, #tpu.dimension_semantics<arbitrary>], iteration_bounds = array<i64: 2, 2>, scalar_prefetch = 0 : i64, scratch_operands = 2 : i64, tpu.core_type = #tpu.core_type<tc>, window_params = [{transform_indices = @transform_0, window_bounds = array<i64: 1, 32, 128>}, {pipeline_mode = #tpu.pipeline_mode<synchronous>, transform_indices = @transform_1, window_bounds = array<i64: 1, 128>}, {pipeline_mode = #tpu.pipeline_mode<synchronous>, transform_indices = @transform_2, window_bounds = array<i64: 128, 384>}, {pipeline_mode = #tpu.pipeline_mode<synchronous>, transform_indices = @transform_3, window_bounds = array<i64: 1, 384>}, {pipeline_mode = #tpu.pipeline_mode<synchronous>, transform_indices = @transform_4, window_bounds = array<i64: 128, 128>}, {pipeline_mode = #tpu.pipeline_mode<synchronous>, transform_indices = @transform_5, window_bounds = array<i64: 1, 128>}, {pipeline_mode = #tpu.pipeline_mode<synchronous>, transform_indices = @transform_6, window_bounds = array<i64: 128, 512>}, {pipeline_mode = #tpu.pipeline_mode<synchronous>, transform_indices = @transform_7, window_bounds = array<i64: 256, 128>}, {transform_indices = @transform_8, window_bounds = array<i64: 32, 32>}, {transform_indices = @transform_9, window_bounds = array<i64: 32, 32>}, {transform_indices = @transform_10, window_bounds = array<i64: 1, 32, 128>}]} {
    %c32_i32 = arith.constant 32 : i32
    %0 = arith.muli %arg1, %c32_i32 : i32
    %1 = tpu.assume_multiple %0, 32 : i32
    %c0 = arith.constant 0 : index
    %c0_0 = arith.constant 0 : index
    %c0_1 = arith.constant 0 : index
    %2 = vector.load %arg2[%c0, %c0_0, %c0_1] : memref<1x32x128xf32, #tpu.memory_space<vmem>>, vector<1x32x128xf32>
    %3 = vector.shape_cast %2 : vector<1x32x128xf32> to vector<32x128xf32>
    %c0_2 = arith.constant 0 : index
    %c0_3 = arith.constant 0 : index
    %4 = vector.load %arg3[%c0_2, %c0_3] : memref<1x128xf32, #tpu.memory_space<vmem>>, vector<1x128xf32>
    %5 = arith.mulf %3, %3 : vector<32x128xf32>
    %cst = arith.constant dense<0.000000e+00> : vector<32xf32>
    %6 = vector.multi_reduction <add>, %5, %cst [1] : vector<32x128xf32> to vector<32xf32>
    %7 = vector.shape_cast %6 : vector<32xf32> to vector<32x1xf32>
    %cst_4 = arith.constant 1.280000e+02 : f32
    %8 = vector.broadcast %cst_4 : f32 to vector<32x1xf32>
    %9 = arith.divf %7, %8 : vector<32x1xf32>
    %cst_5 = arith.constant 9.99999997E-7 : f32
    %10 = vector.broadcast %cst_5 : f32 to vector<32x1xf32>
    %11 = arith.addf %9, %10 : vector<32x1xf32>
    %12 = math.rsqrt %11 : vector<32x1xf32>
    %13 = vector.broadcast %12 : vector<32x1xf32> to vector<32x128xf32>
    %14 = arith.mulf %3, %13 : vector<32x128xf32>
    %15 = vector.broadcast %4 : vector<1x128xf32> to vector<32x128xf32>
    %16 = arith.mulf %14, %15 : vector<32x128xf32>
    %c0_6 = arith.constant 0 : index
    %c0_7 = arith.constant 0 : index
    %17 = vector.load %arg4[%c0_6, %c0_7] : memref<128x384xf32, #tpu.memory_space<vmem>>, vector<128x384xf32>
    %cst_8 = arith.constant dense<0.000000e+00> : vector<32x384xf32>
    %18 = tpu.matmul %16, %17, %cst_8 {dimension_numbers = #tpu.dot_dimension_numbers<[1], [0], [0], [1], [0, 0, 1, 1], [], []>} : vector<32x128xf32>, vector<128x384xf32>, vector<32x384xf32> -> vector<32x384xf32>
    %c0_9 = arith.constant 0 : index
    %c0_10 = arith.constant 0 : index
    %19 = vector.load %arg5[%c0_9, %c0_10] : memref<1x384xf32, #tpu.memory_space<vmem>>, vector<1x384xf32>
    %20 = vector.broadcast %19 : vector<1x384xf32> to vector<32x384xf32>
    %21 = arith.addf %18, %20 : vector<32x384xf32>
    %c0_11 = arith.constant 0 : index
    %c0_12 = arith.constant 0 : index
    %22 = vector.load %arg10[%c0_11, %c0_12] : memref<32x32xf32, #tpu.memory_space<vmem>>, vector<32x32xf32>
    %23 = vector.shape_cast %22 : vector<32x32xf32> to vector<1x32x32xf32>
    %c0_13 = arith.constant 0 : index
    %c0_14 = arith.constant 0 : index
    %24 = vector.load %arg11[%c0_13, %c0_14] : memref<32x32xf32, #tpu.memory_space<vmem>>, vector<32x32xf32>
    %25 = vector.shape_cast %24 : vector<32x32xf32> to vector<1x32x32xf32>
    %26 = vector.extract_strided_slice %21 {offsets = [0, 0], sizes = [32, 128], strides = [1, 1]} : vector<32x384xf32> to vector<32x128xf32>
    %27 = vector.extract_strided_slice %26 {offsets = [0, 0], sizes = [32, 32], strides = [1, 1]} : vector<32x128xf32> to vector<32x32xf32>
    %28 = vector.extract_strided_slice %26 {offsets = [0, 32], sizes = [32, 32], strides = [1, 1]} : vector<32x128xf32> to vector<32x32xf32>
    %29 = vector.extract_strided_slice %26 {offsets = [0, 64], sizes = [32, 32], strides = [1, 1]} : vector<32x128xf32> to vector<32x32xf32>
    %30 = vector.extract_strided_slice %26 {offsets = [0, 96], sizes = [32, 32], strides = [1, 1]} : vector<32x128xf32> to vector<32x32xf32>
    %31 = vector.shape_cast %27 : vector<32x32xf32> to vector<1x32x32xf32>
    %32 = vector.shape_cast %28 : vector<32x32xf32> to vector<1x32x32xf32>
    %33 = vector.shape_cast %29 : vector<32x32xf32> to vector<1x32x32xf32>
    %34 = vector.shape_cast %30 : vector<32x32xf32> to vector<1x32x32xf32>
    %35 = tpu.concatenate %31, %32, %33, %34 in 0 : vector<1x32x32xf32>, vector<1x32x32xf32>, vector<1x32x32xf32>, vector<1x32x32xf32> -> vector<4x32x32xf32>
    %36 = vector.extract_strided_slice %35 {offsets = [0, 0, 16], sizes = [4, 32, 16], strides = [1, 1, 1]} : vector<4x32x32xf32> to vector<4x32x16xf32>
    %37 = vector.extract_strided_slice %35 {offsets = [0, 0, 0], sizes = [4, 32, 16], strides = [1, 1, 1]} : vector<4x32x32xf32> to vector<4x32x16xf32>
    %38 = tpu.concatenate %36, %37 in 2 : vector<4x32x16xf32>, vector<4x32x16xf32> -> vector<4x32x32xf32>
    %39 = vector.broadcast %23 : vector<1x32x32xf32> to vector<4x32x32xf32>
    %40 = arith.mulf %35, %39 : vector<4x32x32xf32>
    %41 = vector.broadcast %25 : vector<1x32x32xf32> to vector<4x32x32xf32>
    %42 = arith.mulf %38, %41 : vector<4x32x32xf32>
    %43 = arith.addf %40, %42 : vector<4x32x32xf32>
    %cst_15 = arith.constant 0.176776692 : f32
    %44 = vector.broadcast %cst_15 : f32 to vector<4x32x32xf32>
    %45 = arith.mulf %43, %44 : vector<4x32x32xf32>
    %46 = vector.extract_strided_slice %21 {offsets = [0, 128], sizes = [32, 128], strides = [1, 1]} : vector<32x384xf32> to vector<32x128xf32>
    %47 = vector.extract_strided_slice %46 {offsets = [0, 0], sizes = [32, 32], strides = [1, 1]} : vector<32x128xf32> to vector<32x32xf32>
    %48 = vector.extract_strided_slice %46 {offsets = [0, 32], sizes = [32, 32], strides = [1, 1]} : vector<32x128xf32> to vector<32x32xf32>
    %49 = vector.extract_strided_slice %46 {offsets = [0, 64], sizes = [32, 32], strides = [1, 1]} : vector<32x128xf32> to vector<32x32xf32>
    %50 = vector.extract_strided_slice %46 {offsets = [0, 96], sizes = [32, 32], strides = [1, 1]} : vector<32x128xf32> to vector<32x32xf32>
    %51 = vector.shape_cast %47 : vector<32x32xf32> to vector<1x32x32xf32>
    %52 = vector.shape_cast %48 : vector<32x32xf32> to vector<1x32x32xf32>
    %53 = vector.shape_cast %49 : vector<32x32xf32> to vector<1x32x32xf32>
    %54 = vector.shape_cast %50 : vector<32x32xf32> to vector<1x32x32xf32>
    %55 = tpu.concatenate %51, %52, %53, %54 in 0 : vector<1x32x32xf32>, vector<1x32x32xf32>, vector<1x32x32xf32>, vector<1x32x32xf32> -> vector<4x32x32xf32>
    %56 = vector.extract_strided_slice %55 {offsets = [0, 0, 16], sizes = [4, 32, 16], strides = [1, 1, 1]} : vector<4x32x32xf32> to vector<4x32x16xf32>
    %57 = vector.extract_strided_slice %55 {offsets = [0, 0, 0], sizes = [4, 32, 16], strides = [1, 1, 1]} : vector<4x32x32xf32> to vector<4x32x16xf32>
    %58 = tpu.concatenate %56, %57 in 2 : vector<4x32x16xf32>, vector<4x32x16xf32> -> vector<4x32x32xf32>
    %59 = vector.broadcast %23 : vector<1x32x32xf32> to vector<4x32x32xf32>
    %60 = arith.mulf %55, %59 : vector<4x32x32xf32>
    %61 = vector.broadcast %25 : vector<1x32x32xf32> to vector<4x32x32xf32>
    %62 = arith.mulf %58, %61 : vector<4x32x32xf32>
    %63 = arith.addf %60, %62 : vector<4x32x32xf32>
    %64 = vector.extract_strided_slice %21 {offsets = [0, 256], sizes = [32, 128], strides = [1, 1]} : vector<32x384xf32> to vector<32x128xf32>
    %65 = vector.extract_strided_slice %64 {offsets = [0, 0], sizes = [32, 32], strides = [1, 1]} : vector<32x128xf32> to vector<32x32xf32>
    %66 = vector.extract_strided_slice %64 {offsets = [0, 32], sizes = [32, 32], strides = [1, 1]} : vector<32x128xf32> to vector<32x32xf32>
    %67 = vector.extract_strided_slice %64 {offsets = [0, 64], sizes = [32, 32], strides = [1, 1]} : vector<32x128xf32> to vector<32x32xf32>
    %68 = vector.extract_strided_slice %64 {offsets = [0, 96], sizes = [32, 32], strides = [1, 1]} : vector<32x128xf32> to vector<32x32xf32>
    %69 = vector.shape_cast %65 : vector<32x32xf32> to vector<1x32x32xf32>
    %70 = vector.shape_cast %66 : vector<32x32xf32> to vector<1x32x32xf32>
    %71 = vector.shape_cast %67 : vector<32x32xf32> to vector<1x32x32xf32>
    %72 = vector.shape_cast %68 : vector<32x32xf32> to vector<1x32x32xf32>
    %73 = tpu.concatenate %69, %70, %71, %72 in 0 : vector<1x32x32xf32>, vector<1x32x32xf32>, vector<1x32x32xf32>, vector<1x32x32xf32> -> vector<4x32x32xf32>
    %c0_16 = arith.constant 0 : index
    %74 = arith.index_cast %1 : i32 to index
    %c0_17 = arith.constant 0 : index
    %75 = vector.load %arg13[%c0_16, %74, %c0_17] : memref<4x64x32xf32, #tpu.memory_space<vmem>>, vector<4x32x32xf32>
    tpu.vector_store %arg13[%c0_16, %74, %c0_17], %63 {strides = array<i32>} : memref<4x64x32xf32, #tpu.memory_space<vmem>>, vector<4x32x32xf32>,
    %c0_18 = arith.constant 0 : index
    %76 = arith.index_cast %1 : i32 to index
    %c0_19 = arith.constant 0 : index
    %77 = vector.load %arg14[%c0_18, %76, %c0_19] : memref<4x64x32xf32, #tpu.memory_space<vmem>>, vector<4x32x32xf32>
    tpu.vector_store %arg14[%c0_18, %76, %c0_19], %73 {strides = array<i32>} : memref<4x64x32xf32, #tpu.memory_space<vmem>>, vector<4x32x32xf32>,
    %cst_20 = arith.constant 0xFF800000 : f32
    %78 = vector.broadcast %cst_20 : f32 to vector<4x32x1xf32>
    %cst_21 = arith.constant 0.000000e+00 : f32
    %79 = vector.broadcast %cst_21 : f32 to vector<4x32x1xf32>
    %cst_22 = arith.constant 0.000000e+00 : f32
    %80 = vector.broadcast %cst_22 : f32 to vector<4x32x32xf32>
    %c0_i32 = arith.constant 0 : i32
    %81 = arith.subi %arg1, %c0_i32 : i32
    %82 = arith.addi %c0_i32, %81 : i32
    %c1_i32 = arith.constant 1 : i32
    %83:3 = scf.for %arg15 = %c0_i32 to %82 step %c1_i32 iter_args(%arg16 = %78, %arg17 = %79, %arg18 = %80) -> (vector<4x32x1xf32>, vector<4x32x1xf32>, vector<4x32x32xf32>)  : i32 {
      %c32_i32_46 = arith.constant 32 : i32
      %154 = arith.muli %arg15, %c32_i32_46 : i32
      %155 = tpu.assume_multiple %154, 32 : i32
      %c0_47 = arith.constant 0 : index
      %156 = arith.index_cast %155 : i32 to index
      %c0_48 = arith.constant 0 : index
      %157 = vector.load %arg13[%c0_47, %156, %c0_48] : memref<4x64x32xf32, #tpu.memory_space<vmem>>, vector<4x32x32xf32>
      %c0_49 = arith.constant 0 : index
      %158 = arith.index_cast %155 : i32 to index
      %c0_50 = arith.constant 0 : index
      %159 = vector.load %arg14[%c0_49, %158, %c0_50] : memref<4x64x32xf32, #tpu.memory_space<vmem>>, vector<4x32x32xf32>
      "tpu.trace_start"() <{level = 10 : i32, message = "hqd,hkd->hqk"}> : () -> ()
      %cst_51 = arith.constant dense<0.000000e+00> : vector<4x32x32xf32>
      %160 = tpu.matmul %45, %157, %cst_51 {dimension_numbers = #tpu.dot_dimension_numbers<[2], [2], [1], [1], [0, 0, 0, 1, 1, 1], [0], [0]>} : vector<4x32x32xf32>, vector<4x32x32xf32>, vector<4x32x32xf32> -> vector<4x32x32xf32>
      "tpu.trace_stop"() : () -> ()
      %cst_52 = arith.constant dense<0xFF800000> : vector<4x32xf32>
      %161 = vector.multi_reduction <maximumf>, %160, %cst_52 [2] : vector<4x32x32xf32> to vector<4x32xf32>
      %162 = vector.shape_cast %161 : vector<4x32xf32> to vector<4x32x1xf32>
      %163 = arith.maximumf %arg16, %162 : vector<4x32x1xf32>
      %164 = arith.subf %arg16, %163 : vector<4x32x1xf32>
      %165 = math.exp %164 : vector<4x32x1xf32>
      %166 = vector.broadcast %163 : vector<4x32x1xf32> to vector<4x32x32xf32>
      %167 = arith.subf %160, %166 : vector<4x32x32xf32>
      %168 = math.exp %167 : vector<4x32x32xf32>
      %169 = arith.mulf %165, %arg17 : vector<4x32x1xf32>
      %cst_53 = arith.constant dense<0.000000e+00> : vector<4x32xf32>
      %170 = vector.multi_reduction <add>, %168, %cst_53 [2] : vector<4x32x32xf32> to vector<4x32xf32>
      %171 = vector.shape_cast %170 : vector<4x32xf32> to vector<4x32x1xf32>
      %172 = arith.addf %169, %171 : vector<4x32x1xf32>
      %173 = vector.broadcast %165 : vector<4x32x1xf32> to vector<4x32x32xf32>
      %174 = arith.mulf %173, %arg18 : vector<4x32x32xf32>
      "tpu.trace_start"() <{level = 10 : i32, message = "hqk,hkd->hqd"}> : () -> ()
      %cst_54 = arith.constant dense<0.000000e+00> : vector<4x32x32xf32>
      %175 = tpu.matmul %168, %159, %cst_54 {dimension_numbers = #tpu.dot_dimension_numbers<[2], [1], [1], [2], [0, 0, 0, 1, 1, 2], [0], [0]>} : vector<4x32x32xf32>, vector<4x32x32xf32>, vector<4x32x32xf32> -> vector<4x32x32xf32>
      "tpu.trace_stop"() : () -> ()
      %176 = arith.addf %174, %175 : vector<4x32x32xf32>
      scf.yield %163, %172, %176 : vector<4x32x1xf32>, vector<4x32x1xf32>, vector<4x32x32xf32>
    }
    %84 = tpu.iota {dimensions = array<i32: 1>} : vector<32x32xi32>
    %85 = tpu.iota {dimensions = array<i32: 0>} : vector<32x32xi32>
    %86 = arith.cmpi sle, %84, %85 : vector<32x32xi32>
    "tpu.trace_start"() <{level = 10 : i32, message = "hqd,hkd->hqk"}> : () -> ()
    %cst_23 = arith.constant dense<0.000000e+00> : vector<4x32x32xf32>
    %87 = tpu.matmul %45, %63, %cst_23 {dimension_numbers = #tpu.dot_dimension_numbers<[2], [2], [1], [1], [0, 0, 0, 1, 1, 1], [0], [0]>} : vector<4x32x32xf32>, vector<4x32x32xf32>, vector<4x32x32xf32> -> vector<4x32x32xf32>
    "tpu.trace_stop"() : () -> ()
    %88 = vector.shape_cast %86 : vector<32x32xi1> to vector<1x32x32xi1>
    %cst_24 = arith.constant -1.000000e+30 : f32
    %89 = vector.shape_cast %88 : vector<1x32x32xi1> to vector<1x32x32xi1>
    %90 = vector.broadcast %89 : vector<1x32x32xi1> to vector<4x32x32xi1>
    %91 = vector.broadcast %cst_24 : f32 to vector<4x32x32xf32>
    %92 = arith.select %90, %87, %91 : vector<4x32x32xi1>, vector<4x32x32xf32>
    %cst_25 = arith.constant dense<0xFF800000> : vector<4x32xf32>
    %93 = vector.multi_reduction <maximumf>, %92, %cst_25 [2] : vector<4x32x32xf32> to vector<4x32xf32>
    %94 = vector.shape_cast %93 : vector<4x32xf32> to vector<4x32x1xf32>
    %95 = arith.maximumf %83#0, %94 : vector<4x32x1xf32>
    %96 = arith.subf %83#0, %95 : vector<4x32x1xf32>
    %97 = math.exp %96 : vector<4x32x1xf32>
    %98 = vector.broadcast %95 : vector<4x32x1xf32> to vector<4x32x32xf32>
    %99 = arith.subf %92, %98 : vector<4x32x32xf32>
    %100 = math.exp %99 : vector<4x32x32xf32>
    %101 = arith.mulf %97, %83#1 : vector<4x32x1xf32>
    %cst_26 = arith.constant dense<0.000000e+00> : vector<4x32xf32>
    %102 = vector.multi_reduction <add>, %100, %cst_26 [2] : vector<4x32x32xf32> to vector<4x32xf32>
    %103 = vector.shape_cast %102 : vector<4x32xf32> to vector<4x32x1xf32>
    %104 = arith.addf %101, %103 : vector<4x32x1xf32>
    %105 = vector.broadcast %97 : vector<4x32x1xf32> to vector<4x32x32xf32>
    %106 = arith.mulf %105, %83#2 : vector<4x32x32xf32>
    "tpu.trace_start"() <{level = 10 : i32, message = "hqk,hkd->hqd"}> : () -> ()
    %cst_27 = arith.constant dense<0.000000e+00> : vector<4x32x32xf32>
    %107 = tpu.matmul %100, %73, %cst_27 {dimension_numbers = #tpu.dot_dimension_numbers<[2], [1], [1], [2], [0, 0, 0, 1, 1, 2], [0], [0]>} : vector<4x32x32xf32>, vector<4x32x32xf32>, vector<4x32x32xf32> -> vector<4x32x32xf32>
    "tpu.trace_stop"() : () -> ()
    %108 = arith.addf %106, %107 : vector<4x32x32xf32>
    %109 = tpu.reciprocal %104 {approx = true} : vector<4x32x1xf32> -> vector<4x32x1xf32>
    %110 = vector.broadcast %109 : vector<4x32x1xf32> to vector<4x32x32xf32>
    %111 = arith.mulf %108, %110 : vector<4x32x32xf32>
    %112 = vector.extract_strided_slice %111 {offsets = [0, 0, 0], sizes = [1, 32, 32], strides = [1, 1, 1]} : vector<4x32x32xf32> to vector<1x32x32xf32>
    %113 = vector.shape_cast %112 : vector<1x32x32xf32> to vector<32x32xf32>
    %114 = vector.extract_strided_slice %111 {offsets = [1, 0, 0], sizes = [1, 32, 32], strides = [1, 1, 1]} : vector<4x32x32xf32> to vector<1x32x32xf32>
    %115 = vector.shape_cast %114 : vector<1x32x32xf32> to vector<32x32xf32>
    %116 = vector.extract_strided_slice %111 {offsets = [2, 0, 0], sizes = [1, 32, 32], strides = [1, 1, 1]} : vector<4x32x32xf32> to vector<1x32x32xf32>
    %117 = vector.shape_cast %116 : vector<1x32x32xf32> to vector<32x32xf32>
    %118 = vector.extract_strided_slice %111 {offsets = [3, 0, 0], sizes = [1, 32, 32], strides = [1, 1, 1]} : vector<4x32x32xf32> to vector<1x32x32xf32>
    %119 = vector.shape_cast %118 : vector<1x32x32xf32> to vector<32x32xf32>
    %120 = tpu.concatenate %113, %115, %117, %119 in 1 : vector<32x32xf32>, vector<32x32xf32>, vector<32x32xf32>, vector<32x32xf32> -> vector<32x128xf32>
    %c0_28 = arith.constant 0 : index
    %c0_29 = arith.constant 0 : index
    %121 = vector.load %arg6[%c0_28, %c0_29] : memref<128x128xf32, #tpu.memory_space<vmem>>, vector<128x128xf32>
    %cst_30 = arith.constant dense<0.000000e+00> : vector<32x128xf32>
    %122 = tpu.matmul %120, %121, %cst_30 {dimension_numbers = #tpu.dot_dimension_numbers<[1], [0], [0], [1], [0, 0, 1, 1], [], []>} : vector<32x128xf32>, vector<128x128xf32>, vector<32x128xf32> -> vector<32x128xf32>
    %123 = arith.addf %3, %122 : vector<32x128xf32>
    %c0_31 = arith.constant 0 : index
    %c0_32 = arith.constant 0 : index
    %124 = vector.load %arg7[%c0_31, %c0_32] : memref<1x128xf32, #tpu.memory_space<vmem>>, vector<1x128xf32>
    %125 = arith.mulf %123, %123 : vector<32x128xf32>
    %cst_33 = arith.constant dense<0.000000e+00> : vector<32xf32>
    %126 = vector.multi_reduction <add>, %125, %cst_33 [1] : vector<32x128xf32> to vector<32xf32>
    %127 = vector.shape_cast %126 : vector<32xf32> to vector<32x1xf32>
    %cst_34 = arith.constant 1.280000e+02 : f32
    %128 = vector.broadcast %cst_34 : f32 to vector<32x1xf32>
    %129 = arith.divf %127, %128 : vector<32x1xf32>
    %cst_35 = arith.constant 9.99999997E-7 : f32
    %130 = vector.broadcast %cst_35 : f32 to vector<32x1xf32>
    %131 = arith.addf %129, %130 : vector<32x1xf32>
    %132 = math.rsqrt %131 : vector<32x1xf32>
    %133 = vector.broadcast %132 : vector<32x1xf32> to vector<32x128xf32>
    %134 = arith.mulf %123, %133 : vector<32x128xf32>
    %135 = vector.broadcast %124 : vector<1x128xf32> to vector<32x128xf32>
    %136 = arith.mulf %134, %135 : vector<32x128xf32>
    %c0_36 = arith.constant 0 : index
    %c0_37 = arith.constant 0 : index
    %137 = vector.load %arg8[%c0_36, %c0_37] : memref<128x512xf32, #tpu.memory_space<vmem>>, vector<128x512xf32>
    %cst_38 = arith.constant dense<0.000000e+00> : vector<32x512xf32>
    %138 = tpu.matmul %136, %137, %cst_38 {dimension_numbers = #tpu.dot_dimension_numbers<[1], [0], [0], [1], [0, 0, 1, 1], [], []>} : vector<32x128xf32>, vector<128x512xf32>, vector<32x512xf32> -> vector<32x512xf32>
    %139 = vector.extract_strided_slice %138 {offsets = [0, 0], sizes = [32, 256], strides = [1, 1]} : vector<32x512xf32> to vector<32x256xf32>
    %140 = vector.extract_strided_slice %138 {offsets = [0, 256], sizes = [32, 256], strides = [1, 1]} : vector<32x512xf32> to vector<32x256xf32>
    %141 = arith.negf %140 : vector<32x256xf32>
    %142 = math.exp %141 : vector<32x256xf32>
    %cst_39 = arith.constant 1.000000e+00 : f32
    %143 = vector.broadcast %cst_39 : f32 to vector<32x256xf32>
    %144 = arith.addf %143, %142 : vector<32x256xf32>
    %145 = arith.divf %143, %144 : vector<32x256xf32>
    %146 = arith.mulf %140, %145 : vector<32x256xf32>
    %147 = arith.mulf %139, %146 : vector<32x256xf32>
    %c0_40 = arith.constant 0 : index
    %c0_41 = arith.constant 0 : index
    %148 = vector.load %arg9[%c0_40, %c0_41] : memref<256x128xf32, #tpu.memory_space<vmem>>, vector<256x128xf32>
    %cst_42 = arith.constant dense<0.000000e+00> : vector<32x128xf32>
    %149 = tpu.matmul %147, %148, %cst_42 {dimension_numbers = #tpu.dot_dimension_numbers<[1], [0], [0], [1], [0, 0, 1, 1], [], []>} : vector<32x256xf32>, vector<256x128xf32>, vector<32x128xf32> -> vector<32x128xf32>
    %150 = arith.addf %123, %149 : vector<32x128xf32>
    %c0_43 = arith.constant 0 : index
    %c0_44 = arith.constant 0 : index
    %c0_45 = arith.constant 0 : index
    %151 = vector.load %arg12[%c0_43, %c0_44, %c0_45] : memref<1x32x128xf32, #tpu.memory_space<vmem>>, vector<1x32x128xf32>
    %152 = vector.shape_cast %151 : vector<1x32x128xf32> to vector<32x128xf32>
    %153 = vector.shape_cast %150 : vector<32x128xf32> to vector<1x32x128xf32>
    tpu.vector_store %arg12[%c0_43, %c0_44, %c0_45], %153 {strides = array<i32>} : memref<1x32x128xf32, #tpu.memory_space<vmem>>, vector<1x32x128xf32>,
    return
  }
  func.func @transform_0(%arg0: i32, %arg1: i32) -> (i32, i32, i32) {
    %c0_i32 = arith.constant 0 : i32
    %c0_i32_0 = arith.constant 0 : i32
    return %arg0, %arg1, %c0_i32 : i32, i32, i32
  }
  func.func @transform_1(%arg0: i32, %arg1: i32) -> (i32, i32) {
    %c0_i32 = arith.constant 0 : i32
    %c0_i32_0 = arith.constant 0 : i32
    %c0_i32_1 = arith.constant 0 : i32
    return %c0_i32, %c0_i32_0 : i32, i32
  }
  func.func @transform_2(%arg0: i32, %arg1: i32) -> (i32, i32) {
    %c0_i32 = arith.constant 0 : i32
    %c0_i32_0 = arith.constant 0 : i32
    %c0_i32_1 = arith.constant 0 : i32
    return %c0_i32, %c0_i32_0 : i32, i32
  }
  func.func @transform_3(%arg0: i32, %arg1: i32) -> (i32, i32) {
    %c0_i32 = arith.constant 0 : i32
    %c0_i32_0 = arith.constant 0 : i32
    %c0_i32_1 = arith.constant 0 : i32
    return %c0_i32, %c0_i32_0 : i32, i32
  }
  func.func @transform_4(%arg0: i32, %arg1: i32) -> (i32, i32) {
    %c0_i32 = arith.constant 0 : i32
    %c0_i32_0 = arith.constant 0 : i32
    %c0_i32_1 = arith.constant 0 : i32
    return %c0_i32, %c0_i32_0 : i32, i32
  }
  func.func @transform_5(%arg0: i32, %arg1: i32) -> (i32, i32) {
    %c0_i32 = arith.constant 0 : i32
    %c0_i32_0 = arith.constant 0 : i32
    %c0_i32_1 = arith.constant 0 : i32
    return %c0_i32, %c0_i32_0 : i32, i32
  }
  func.func @transform_6(%arg0: i32, %arg1: i32) -> (i32, i32) {
    %c0_i32 = arith.constant 0 : i32
    %c0_i32_0 = arith.constant 0 : i32
    %c0_i32_1 = arith.constant 0 : i32
    return %c0_i32, %c0_i32_0 : i32, i32
  }
  func.func @transform_7(%arg0: i32, %arg1: i32) -> (i32, i32) {
    %c0_i32 = arith.constant 0 : i32
    %c0_i32_0 = arith.constant 0 : i32
    %c0_i32_1 = arith.constant 0 : i32
    return %c0_i32, %c0_i32_0 : i32, i32
  }
  func.func @transform_8(%arg0: i32, %arg1: i32) -> (i32, i32) {
    %c0_i32 = arith.constant 0 : i32
    %c0_i32_0 = arith.constant 0 : i32
    return %arg1, %c0_i32 : i32, i32
  }
  func.func @transform_9(%arg0: i32, %arg1: i32) -> (i32, i32) {
    %c0_i32 = arith.constant 0 : i32
    %c0_i32_0 = arith.constant 0 : i32
    return %arg1, %c0_i32 : i32, i32
  }
  func.func @transform_10(%arg0: i32, %arg1: i32) -> (i32, i32, i32) {
    %c0_i32 = arith.constant 0 : i32
    %c0_i32_0 = arith.constant 0 : i32
    return %arg0, %arg1, %c0_i32 : i32, i32, i32
  }
}

</mosaic_0001>

<llo_original>
// kernel: tpu_custom_call.1
$region0: #{tpu_custom_call.1}
  #allocation0 [shape = 'u32[]', space=smem, size = 0x4, offset = 0x4, fixed_abs, tag = 'smem constant byte address 0x4 - core index']
  #allocation1 [shape = 'u32[144,128]{1,0:T(1,128)}', space=vmem, size = 0x12000, scoped, tag = 'internal scratch']
  #allocation2 [shape = 'f32[4,64,32]{2,1,0:T(8,128)}', space=vmem, size = 0x20000, scoped, tag = 'scratch operand']
  #allocation3 [shape = 'f32[4,64,32]{2,1,0:T(8,128)}', space=vmem, size = 0x20000, scoped, tag = 'scratch operand']
  %s0 = inlined_call_operand.vmem [shape: f32[2,64,128], index: 0, kind: input, shape index: {}]
  %s1 = inlined_call_operand.vmem [shape: f32[1,128], index: 1, kind: input, shape index: {}]
  %s2 = inlined_call_operand.hbm [shape: f32[128,384], index: 2, kind: input, shape index: {}]
  %s3 = inlined_call_operand.vmem [shape: f32[1,384], index: 3, kind: input, shape index: {}]
  %s4 = inlined_call_operand.hbm [shape: f32[128,128], index: 4, kind: input, shape index: {}]
  %s5 = inlined_call_operand.vmem [shape: f32[1,128], index: 5, kind: input, shape index: {}]
  %s6 = inlined_call_operand.hbm [shape: f32[128,512], index: 6, kind: input, shape index: {}]
  %s7 = inlined_call_operand.hbm [shape: f32[256,128], index: 7, kind: input, shape index: {}]
  %s8 = inlined_call_operand.vmem [shape: f32[64,32], index: 8, kind: input, shape index: {}]
  %s9 = inlined_call_operand.vmem [shape: f32[64,32], index: 9, kind: input, shape index: {}]
  %s10 = inlined_call_operand.hbm [shape: f32[2,64,128], index: 10, kind: output, shape index: {}]
  %s11 = sld [smem:[#allocation0]]
  $region96: #{tpu_custom_call.1} parent=0
    _
  %s13 = ssub.s32 1, %s11
  %s14 = scalar_select 0, %s13, %s11
  $region1: #{tpu_custom_call.1} parent=0
    #allocation4 [shape = 'u8[196608]{0}', space=vmem, size = 0x30000, scoped, tag = 'input window, operand 2, single buffered']
    #allocation5 [shape = 's32[2]{0}', space=sflag, size = 0x8, scoped, tag = 'scoped memory for tpu_custom_call.1']
    #allocation6 [shape = 's32[2]{0}', space=sflag, size = 0x8, scoped, tag = 'scoped memory for tpu_custom_call.1']
    #allocation7 [shape = 'u8[65536]{0}', space=vmem, size = 0x10000, scoped, tag = 'input window, operand 4, single buffered']
    #allocation8 [shape = 's32[1]{0}', space=sflag, size = 0x4, scoped, tag = 'scoped memory for tpu_custom_call.1']
    #allocation9 [shape = 'u8[262144]{0}', space=vmem, size = 0x40000, scoped, tag = 'input window, operand 6, single buffered']
    #allocation10 [shape = 'u8[131072]{0}', space=vmem, size = 0x20000, scoped, tag = 'input window, operand 7, single buffered']
    #allocation11 [shape = 's32[1]{0}', space=sflag, size = 0x4, scoped, tag = 'scoped memory for tpu_custom_call.1']
    #allocation12 [shape = 'u8[32768]{0}', space=vmem, size = 0x8000, scoped, tag = 'output window, operand 0']
    %15 = vsyncpa [#allocation5], 0
    %16 = vsyncpa [#allocation8], 0
    %17 = vsyncpa [#allocation11], 0
    %18 = vsyncpa [#allocation6], 0
    %s19 = scalar_lea.sflag [#allocation6], 1
    %20 = vsyncpa %s19, 0
    loop: start=0, step=1, limit=6
    $region2: #{tpu_custom_call.1} parent=1 // loop_pre_header
      _
    $region3: #{tpu_custom_call.1} parent=1 // loop_header
      %s22 = sphi 0, %s26
      %p23 = scmp.ge.s32.totalorder %s22, 6
      %s29 = sphi 0, %s41
      %s30 = sphi 0, %s37
      %s31 = sphi 0, %s29
      %s32 = sphi 0, %s30
      %s33 = sphi 0, %s31
      %s34 = sphi 0, %s32
      %s46 = sphi 0, %s48
      %s49 = sphi 0, %s46
      %s50 = sphi 0, %s49
      %s66 = sphi 0, %s50
      %s70 = sphi 0, %s70
      %s72 = sphi 0, %s70
      %s73 = sphi 0, %s72
      %s87 = sphi 0, %s73
      %s91 = sphi 0, %s91
      %s93 = sphi 0, %s91
      %s94 = sphi 0, %s93
      %s108 = sphi 0, %s94
      %s112 = sphi 0, %s112
      %s114 = sphi 0, %s112
      %s115 = sphi 0, %s114
      %s129 = sphi 0, %s115
      %s133 = sphi 0, %s133
      %s135 = sphi 0, %s133
      %s136 = sphi 0, %s135
      %s150 = sphi 0, %s136
      %s154 = sphi 0, %s154
      %s156 = sphi 0, %s154
      %s157 = sphi 0, %s156
      %s171 = sphi 0, %s157
      %s175 = sphi 0, %s175
      %s177 = sphi 0, %s175
      %s178 = sphi 0, %s177
      %s192 = sphi 0, %s178
      %s196 = sphi 0, %s196
      %s198 = sphi 0, %s196
      %s199 = sphi 0, %s198
      %s213 = sphi 0, %s199
      %s219 = sphi 0, %s221
      %s222 = sphi 0, %s219
      %s223 = sphi 0, %s222
      %s239 = sphi 0, %s223
      %s245 = sphi 0, %s247
      %s248 = sphi 0, %s245
      %s249 = sphi 0, %s248
      %s265 = sphi 0, %s249
      %s273 = sphi 0, %s275
      %s276 = sphi 0, %s273
      %s277 = sphi 0, %s276
      %s293 = sphi 0, %s277
    $region4: #{tpu_custom_call.1} parent=1 // loop_header_branch
      %25 = sbr.rel (%p23) target = $region8
    $region5: #{tpu_custom_call.1} parent=1 // loop_body
      %s27 = ssub.s32 %s22, 1
      %s28 = ssub.s32 %s22, 2
      %s35 = sadd.s32 1, %s30
      %p36 = scmp.ge.s32.totalorder %s35, 2
      %s37 = scalar_select %p36, 0, %s35
      %s38 = sadd.s32 1, %s29
      %s39 = scalar_select %p36, %s38, %s29
      %p40 = scmp.ge.s32.totalorder %s39, 2
      %s41 = scalar_select %p40, 0, %s39
      %s42 = ssub.s32 %s29, %s41
      %s43 = ssub.s32 %s30, %s37
      %s44 = sor.u32 %s42, %s43
      %p45 = scmp.eq.s32.totalorder %s44, 0
      %s47 = sadd.s32 %s46, 1
      %s48 = scalar_select %p45, %s46, %s47
      %p51 = pneg %p45
      %p52 = scmp.eq.s32.totalorder %s22, 3
      %p53 = por %p51, %p52
      %p54 = scmp.ne.s32.totalorder %s46, %s49
      %p55 = scmp.eq.s32.totalorder %s22, 0
      %p56 = por %p54, %p55
      %p57 = scmp.ne.s32.totalorder %s46, %s49
      %p58 = scmp.eq.s32.totalorder %s27, 3
      %p59 = por %p57, %p58
      %p60 = scmp.ne.s32.totalorder %s49, %s50
      %p61 = scmp.eq.s32.totalorder %s27, 0
      %p62 = por %p60, %p61
      %p63 = scmp.ne.s32.totalorder %s49, %s50
      %p64 = scmp.eq.s32.totalorder %s28, 3
      %p65 = por %p63, %p64
      %p67 = scmp.ne.s32.totalorder %s50, %s66
      %p68 = scmp.eq.s32.totalorder %s28, 0
      %p69 = por %p67, %p68
      %s71 = sadd.s32 %s70, 1
      %p74 = scmp.eq.s32.totalorder %s22, 3
      %p75 = scmp.ne.s32.totalorder %s70, %s72
      %p76 = scmp.eq.s32.totalorder %s22, 0
      %p77 = por %p75, %p76
      %p78 = scmp.ne.s32.totalorder %s70, %s72
      %p79 = scmp.eq.s32.totalorder %s27, 3
      %p80 = por %p78, %p79
      %p81 = scmp.ne.s32.totalorder %s72, %s73
      %p82 = scmp.eq.s32.totalorder %s27, 0
      %p83 = por %p81, %p82
      %p84 = scmp.ne.s32.totalorder %s72, %s73
      %p85 = scmp.eq.s32.totalorder %s28, 3
      %p86 = por %p84, %p85
      %p88 = scmp.ne.s32.totalorder %s73, %s87
      %p89 = scmp.eq.s32.totalorder %s28, 0
      %p90 = por %p88, %p89
      %s92 = sadd.s32 %s91, 1
      %p95 = scmp.eq.s32.totalorder %s22, 3
      %p96 = scmp.ne.s32.totalorder %s91, %s93
      %p97 = scmp.eq.s32.totalorder %s22, 0
      %p98 = por %p96, %p97
      %p99 = scmp.ne.s32.totalorder %s91, %s93
      %p100 = scmp.eq.s32.totalorder %s27, 3
      %p101 = por %p99, %p100
      %p102 = scmp.ne.s32.totalorder %s93, %s94
      %p103 = scmp.eq.s32.totalorder %s27, 0
      %p104 = por %p102, %p103
      %p105 = scmp.ne.s32.totalorder %s93, %s94
      %p106 = scmp.eq.s32.totalorder %s28, 3
      %p107 = por %p105, %p106
      %p109 = scmp.ne.s32.totalorder %s94, %s108
      %p110 = scmp.eq.s32.totalorder %s28, 0
      %p111 = por %p109, %p110
      %s113 = sadd.s32 %s112, 1
      %p116 = scmp.eq.s32.totalorder %s22, 3
      %p117 = scmp.ne.s32.totalorder %s112, %s114
      %p118 = scmp.eq.s32.totalorder %s22, 0
      %p119 = por %p117, %p118
      %p120 = scmp.ne.s32.totalorder %s112, %s114
      %p121 = scmp.eq.s32.totalorder %s27, 3
      %p122 = por %p120, %p121
      %p123 = scmp.ne.s32.totalorder %s114, %s115
      %p124 = scmp.eq.s32.totalorder %s27, 0
      %p125 = por %p123, %p124
      %p126 = scmp.ne.s32.totalorder %s114, %s115
      %p127 = scmp.eq.s32.totalorder %s28, 3
      %p128 = por %p126, %p127
      %p130 = scmp.ne.s32.totalorder %s115, %s129
      %p131 = scmp.eq.s32.totalorder %s28, 0
      %p132 = por %p130, %p131
      %s134 = sadd.s32 %s133, 1
      %p137 = scmp.eq.s32.totalorder %s22, 3
      %p138 = scmp.ne.s32.totalorder %s133, %s135
      %p139 = scmp.eq.s32.totalorder %s22, 0
      %p140 = por %p138, %p139
      %p141 = scmp.ne.s32.totalorder %s133, %s135
      %p142 = scmp.eq.s32.totalorder %s27, 3
      %p143 = por %p141, %p142
      %p144 = scmp.ne.s32.totalorder %s135, %s136
      %p145 = scmp.eq.s32.totalorder %s27, 0
      %p146 = por %p144, %p145
      %p147 = scmp.ne.s32.totalorder %s135, %s136
      %p148 = scmp.eq.s32.totalorder %s28, 3
      %p149 = por %p147, %p148
      %p151 = scmp.ne.s32.totalorder %s136, %s150
      %p152 = scmp.eq.s32.totalorder %s28, 0
      %p153 = por %p151, %p152
      %s155 = sadd.s32 %s154, 1
      %p158 = scmp.eq.s32.totalorder %s22, 3
      %p159 = scmp.ne.s32.totalorder %s154, %s156
      %p160 = scmp.eq.s32.totalorder %s22, 0
      %p161 = por %p159, %p160
      %p162 = scmp.ne.s32.totalorder %s154, %s156
      %p163 = scmp.eq.s32.totalorder %s27, 3
      %p164 = por %p162, %p163
      %p165 = scmp.ne.s32.totalorder %s156, %s157
      %p166 = scmp.eq.s32.totalorder %s27, 0
      %p167 = por %p165, %p166
      %p168 = scmp.ne.s32.totalorder %s156, %s157
      %p169 = scmp.eq.s32.totalorder %s28, 3
      %p170 = por %p168, %p169
      %p172 = scmp.ne.s32.totalorder %s157, %s171
      %p173 = scmp.eq.s32.totalorder %s28, 0
      %p174 = por %p172, %p173
      %s176 = sadd.s32 %s175, 1
      %p179 = scmp.eq.s32.totalorder %s22, 3
      %p180 = scmp.ne.s32.totalorder %s175, %s177
      %p181 = scmp.eq.s32.totalorder %s22, 0
      %p182 = por %p180, %p181
      %p183 = scmp.ne.s32.totalorder %s175, %s177
      %p184 = scmp.eq.s32.totalorder %s27, 3
      %p185 = por %p183, %p184
      %p186 = scmp.ne.s32.totalorder %s177, %s178
      %p187 = scmp.eq.s32.totalorder %s27, 0
      %p188 = por %p186, %p187
      %p189 = scmp.ne.s32.totalorder %s177, %s178
      %p190 = scmp.eq.s32.totalorder %s28, 3
      %p191 = por %p189, %p190
      %p193 = scmp.ne.s32.totalorder %s178, %s192
      %p194 = scmp.eq.s32.totalorder %s28, 0
      %p195 = por %p193, %p194
      %s197 = sadd.s32 %s196, 1
      %p200 = scmp.eq.s32.totalorder %s22, 3
      %p201 = scmp.ne.s32.totalorder %s196, %s198
      %p202 = scmp.eq.s32.totalorder %s22, 0
      %p203 = por %p201, %p202
      %p204 = scmp.ne.s32.totalorder %s196, %s198
      %p205 = scmp.eq.s32.totalorder %s27, 3
      %p206 = por %p204, %p205
      %p207 = scmp.ne.s32.totalorder %s198, %s199
      %p208 = scmp.eq.s32.totalorder %s27, 0
      %p209 = por %p207, %p208
      %p210 = scmp.ne.s32.totalorder %s198, %s199
      %p211 = scmp.eq.s32.totalorder %s28, 3
      %p212 = por %p210, %p211
      %p214 = scmp.ne.s32.totalorder %s199, %s213
      %p215 = scmp.eq.s32.totalorder %s28, 0
      %p216 = por %p214, %p215
      %s217 = ssub.s32 %s30, %s37
      %p218 = scmp.eq.s32.totalorder %s217, 0
      %s220 = sadd.s32 %s219, 1
      %s221 = scalar_select %p218, %s219, %s220
      %p224 = pneg %p218
      %p225 = scmp.eq.s32.totalorder %s22, 3
      %p226 = por %p224, %p225
      %p227 = scmp.ne.s32.totalorder %s219, %s222
      %p228 = scmp.eq.s32.totalorder %s22, 0
      %p229 = por %p227, %p228
      %p230 = scmp.ne.s32.totalorder %s219, %s222
      %p231 = scmp.eq.s32.totalorder %s27, 3
      %p232 = por %p230, %p231
      %p233 = scmp.ne.s32.totalorder %s222, %s223
      %p234 = scmp.eq.s32.totalorder %s27, 0
      %p235 = por %p233, %p234
      %p236 = scmp.ne.s32.totalorder %s222, %s223
      %p237 = scmp.eq.s32.totalorder %s28, 3
      %p238 = por %p236, %p237
      %p240 = scmp.ne.s32.totalorder %s223, %s239
      %p241 = scmp.eq.s32.totalorder %s28, 0
      %p242 = por %p240, %p241
      %s243 = ssub.s32 %s30, %s37
      %p244 = scmp.eq.s32.totalorder %s243, 0
      %s246 = sadd.s32 %s245, 1
      %s247 = scalar_select %p244, %s245, %s246
      %p250 = pneg %p244
      %p251 = scmp.eq.s32.totalorder %s22, 3
      %p252 = por %p250, %p251
      %p253 = scmp.ne.s32.totalorder %s245, %s248
      %p254 = scmp.eq.s32.totalorder %s22, 0
      %p255 = por %p253, %p254
      %p256 = scmp.ne.s32.totalorder %s245, %s248
      %p257 = scmp.eq.s32.totalorder %s27, 3
      %p258 = por %p256, %p257
      %p259 = scmp.ne.s32.totalorder %s248, %s249
      %p260 = scmp.eq.s32.totalorder %s27, 0
      %p261 = por %p259, %p260
      %p262 = scmp.ne.s32.totalorder %s248, %s249
      %p263 = scmp.eq.s32.totalorder %s28, 3
      %p264 = por %p262, %p263
      %p266 = scmp.ne.s32.totalorder %s249, %s265
      %p267 = scmp.eq.s32.totalorder %s28, 0
      %p268 = por %p266, %p267
      %s269 = ssub.s32 %s29, %s41
      %s270 = ssub.s32 %s30, %s37
      %s271 = sor.u32 %s269, %s270
      %p272 = scmp.eq.s32.totalorder %s271, 0
      %s274 = sadd.s32 %s273, 1
      %s275 = scalar_select %p272, %s273, %s274
      %p278 = pneg %p272
      %p279 = scmp.eq.s32.totalorder %s22, 3
      %p280 = por %p278, %p279
      %p281 = scmp.ne.s32.totalorder %s273, %s276
      %p282 = scmp.eq.s32.totalorder %s22, 0
      %p283 = por %p281, %p282
      %p284 = scmp.ne.s32.totalorder %s273, %s276
      %p285 = scmp.eq.s32.totalorder %s27, 3
      %p286 = por %p284, %p285
      %p287 = scmp.ne.s32.totalorder %s276, %s277
      %p288 = scmp.eq.s32.totalorder %s27, 0
      %p289 = por %p287, %p288
      %p290 = scmp.ne.s32.totalorder %s276, %s277
      %p291 = scmp.eq.s32.totalorder %s28, 3
      %p292 = por %p290, %p291
      %p294 = scmp.ne.s32.totalorder %s277, %s293
      %p295 = scmp.eq.s32.totalorder %s28, 0
      %p296 = por %p294, %p295
      %p297 = scmp.le.s32.totalorder 1, %s22
      %p298 = scmp.lt.s32.totalorder %s22, 5
      %p299 = pnand %p297, %p298
      %p300 = pneg %p299
      // Predicated region
      $region9: #{tpu_custom_call.1} parent=5 // pred_check
        _
      $region10: #{tpu_custom_call.1} parent=5 // pred_check_branch
        %302 = sbr.rel (%p299) target = $region12
      $region11: #{tpu_custom_call.1} parent=5 // pred_region
        %s303 = ssub.s32 %s22, 1
        // Predicated region
        $region13: #{tpu_custom_call.1} parent=11 // pred_check
          %p304 = pneg %p83
        $region14: #{tpu_custom_call.1} parent=11 // pred_check_branch
          %306 = sbr.rel (%p304) target = $region16
        $region15: #{tpu_custom_call.1} parent=11 // pred_region
          _
        $region16: #{tpu_custom_call.1} parent=11 // pred_fallthru
          _
        // Predicated region
        $region17: #{tpu_custom_call.1} parent=11 // pred_check
          %p307 = pneg %p104
        $region18: #{tpu_custom_call.1} parent=11 // pred_check_branch
          %309 = sbr.rel (%p307) target = $region20
        $region19: #{tpu_custom_call.1} parent=11 // pred_region
          %s311 = ssub.s32 6144, 6144
          %312 = vsyncadd [#allocation5], %s311
          %s313 = sshll.u32 [#allocation4], 4
          %s314 = int_to_ptr.vmem [resolvable:$true] %s313
          %319 = dma.hbm_to_vmem [thread:$0]  %s2, 6144, %s314, [#allocation5], 384, 384, 24
        $region20: #{tpu_custom_call.1} parent=11 // pred_fallthru
          _
        // Predicated region
        $region21: #{tpu_custom_call.1} parent=11 // pred_check
          %p320 = pneg %p125
        $region22: #{tpu_custom_call.1} parent=11 // pred_check_branch
          %322 = sbr.rel (%p320) target = $region24
        $region23: #{tpu_custom_call.1} parent=11 // pred_region
          _
        $region24: #{tpu_custom_call.1} parent=11 // pred_fallthru
          _
        // Predicated region
        $region25: #{tpu_custom_call.1} parent=11 // pred_check
          %p323 = pneg %p146
        $region26: #{tpu_custom_call.1} parent=11 // pred_check_branch
          %325 = sbr.rel (%p323) target = $region28
        $region27: #{tpu_custom_call.1} parent=11 // pred_region
          %s327 = ssub.s32 2048, 2048
          %328 = vsyncadd [#allocation8], %s327
          %s329 = sshll.u32 [#allocation7], 4
          %s330 = int_to_ptr.vmem [resolvable:$true] %s329
          %335 = dma.hbm_to_vmem [thread:$0]  %s4, 2048, %s330, [#allocation8], 128, 128, 8
        $region28: #{tpu_custom_call.1} parent=11 // pred_fallthru
          _
        // Predicated region
        $region29: #{tpu_custom_call.1} parent=11 // pred_check
          %p336 = pneg %p167
        $region30: #{tpu_custom_call.1} parent=11 // pred_check_branch
          %338 = sbr.rel (%p336) target = $region32
        $region31: #{tpu_custom_call.1} parent=11 // pred_region
          _
        $region32: #{tpu_custom_call.1} parent=11 // pred_fallthru
          _
        // Predicated region
        $region33: #{tpu_custom_call.1} parent=11 // pred_check
          %p339 = pneg %p188
        $region34: #{tpu_custom_call.1} parent=11 // pred_check_branch
          %341 = sbr.rel (%p339) target = $region36
        $region35: #{tpu_custom_call.1} parent=11 // pred_region
          %s343 = ssub.s32 8192, 8192
          %344 = vsyncadd [#allocation8], %s343
          %s345 = sshll.u32 [#allocation9], 4
          %s346 = int_to_ptr.vmem [resolvable:$true] %s345
          %351 = dma.hbm_to_vmem [thread:$0]  %s6, 8192, %s346, [#allocation8], 512, 512, 32
        $region36: #{tpu_custom_call.1} parent=11 // pred_fallthru
          _
        // Predicated region
        $region37: #{tpu_custom_call.1} parent=11 // pred_check
          %p352 = pneg %p209
        $region38: #{tpu_custom_call.1} parent=11 // pred_check_branch
          %354 = sbr.rel (%p352) target = $region40
        $region39: #{tpu_custom_call.1} parent=11 // pred_region
          %s356 = ssub.s32 4096, 4096
          %357 = vsyncadd [#allocation11], %s356
          %s358 = sshll.u32 [#allocation10], 4
          %s359 = int_to_ptr.vmem [resolvable:$true] %s358
          %364 = dma.hbm_to_vmem [thread:$0]  %s7, 4096, %s359, [#allocation11], 128, 128, 8
        $region40: #{tpu_custom_call.1} parent=11 // pred_fallthru
          _
      $region12: #{tpu_custom_call.1} parent=5 // pred_fallthru
        _
      %p365 = scmp.lt.s32.totalorder %s22, 4
      // Predicated region
      $region41: #{tpu_custom_call.1} parent=5 // pred_check
        %p366 = pneg %p365
      $region42: #{tpu_custom_call.1} parent=5 // pred_check_branch
        %368 = sbr.rel (%p366) target = $region44
      $region43: #{tpu_custom_call.1} parent=5 // pred_region
        // Predicated region
        $region45: #{tpu_custom_call.1} parent=43 // pred_check
          %p369 = pneg %p56
        $region46: #{tpu_custom_call.1} parent=43 // pred_check_branch
          %371 = sbr.rel (%p369) target = $region48
        $region47: #{tpu_custom_call.1} parent=43 // pred_region
          %s372 = smul.u32 4, %s30
          %p373 = scmp.lt.s32.totalorder %s29, 1
          %s374 = scalar_select %p373, %s29, 1
          %p375 = scmp.lt.s32.totalorder %s372, 7
          %s376 = scalar_select %p375, %s372, 7
          %s377 = smul.addr %s374, 8
          %s378 = sadd.s32 %s376, %s377
          %s379 = smul.addr %s378, 8
          %s380 = scalar_lea.vmem %s0, %s379
          %s381 = smul.u32 4, %s30
        $region48: #{tpu_custom_call.1} parent=43 // pred_fallthru
          _
        // Predicated region
        $region49: #{tpu_custom_call.1} parent=43 // pred_check
          %p382 = pneg %p229
        $region50: #{tpu_custom_call.1} parent=43 // pred_check_branch
          %384 = sbr.rel (%p382) target = $region52
        $region51: #{tpu_custom_call.1} parent=43 // pred_region
          %s385 = smul.u32 4, %s30
          %p386 = scmp.lt.s32.totalorder %s385, 7
          %s387 = scalar_select %p386, %s385, 7
          %s388 = smul.addr %s387, 8
          %s389 = scalar_lea.vmem %s8, %s388
          %s390 = smul.u32 4, %s30
        $region52: #{tpu_custom_call.1} parent=43 // pred_fallthru
          _
        // Predicated region
        $region53: #{tpu_custom_call.1} parent=43 // pred_check
          %p391 = pneg %p255
        $region54: #{tpu_custom_call.1} parent=43 // pred_check_branch
          %393 = sbr.rel (%p391) target = $region56
        $region55: #{tpu_custom_call.1} parent=43 // pred_region
          %s394 = smul.u32 4, %s30
          %p395 = scmp.lt.s32.totalorder %s394, 7
          %s396 = scalar_select %p395, %s394, 7
          %s397 = smul.addr %s396, 8
          %s398 = scalar_lea.vmem %s9, %s397
          %s399 = smul.u32 4, %s30
        $region56: #{tpu_custom_call.1} parent=43 // pred_fallthru
          _
      $region44: #{tpu_custom_call.1} parent=5 // pred_fallthru
        _
      %p400 = scmp.le.s32.totalorder 1, %s22
      %p401 = scmp.lt.s32.totalorder %s22, 5
      %p402 = pnand %p400, %p401
      %p403 = pneg %p402
      // Predicated region
      $region57: #{tpu_custom_call.1} parent=5 // pred_check
        _
      $region58: #{tpu_custom_call.1} parent=5 // pred_check_branch
        %405 = sbr.rel (%p402) target = $region60
      $region59: #{tpu_custom_call.1} parent=5 // pred_region
        %s406 = ssub.s32 %s22, 1
        // Predicated region
        $region61: #{tpu_custom_call.1} parent=59 // pred_check
          %p407 = pneg %p104
        $region62: #{tpu_custom_call.1} parent=59 // pred_check_branch
          %409 = sbr.rel (%p407) target = $region64
        $region63: #{tpu_custom_call.1} parent=59 // pred_region
          %410 = dma.done [#allocation5], 6144
        $region64: #{tpu_custom_call.1} parent=59 // pred_fallthru
          _
        // Predicated region
        $region65: #{tpu_custom_call.1} parent=59 // pred_check
          %p411 = pneg %p146
        $region66: #{tpu_custom_call.1} parent=59 // pred_check_branch
          %413 = sbr.rel (%p411) target = $region68
        $region67: #{tpu_custom_call.1} parent=59 // pred_region
          %414 = dma.done [#allocation8], 2048
        $region68: #{tpu_custom_call.1} parent=59 // pred_fallthru
          _
        // Predicated region
        $region69: #{tpu_custom_call.1} parent=59 // pred_check
          %p415 = pneg %p188
        $region70: #{tpu_custom_call.1} parent=59 // pred_check_branch
          %417 = sbr.rel (%p415) target = $region72
        $region71: #{tpu_custom_call.1} parent=59 // pred_region
          %418 = dma.done [#allocation8], 8192
        $region72: #{tpu_custom_call.1} parent=59 // pred_fallthru
          _
        // Predicated region
        $region73: #{tpu_custom_call.1} parent=59 // pred_check
          %p419 = pneg %p209
        $region74: #{tpu_custom_call.1} parent=59 // pred_check_branch
          %421 = sbr.rel (%p419) target = $region76
        $region75: #{tpu_custom_call.1} parent=59 // pred_region
          %422 = dma.done [#allocation11], 4096
        $region76: #{tpu_custom_call.1} parent=59 // pred_fallthru
          _
        %s423 = smul.u32 4, %s32
        %p424 = scmp.lt.s32.totalorder %s31, 1
        %s425 = scalar_select %p424, %s31, 1
        %p426 = scmp.lt.s32.totalorder %s423, 7
        %s427 = scalar_select %p426, %s423, 7
        %s428 = smul.addr %s425, 8
        %s429 = sadd.s32 %s427, %s428
        %s430 = smul.addr %s429, 8
        %s431 = scalar_lea.vmem %s0, %s430
        %p432 = pneg %p62
        %p433 = pneg %p59
        %p434 = pneg %p83
        %p435 = pneg %p80
        %p436 = pneg %p104
        %p437 = pneg %p101
        %p438 = pneg %p125
        %p439 = pneg %p122
        %p440 = pneg %p146
        %p441 = pneg %p143
        %p442 = pneg %p167
        %p443 = pneg %p164
        %p444 = pneg %p188
        %p445 = pneg %p185
        %p446 = pneg %p209
        %p447 = pneg %p206
        %s448 = smul.u32 4, %s32
        %p449 = scmp.lt.s32.totalorder %s448, 7
        %s450 = scalar_select %p449, %s448, 7
        %s451 = smul.addr %s450, 8
        %s452 = scalar_lea.vmem %s8, %s451
        %p453 = pneg %p235
        %p454 = pneg %p232
        %s455 = smul.u32 4, %s32
        %p456 = scmp.lt.s32.totalorder %s455, 7
        %s457 = scalar_select %p456, %s455, 7
        %s458 = smul.addr %s457, 8
        %s459 = scalar_lea.vmem %s9, %s458
        %p460 = pneg %p261
        %p461 = pneg %p258
        %p462 = pneg %p289
        %p463 = pneg %p286
        %s464 = sand.u32 %s276, 1
        %s465 = scalar_lea.sflag [#allocation6], %s464
        %s466 = sand.u32 %s276, 1
        %s467 = smul.addr %s466, 32
        %s468 = scalar_lea.vmem [#allocation12], %s467
        %s469 = smul.u32 4, %s32
        %p470 = scmp.lt.s32.totalorder %s31, 1
        %s471 = scalar_select %p470, %s31, 1
        %p472 = scmp.lt.s32.totalorder %s469, 7
        %s473 = scalar_select %p472, %s469, 7
        %s474 = smul.addr %s471, 8
        %s475 = sadd.s32 %s473, %s474
        %s476 = smul.addr %s475, 8
        %s477 = scalar_lea.vmem %s0, %s476
        %s478 = smul.u32 4, %s32
        %s479 = smul.u32 4, %s32
        %p480 = scmp.lt.s32.totalorder %s479, 7
        %s481 = scalar_select %p480, %s479, 7
        %s482 = smul.addr %s481, 8
        %s483 = scalar_lea.vmem %s8, %s482
        %s484 = smul.u32 4, %s32
        %s485 = smul.u32 4, %s32
        %p486 = scmp.lt.s32.totalorder %s485, 7
        %s487 = scalar_select %p486, %s485, 7
        %s488 = smul.addr %s487, 8
        %s489 = scalar_lea.vmem %s9, %s488
        %s490 = smul.u32 4, %s32
        %s491 = smul.u32 4, %s32
        %s492 = smul.u32 %s32, 32
        %v493 = vld [vmem:[%s477] sm:$0xff]
        %v494 = vld [vmem:[%s477 + $0x8] sm:$0xff]
        %v495 = vld [vmem:[%s477 + $0x10] sm:$0xff]
        %v496 = vld [vmem:[%s477 + $0x18] sm:$0xff]
        %v497 = vld [vmem:[%s1] sm:$0x1]
        %v498 = vmul.f32 %v493, %v493
        %v499 = vmul.f32 %v494, %v494
        %v500 = vmul.f32 %v495, %v495
        %v501 = vmul.f32 %v496, %v496
        %502 = vadd.xlane.f32.xlu0 %v498
        %v503 = vpop.xlane.xlu0 %502
        %504 = vadd.xlane.f32.xlu0 %v499
        %v505 = vpop.xlane.xlu0 %504
        %506 = vadd.xlane.f32.xlu0 %v500
        %v507 = vpop.xlane.xlu0 %506
        %508 = vadd.xlane.f32.xlu0 %v501
        %v509 = vpop.xlane.xlu0 %508
        %v510 = vrcp.pop 128.0
        %v511 = vmul.f32 %v503, %v510
        %v512 = vmul.f32 %v505, %v510
        %v513 = vmul.f32 %v507, %v510
        %v514 = vmul.f32 %v509, %v510
        %v515 = vadd.f32 %v511, 1e-06
        %v516 = vadd.f32 %v512, 1e-06
        %v517 = vadd.f32 %v513, 1e-06
        %v518 = vadd.f32 %v514, 1e-06
        %v519 = vrsqrt.pop %v515
        %v520 = vrsqrt.pop %v516
        %v521 = vrsqrt.pop %v517
        %v522 = vrsqrt.pop %v518
        %v523 = vmul.f32 %v493, %v519
        %v524 = vmul.f32 %v494, %v520
        %v525 = vmul.f32 %v495, %v521
        %v526 = vmul.f32 %v496, %v522
        %v528 = vlaneseq
        %v529 = vshrl.u32 %v528, 7
        %v530 = vsub.s32 0, %v529
        %v531 = vrot.slane %v497, %v530
        %v533 = vmul.f32 %v523, %v531
        %v534 = vmul.f32 %v524, %v531
        %v535 = vmul.f32 %v525, %v531
        %v536 = vmul.f32 %v526, %v531
        %v537 = vld [vmem:[#allocation4] sm:$0xff]
        %v538 = vld [vmem:[#allocation4 + $0x8] sm:$0xff]
        %v539 = vld [vmem:[#allocation4 + $0x10] sm:$0xff]
        %v540 = vld [vmem:[#allocation4 + $0x18] sm:$0xff]
        %v541 = vld [vmem:[#allocation4 + $0x20] sm:$0xff]
        %v542 = vld [vmem:[#allocation4 + $0x28] sm:$0xff]
        %v543 = vld [vmem:[#allocation4 + $0x30] sm:$0xff]
        %v544 = vld [vmem:[#allocation4 + $0x38] sm:$0xff]
        %v545 = vld [vmem:[#allocation4 + $0x40] sm:$0xff]
        %v546 = vld [vmem:[#allocation4 + $0x48] sm:$0xff]
        %v547 = vld [vmem:[#allocation4 + $0x50] sm:$0xff]
        %v548 = vld [vmem:[#allocation4 + $0x58] sm:$0xff]
        %v549 = vld [vmem:[#allocation4 + $0x60] sm:$0xff]
        %v550 = vld [vmem:[#allocation4 + $0x68] sm:$0xff]
        %v551 = vld [vmem:[#allocation4 + $0x70] sm:$0xff]
        %v552 = vld [vmem:[#allocation4 + $0x78] sm:$0xff]
        %v553 = vld [vmem:[#allocation4 + $0x80] sm:$0xff]
        %v554 = vld [vmem:[#allocation4 + $0x88] sm:$0xff]
        %v555 = vld [vmem:[#allocation4 + $0x90] sm:$0xff]
        %v556 = vld [vmem:[#allocation4 + $0x98] sm:$0xff]
        %v557 = vld [vmem:[#allocation4 + $0xa0] sm:$0xff]
        %v558 = vld [vmem:[#allocation4 + $0xa8] sm:$0xff]
        %v559 = vld [vmem:[#allocation4 + $0xb0] sm:$0xff]
        %v560 = vld [vmem:[#allocation4 + $0xb8] sm:$0xff]
        %v561 = vld [vmem:[#allocation4 + $0xc0] sm:$0xff]
        %v562 = vld [vmem:[#allocation4 + $0xc8] sm:$0xff]
        %v563 = vld [vmem:[#allocation4 + $0xd0] sm:$0xff]
        %v564 = vld [vmem:[#allocation4 + $0xd8] sm:$0xff]
        %v565 = vld [vmem:[#allocation4 + $0xe0] sm:$0xff]
        %v566 = vld [vmem:[#allocation4 + $0xe8] sm:$0xff]
        %v567 = vld [vmem:[#allocation4 + $0xf0] sm:$0xff]
        %v568 = vld [vmem:[#allocation4 + $0xf8] sm:$0xff]
        %v569 = vld [vmem:[#allocation4 + $0x100] sm:$0xff]
        %v570 = vld [vmem:[#allocation4 + $0x108] sm:$0xff]
        %v571 = vld [vmem:[#allocation4 + $0x110] sm:$0xff]
        %v572 = vld [vmem:[#allocation4 + $0x118] sm:$0xff]
        %v573 = vld [vmem:[#allocation4 + $0x120] sm:$0xff]
        %v574 = vld [vmem:[#allocation4 + $0x128] sm:$0xff]
        %v575 = vld [vmem:[#allocation4 + $0x130] sm:$0xff]
        %v576 = vld [vmem:[#allocation4 + $0x138] sm:$0xff]
        %v577 = vld [vmem:[#allocation4 + $0x140] sm:$0xff]
        %v578 = vld [vmem:[#allocation4 + $0x148] sm:$0xff]
        %v579 = vld [vmem:[#allocation4 + $0x150] sm:$0xff]
        %v580 = vld [vmem:[#allocation4 + $0x158] sm:$0xff]
        %v581 = vld [vmem:[#allocation4 + $0x160] sm:$0xff]
        %v582 = vld [vmem:[#allocation4 + $0x168] sm:$0xff]
        %v583 = vld [vmem:[#allocation4 + $0x170] sm:$0xff]
        %v584 = vld [vmem:[#allocation4 + $0x178] sm:$0xff]
        %v585 = vld [vmem:[%s3] sm:$0x7]
        %v587 = vlaneseq
        %v588 = vshrl.u32 %v587, 7
        %v589 = vsub.s32 0, %v588
        %v590 = vrot.slane %v585, %v589
        %v591 = vlaneseq
        %v592 = vshrl.u32 %v591, 7
        %v593 = vsub.s32 1, %v592
        %v594 = vrot.slane %v585, %v593
        %v595 = vlaneseq
        %v596 = vshrl.u32 %v595, 7
        %v597 = vsub.s32 2, %v596
        %v598 = vrot.slane %v585, %v597
        %602 = vmatprep.subr.mxu0 %v538
        %603 = vmatpush1.msra.mxu0 %v537
        %604 = vmatprep.subr.mxu0 %v541
        %605 = vmatpush1.msra.mxu0 %v540
        %606 = vmatprep.subr.mxu0 %v544
        %607 = vmatpush1.msra.mxu0 %v543
        %608 = vmatprep.subr.mxu0 %v547
        %609 = vmatpush1.msra.mxu0 %v546
        %610 = vmatprep.subr.mxu0 %v550
        %611 = vmatpush1.msra.mxu0 %v549
        %612 = vmatprep.subr.mxu0 %v553
        %613 = vmatpush1.msra.mxu0 %v552
        %614 = vmatprep.subr.mxu0 %v556
        %615 = vmatpush1.msra.mxu0 %v555
        %616 = vmatprep.subr.mxu0 %v559
        %617 = vmatpush1.msra.mxu0 %v558
        %618 = vmatprep.subr.mxu0 %v562
        %619 = vmatpush1.msra.mxu0 %v561
        %620 = vmatprep.subr.mxu0 %v565
        %621 = vmatpush1.msra.mxu0 %v564
        %622 = vmatprep.subr.mxu0 %v568
        %623 = vmatpush1.msra.mxu0 %v567
        %624 = vmatprep.subr.mxu0 %v571
        %625 = vmatpush1.msra.mxu0 %v570
        %626 = vmatprep.subr.mxu0 %v574
        %627 = vmatpush1.msra.mxu0 %v573
        %628 = vmatprep.subr.mxu0 %v577
        %629 = vmatpush1.msra.mxu0 %v576
        %630 = vmatprep.subr.mxu0 %v580
        %631 = vmatpush1.msra.mxu0 %v579
        %632 = vmatprep.subr.mxu0 %v583
        %633 = vmatpush1.msra.mxu0 %v582
        %634 = vmatprep.subr.mxu0 0.0
        %635 = vmatpush1.msra.mxu0 0.0
        %636 = vmatprep.subr.mxu0 0.0
        %637 = vmatpush1.msra.mxu0 0.0
        %638 = vmatprep.subr.mxu0 0.0
        %639 = vmatpush1.msra.mxu0 0.0
        %640 = vmatprep.subr.mxu0 0.0
        %641 = vmatpush1.msra.mxu0 0.0
        %642 = vmatprep.subr.mxu0 0.0
        %643 = vmatpush1.msra.mxu0 0.0
        %644 = vmatprep.subr.mxu0 0.0
        %645 = vmatpush1.msra.mxu0 0.0
        %646 = vmatprep.subr.mxu0 0.0
        %647 = vmatpush1.msra.mxu0 0.0
        %648 = vmatprep.subr.mxu0 0.0
        %649 = vmatpush1.msra.mxu0 0.0
        %650 = vmatprep.subr.mxu0 0.0
        %651 = vmatpush1.msra.mxu0 0.0
        %652 = vmatprep.subr.mxu0 0.0
        %653 = vmatpush1.msra.mxu0 0.0
        %654 = vmatprep.subr.mxu0 0.0
        %655 = vmatpush1.msra.mxu0 0.0
        %656 = vmatprep.subr.mxu0 0.0
        %657 = vmatpush1.msra.mxu0 0.0
        %658 = vmatprep.subr.mxu0 0.0
        %659 = vmatpush1.msra.mxu0 0.0
        %660 = vmatprep.subr.mxu0 0.0
        %661 = vmatpush1.msra.mxu0 0.0
        %662 = vmatprep.subr.mxu0 0.0
        %663 = vmatpush1.msra.mxu0 0.0
        %664 = vmatprep.subr.mxu0 0.0
        %665 = vmatpush1.msra.mxu0 0.0
        %666 = vmatprep.mubr.f32.mxu0 0.0
        %667 = vmatmul.mubr.f32.gmra.mrb[0].mxu0 %v533
        %v668 = vpop.f32.mrb[0].mxu0
        %v669 = vadd.f32 %v590, %v668
        %v670 = vpop.f32.mrb[0].mxu0
        %v671 = vadd.f32 %v594, %v670
        %672 = vmatprep.mubr.f32.mxu0 0.0
        %673 = vmatmul.mubr.f32.gmra.mrb[0].mxu0 %v534
        %v674 = vpop.f32.mrb[0].mxu0
        %v675 = vadd.f32 %v590, %v674
        %v676 = vpop.f32.mrb[0].mxu0
        %v677 = vadd.f32 %v594, %v676
        %678 = vmatprep.mubr.f32.mxu0 0.0
        %679 = vmatmul.mubr.f32.gmra.mrb[0].mxu0 %v535
        %v680 = vpop.f32.mrb[0].mxu0
        %v681 = vadd.f32 %v590, %v680
        %v682 = vpop.f32.mrb[0].mxu0
        %v683 = vadd.f32 %v594, %v682
        %684 = vmatprep.mubr.f32.mxu0 0.0
        %685 = vmatmul.mubr.f32.gmra.mrb[0].mxu0 %v536
        %v686 = vpop.f32.mrb[0].mxu0
        %v687 = vadd.f32 %v590, %v686
        %v688 = vpop.f32.mrb[0].mxu0
        %v689 = vadd.f32 %v594, %v688
        %690 = vdwg.mxu0
        %691 = vmatprep.subr.mxu0 0.0
        %692 = vmatpush1.msra.mxu0 %v539
        %693 = vmatprep.subr.mxu0 0.0
        %694 = vmatpush1.msra.mxu0 %v542
        %695 = vmatprep.subr.mxu0 0.0
        %696 = vmatpush1.msra.mxu0 %v545
        %697 = vmatprep.subr.mxu0 0.0
        %698 = vmatpush1.msra.mxu0 %v548
        %699 = vmatprep.subr.mxu0 0.0
        %700 = vmatpush1.msra.mxu0 %v551
        %701 = vmatprep.subr.mxu0 0.0
        %702 = vmatpush1.msra.mxu0 %v554
        %703 = vmatprep.subr.mxu0 0.0
        %704 = vmatpush1.msra.mxu0 %v557
        %705 = vmatprep.subr.mxu0 0.0
        %706 = vmatpush1.msra.mxu0 %v560
        %707 = vmatprep.subr.mxu0 0.0
        %708 = vmatpush1.msra.mxu0 %v563
        %709 = vmatprep.subr.mxu0 0.0
        %710 = vmatpush1.msra.mxu0 %v566
        %711 = vmatprep.subr.mxu0 0.0
        %712 = vmatpush1.msra.mxu0 %v569
        %713 = vmatprep.subr.mxu0 0.0
        %714 = vmatpush1.msra.mxu0 %v572
        %715 = vmatprep.subr.mxu0 0.0
        %716 = vmatpush1.msra.mxu0 %v575
        %717 = vmatprep.subr.mxu0 0.0
        %718 = vmatpush1.msra.mxu0 %v578
        %719 = vmatprep.subr.mxu0 0.0
        %720 = vmatpush1.msra.mxu0 %v581
        %721 = vmatprep.subr.mxu0 0.0
        %722 = vmatpush1.msra.mxu0 %v584
        %723 = vmatprep.subr.mxu0 0.0
        %724 = vmatpush1.msra.mxu0 0.0
        %725 = vmatprep.subr.mxu0 0.0
        %726 = vmatpush1.msra.mxu0 0.0
        %727 = vmatprep.subr.mxu0 0.0
        %728 = vmatpush1.msra.mxu0 0.0
        %729 = vmatprep.subr.mxu0 0.0
        %730 = vmatpush1.msra.mxu0 0.0
        %731 = vmatprep.subr.mxu0 0.0
        %732 = vmatpush1.msra.mxu0 0.0
        %733 = vmatprep.subr.mxu0 0.0
        %734 = vmatpush1.msra.mxu0 0.0
        %735 = vmatprep.subr.mxu0 0.0
        %736 = vmatpush1.msra.mxu0 0.0
        %737 = vmatprep.subr.mxu0 0.0
        %738 = vmatpush1.msra.mxu0 0.0
        %739 = vmatprep.subr.mxu0 0.0
        %740 = vmatpush1.msra.mxu0 0.0
        %741 = vmatprep.subr.mxu0 0.0
        %742 = vmatpush1.msra.mxu0 0.0
        %743 = vmatprep.subr.mxu0 0.0
        %744 = vmatpush1.msra.mxu0 0.0
        %745 = vmatprep.subr.mxu0 0.0
        %746 = vmatpush1.msra.mxu0 0.0
        %747 = vmatprep.subr.mxu0 0.0
        %748 = vmatpush1.msra.mxu0 0.0
        %749 = vmatprep.subr.mxu0 0.0
        %750 = vmatpush1.msra.mxu0 0.0
        %751 = vmatprep.subr.mxu0 0.0
        %752 = vmatpush1.msra.mxu0 0.0
        %753 = vmatprep.subr.mxu0 0.0
        %754 = vmatpush1.msra.mxu0 0.0
        %755 = vmatprep.mubr.f32.mxu0 0.0
        %756 = vmatmul.mubr.f32.gmra.mrb[0].mxu0 %v533
        %v757 = vpop.f32.mrb[0].mxu0
        %v758 = vadd.f32 %v598, %v757
        %v759 = vpop.f32.mrb[0].mxu0
        %760 = vmatprep.mubr.f32.mxu0 0.0
        %761 = vmatmul.mubr.f32.gmra.mrb[0].mxu0 %v534
        %v762 = vpop.f32.mrb[0].mxu0
        %v763 = vadd.f32 %v598, %v762
        %v764 = vpop.f32.mrb[0].mxu0
        %765 = vmatprep.mubr.f32.mxu0 0.0
        %766 = vmatmul.mubr.f32.gmra.mrb[0].mxu0 %v535
        %v767 = vpop.f32.mrb[0].mxu0
        %v768 = vadd.f32 %v598, %v767
        %v769 = vpop.f32.mrb[0].mxu0
        %770 = vmatprep.mubr.f32.mxu0 0.0
        %771 = vmatmul.mubr.f32.gmra.mrb[0].mxu0 %v536
        %v772 = vpop.f32.mrb[0].mxu0
        %v773 = vadd.f32 %v598, %v772
        %v774 = vpop.f32.mrb[0].mxu0
        %775 = vdwg.mxu0
        %v776 = vld [vmem:[%s483] sm:$0xff]
        %v777 = vld [vmem:[%s483 + $0x8] sm:$0xff]
        %v778 = vld [vmem:[%s483 + $0x10] sm:$0xff]
        %v779 = vld [vmem:[%s483 + $0x18] sm:$0xff]
        %v780 = vld [vmem:[%s489] sm:$0xff]
        %v781 = vld [vmem:[%s489 + $0x8] sm:$0xff]
        %v782 = vld [vmem:[%s489 + $0x10] sm:$0xff]
        %v783 = vld [vmem:[%s489 + $0x18] sm:$0xff]
        %788 = vrot.lane.b32.xlu0 %v669, 96
        %v789 = vpop.permute.xlu0 %788
        %790 = vrot.lane.b32.xlu0 %v675, 96
        %v791 = vpop.permute.xlu0 %790
        %792 = vrot.lane.b32.xlu0 %v681, 96
        %v793 = vpop.permute.xlu0 %792
        %794 = vrot.lane.b32.xlu0 %v687, 96
        %v795 = vpop.permute.xlu0 %794
        %800 = vrot.lane.b32.xlu0 %v669, 64
        %v801 = vpop.permute.xlu0 %800
        %802 = vrot.lane.b32.xlu0 %v675, 64
        %v803 = vpop.permute.xlu0 %802
        %804 = vrot.lane.b32.xlu0 %v681, 64
        %v805 = vpop.permute.xlu0 %804
        %806 = vrot.lane.b32.xlu0 %v687, 64
        %v807 = vpop.permute.xlu0 %806
        %812 = vrot.lane.b32.xlu0 %v669, 32
        %v813 = vpop.permute.xlu0 %812
        %814 = vrot.lane.b32.xlu0 %v675, 32
        %v815 = vpop.permute.xlu0 %814
        %816 = vrot.lane.b32.xlu0 %v681, 32
        %v817 = vpop.permute.xlu0 %816
        %818 = vrot.lane.b32.xlu0 %v687, 32
        %v819 = vpop.permute.xlu0 %818
        %824 = vrot.lane.b32.xlu0 %v669, 112
        %v825 = vpop.permute.xlu0 %824
        %826 = vrot.lane.b32.xlu0 %v675, 112
        %v827 = vpop.permute.xlu0 %826
        %828 = vrot.lane.b32.xlu0 %v681, 112
        %v829 = vpop.permute.xlu0 %828
        %830 = vrot.lane.b32.xlu0 %v687, 112
        %v831 = vpop.permute.xlu0 %830
        %832 = vrot.lane.b32.xlu0 %v789, 112
        %v833 = vpop.permute.xlu0 %832
        %834 = vrot.lane.b32.xlu0 %v791, 112
        %v835 = vpop.permute.xlu0 %834
        %836 = vrot.lane.b32.xlu0 %v793, 112
        %v837 = vpop.permute.xlu0 %836
        %838 = vrot.lane.b32.xlu0 %v795, 112
        %v839 = vpop.permute.xlu0 %838
        %840 = vrot.lane.b32.xlu0 %v801, 112
        %v841 = vpop.permute.xlu0 %840
        %842 = vrot.lane.b32.xlu0 %v803, 112
        %v843 = vpop.permute.xlu0 %842
        %844 = vrot.lane.b32.xlu0 %v805, 112
        %v845 = vpop.permute.xlu0 %844
        %846 = vrot.lane.b32.xlu0 %v807, 112
        %v847 = vpop.permute.xlu0 %846
        %848 = vrot.lane.b32.xlu0 %v813, 112
        %v849 = vpop.permute.xlu0 %848
        %850 = vrot.lane.b32.xlu0 %v815, 112
        %v851 = vpop.permute.xlu0 %850
        %852 = vrot.lane.b32.xlu0 %v817, 112
        %v853 = vpop.permute.xlu0 %852
        %854 = vrot.lane.b32.xlu0 %v819, 112
        %v855 = vpop.permute.xlu0 %854
        %872 = vrot.lane.b32.xlu0 %v669, 16
        %v873 = vpop.permute.xlu0 %872
        %874 = vrot.lane.b32.xlu0 %v675, 16
        %v875 = vpop.permute.xlu0 %874
        %876 = vrot.lane.b32.xlu0 %v681, 16
        %v877 = vpop.permute.xlu0 %876
        %878 = vrot.lane.b32.xlu0 %v687, 16
        %v879 = vpop.permute.xlu0 %878
        %880 = vrot.lane.b32.xlu0 %v789, 16
        %v881 = vpop.permute.xlu0 %880
        %882 = vrot.lane.b32.xlu0 %v791, 16
        %v883 = vpop.permute.xlu0 %882
        %884 = vrot.lane.b32.xlu0 %v793, 16
        %v885 = vpop.permute.xlu0 %884
        %886 = vrot.lane.b32.xlu0 %v795, 16
        %v887 = vpop.permute.xlu0 %886
        %888 = vrot.lane.b32.xlu0 %v801, 16
        %v889 = vpop.permute.xlu0 %888
        %890 = vrot.lane.b32.xlu0 %v803, 16
        %v891 = vpop.permute.xlu0 %890
        %892 = vrot.lane.b32.xlu0 %v805, 16
        %v893 = vpop.permute.xlu0 %892
        %894 = vrot.lane.b32.xlu0 %v807, 16
        %v895 = vpop.permute.xlu0 %894
        %896 = vrot.lane.b32.xlu0 %v813, 16
        %v897 = vpop.permute.xlu0 %896
        %898 = vrot.lane.b32.xlu0 %v815, 16
        %v899 = vpop.permute.xlu0 %898
        %900 = vrot.lane.b32.xlu0 %v817, 16
        %v901 = vpop.permute.xlu0 %900
        %902 = vrot.lane.b32.xlu0 %v819, 16
        %v903 = vpop.permute.xlu0 %902
        %vm920 = vcmask 130048
        %v921 = vsel %vm920, %v825, %v873
        %v922 = vsel %vm920, %v827, %v875
        %v923 = vsel %vm920, %v829, %v877
        %v924 = vsel %vm920, %v831, %v879
        %v925 = vsel %vm920, %v833, %v881
        %v926 = vsel %vm920, %v835, %v883
        %v927 = vsel %vm920, %v837, %v885
        %v928 = vsel %vm920, %v839, %v887
        %v929 = vsel %vm920, %v841, %v889
        %v930 = vsel %vm920, %v843, %v891
        %v931 = vsel %vm920, %v845, %v893
        %v932 = vsel %vm920, %v847, %v895
        %v933 = vsel %vm920, %v849, %v897
        %v934 = vsel %vm920, %v851, %v899
        %v935 = vsel %vm920, %v853, %v901
        %v936 = vsel %vm920, %v855, %v903
        %v937 = vmul.f32 %v669, %v776
        %v938 = vmul.f32 %v675, %v777
        %v939 = vmul.f32 %v681, %v778
        %v940 = vmul.f32 %v687, %v779
        %v941 = vmul.f32 %v789, %v776
        %v942 = vmul.f32 %v791, %v777
        %v943 = vmul.f32 %v793, %v778
        %v944 = vmul.f32 %v795, %v779
        %v945 = vmul.f32 %v801, %v776
        %v946 = vmul.f32 %v803, %v777
        %v947 = vmul.f32 %v805, %v778
        %v948 = vmul.f32 %v807, %v779
        %v949 = vmul.f32 %v813, %v776
        %v950 = vmul.f32 %v815, %v777
        %v951 = vmul.f32 %v817, %v778
        %v952 = vmul.f32 %v819, %v779
        %v953 = vmul.f32 %v921, %v780
        %v954 = vmul.f32 %v922, %v781
        %v955 = vmul.f32 %v923, %v782
        %v956 = vmul.f32 %v924, %v783
        %v957 = vmul.f32 %v925, %v780
        %v958 = vmul.f32 %v926, %v781
        %v959 = vmul.f32 %v927, %v782
        %v960 = vmul.f32 %v928, %v783
        %v961 = vmul.f32 %v929, %v780
        %v962 = vmul.f32 %v930, %v781
        %v963 = vmul.f32 %v931, %v782
        %v964 = vmul.f32 %v932, %v783
        %v965 = vmul.f32 %v933, %v780
        %v966 = vmul.f32 %v934, %v781
        %v967 = vmul.f32 %v935, %v782
        %v968 = vmul.f32 %v936, %v783
        %v969 = vadd.f32 %v937, %v953
        %v970 = vadd.f32 %v938, %v954
        %v971 = vadd.f32 %v939, %v955
        %v972 = vadd.f32 %v940, %v956
        %v973 = vadd.f32 %v941, %v957
        %v974 = vadd.f32 %v942, %v958
        %v975 = vadd.f32 %v943, %v959
        %v976 = vadd.f32 %v944, %v960
        %v977 = vadd.f32 %v945, %v961
        %v978 = vadd.f32 %v946, %v962
        %v979 = vadd.f32 %v947, %v963
        %v980 = vadd.f32 %v948, %v964
        %v981 = vadd.f32 %v949, %v965
        %v982 = vadd.f32 %v950, %v966
        %v983 = vadd.f32 %v951, %v967
        %v984 = vadd.f32 %v952, %v968
        %v985 = vmul.f32 %v969, 0.17677669
        %v986 = vmul.f32 %v970, 0.17677669
        %v987 = vmul.f32 %v971, 0.17677669
        %v988 = vmul.f32 %v972, 0.17677669
        %v989 = vmul.f32 %v973, 0.17677669
        %v990 = vmul.f32 %v974, 0.17677669
        %v991 = vmul.f32 %v975, 0.17677669
        %v992 = vmul.f32 %v976, 0.17677669
        %v993 = vmul.f32 %v977, 0.17677669
        %v994 = vmul.f32 %v978, 0.17677669
        %v995 = vmul.f32 %v979, 0.17677669
        %v996 = vmul.f32 %v980, 0.17677669
        %v997 = vmul.f32 %v981, 0.17677669
        %v998 = vmul.f32 %v982, 0.17677669
        %v999 = vmul.f32 %v983, 0.17677669
        %v1000 = vmul.f32 %v984, 0.17677669
        %1005 = vrot.lane.b32.xlu0 %v671, 96
        %v1006 = vpop.permute.xlu0 %1005
        %1007 = vrot.lane.b32.xlu0 %v677, 96
        %v1008 = vpop.permute.xlu0 %1007
        %1009 = vrot.lane.b32.xlu0 %v683, 96
        %v1010 = vpop.permute.xlu0 %1009
        %1011 = vrot.lane.b32.xlu0 %v689, 96
        %v1012 = vpop.permute.xlu0 %1011
        %1017 = vrot.lane.b32.xlu0 %v671, 64
        %v1018 = vpop.permute.xlu0 %1017
        %1019 = vrot.lane.b32.xlu0 %v677, 64
        %v1020 = vpop.permute.xlu0 %1019
        %1021 = vrot.lane.b32.xlu0 %v683, 64
        %v1022 = vpop.permute.xlu0 %1021
        %1023 = vrot.lane.b32.xlu0 %v689, 64
        %v1024 = vpop.permute.xlu0 %1023
        %1029 = vrot.lane.b32.xlu0 %v671, 32
        %v1030 = vpop.permute.xlu0 %1029
        %1031 = vrot.lane.b32.xlu0 %v677, 32
        %v1032 = vpop.permute.xlu0 %1031
        %1033 = vrot.lane.b32.xlu0 %v683, 32
        %v1034 = vpop.permute.xlu0 %1033
        %1035 = vrot.lane.b32.xlu0 %v689, 32
        %v1036 = vpop.permute.xlu0 %1035
        %1041 = vrot.lane.b32.xlu0 %v671, 112
        %v1042 = vpop.permute.xlu0 %1041
        %1043 = vrot.lane.b32.xlu0 %v677, 112
        %v1044 = vpop.permute.xlu0 %1043
        %1045 = vrot.lane.b32.xlu0 %v683, 112
        %v1046 = vpop.permute.xlu0 %1045
        %1047 = vrot.lane.b32.xlu0 %v689, 112
        %v1048 = vpop.permute.xlu0 %1047
        %1049 = vrot.lane.b32.xlu0 %v1006, 112
        %v1050 = vpop.permute.xlu0 %1049
        %1051 = vrot.lane.b32.xlu0 %v1008, 112
        %v1052 = vpop.permute.xlu0 %1051
        %1053 = vrot.lane.b32.xlu0 %v1010, 112
        %v1054 = vpop.permute.xlu0 %1053
        %1055 = vrot.lane.b32.xlu0 %v1012, 112
        %v1056 = vpop.permute.xlu0 %1055
        %1057 = vrot.lane.b32.xlu0 %v1018, 112
        %v1058 = vpop.permute.xlu0 %1057
        %1059 = vrot.lane.b32.xlu0 %v1020, 112
        %v1060 = vpop.permute.xlu0 %1059
        %1061 = vrot.lane.b32.xlu0 %v1022, 112
        %v1062 = vpop.permute.xlu0 %1061
        %1063 = vrot.lane.b32.xlu0 %v1024, 112
        %v1064 = vpop.permute.xlu0 %1063
        %1065 = vrot.lane.b32.xlu0 %v1030, 112
        %v1066 = vpop.permute.xlu0 %1065
        %1067 = vrot.lane.b32.xlu0 %v1032, 112
        %v1068 = vpop.permute.xlu0 %1067
        %1069 = vrot.lane.b32.xlu0 %v1034, 112
        %v1070 = vpop.permute.xlu0 %1069
        %1071 = vrot.lane.b32.xlu0 %v1036, 112
        %v1072 = vpop.permute.xlu0 %1071
        %1089 = vrot.lane.b32.xlu0 %v671, 16
        %v1090 = vpop.permute.xlu0 %1089
        %1091 = vrot.lane.b32.xlu0 %v677, 16
        %v1092 = vpop.permute.xlu0 %1091
        %1093 = vrot.lane.b32.xlu0 %v683, 16
        %v1094 = vpop.permute.xlu0 %1093
        %1095 = vrot.lane.b32.xlu0 %v689, 16
        %v1096 = vpop.permute.xlu0 %1095
        %1097 = vrot.lane.b32.xlu0 %v1006, 16
        %v1098 = vpop.permute.xlu0 %1097
        %1099 = vrot.lane.b32.xlu0 %v1008, 16
        %v1100 = vpop.permute.xlu0 %1099
        %1101 = vrot.lane.b32.xlu0 %v1010, 16
        %v1102 = vpop.permute.xlu0 %1101
        %1103 = vrot.lane.b32.xlu0 %v1012, 16
        %v1104 = vpop.permute.xlu0 %1103
        %1105 = vrot.lane.b32.xlu0 %v1018, 16
        %v1106 = vpop.permute.xlu0 %1105
        %1107 = vrot.lane.b32.xlu0 %v1020, 16
        %v1108 = vpop.permute.xlu0 %1107
        %1109 = vrot.lane.b32.xlu0 %v1022, 16
        %v1110 = vpop.permute.xlu0 %1109
        %1111 = vrot.lane.b32.xlu0 %v1024, 16
        %v1112 = vpop.permute.xlu0 %1111
        %1113 = vrot.lane.b32.xlu0 %v1030, 16
        %v1114 = vpop.permute.xlu0 %1113
        %1115 = vrot.lane.b32.xlu0 %v1032, 16
        %v1116 = vpop.permute.xlu0 %1115
        %1117 = vrot.lane.b32.xlu0 %v1034, 16
        %v1118 = vpop.permute.xlu0 %1117
        %1119 = vrot.lane.b32.xlu0 %v1036, 16
        %v1120 = vpop.permute.xlu0 %1119
        %v1137 = vsel %vm920, %v1042, %v1090
        %v1138 = vsel %vm920, %v1044, %v1092
        %v1139 = vsel %vm920, %v1046, %v1094
        %v1140 = vsel %vm920, %v1048, %v1096
        %v1141 = vsel %vm920, %v1050, %v1098
        %v1142 = vsel %vm920, %v1052, %v1100
        %v1143 = vsel %vm920, %v1054, %v1102
        %v1144 = vsel %vm920, %v1056, %v1104
        %v1145 = vsel %vm920, %v1058, %v1106
        %v1146 = vsel %vm920, %v1060, %v1108
        %v1147 = vsel %vm920, %v1062, %v1110
        %v1148 = vsel %vm920, %v1064, %v1112
        %v1149 = vsel %vm920, %v1066, %v1114
        %v1150 = vsel %vm920, %v1068, %v1116
        %v1151 = vsel %vm920, %v1070, %v1118
        %v1152 = vsel %vm920, %v1072, %v1120
        %v1153 = vmul.f32 %v671, %v776
        %v1154 = vmul.f32 %v677, %v777
        %v1155 = vmul.f32 %v683, %v778
        %v1156 = vmul.f32 %v689, %v779
        %v1157 = vmul.f32 %v1006, %v776
        %v1158 = vmul.f32 %v1008, %v777
        %v1159 = vmul.f32 %v1010, %v778
        %v1160 = vmul.f32 %v1012, %v779
        %v1161 = vmul.f32 %v1018, %v776
        %v1162 = vmul.f32 %v1020, %v777
        %v1163 = vmul.f32 %v1022, %v778
        %v1164 = vmul.f32 %v1024, %v779
        %v1165 = vmul.f32 %v1030, %v776
        %v1166 = vmul.f32 %v1032, %v777
        %v1167 = vmul.f32 %v1034, %v778
        %v1168 = vmul.f32 %v1036, %v779
        %v1169 = vmul.f32 %v1137, %v780
        %v1170 = vmul.f32 %v1138, %v781
        %v1171 = vmul.f32 %v1139, %v782
        %v1172 = vmul.f32 %v1140, %v783
        %v1173 = vmul.f32 %v1141, %v780
        %v1174 = vmul.f32 %v1142, %v781
        %v1175 = vmul.f32 %v1143, %v782
        %v1176 = vmul.f32 %v1144, %v783
        %v1177 = vmul.f32 %v1145, %v780
        %v1178 = vmul.f32 %v1146, %v781
        %v1179 = vmul.f32 %v1147, %v782
        %v1180 = vmul.f32 %v1148, %v783
        %v1181 = vmul.f32 %v1149, %v780
        %v1182 = vmul.f32 %v1150, %v781
        %v1183 = vmul.f32 %v1151, %v782
        %v1184 = vmul.f32 %v1152, %v783
        %v1185 = vadd.f32 %v1153, %v1169
        %v1186 = vadd.f32 %v1154, %v1170
        %v1187 = vadd.f32 %v1155, %v1171
        %v1188 = vadd.f32 %v1156, %v1172
        %v1189 = vadd.f32 %v1157, %v1173
        %v1190 = vadd.f32 %v1158, %v1174
        %v1191 = vadd.f32 %v1159, %v1175
        %v1192 = vadd.f32 %v1160, %v1176
        %v1193 = vadd.f32 %v1161, %v1177
        %v1194 = vadd.f32 %v1162, %v1178
        %v1195 = vadd.f32 %v1163, %v1179
        %v1196 = vadd.f32 %v1164, %v1180
        %v1197 = vadd.f32 %v1165, %v1181
        %v1198 = vadd.f32 %v1166, %v1182
        %v1199 = vadd.f32 %v1167, %v1183
        %v1200 = vadd.f32 %v1168, %v1184
        %1205 = vrot.lane.b32.xlu0 %v758, 96
        %v1206 = vpop.permute.xlu0 %1205
        %1207 = vrot.lane.b32.xlu0 %v763, 96
        %v1208 = vpop.permute.xlu0 %1207
        %1209 = vrot.lane.b32.xlu0 %v768, 96
        %v1210 = vpop.permute.xlu0 %1209
        %1211 = vrot.lane.b32.xlu0 %v773, 96
        %v1212 = vpop.permute.xlu0 %1211
        %1217 = vrot.lane.b32.xlu0 %v758, 64
        %v1218 = vpop.permute.xlu0 %1217
        %1219 = vrot.lane.b32.xlu0 %v763, 64
        %v1220 = vpop.permute.xlu0 %1219
        %1221 = vrot.lane.b32.xlu0 %v768, 64
        %v1222 = vpop.permute.xlu0 %1221
        %1223 = vrot.lane.b32.xlu0 %v773, 64
        %v1224 = vpop.permute.xlu0 %1223
        %1229 = vrot.lane.b32.xlu0 %v758, 32
        %v1230 = vpop.permute.xlu0 %1229
        %1231 = vrot.lane.b32.xlu0 %v763, 32
        %v1232 = vpop.permute.xlu0 %1231
        %1233 = vrot.lane.b32.xlu0 %v768, 32
        %v1234 = vpop.permute.xlu0 %1233
        %1235 = vrot.lane.b32.xlu0 %v773, 32
        %v1236 = vpop.permute.xlu0 %1235
        %s1241 = scalar_lea.vmem [#allocation2], %s492
        %vm1242 = vcmask 261120
        %1243 = vst.msk [vmem:[%s1241] sm:$0xff] %vm1242, %v1185
        %1244 = vst.msk [vmem:[%s1241 + $0x8] sm:$0xff] %vm1242, %v1186
        %1245 = vst.msk [vmem:[%s1241 + $0x10] sm:$0xff] %vm1242, %v1187
        %1246 = vst.msk [vmem:[%s1241 + $0x18] sm:$0xff] %vm1242, %v1188
        %1247 = vst.msk [vmem:[%s1241 + $0x40] sm:$0xff] %vm1242, %v1189
        %1248 = vst.msk [vmem:[%s1241 + $0x48] sm:$0xff] %vm1242, %v1190
        %1249 = vst.msk [vmem:[%s1241 + $0x50] sm:$0xff] %vm1242, %v1191
        %1250 = vst.msk [vmem:[%s1241 + $0x58] sm:$0xff] %vm1242, %v1192
        %1251 = vst.msk [vmem:[%s1241 + $0x80] sm:$0xff] %vm1242, %v1193
        %1252 = vst.msk [vmem:[%s1241 + $0x88] sm:$0xff] %vm1242, %v1194
        %1253 = vst.msk [vmem:[%s1241 + $0x90] sm:$0xff] %vm1242, %v1195
        %1254 = vst.msk [vmem:[%s1241 + $0x98] sm:$0xff] %vm1242, %v1196
        %1255 = vst.msk [vmem:[%s1241 + $0xc0] sm:$0xff] %vm1242, %v1197
        %1256 = vst.msk [vmem:[%s1241 + $0xc8] sm:$0xff] %vm1242, %v1198
        %1257 = vst.msk [vmem:[%s1241 + $0xd0] sm:$0xff] %vm1242, %v1199
        %1258 = vst.msk [vmem:[%s1241 + $0xd8] sm:$0xff] %vm1242, %v1200
        %s1259 = scalar_lea.vmem [#allocation3], %s492
        %1260 = vst.msk [vmem:[%s1259] sm:$0xff] %vm1242, %v758
        %1261 = vst.msk [vmem:[%s1259 + $0x8] sm:$0xff] %vm1242, %v763
        %1262 = vst.msk [vmem:[%s1259 + $0x10] sm:$0xff] %vm1242, %v768
        %1263 = vst.msk [vmem:[%s1259 + $0x18] sm:$0xff] %vm1242, %v773
        %1264 = vst.msk [vmem:[%s1259 + $0x40] sm:$0xff] %vm1242, %v1206
        %1265 = vst.msk [vmem:[%s1259 + $0x48] sm:$0xff] %vm1242, %v1208
        %1266 = vst.msk [vmem:[%s1259 + $0x50] sm:$0xff] %vm1242, %v1210
        %1267 = vst.msk [vmem:[%s1259 + $0x58] sm:$0xff] %vm1242, %v1212
        %1268 = vst.msk [vmem:[%s1259 + $0x80] sm:$0xff] %vm1242, %v1218
        %1269 = vst.msk [vmem:[%s1259 + $0x88] sm:$0xff] %vm1242, %v1220
        %1270 = vst.msk [vmem:[%s1259 + $0x90] sm:$0xff] %vm1242, %v1222
        %1271 = vst.msk [vmem:[%s1259 + $0x98] sm:$0xff] %vm1242, %v1224
        %1272 = vst.msk [vmem:[%s1259 + $0xc0] sm:$0xff] %vm1242, %v1230
        %1273 = vst.msk [vmem:[%s1259 + $0xc8] sm:$0xff] %vm1242, %v1232
        %1274 = vst.msk [vmem:[%s1259 + $0xd0] sm:$0xff] %vm1242, %v1234
        %1275 = vst.msk [vmem:[%s1259 + $0xd8] sm:$0xff] %vm1242, %v1236
        // While loop
        $region77: #{tpu_custom_call.1} parent=59 // loop_pre_header
          _
        $region78: #{tpu_custom_call.1} parent=59 // loop_header
          %s1277 = sphi 0, %s1279
          %p1278 = scmp.ge.s32.totalorder %s1277, %s32
          %v1282 = vphi -inf, %v1849
          %v1283 = vphi -inf, %v1850
          %v1284 = vphi -inf, %v1851
          %v1285 = vphi -inf, %v1852
          %v1286 = vphi -inf, %v1853
          %v1287 = vphi -inf, %v1854
          %v1288 = vphi -inf, %v1855
          %v1289 = vphi -inf, %v1856
          %v1290 = vphi -inf, %v1857
          %v1291 = vphi -inf, %v1858
          %v1292 = vphi -inf, %v1859
          %v1293 = vphi -inf, %v1860
          %v1294 = vphi -inf, %v1861
          %v1295 = vphi -inf, %v1862
          %v1296 = vphi -inf, %v1863
          %v1297 = vphi -inf, %v1864
          %v1298 = vphi 0.0, %v2025
          %v1299 = vphi 0.0, %v2026
          %v1300 = vphi 0.0, %v2027
          %v1301 = vphi 0.0, %v2028
          %v1302 = vphi 0.0, %v2029
          %v1303 = vphi 0.0, %v2030
          %v1304 = vphi 0.0, %v2031
          %v1305 = vphi 0.0, %v2032
          %v1306 = vphi 0.0, %v2033
          %v1307 = vphi 0.0, %v2034
          %v1308 = vphi 0.0, %v2035
          %v1309 = vphi 0.0, %v2036
          %v1310 = vphi 0.0, %v2037
          %v1311 = vphi 0.0, %v2038
          %v1312 = vphi 0.0, %v2039
          %v1313 = vphi 0.0, %v2040
          %v1314 = vphi 0.0, %v2445
          %v1315 = vphi 0.0, %v2446
          %v1316 = vphi 0.0, %v2447
          %v1317 = vphi 0.0, %v2448
          %v1318 = vphi 0.0, %v2449
          %v1319 = vphi 0.0, %v2450
          %v1320 = vphi 0.0, %v2451
          %v1321 = vphi 0.0, %v2452
          %v1322 = vphi 0.0, %v2453
          %v1323 = vphi 0.0, %v2454
          %v1324 = vphi 0.0, %v2455
          %v1325 = vphi 0.0, %v2456
          %v1326 = vphi 0.0, %v2457
          %v1327 = vphi 0.0, %v2458
          %v1328 = vphi 0.0, %v2459
          %v1329 = vphi 0.0, %v2460
        $region79: #{tpu_custom_call.1} parent=59 // loop_header_branch
          %1281 = sbr.rel (%p1278) target = $region83
        $region80: #{tpu_custom_call.1} parent=59 // loop_body
          %s1330 = smul.u32 %s1277, 32
          %s1331 = scalar_lea.vmem [#allocation2], %s1330
          %v1332 = vld [vmem:[%s1331] sm:$0xff]
          %v1333 = vld [vmem:[%s1331 + $0x8] sm:$0xff]
          %v1334 = vld [vmem:[%s1331 + $0x10] sm:$0xff]
          %v1335 = vld [vmem:[%s1331 + $0x18] sm:$0xff]
          %v1336 = vld [vmem:[%s1331 + $0x40] sm:$0xff]
          %v1337 = vld [vmem:[%s1331 + $0x48] sm:$0xff]
          %v1338 = vld [vmem:[%s1331 + $0x50] sm:$0xff]
          %v1339 = vld [vmem:[%s1331 + $0x58] sm:$0xff]
          %v1340 = vld [vmem:[%s1331 + $0x80] sm:$0xff]
          %v1341 = vld [vmem:[%s1331 + $0x88] sm:$0xff]
          %v1342 = vld [vmem:[%s1331 + $0x90] sm:$0xff]
          %v1343 = vld [vmem:[%s1331 + $0x98] sm:$0xff]
          %v1344 = vld [vmem:[%s1331 + $0xc0] sm:$0xff]
          %v1345 = vld [vmem:[%s1331 + $0xc8] sm:$0xff]
          %v1346 = vld [vmem:[%s1331 + $0xd0] sm:$0xff]
          %v1347 = vld [vmem:[%s1331 + $0xd8] sm:$0xff]
          %s1348 = scalar_lea.vmem [#allocation3], %s1330
          %v1349 = vld [vmem:[%s1348] sm:$0xff]
          %v1350 = vld [vmem:[%s1348 + $0x8] sm:$0xff]
          %v1351 = vld [vmem:[%s1348 + $0x10] sm:$0xff]
          %v1352 = vld [vmem:[%s1348 + $0x18] sm:$0xff]
          %v1353 = vld [vmem:[%s1348 + $0x40] sm:$0xff]
          %v1354 = vld [vmem:[%s1348 + $0x48] sm:$0xff]
          %v1355 = vld [vmem:[%s1348 + $0x50] sm:$0xff]
          %v1356 = vld [vmem:[%s1348 + $0x58] sm:$0xff]
          %v1357 = vld [vmem:[%s1348 + $0x80] sm:$0xff]
          %v1358 = vld [vmem:[%s1348 + $0x88] sm:$0xff]
          %v1359 = vld [vmem:[%s1348 + $0x90] sm:$0xff]
          %v1360 = vld [vmem:[%s1348 + $0x98] sm:$0xff]
          %v1361 = vld [vmem:[%s1348 + $0xc0] sm:$0xff]
          %v1362 = vld [vmem:[%s1348 + $0xc8] sm:$0xff]
          %v1363 = vld [vmem:[%s1348 + $0xd0] sm:$0xff]
          %v1364 = vld [vmem:[%s1348 + $0xd8] sm:$0xff]
          %v1366 = vsel %vm1242, %v985, 0
          %v1369 = vsel %vm1242, %v986, 0
          %v1372 = vsel %vm1242, %v987, 0
          %v1375 = vsel %vm1242, %v988, 0
          %v1378 = vsel %vm1242, %v1332, 0
          %v1381 = vsel %vm1242, %v1333, 0
          %v1384 = vsel %vm1242, %v1334, 0
          %v1387 = vsel %vm1242, %v1335, 0
          %1389 = vmatprep.subr.mxu0 0.0
          %1390 = vmatpush1.xpose.msra.mxu0 %v1378
          %1391 = vmatprep.subr.mxu0 0.0
          %1392 = vmatpush1.xpose.msra.mxu0 %v1381
          %1393 = vmatprep.subr.mxu0 0.0
          %1394 = vmatpush1.xpose.msra.mxu0 %v1384
          %1395 = vmatprep.subr.mxu0 0.0
          %1396 = vmatpush1.xpose.msra.mxu0 %v1387
          %1397 = vmatprep.subr.mxu0 0.0
          %1398 = vmatpush1.xpose.msra.mxu0 0.0
          %1399 = vmatprep.subr.mxu0 0.0
          %1400 = vmatpush1.xpose.msra.mxu0 0.0
          %1401 = vmatprep.subr.mxu0 0.0
          %1402 = vmatpush1.xpose.msra.mxu0 0.0
          %1403 = vmatprep.subr.mxu0 0.0
          %1404 = vmatpush1.xpose.msra.mxu0 0.0
          %1405 = vmatprep.subr.mxu0 0.0
          %1406 = vmatpush1.xpose.msra.mxu0 0.0
          %1407 = vmatprep.subr.mxu0 0.0
          %1408 = vmatpush1.xpose.msra.mxu0 0.0
          %1409 = vmatprep.subr.mxu0 0.0
          %1410 = vmatpush1.xpose.msra.mxu0 0.0
          %1411 = vmatprep.subr.mxu0 0.0
          %1412 = vmatpush1.xpose.msra.mxu0 0.0
          %1413 = vmatprep.subr.mxu0 0.0
          %1414 = vmatpush1.xpose.msra.mxu0 0.0
          %1415 = vmatprep.subr.mxu0 0.0
          %1416 = vmatpush1.xpose.msra.mxu0 0.0
          %1417 = vmatprep.subr.mxu0 0.0
          %1418 = vmatpush1.xpose.msra.mxu0 0.0
          %1419 = vmatprep.subr.mxu0 0.0
          %1420 = vmatpush1.xpose.msra.mxu0 0.0
          %1421 = vmatprep.subr.mxu0 0.0
          %1422 = vmatpush1.xpose.msra.mxu0 0.0
          %1423 = vmatprep.subr.mxu0 0.0
          %1424 = vmatpush1.xpose.msra.mxu0 0.0
          %1425 = vmatprep.subr.mxu0 0.0
          %1426 = vmatpush1.xpose.msra.mxu0 0.0
          %1427 = vmatprep.subr.mxu0 0.0
          %1428 = vmatpush1.xpose.msra.mxu0 0.0
          %1429 = vmatprep.subr.mxu0 0.0
          %1430 = vmatpush1.xpose.msra.mxu0 0.0
          %1431 = vmatprep.subr.mxu0 0.0
          %1432 = vmatpush1.xpose.msra.mxu0 0.0
          %1433 = vmatprep.subr.mxu0 0.0
          %1434 = vmatpush1.xpose.msra.mxu0 0.0
          %1435 = vmatprep.subr.mxu0 0.0
          %1436 = vmatpush1.xpose.msra.mxu0 0.0
          %1437 = vmatprep.subr.mxu0 0.0
          %1438 = vmatpush1.xpose.msra.mxu0 0.0
          %1439 = vmatprep.subr.mxu0 0.0
          %1440 = vmatpush1.xpose.msra.mxu0 0.0
          %1441 = vmatprep.subr.mxu0 0.0
          %1442 = vmatpush1.xpose.msra.mxu0 0.0
          %1443 = vmatprep.subr.mxu0 0.0
          %1444 = vmatpush1.xpose.msra.mxu0 0.0
          %1445 = vmatprep.subr.mxu0 0.0
          %1446 = vmatpush1.xpose.msra.mxu0 0.0
          %1447 = vmatprep.subr.mxu0 0.0
          %1448 = vmatpush1.xpose.msra.mxu0 0.0
          %1449 = vmatprep.subr.mxu0 0.0
          %1450 = vmatpush1.xpose.msra.mxu0 0.0
          %1451 = vmatprep.subr.mxu0 0.0
          %1452 = vmatpush1.xpose.msra.mxu0 0.0
          %1453 = vmatprep.mubr.f32.mxu0 0.0
          %1454 = vmatmul.mubr.f32.gmra.mrb[0].mxu0 %v1366
          %v1455 = vpop.f32.mrb[0].mxu0
          %v1456 = vadd.f32 0.0, %v1455
          %v1457 = vpop.f32.mrb[0].mxu0
          %1458 = vmatprep.mubr.f32.mxu0 0.0
          %1459 = vmatmul.mubr.f32.gmra.mrb[0].mxu0 %v1369
          %v1460 = vpop.f32.mrb[0].mxu0
          %v1461 = vadd.f32 0.0, %v1460
          %v1462 = vpop.f32.mrb[0].mxu0
          %1463 = vmatprep.mubr.f32.mxu0 0.0
          %1464 = vmatmul.mubr.f32.gmra.mrb[0].mxu0 %v1372
          %v1465 = vpop.f32.mrb[0].mxu0
          %v1466 = vadd.f32 0.0, %v1465
          %v1467 = vpop.f32.mrb[0].mxu0
          %1468 = vmatprep.mubr.f32.mxu0 0.0
          %1469 = vmatmul.mubr.f32.gmra.mrb[0].mxu0 %v1375
          %v1470 = vpop.f32.mrb[0].mxu0
          %v1471 = vadd.f32 0.0, %v1470
          %v1472 = vpop.f32.mrb[0].mxu0
          %1473 = vdwg.mxu0
          %v1475 = vsel %vm1242, %v989, 0
          %v1478 = vsel %vm1242, %v990, 0
          %v1481 = vsel %vm1242, %v991, 0
          %v1484 = vsel %vm1242, %v992, 0
          %v1487 = vsel %vm1242, %v1336, 0
          %v1490 = vsel %vm1242, %v1337, 0
          %v1493 = vsel %vm1242, %v1338, 0
          %v1496 = vsel %vm1242, %v1339, 0
          %1498 = vmatprep.subr.mxu0 0.0
          %1499 = vmatpush1.xpose.msra.mxu0 %v1487
          %1500 = vmatprep.subr.mxu0 0.0
          %1501 = vmatpush1.xpose.msra.mxu0 %v1490
          %1502 = vmatprep.subr.mxu0 0.0
          %1503 = vmatpush1.xpose.msra.mxu0 %v1493
          %1504 = vmatprep.subr.mxu0 0.0
          %1505 = vmatpush1.xpose.msra.mxu0 %v1496
          %1506 = vmatprep.subr.mxu0 0.0
          %1507 = vmatpush1.xpose.msra.mxu0 0.0
          %1508 = vmatprep.subr.mxu0 0.0
          %1509 = vmatpush1.xpose.msra.mxu0 0.0
          %1510 = vmatprep.subr.mxu0 0.0
          %1511 = vmatpush1.xpose.msra.mxu0 0.0
          %1512 = vmatprep.subr.mxu0 0.0
          %1513 = vmatpush1.xpose.msra.mxu0 0.0
          %1514 = vmatprep.subr.mxu0 0.0
          %1515 = vmatpush1.xpose.msra.mxu0 0.0
          %1516 = vmatprep.subr.mxu0 0.0
          %1517 = vmatpush1.xpose.msra.mxu0 0.0
          %1518 = vmatprep.subr.mxu0 0.0
          %1519 = vmatpush1.xpose.msra.mxu0 0.0
          %1520 = vmatprep.subr.mxu0 0.0
          %1521 = vmatpush1.xpose.msra.mxu0 0.0
          %1522 = vmatprep.subr.mxu0 0.0
          %1523 = vmatpush1.xpose.msra.mxu0 0.0
          %1524 = vmatprep.subr.mxu0 0.0
          %1525 = vmatpush1.xpose.msra.mxu0 0.0
          %1526 = vmatprep.subr.mxu0 0.0
          %1527 = vmatpush1.xpose.msra.mxu0 0.0
          %1528 = vmatprep.subr.mxu0 0.0
          %1529 = vmatpush1.xpose.msra.mxu0 0.0
          %1530 = vmatprep.subr.mxu0 0.0
          %1531 = vmatpush1.xpose.msra.mxu0 0.0
          %1532 = vmatprep.subr.mxu0 0.0
          %1533 = vmatpush1.xpose.msra.mxu0 0.0
          %1534 = vmatprep.subr.mxu0 0.0
          %1535 = vmatpush1.xpose.msra.mxu0 0.0
          %1536 = vmatprep.subr.mxu0 0.0
          %1537 = vmatpush1.xpose.msra.mxu0 0.0
          %1538 = vmatprep.subr.mxu0 0.0
          %1539 = vmatpush1.xpose.msra.mxu0 0.0
          %1540 = vmatprep.subr.mxu0 0.0
          %1541 = vmatpush1.xpose.msra.mxu0 0.0
          %1542 = vmatprep.subr.mxu0 0.0
          %1543 = vmatpush1.xpose.msra.mxu0 0.0
          %1544 = vmatprep.subr.mxu0 0.0
          %1545 = vmatpush1.xpose.msra.mxu0 0.0
          %1546 = vmatprep.subr.mxu0 0.0
          %1547 = vmatpush1.xpose.msra.mxu0 0.0
          %1548 = vmatprep.subr.mxu0 0.0
          %1549 = vmatpush1.xpose.msra.mxu0 0.0
          %1550 = vmatprep.subr.mxu0 0.0
          %1551 = vmatpush1.xpose.msra.mxu0 0.0
          %1552 = vmatprep.subr.mxu0 0.0
          %1553 = vmatpush1.xpose.msra.mxu0 0.0
          %1554 = vmatprep.subr.mxu0 0.0
          %1555 = vmatpush1.xpose.msra.mxu0 0.0
          %1556 = vmatprep.subr.mxu0 0.0
          %1557 = vmatpush1.xpose.msra.mxu0 0.0
          %1558 = vmatprep.subr.mxu0 0.0
          %1559 = vmatpush1.xpose.msra.mxu0 0.0
          %1560 = vmatprep.subr.mxu0 0.0
          %1561 = vmatpush1.xpose.msra.mxu0 0.0
          %1562 = vmatprep.mubr.f32.mxu0 0.0
          %1563 = vmatmul.mubr.f32.gmra.mrb[0].mxu0 %v1475
          %v1564 = vpop.f32.mrb[0].mxu0
          %v1565 = vadd.f32 0.0, %v1564
          %v1566 = vpop.f32.mrb[0].mxu0
          %1567 = vmatprep.mubr.f32.mxu0 0.0
          %1568 = vmatmul.mubr.f32.gmra.mrb[0].mxu0 %v1478
          %v1569 = vpop.f32.mrb[0].mxu0
          %v1570 = vadd.f32 0.0, %v1569
          %v1571 = vpop.f32.mrb[0].mxu0
          %1572 = vmatprep.mubr.f32.mxu0 0.0
          %1573 = vmatmul.mubr.f32.gmra.mrb[0].mxu0 %v1481
          %v1574 = vpop.f32.mrb[0].mxu0
          %v1575 = vadd.f32 0.0, %v1574
          %v1576 = vpop.f32.mrb[0].mxu0
          %1577 = vmatprep.mubr.f32.mxu0 0.0
          %1578 = vmatmul.mubr.f32.gmra.mrb[0].mxu0 %v1484
          %v1579 = vpop.f32.mrb[0].mxu0
          %v1580 = vadd.f32 0.0, %v1579
          %v1581 = vpop.f32.mrb[0].mxu0
          %1582 = vdwg.mxu0
          %v1584 = vsel %vm1242, %v993, 0
          %v1587 = vsel %vm1242, %v994, 0
          %v1590 = vsel %vm1242, %v995, 0
          %v1593 = vsel %vm1242, %v996, 0
          %v1596 = vsel %vm1242, %v1340, 0
          %v1599 = vsel %vm1242, %v1341, 0
          %v1602 = vsel %vm1242, %v1342, 0
          %v1605 = vsel %vm1242, %v1343, 0
          %1607 = vmatprep.subr.mxu0 0.0
          %1608 = vmatpush1.xpose.msra.mxu0 %v1596
          %1609 = vmatprep.subr.mxu0 0.0
          %1610 = vmatpush1.xpose.msra.mxu0 %v1599
          %1611 = vmatprep.subr.mxu0 0.0
          %1612 = vmatpush1.xpose.msra.mxu0 %v1602
          %1613 = vmatprep.subr.mxu0 0.0
          %1614 = vmatpush1.xpose.msra.mxu0 %v1605
          %1615 = vmatprep.subr.mxu0 0.0
          %1616 = vmatpush1.xpose.msra.mxu0 0.0
          %1617 = vmatprep.subr.mxu0 0.0
          %1618 = vmatpush1.xpose.msra.mxu0 0.0
          %1619 = vmatprep.subr.mxu0 0.0
          %1620 = vmatpush1.xpose.msra.mxu0 0.0
          %1621 = vmatprep.subr.mxu0 0.0
          %1622 = vmatpush1.xpose.msra.mxu0 0.0
          %1623 = vmatprep.subr.mxu0 0.0
          %1624 = vmatpush1.xpose.msra.mxu0 0.0
          %1625 = vmatprep.subr.mxu0 0.0
          %1626 = vmatpush1.xpose.msra.mxu0 0.0
          %1627 = vmatprep.subr.mxu0 0.0
          %1628 = vmatpush1.xpose.msra.mxu0 0.0
          %1629 = vmatprep.subr.mxu0 0.0
          %1630 = vmatpush1.xpose.msra.mxu0 0.0
          %1631 = vmatprep.subr.mxu0 0.0
          %1632 = vmatpush1.xpose.msra.mxu0 0.0
          %1633 = vmatprep.subr.mxu0 0.0
          %1634 = vmatpush1.xpose.msra.mxu0 0.0
          %1635 = vmatprep.subr.mxu0 0.0
          %1636 = vmatpush1.xpose.msra.mxu0 0.0
          %1637 = vmatprep.subr.mxu0 0.0
          %1638 = vmatpush1.xpose.msra.mxu0 0.0
          %1639 = vmatprep.subr.mxu0 0.0
          %1640 = vmatpush1.xpose.msra.mxu0 0.0
          %1641 = vmatprep.subr.mxu0 0.0
          %1642 = vmatpush1.xpose.msra.mxu0 0.0
          %1643 = vmatprep.subr.mxu0 0.0
          %1644 = vmatpush1.xpose.msra.mxu0 0.0
          %1645 = vmatprep.subr.mxu0 0.0
          %1646 = vmatpush1.xpose.msra.mxu0 0.0
          %1647 = vmatprep.subr.mxu0 0.0
          %1648 = vmatpush1.xpose.msra.mxu0 0.0
          %1649 = vmatprep.subr.mxu0 0.0
          %1650 = vmatpush1.xpose.msra.mxu0 0.0
          %1651 = vmatprep.subr.mxu0 0.0
          %1652 = vmatpush1.xpose.msra.mxu0 0.0
          %1653 = vmatprep.subr.mxu0 0.0
          %1654 = vmatpush1.xpose.msra.mxu0 0.0
          %1655 = vmatprep.subr.mxu0 0.0
          %1656 = vmatpush1.xpose.msra.mxu0 0.0
          %1657 = vmatprep.subr.mxu0 0.0
          %1658 = vmatpush1.xpose.msra.mxu0 0.0
          %1659 = vmatprep.subr.mxu0 0.0
          %1660 = vmatpush1.xpose.msra.mxu0 0.0
          %1661 = vmatprep.subr.mxu0 0.0
          %1662 = vmatpush1.xpose.msra.mxu0 0.0
          %1663 = vmatprep.subr.mxu0 0.0
          %1664 = vmatpush1.xpose.msra.mxu0 0.0
          %1665 = vmatprep.subr.mxu0 0.0
          %1666 = vmatpush1.xpose.msra.mxu0 0.0
          %1667 = vmatprep.subr.mxu0 0.0
          %1668 = vmatpush1.xpose.msra.mxu0 0.0
          %1669 = vmatprep.subr.mxu0 0.0
          %1670 = vmatpush1.xpose.msra.mxu0 0.0
          %1671 = vmatprep.mubr.f32.mxu0 0.0
          %1672 = vmatmul.mubr.f32.gmra.mrb[0].mxu0 %v1584
          %v1673 = vpop.f32.mrb[0].mxu0
          %v1674 = vadd.f32 0.0, %v1673
          %v1675 = vpop.f32.mrb[0].mxu0
          %1676 = vmatprep.mubr.f32.mxu0 0.0
          %1677 = vmatmul.mubr.f32.gmra.mrb[0].mxu0 %v1587
          %v1678 = vpop.f32.mrb[0].mxu0
          %v1679 = vadd.f32 0.0, %v1678
          %v1680 = vpop.f32.mrb[0].mxu0
          %1681 = vmatprep.mubr.f32.mxu0 0.0
          %1682 = vmatmul.mubr.f32.gmra.mrb[0].mxu0 %v1590
          %v1683 = vpop.f32.mrb[0].mxu0
          %v1684 = vadd.f32 0.0, %v1683
          %v1685 = vpop.f32.mrb[0].mxu0
          %1686 = vmatprep.mubr.f32.mxu0 0.0
          %1687 = vmatmul.mubr.f32.gmra.mrb[0].mxu0 %v1593
          %v1688 = vpop.f32.mrb[0].mxu0
          %v1689 = vadd.f32 0.0, %v1688
          %v1690 = vpop.f32.mrb[0].mxu0
          %1691 = vdwg.mxu0
          %v1693 = vsel %vm1242, %v997, 0
          %v1696 = vsel %vm1242, %v998, 0
          %v1699 = vsel %vm1242, %v999, 0
          %v1702 = vsel %vm1242, %v1000, 0
          %v1705 = vsel %vm1242, %v1344, 0
          %v1708 = vsel %vm1242, %v1345, 0
          %v1711 = vsel %vm1242, %v1346, 0
          %v1714 = vsel %vm1242, %v1347, 0
          %1716 = vmatprep.subr.mxu0 0.0
          %1717 = vmatpush1.xpose.msra.mxu0 %v1705
          %1718 = vmatprep.subr.mxu0 0.0
          %1719 = vmatpush1.xpose.msra.mxu0 %v1708
          %1720 = vmatprep.subr.mxu0 0.0
          %1721 = vmatpush1.xpose.msra.mxu0 %v1711
          %1722 = vmatprep.subr.mxu0 0.0
          %1723 = vmatpush1.xpose.msra.mxu0 %v1714
          %1724 = vmatprep.subr.mxu0 0.0
          %1725 = vmatpush1.xpose.msra.mxu0 0.0
          %1726 = vmatprep.subr.mxu0 0.0
          %1727 = vmatpush1.xpose.msra.mxu0 0.0
          %1728 = vmatprep.subr.mxu0 0.0
          %1729 = vmatpush1.xpose.msra.mxu0 0.0
          %1730 = vmatprep.subr.mxu0 0.0
          %1731 = vmatpush1.xpose.msra.mxu0 0.0
          %1732 = vmatprep.subr.mxu0 0.0
          %1733 = vmatpush1.xpose.msra.mxu0 0.0
          %1734 = vmatprep.subr.mxu0 0.0
          %1735 = vmatpush1.xpose.msra.mxu0 0.0
          %1736 = vmatprep.subr.mxu0 0.0
          %1737 = vmatpush1.xpose.msra.mxu0 0.0
          %1738 = vmatprep.subr.mxu0 0.0
          %1739 = vmatpush1.xpose.msra.mxu0 0.0
          %1740 = vmatprep.subr.mxu0 0.0
          %1741 = vmatpush1.xpose.msra.mxu0 0.0
          %1742 = vmatprep.subr.mxu0 0.0
          %1743 = vmatpush1.xpose.msra.mxu0 0.0
          %1744 = vmatprep.subr.mxu0 0.0
          %1745 = vmatpush1.xpose.msra.mxu0 0.0
          %1746 = vmatprep.subr.mxu0 0.0
          %1747 = vmatpush1.xpose.msra.mxu0 0.0
          %1748 = vmatprep.subr.mxu0 0.0
          %1749 = vmatpush1.xpose.msra.mxu0 0.0
          %1750 = vmatprep.subr.mxu0 0.0
          %1751 = vmatpush1.xpose.msra.mxu0 0.0
          %1752 = vmatprep.subr.mxu0 0.0
          %1753 = vmatpush1.xpose.msra.mxu0 0.0
          %1754 = vmatprep.subr.mxu0 0.0
          %1755 = vmatpush1.xpose.msra.mxu0 0.0
          %1756 = vmatprep.subr.mxu0 0.0
          %1757 = vmatpush1.xpose.msra.mxu0 0.0
          %1758 = vmatprep.subr.mxu0 0.0
          %1759 = vmatpush1.xpose.msra.mxu0 0.0
          %1760 = vmatprep.subr.mxu0 0.0
          %1761 = vmatpush1.xpose.msra.mxu0 0.0
          %1762 = vmatprep.subr.mxu0 0.0
          %1763 = vmatpush1.xpose.msra.mxu0 0.0
          %1764 = vmatprep.subr.mxu0 0.0
          %1765 = vmatpush1.xpose.msra.mxu0 0.0
          %1766 = vmatprep.subr.mxu0 0.0
          %1767 = vmatpush1.xpose.msra.mxu0 0.0
          %1768 = vmatprep.subr.mxu0 0.0
          %1769 = vmatpush1.xpose.msra.mxu0 0.0
          %1770 = vmatprep.subr.mxu0 0.0
          %1771 = vmatpush1.xpose.msra.mxu0 0.0
          %1772 = vmatprep.subr.mxu0 0.0
          %1773 = vmatpush1.xpose.msra.mxu0 0.0
          %1774 = vmatprep.subr.mxu0 0.0
          %1775 = vmatpush1.xpose.msra.mxu0 0.0
          %1776 = vmatprep.subr.mxu0 0.0
          %1777 = vmatpush1.xpose.msra.mxu0 0.0
          %1778 = vmatprep.subr.mxu0 0.0
          %1779 = vmatpush1.xpose.msra.mxu0 0.0
          %1780 = vmatprep.mubr.f32.mxu0 0.0
          %1781 = vmatmul.mubr.f32.gmra.mrb[0].mxu0 %v1693
          %v1782 = vpop.f32.mrb[0].mxu0
          %v1783 = vadd.f32 0.0, %v1782
          %v1784 = vpop.f32.mrb[0].mxu0
          %1785 = vmatprep.mubr.f32.mxu0 0.0
          %1786 = vmatmul.mubr.f32.gmra.mrb[0].mxu0 %v1696
          %v1787 = vpop.f32.mrb[0].mxu0
          %v1788 = vadd.f32 0.0, %v1787
          %v1789 = vpop.f32.mrb[0].mxu0
          %1790 = vmatprep.mubr.f32.mxu0 0.0
          %1791 = vmatmul.mubr.f32.gmra.mrb[0].mxu0 %v1699
          %v1792 = vpop.f32.mrb[0].mxu0
          %v1793 = vadd.f32 0.0, %v1792
          %v1794 = vpop.f32.mrb[0].mxu0
          %1795 = vmatprep.mubr.f32.mxu0 0.0
          %1796 = vmatmul.mubr.f32.gmra.mrb[0].mxu0 %v1702
          %v1797 = vpop.f32.mrb[0].mxu0
          %v1798 = vadd.f32 0.0, %v1797
          %v1799 = vpop.f32.mrb[0].mxu0
          %1800 = vdwg.mxu0
          %v1801 = vsel %vm1242, %v1456, -inf
          %1802 = vmax.xlane.f32.xlu0 %v1801
          %v1803 = vpop.xlane.xlu0 %1802
          %v1804 = vsel %vm1242, %v1461, -inf
          %1805 = vmax.xlane.f32.xlu0 %v1804
          %v1806 = vpop.xlane.xlu0 %1805
          %v1807 = vsel %vm1242, %v1466, -inf
          %1808 = vmax.xlane.f32.xlu0 %v1807
          %v1809 = vpop.xlane.xlu0 %1808
          %v1810 = vsel %vm1242, %v1471, -inf
          %1811 = vmax.xlane.f32.xlu0 %v1810
          %v1812 = vpop.xlane.xlu0 %1811
          %v1813 = vsel %vm1242, %v1565, -inf
          %1814 = vmax.xlane.f32.xlu0 %v1813
          %v1815 = vpop.xlane.xlu0 %1814
          %v1816 = vsel %vm1242, %v1570, -inf
          %1817 = vmax.xlane.f32.xlu0 %v1816
          %v1818 = vpop.xlane.xlu0 %1817
          %v1819 = vsel %vm1242, %v1575, -inf
          %1820 = vmax.xlane.f32.xlu0 %v1819
          %v1821 = vpop.xlane.xlu0 %1820
          %v1822 = vsel %vm1242, %v1580, -inf
          %1823 = vmax.xlane.f32.xlu0 %v1822
          %v1824 = vpop.xlane.xlu0 %1823
          %v1825 = vsel %vm1242, %v1674, -inf
          %1826 = vmax.xlane.f32.xlu0 %v1825
          %v1827 = vpop.xlane.xlu0 %1826
          %v1828 = vsel %vm1242, %v1679, -inf
          %1829 = vmax.xlane.f32.xlu0 %v1828
          %v1830 = vpop.xlane.xlu0 %1829
          %v1831 = vsel %vm1242, %v1684, -inf
          %1832 = vmax.xlane.f32.xlu0 %v1831
          %v1833 = vpop.xlane.xlu0 %1832
          %v1834 = vsel %vm1242, %v1689, -inf
          %1835 = vmax.xlane.f32.xlu0 %v1834
          %v1836 = vpop.xlane.xlu0 %1835
          %v1837 = vsel %vm1242, %v1783, -inf
          %1838 = vmax.xlane.f32.xlu0 %v1837
          %v1839 = vpop.xlane.xlu0 %1838
          %v1840 = vsel %vm1242, %v1788, -inf
          %1841 = vmax.xlane.f32.xlu0 %v1840
          %v1842 = vpop.xlane.xlu0 %1841
          %v1843 = vsel %vm1242, %v1793, -inf
          %1844 = vmax.xlane.f32.xlu0 %v1843
          %v1845 = vpop.xlane.xlu0 %1844
          %v1846 = vsel %vm1242, %v1798, -inf
          %1847 = vmax.xlane.f32.xlu0 %v1846
          %v1848 = vpop.xlane.xlu0 %1847
          %v1849 = vmax.f32 %v1282, %v1803
          %v1850 = vmax.f32 %v1283, %v1806
          %v1851 = vmax.f32 %v1284, %v1809
          %v1852 = vmax.f32 %v1285, %v1812
          %v1853 = vmax.f32 %v1286, %v1815
          %v1854 = vmax.f32 %v1287, %v1818
          %v1855 = vmax.f32 %v1288, %v1821
          %v1856 = vmax.f32 %v1289, %v1824
          %v1857 = vmax.f32 %v1290, %v1827
          %v1858 = vmax.f32 %v1291, %v1830
          %v1859 = vmax.f32 %v1292, %v1833
          %v1860 = vmax.f32 %v1293, %v1836
          %v1861 = vmax.f32 %v1294, %v1839
          %v1862 = vmax.f32 %v1295, %v1842
          %v1863 = vmax.f32 %v1296, %v1845
          %v1864 = vmax.f32 %v1297, %v1848
          %v1865 = vsub.f32 %v1282, %v1849
          %v1866 = vsub.f32 %v1283, %v1850
          %v1867 = vsub.f32 %v1284, %v1851
          %v1868 = vsub.f32 %v1285, %v1852
          %v1869 = vsub.f32 %v1286, %v1853
          %v1870 = vsub.f32 %v1287, %v1854
          %v1871 = vsub.f32 %v1288, %v1855
          %v1872 = vsub.f32 %v1289, %v1856
          %v1873 = vsub.f32 %v1290, %v1857
          %v1874 = vsub.f32 %v1291, %v1858
          %v1875 = vsub.f32 %v1292, %v1859
          %v1876 = vsub.f32 %v1293, %v1860
          %v1877 = vsub.f32 %v1294, %v1861
          %v1878 = vsub.f32 %v1295, %v1862
          %v1879 = vsub.f32 %v1296, %v1863
          %v1880 = vsub.f32 %v1297, %v1864
          %v1881 = vmul.f32 %v1865, 1.442695
          %v1882 = vpow.pop %v1881
          %v1883 = vmul.f32 %v1866, 1.442695
          %v1884 = vpow.pop %v1883
          %v1885 = vmul.f32 %v1867, 1.442695
          %v1886 = vpow.pop %v1885
          %v1887 = vmul.f32 %v1868, 1.442695
          %v1888 = vpow.pop %v1887
          %v1889 = vmul.f32 %v1869, 1.442695
          %v1890 = vpow.pop %v1889
          %v1891 = vmul.f32 %v1870, 1.442695
          %v1892 = vpow.pop %v1891
          %v1893 = vmul.f32 %v1871, 1.442695
          %v1894 = vpow.pop %v1893
          %v1895 = vmul.f32 %v1872, 1.442695
          %v1896 = vpow.pop %v1895
          %v1897 = vmul.f32 %v1873, 1.442695
          %v1898 = vpow.pop %v1897
          %v1899 = vmul.f32 %v1874, 1.442695
          %v1900 = vpow.pop %v1899
          %v1901 = vmul.f32 %v1875, 1.442695
          %v1902 = vpow.pop %v1901
          %v1903 = vmul.f32 %v1876, 1.442695
          %v1904 = vpow.pop %v1903
          %v1905 = vmul.f32 %v1877, 1.442695
          %v1906 = vpow.pop %v1905
          %v1907 = vmul.f32 %v1878, 1.442695
          %v1908 = vpow.pop %v1907
          %v1909 = vmul.f32 %v1879, 1.442695
          %v1910 = vpow.pop %v1909
          %v1911 = vmul.f32 %v1880, 1.442695
          %v1912 = vpow.pop %v1911
          %v1913 = vsub.f32 %v1456, %v1849
          %v1914 = vsub.f32 %v1461, %v1850
          %v1915 = vsub.f32 %v1466, %v1851
          %v1916 = vsub.f32 %v1471, %v1852
          %v1917 = vsub.f32 %v1565, %v1853
          %v1918 = vsub.f32 %v1570, %v1854
          %v1919 = vsub.f32 %v1575, %v1855
          %v1920 = vsub.f32 %v1580, %v1856
          %v1921 = vsub.f32 %v1674, %v1857
          %v1922 = vsub.f32 %v1679, %v1858
          %v1923 = vsub.f32 %v1684, %v1859
          %v1924 = vsub.f32 %v1689, %v1860
          %v1925 = vsub.f32 %v1783, %v1861
          %v1926 = vsub.f32 %v1788, %v1862
          %v1927 = vsub.f32 %v1793, %v1863
          %v1928 = vsub.f32 %v1798, %v1864
          %v1929 = vmul.f32 %v1913, 1.442695
          %v1930 = vpow.pop %v1929
          %v1931 = vmul.f32 %v1914, 1.442695
          %v1932 = vpow.pop %v1931
          %v1933 = vmul.f32 %v1915, 1.442695
          %v1934 = vpow.pop %v1933
          %v1935 = vmul.f32 %v1916, 1.442695
          %v1936 = vpow.pop %v1935
          %v1937 = vmul.f32 %v1917, 1.442695
          %v1938 = vpow.pop %v1937
          %v1939 = vmul.f32 %v1918, 1.442695
          %v1940 = vpow.pop %v1939
          %v1941 = vmul.f32 %v1919, 1.442695
          %v1942 = vpow.pop %v1941
          %v1943 = vmul.f32 %v1920, 1.442695
          %v1944 = vpow.pop %v1943
          %v1945 = vmul.f32 %v1921, 1.442695
          %v1946 = vpow.pop %v1945
          %v1947 = vmul.f32 %v1922, 1.442695
          %v1948 = vpow.pop %v1947
          %v1949 = vmul.f32 %v1923, 1.442695
          %v1950 = vpow.pop %v1949
          %v1951 = vmul.f32 %v1924, 1.442695
          %v1952 = vpow.pop %v1951
          %v1953 = vmul.f32 %v1925, 1.442695
          %v1954 = vpow.pop %v1953
          %v1955 = vmul.f32 %v1926, 1.442695
          %v1956 = vpow.pop %v1955
          %v1957 = vmul.f32 %v1927, 1.442695
          %v1958 = vpow.pop %v1957
          %v1959 = vmul.f32 %v1928, 1.442695
          %v1960 = vpow.pop %v1959
          %v1961 = vmul.f32 %v1882, %v1298
          %v1962 = vmul.f32 %v1884, %v1299
          %v1963 = vmul.f32 %v1886, %v1300
          %v1964 = vmul.f32 %v1888, %v1301
          %v1965 = vmul.f32 %v1890, %v1302
          %v1966 = vmul.f32 %v1892, %v1303
          %v1967 = vmul.f32 %v1894, %v1304
          %v1968 = vmul.f32 %v1896, %v1305
          %v1969 = vmul.f32 %v1898, %v1306
          %v1970 = vmul.f32 %v1900, %v1307
          %v1971 = vmul.f32 %v1902, %v1308
          %v1972 = vmul.f32 %v1904, %v1309
          %v1973 = vmul.f32 %v1906, %v1310
          %v1974 = vmul.f32 %v1908, %v1311
          %v1975 = vmul.f32 %v1910, %v1312
          %v1976 = vmul.f32 %v1912, %v1313
          %v1977 = vsel %vm1242, %v1930, 0.0
          %1978 = vadd.xlane.f32.xlu0 %v1977
          %v1979 = vpop.xlane.xlu0 %1978
          %v1980 = vsel %vm1242, %v1932, 0.0
          %1981 = vadd.xlane.f32.xlu0 %v1980
          %v1982 = vpop.xlane.xlu0 %1981
          %v1983 = vsel %vm1242, %v1934, 0.0
          %1984 = vadd.xlane.f32.xlu0 %v1983
          %v1985 = vpop.xlane.xlu0 %1984
          %v1986 = vsel %vm1242, %v1936, 0.0
          %1987 = vadd.xlane.f32.xlu0 %v1986
          %v1988 = vpop.xlane.xlu0 %1987
          %v1989 = vsel %vm1242, %v1938, 0.0
          %1990 = vadd.xlane.f32.xlu0 %v1989
          %v1991 = vpop.xlane.xlu0 %1990
          %v1992 = vsel %vm1242, %v1940, 0.0
          %1993 = vadd.xlane.f32.xlu0 %v1992
          %v1994 = vpop.xlane.xlu0 %1993
          %v1995 = vsel %vm1242, %v1942, 0.0
          %1996 = vadd.xlane.f32.xlu0 %v1995
          %v1997 = vpop.xlane.xlu0 %1996
          %v1998 = vsel %vm1242, %v1944, 0.0
          %1999 = vadd.xlane.f32.xlu0 %v1998
          %v2000 = vpop.xlane.xlu0 %1999
          %v2001 = vsel %vm1242, %v1946, 0.0
          %2002 = vadd.xlane.f32.xlu0 %v2001
          %v2003 = vpop.xlane.xlu0 %2002
          %v2004 = vsel %vm1242, %v1948, 0.0
          %2005 = vadd.xlane.f32.xlu0 %v2004
          %v2006 = vpop.xlane.xlu0 %2005
          %v2007 = vsel %vm1242, %v1950, 0.0
          %2008 = vadd.xlane.f32.xlu0 %v2007
          %v2009 = vpop.xlane.xlu0 %2008
          %v2010 = vsel %vm1242, %v1952, 0.0
          %2011 = vadd.xlane.f32.xlu0 %v2010
          %v2012 = vpop.xlane.xlu0 %2011
          %v2013 = vsel %vm1242, %v1954, 0.0
          %2014 = vadd.xlane.f32.xlu0 %v2013
          %v2015 = vpop.xlane.xlu0 %2014
          %v2016 = vsel %vm1242, %v1956, 0.0
          %2017 = vadd.xlane.f32.xlu0 %v2016
          %v2018 = vpop.xlane.xlu0 %2017
          %v2019 = vsel %vm1242, %v1958, 0.0
          %2020 = vadd.xlane.f32.xlu0 %v2019
          %v2021 = vpop.xlane.xlu0 %2020
          %v2022 = vsel %vm1242, %v1960, 0.0
          %2023 = vadd.xlane.f32.xlu0 %v2022
          %v2024 = vpop.xlane.xlu0 %2023
          %v2025 = vadd.f32 %v1961, %v1979
          %v2026 = vadd.f32 %v1962, %v1982
          %v2027 = vadd.f32 %v1963, %v1985
          %v2028 = vadd.f32 %v1964, %v1988
          %v2029 = vadd.f32 %v1965, %v1991
          %v2030 = vadd.f32 %v1966, %v1994
          %v2031 = vadd.f32 %v1967, %v1997
          %v2032 = vadd.f32 %v1968, %v2000
          %v2033 = vadd.f32 %v1969, %v2003
          %v2034 = vadd.f32 %v1970, %v2006
          %v2035 = vadd.f32 %v1971, %v2009
          %v2036 = vadd.f32 %v1972, %v2012
          %v2037 = vadd.f32 %v1973, %v2015
          %v2038 = vadd.f32 %v1974, %v2018
          %v2039 = vadd.f32 %v1975, %v2021
          %v2040 = vadd.f32 %v1976, %v2024
          %v2041 = vmul.f32 %v1882, %v1314
          %v2042 = vmul.f32 %v1884, %v1315
          %v2043 = vmul.f32 %v1886, %v1316
          %v2044 = vmul.f32 %v1888, %v1317
          %v2045 = vmul.f32 %v1890, %v1318
          %v2046 = vmul.f32 %v1892, %v1319
          %v2047 = vmul.f32 %v1894, %v1320
          %v2048 = vmul.f32 %v1896, %v1321
          %v2049 = vmul.f32 %v1898, %v1322
          %v2050 = vmul.f32 %v1900, %v1323
          %v2051 = vmul.f32 %v1902, %v1324
          %v2052 = vmul.f32 %v1904, %v1325
          %v2053 = vmul.f32 %v1906, %v1326
          %v2054 = vmul.f32 %v1908, %v1327
          %v2055 = vmul.f32 %v1910, %v1328
          %v2056 = vmul.f32 %v1912, %v1329
          %v2058 = vsel %vm1242, %v1930, 0
          %v2061 = vsel %vm1242, %v1932, 0
          %v2064 = vsel %vm1242, %v1934, 0
          %v2067 = vsel %vm1242, %v1936, 0
          %2069 = vmatprep.subr.mxu0 0.0
          %2070 = vmatpush1.msra.mxu0 %v1349
          %2071 = vmatprep.subr.mxu0 0.0
          %2072 = vmatpush1.msra.mxu0 %v1350
          %2073 = vmatprep.subr.mxu0 0.0
          %2074 = vmatpush1.msra.mxu0 %v1351
          %2075 = vmatprep.subr.mxu0 0.0
          %2076 = vmatpush1.msra.mxu0 %v1352
          %2077 = vmatprep.subr.mxu0 0.0
          %2078 = vmatpush1.msra.mxu0 0.0
          %2079 = vmatprep.subr.mxu0 0.0
          %2080 = vmatpush1.msra.mxu0 0.0
          %2081 = vmatprep.subr.mxu0 0.0
          %2082 = vmatpush1.msra.mxu0 0.0
          %2083 = vmatprep.subr.mxu0 0.0
          %2084 = vmatpush1.msra.mxu0 0.0
          %2085 = vmatprep.subr.mxu0 0.0
          %2086 = vmatpush1.msra.mxu0 0.0
          %2087 = vmatprep.subr.mxu0 0.0
          %2088 = vmatpush1.msra.mxu0 0.0
          %2089 = vmatprep.subr.mxu0 0.0
          %2090 = vmatpush1.msra.mxu0 0.0
          %2091 = vmatprep.subr.mxu0 0.0
          %2092 = vmatpush1.msra.mxu0 0.0
          %2093 = vmatprep.subr.mxu0 0.0
          %2094 = vmatpush1.msra.mxu0 0.0
          %2095 = vmatprep.subr.mxu0 0.0
          %2096 = vmatpush1.msra.mxu0 0.0
          %2097 = vmatprep.subr.mxu0 0.0
          %2098 = vmatpush1.msra.mxu0 0.0
          %2099 = vmatprep.subr.mxu0 0.0
          %2100 = vmatpush1.msra.mxu0 0.0
          %2101 = vmatprep.subr.mxu0 0.0
          %2102 = vmatpush1.msra.mxu0 0.0
          %2103 = vmatprep.subr.mxu0 0.0
          %2104 = vmatpush1.msra.mxu0 0.0
          %2105 = vmatprep.subr.mxu0 0.0
          %2106 = vmatpush1.msra.mxu0 0.0
          %2107 = vmatprep.subr.mxu0 0.0
          %2108 = vmatpush1.msra.mxu0 0.0
          %2109 = vmatprep.subr.mxu0 0.0
          %2110 = vmatpush1.msra.mxu0 0.0
          %2111 = vmatprep.subr.mxu0 0.0
          %2112 = vmatpush1.msra.mxu0 0.0
          %2113 = vmatprep.subr.mxu0 0.0
          %2114 = vmatpush1.msra.mxu0 0.0
          %2115 = vmatprep.subr.mxu0 0.0
          %2116 = vmatpush1.msra.mxu0 0.0
          %2117 = vmatprep.subr.mxu0 0.0
          %2118 = vmatpush1.msra.mxu0 0.0
          %2119 = vmatprep.subr.mxu0 0.0
          %2120 = vmatpush1.msra.mxu0 0.0
          %2121 = vmatprep.subr.mxu0 0.0
          %2122 = vmatpush1.msra.mxu0 0.0
          %2123 = vmatprep.subr.mxu0 0.0
          %2124 = vmatpush1.msra.mxu0 0.0
          %2125 = vmatprep.subr.mxu0 0.0
          %2126 = vmatpush1.msra.mxu0 0.0
          %2127 = vmatprep.subr.mxu0 0.0
          %2128 = vmatpush1.msra.mxu0 0.0
          %2129 = vmatprep.subr.mxu0 0.0
          %2130 = vmatpush1.msra.mxu0 0.0
          %2131 = vmatprep.subr.mxu0 0.0
          %2132 = vmatpush1.msra.mxu0 0.0
          %2133 = vmatprep.mubr.f32.mxu0 0.0
          %2134 = vmatmul.mubr.f32.gmra.mrb[0].mxu0 %v2058
          %v2135 = vpop.f32.mrb[0].mxu0
          %v2136 = vadd.f32 0.0, %v2135
          %v2137 = vpop.f32.mrb[0].mxu0
          %2138 = vmatprep.mubr.f32.mxu0 0.0
          %2139 = vmatmul.mubr.f32.gmra.mrb[0].mxu0 %v2061
          %v2140 = vpop.f32.mrb[0].mxu0
          %v2141 = vadd.f32 0.0, %v2140
          %v2142 = vpop.f32.mrb[0].mxu0
          %2143 = vmatprep.mubr.f32.mxu0 0.0
          %2144 = vmatmul.mubr.f32.gmra.mrb[0].mxu0 %v2064
          %v2145 = vpop.f32.mrb[0].mxu0
          %v2146 = vadd.f32 0.0, %v2145
          %v2147 = vpop.f32.mrb[0].mxu0
          %2148 = vmatprep.mubr.f32.mxu0 0.0
          %2149 = vmatmul.mubr.f32.gmra.mrb[0].mxu0 %v2067
          %v2150 = vpop.f32.mrb[0].mxu0
          %v2151 = vadd.f32 0.0, %v2150
          %v2152 = vpop.f32.mrb[0].mxu0
          %2153 = vdwg.mxu0
          %v2155 = vsel %vm1242, %v1938, 0
          %v2158 = vsel %vm1242, %v1940, 0
          %v2161 = vsel %vm1242, %v1942, 0
          %v2164 = vsel %vm1242, %v1944, 0
          %2166 = vmatprep.subr.mxu0 0.0
          %2167 = vmatpush1.msra.mxu0 %v1353
          %2168 = vmatprep.subr.mxu0 0.0
          %2169 = vmatpush1.msra.mxu0 %v1354
          %2170 = vmatprep.subr.mxu0 0.0
          %2171 = vmatpush1.msra.mxu0 %v1355
          %2172 = vmatprep.subr.mxu0 0.0
          %2173 = vmatpush1.msra.mxu0 %v1356
          %2174 = vmatprep.subr.mxu0 0.0
          %2175 = vmatpush1.msra.mxu0 0.0
          %2176 = vmatprep.subr.mxu0 0.0
          %2177 = vmatpush1.msra.mxu0 0.0
          %2178 = vmatprep.subr.mxu0 0.0
          %2179 = vmatpush1.msra.mxu0 0.0
          %2180 = vmatprep.subr.mxu0 0.0
          %2181 = vmatpush1.msra.mxu0 0.0
          %2182 = vmatprep.subr.mxu0 0.0
          %2183 = vmatpush1.msra.mxu0 0.0
          %2184 = vmatprep.subr.mxu0 0.0
          %2185 = vmatpush1.msra.mxu0 0.0
          %2186 = vmatprep.subr.mxu0 0.0
          %2187 = vmatpush1.msra.mxu0 0.0
          %2188 = vmatprep.subr.mxu0 0.0
          %2189 = vmatpush1.msra.mxu0 0.0
          %2190 = vmatprep.subr.mxu0 0.0
          %2191 = vmatpush1.msra.mxu0 0.0
          %2192 = vmatprep.subr.mxu0 0.0
          %2193 = vmatpush1.msra.mxu0 0.0
          %2194 = vmatprep.subr.mxu0 0.0
          %2195 = vmatpush1.msra.mxu0 0.0
          %2196 = vmatprep.subr.mxu0 0.0
          %2197 = vmatpush1.msra.mxu0 0.0
          %2198 = vmatprep.subr.mxu0 0.0
          %2199 = vmatpush1.msra.mxu0 0.0
          %2200 = vmatprep.subr.mxu0 0.0
          %2201 = vmatpush1.msra.mxu0 0.0
          %2202 = vmatprep.subr.mxu0 0.0
          %2203 = vmatpush1.msra.mxu0 0.0
          %2204 = vmatprep.subr.mxu0 0.0
          %2205 = vmatpush1.msra.mxu0 0.0
          %2206 = vmatprep.subr.mxu0 0.0
          %2207 = vmatpush1.msra.mxu0 0.0
          %2208 = vmatprep.subr.mxu0 0.0
          %2209 = vmatpush1.msra.mxu0 0.0
          %2210 = vmatprep.subr.mxu0 0.0
          %2211 = vmatpush1.msra.mxu0 0.0
          %2212 = vmatprep.subr.mxu0 0.0
          %2213 = vmatpush1.msra.mxu0 0.0
          %2214 = vmatprep.subr.mxu0 0.0
          %2215 = vmatpush1.msra.mxu0 0.0
          %2216 = vmatprep.subr.mxu0 0.0
          %2217 = vmatpush1.msra.mxu0 0.0
          %2218 = vmatprep.subr.mxu0 0.0
          %2219 = vmatpush1.msra.mxu0 0.0
          %2220 = vmatprep.subr.mxu0 0.0
          %2221 = vmatpush1.msra.mxu0 0.0
          %2222 = vmatprep.subr.mxu0 0.0
          %2223 = vmatpush1.msra.mxu0 0.0
          %2224 = vmatprep.subr.mxu0 0.0
          %2225 = vmatpush1.msra.mxu0 0.0
          %2226 = vmatprep.subr.mxu0 0.0
          %2227 = vmatpush1.msra.mxu0 0.0
          %2228 = vmatprep.subr.mxu0 0.0
          %2229 = vmatpush1.msra.mxu0 0.0
          %2230 = vmatprep.mubr.f32.mxu0 0.0
          %2231 = vmatmul.mubr.f32.gmra.mrb[0].mxu0 %v2155
          %v2232 = vpop.f32.mrb[0].mxu0
          %v2233 = vadd.f32 0.0, %v2232
          %v2234 = vpop.f32.mrb[0].mxu0
          %2235 = vmatprep.mubr.f32.mxu0 0.0
          %2236 = vmatmul.mubr.f32.gmra.mrb[0].mxu0 %v2158
          %v2237 = vpop.f32.mrb[0].mxu0
          %v2238 = vadd.f32 0.0, %v2237
          %v2239 = vpop.f32.mrb[0].mxu0
          %2240 = vmatprep.mubr.f32.mxu0 0.0
          %2241 = vmatmul.mubr.f32.gmra.mrb[0].mxu0 %v2161
          %v2242 = vpop.f32.mrb[0].mxu0
          %v2243 = vadd.f32 0.0, %v2242
          %v2244 = vpop.f32.mrb[0].mxu0
          %2245 = vmatprep.mubr.f32.mxu0 0.0
          %2246 = vmatmul.mubr.f32.gmra.mrb[0].mxu0 %v2164
          %v2247 = vpop.f32.mrb[0].mxu0
          %v2248 = vadd.f32 0.0, %v2247
          %v2249 = vpop.f32.mrb[0].mxu0
          %2250 = vdwg.mxu0
          %v2252 = vsel %vm1242, %v1946, 0
          %v2255 = vsel %vm1242, %v1948, 0
          %v2258 = vsel %vm1242, %v1950, 0
          %v2261 = vsel %vm1242, %v1952, 0
          %2263 = vmatprep.subr.mxu0 0.0
          %2264 = vmatpush1.msra.mxu0 %v1357
          %2265 = vmatprep.subr.mxu0 0.0
          %2266 = vmatpush1.msra.mxu0 %v1358
          %2267 = vmatprep.subr.mxu0 0.0
          %2268 = vmatpush1.msra.mxu0 %v1359
          %2269 = vmatprep.subr.mxu0 0.0
          %2270 = vmatpush1.msra.mxu0 %v1360
          %2271 = vmatprep.subr.mxu0 0.0
          %2272 = vmatpush1.msra.mxu0 0.0
          %2273 = vmatprep.subr.mxu0 0.0
          %2274 = vmatpush1.msra.mxu0 0.0
          %2275 = vmatprep.subr.mxu0 0.0
          %2276 = vmatpush1.msra.mxu0 0.0
          %2277 = vmatprep.subr.mxu0 0.0
          %2278 = vmatpush1.msra.mxu0 0.0
          %2279 = vmatprep.subr.mxu0 0.0
          %2280 = vmatpush1.msra.mxu0 0.0
          %2281 = vmatprep.subr.mxu0 0.0
          %2282 = vmatpush1.msra.mxu0 0.0
          %2283 = vmatprep.subr.mxu0 0.0
          %2284 = vmatpush1.msra.mxu0 0.0
          %2285 = vmatprep.subr.mxu0 0.0
          %2286 = vmatpush1.msra.mxu0 0.0
          %2287 = vmatprep.subr.mxu0 0.0
          %2288 = vmatpush1.msra.mxu0 0.0
          %2289 = vmatprep.subr.mxu0 0.0
          %2290 = vmatpush1.msra.mxu0 0.0
          %2291 = vmatprep.subr.mxu0 0.0
          %2292 = vmatpush1.msra.mxu0 0.0
          %2293 = vmatprep.subr.mxu0 0.0
          %2294 = vmatpush1.msra.mxu0 0.0
          %2295 = vmatprep.subr.mxu0 0.0
          %2296 = vmatpush1.msra.mxu0 0.0
          %2297 = vmatprep.subr.mxu0 0.0
          %2298 = vmatpush1.msra.mxu0 0.0
          %2299 = vmatprep.subr.mxu0 0.0
          %2300 = vmatpush1.msra.mxu0 0.0
          %2301 = vmatprep.subr.mxu0 0.0
          %2302 = vmatpush1.msra.mxu0 0.0
          %2303 = vmatprep.subr.mxu0 0.0
          %2304 = vmatpush1.msra.mxu0 0.0
          %2305 = vmatprep.subr.mxu0 0.0
          %2306 = vmatpush1.msra.mxu0 0.0
          %2307 = vmatprep.subr.mxu0 0.0
          %2308 = vmatpush1.msra.mxu0 0.0
          %2309 = vmatprep.subr.mxu0 0.0
          %2310 = vmatpush1.msra.mxu0 0.0
          %2311 = vmatprep.subr.mxu0 0.0
          %2312 = vmatpush1.msra.mxu0 0.0
          %2313 = vmatprep.subr.mxu0 0.0
          %2314 = vmatpush1.msra.mxu0 0.0
          %2315 = vmatprep.subr.mxu0 0.0
          %2316 = vmatpush1.msra.mxu0 0.0
          %2317 = vmatprep.subr.mxu0 0.0
          %2318 = vmatpush1.msra.mxu0 0.0
          %2319 = vmatprep.subr.mxu0 0.0
          %2320 = vmatpush1.msra.mxu0 0.0
          %2321 = vmatprep.subr.mxu0 0.0
          %2322 = vmatpush1.msra.mxu0 0.0
          %2323 = vmatprep.subr.mxu0 0.0
          %2324 = vmatpush1.msra.mxu0 0.0
          %2325 = vmatprep.subr.mxu0 0.0
          %2326 = vmatpush1.msra.mxu0 0.0
          %2327 = vmatprep.mubr.f32.mxu0 0.0
          %2328 = vmatmul.mubr.f32.gmra.mrb[0].mxu0 %v2252
          %v2329 = vpop.f32.mrb[0].mxu0
          %v2330 = vadd.f32 0.0, %v2329
          %v2331 = vpop.f32.mrb[0].mxu0
          %2332 = vmatprep.mubr.f32.mxu0 0.0
          %2333 = vmatmul.mubr.f32.gmra.mrb[0].mxu0 %v2255
          %v2334 = vpop.f32.mrb[0].mxu0
          %v2335 = vadd.f32 0.0, %v2334
          %v2336 = vpop.f32.mrb[0].mxu0
          %2337 = vmatprep.mubr.f32.mxu0 0.0
          %2338 = vmatmul.mubr.f32.gmra.mrb[0].mxu0 %v2258
          %v2339 = vpop.f32.mrb[0].mxu0
          %v2340 = vadd.f32 0.0, %v2339
          %v2341 = vpop.f32.mrb[0].mxu0
          %2342 = vmatprep.mubr.f32.mxu0 0.0
          %2343 = vmatmul.mubr.f32.gmra.mrb[0].mxu0 %v2261
          %v2344 = vpop.f32.mrb[0].mxu0
          %v2345 = vadd.f32 0.0, %v2344
          %v2346 = vpop.f32.mrb[0].mxu0
          %2347 = vdwg.mxu0
          %v2349 = vsel %vm1242, %v1954, 0
          %v2352 = vsel %vm1242, %v1956, 0
          %v2355 = vsel %vm1242, %v1958, 0
          %v2358 = vsel %vm1242, %v1960, 0
          %2360 = vmatprep.subr.mxu0 0.0
          %2361 = vmatpush1.msra.mxu0 %v1361
          %2362 = vmatprep.subr.mxu0 0.0
          %2363 = vmatpush1.msra.mxu0 %v1362
          %2364 = vmatprep.subr.mxu0 0.0
          %2365 = vmatpush1.msra.mxu0 %v1363
          %2366 = vmatprep.subr.mxu0 0.0
          %2367 = vmatpush1.msra.mxu0 %v1364
          %2368 = vmatprep.subr.mxu0 0.0
          %2369 = vmatpush1.msra.mxu0 0.0
          %2370 = vmatprep.subr.mxu0 0.0
          %2371 = vmatpush1.msra.mxu0 0.0
          %2372 = vmatprep.subr.mxu0 0.0
          %2373 = vmatpush1.msra.mxu0 0.0
          %2374 = vmatprep.subr.mxu0 0.0
          %2375 = vmatpush1.msra.mxu0 0.0
          %2376 = vmatprep.subr.mxu0 0.0
          %2377 = vmatpush1.msra.mxu0 0.0
          %2378 = vmatprep.subr.mxu0 0.0
          %2379 = vmatpush1.msra.mxu0 0.0
          %2380 = vmatprep.subr.mxu0 0.0
          %2381 = vmatpush1.msra.mxu0 0.0
          %2382 = vmatprep.subr.mxu0 0.0
          %2383 = vmatpush1.msra.mxu0 0.0
          %2384 = vmatprep.subr.mxu0 0.0
          %2385 = vmatpush1.msra.mxu0 0.0
          %2386 = vmatprep.subr.mxu0 0.0
          %2387 = vmatpush1.msra.mxu0 0.0
          %2388 = vmatprep.subr.mxu0 0.0
          %2389 = vmatpush1.msra.mxu0 0.0
          %2390 = vmatprep.subr.mxu0 0.0
          %2391 = vmatpush1.msra.mxu0 0.0
          %2392 = vmatprep.subr.mxu0 0.0
          %2393 = vmatpush1.msra.mxu0 0.0
          %2394 = vmatprep.subr.mxu0 0.0
          %2395 = vmatpush1.msra.mxu0 0.0
          %2396 = vmatprep.subr.mxu0 0.0
          %2397 = vmatpush1.msra.mxu0 0.0
          %2398 = vmatprep.subr.mxu0 0.0
          %2399 = vmatpush1.msra.mxu0 0.0
          %2400 = vmatprep.subr.mxu0 0.0
          %2401 = vmatpush1.msra.mxu0 0.0
          %2402 = vmatprep.subr.mxu0 0.0
          %2403 = vmatpush1.msra.mxu0 0.0
          %2404 = vmatprep.subr.mxu0 0.0
          %2405 = vmatpush1.msra.mxu0 0.0
          %2406 = vmatprep.subr.mxu0 0.0
          %2407 = vmatpush1.msra.mxu0 0.0
          %2408 = vmatprep.subr.mxu0 0.0
          %2409 = vmatpush1.msra.mxu0 0.0
          %2410 = vmatprep.subr.mxu0 0.0
          %2411 = vmatpush1.msra.mxu0 0.0
          %2412 = vmatprep.subr.mxu0 0.0
          %2413 = vmatpush1.msra.mxu0 0.0
          %2414 = vmatprep.subr.mxu0 0.0
          %2415 = vmatpush1.msra.mxu0 0.0
          %2416 = vmatprep.subr.mxu0 0.0
          %2417 = vmatpush1.msra.mxu0 0.0
          %2418 = vmatprep.subr.mxu0 0.0
          %2419 = vmatpush1.msra.mxu0 0.0
          %2420 = vmatprep.subr.mxu0 0.0
          %2421 = vmatpush1.msra.mxu0 0.0
          %2422 = vmatprep.subr.mxu0 0.0
          %2423 = vmatpush1.msra.mxu0 0.0
          %2424 = vmatprep.mubr.f32.mxu0 0.0
          %2425 = vmatmul.mubr.f32.gmra.mrb[0].mxu0 %v2349
          %v2426 = vpop.f32.mrb[0].mxu0
          %v2427 = vadd.f32 0.0, %v2426
          %v2428 = vpop.f32.mrb[0].mxu0
          %2429 = vmatprep.mubr.f32.mxu0 0.0
          %2430 = vmatmul.mubr.f32.gmra.mrb[0].mxu0 %v2352
          %v2431 = vpop.f32.mrb[0].mxu0
          %v2432 = vadd.f32 0.0, %v2431
          %v2433 = vpop.f32.mrb[0].mxu0
          %2434 = vmatprep.mubr.f32.mxu0 0.0
          %2435 = vmatmul.mubr.f32.gmra.mrb[0].mxu0 %v2355
          %v2436 = vpop.f32.mrb[0].mxu0
          %v2437 = vadd.f32 0.0, %v2436
          %v2438 = vpop.f32.mrb[0].mxu0
          %2439 = vmatprep.mubr.f32.mxu0 0.0
          %2440 = vmatmul.mubr.f32.gmra.mrb[0].mxu0 %v2358
          %v2441 = vpop.f32.mrb[0].mxu0
          %v2442 = vadd.f32 0.0, %v2441
          %v2443 = vpop.f32.mrb[0].mxu0
          %2444 = vdwg.mxu0
          %v2445 = vadd.f32 %v2041, %v2136
          %v2446 = vadd.f32 %v2042, %v2141
          %v2447 = vadd.f32 %v2043, %v2146
          %v2448 = vadd.f32 %v2044, %v2151
          %v2449 = vadd.f32 %v2045, %v2233
          %v2450 = vadd.f32 %v2046, %v2238
          %v2451 = vadd.f32 %v2047, %v2243
          %v2452 = vadd.f32 %v2048, %v2248
          %v2453 = vadd.f32 %v2049, %v2330
          %v2454 = vadd.f32 %v2050, %v2335
          %v2455 = vadd.f32 %v2051, %v2340
          %v2456 = vadd.f32 %v2052, %v2345
          %v2457 = vadd.f32 %v2053, %v2427
          %v2458 = vadd.f32 %v2054, %v2432
          %v2459 = vadd.f32 %v2055, %v2437
          %v2460 = vadd.f32 %v2056, %v2442
        $region81: #{tpu_custom_call.1} parent=59 // loop_footer
          %s1279 = sadd.s32 %s1277, 1
        $region82: #{tpu_custom_call.1} parent=59 // loop_footer_branch
          %1276 = sbr.rel target = $region78
        $region83: #{tpu_custom_call.1} parent=59 // loop_exit
          _
        %v2461 = vlaneseq
        %v2462 = vand.u32 %v2461, 127
        %v2463 = vlaneseq
        %v2464 = vshrl.u32 %v2463, 7
        %v2465 = vadd.s32 %v2464, 8
        %v2466 = vadd.s32 %v2464, 16
        %v2467 = vadd.s32 %v2464, 24
        %vm2468 = vcmp.le.s32.totalorder %v2462, %v2464
        %vm2469 = vcmp.le.s32.totalorder %v2462, %v2465
        %vm2470 = vcmp.le.s32.totalorder %v2462, %v2466
        %vm2471 = vcmp.le.s32.totalorder %v2462, %v2467
        %v2473 = vsel %vm1242, %v985, 0
        %v2476 = vsel %vm1242, %v986, 0
        %v2479 = vsel %vm1242, %v987, 0
        %v2482 = vsel %vm1242, %v988, 0
        %v2485 = vsel %vm1242, %v1185, 0
        %v2488 = vsel %vm1242, %v1186, 0
        %v2491 = vsel %vm1242, %v1187, 0
        %v2494 = vsel %vm1242, %v1188, 0
        %2496 = vmatprep.subr.mxu0 0.0
        %2497 = vmatpush1.xpose.msra.mxu0 %v2485
        %2498 = vmatprep.subr.mxu0 0.0
        %2499 = vmatpush1.xpose.msra.mxu0 %v2488
        %2500 = vmatprep.subr.mxu0 0.0
        %2501 = vmatpush1.xpose.msra.mxu0 %v2491
        %2502 = vmatprep.subr.mxu0 0.0
        %2503 = vmatpush1.xpose.msra.mxu0 %v2494
        %2504 = vmatprep.subr.mxu0 0.0
        %2505 = vmatpush1.xpose.msra.mxu0 0.0
        %2506 = vmatprep.subr.mxu0 0.0
        %2507 = vmatpush1.xpose.msra.mxu0 0.0
        %2508 = vmatprep.subr.mxu0 0.0
        %2509 = vmatpush1.xpose.msra.mxu0 0.0
        %2510 = vmatprep.subr.mxu0 0.0
        %2511 = vmatpush1.xpose.msra.mxu0 0.0
        %2512 = vmatprep.subr.mxu0 0.0
        %2513 = vmatpush1.xpose.msra.mxu0 0.0
        %2514 = vmatprep.subr.mxu0 0.0
        %2515 = vmatpush1.xpose.msra.mxu0 0.0
        %2516 = vmatprep.subr.mxu0 0.0
        %2517 = vmatpush1.xpose.msra.mxu0 0.0
        %2518 = vmatprep.subr.mxu0 0.0
        %2519 = vmatpush1.xpose.msra.mxu0 0.0
        %2520 = vmatprep.subr.mxu0 0.0
        %2521 = vmatpush1.xpose.msra.mxu0 0.0
        %2522 = vmatprep.subr.mxu0 0.0
        %2523 = vmatpush1.xpose.msra.mxu0 0.0
        %2524 = vmatprep.subr.mxu0 0.0
        %2525 = vmatpush1.xpose.msra.mxu0 0.0
        %2526 = vmatprep.subr.mxu0 0.0
        %2527 = vmatpush1.xpose.msra.mxu0 0.0
        %2528 = vmatprep.subr.mxu0 0.0
        %2529 = vmatpush1.xpose.msra.mxu0 0.0
        %2530 = vmatprep.subr.mxu0 0.0
        %2531 = vmatpush1.xpose.msra.mxu0 0.0
        %2532 = vmatprep.subr.mxu0 0.0
        %2533 = vmatpush1.xpose.msra.mxu0 0.0
        %2534 = vmatprep.subr.mxu0 0.0
        %2535 = vmatpush1.xpose.msra.mxu0 0.0
        %2536 = vmatprep.subr.mxu0 0.0
        %2537 = vmatpush1.xpose.msra.mxu0 0.0
        %2538 = vmatprep.subr.mxu0 0.0
        %2539 = vmatpush1.xpose.msra.mxu0 0.0
        %2540 = vmatprep.subr.mxu0 0.0
        %2541 = vmatpush1.xpose.msra.mxu0 0.0
        %2542 = vmatprep.subr.mxu0 0.0
        %2543 = vmatpush1.xpose.msra.mxu0 0.0
        %2544 = vmatprep.subr.mxu0 0.0
        %2545 = vmatpush1.xpose.msra.mxu0 0.0
        %2546 = vmatprep.subr.mxu0 0.0
        %2547 = vmatpush1.xpose.msra.mxu0 0.0
        %2548 = vmatprep.subr.mxu0 0.0
        %2549 = vmatpush1.xpose.msra.mxu0 0.0
        %2550 = vmatprep.subr.mxu0 0.0
        %2551 = vmatpush1.xpose.msra.mxu0 0.0
        %2552 = vmatprep.subr.mxu0 0.0
        %2553 = vmatpush1.xpose.msra.mxu0 0.0
        %2554 = vmatprep.subr.mxu0 0.0
        %2555 = vmatpush1.xpose.msra.mxu0 0.0
        %2556 = vmatprep.subr.mxu0 0.0
        %2557 = vmatpush1.xpose.msra.mxu0 0.0
        %2558 = vmatprep.subr.mxu0 0.0
        %2559 = vmatpush1.xpose.msra.mxu0 0.0
        %2560 = vmatprep.mubr.f32.mxu0 0.0
        %2561 = vmatmul.mubr.f32.gmra.mrb[0].mxu0 %v2473
        %v2562 = vpop.f32.mrb[0].mxu0
        %v2563 = vadd.f32 0.0, %v2562
        %v2564 = vpop.f32.mrb[0].mxu0
        %2565 = vmatprep.mubr.f32.mxu0 0.0
        %2566 = vmatmul.mubr.f32.gmra.mrb[0].mxu0 %v2476
        %v2567 = vpop.f32.mrb[0].mxu0
        %v2568 = vadd.f32 0.0, %v2567
        %v2569 = vpop.f32.mrb[0].mxu0
        %2570 = vmatprep.mubr.f32.mxu0 0.0
        %2571 = vmatmul.mubr.f32.gmra.mrb[0].mxu0 %v2479
        %v2572 = vpop.f32.mrb[0].mxu0
        %v2573 = vadd.f32 0.0, %v2572
        %v2574 = vpop.f32.mrb[0].mxu0
        %2575 = vmatprep.mubr.f32.mxu0 0.0
        %2576 = vmatmul.mubr.f32.gmra.mrb[0].mxu0 %v2482
        %v2577 = vpop.f32.mrb[0].mxu0
        %v2578 = vadd.f32 0.0, %v2577
        %v2579 = vpop.f32.mrb[0].mxu0
        %2580 = vdwg.mxu0
        %v2582 = vsel %vm1242, %v989, 0
        %v2585 = vsel %vm1242, %v990, 0
        %v2588 = vsel %vm1242, %v991, 0
        %v2591 = vsel %vm1242, %v992, 0
        %v2594 = vsel %vm1242, %v1189, 0
        %v2597 = vsel %vm1242, %v1190, 0
        %v2600 = vsel %vm1242, %v1191, 0
        %v2603 = vsel %vm1242, %v1192, 0
        %2605 = vmatprep.subr.mxu0 0.0
        %2606 = vmatpush1.xpose.msra.mxu0 %v2594
        %2607 = vmatprep.subr.mxu0 0.0
        %2608 = vmatpush1.xpose.msra.mxu0 %v2597
        %2609 = vmatprep.subr.mxu0 0.0
        %2610 = vmatpush1.xpose.msra.mxu0 %v2600
        %2611 = vmatprep.subr.mxu0 0.0
        %2612 = vmatpush1.xpose.msra.mxu0 %v2603
        %2613 = vmatprep.subr.mxu0 0.0
        %2614 = vmatpush1.xpose.msra.mxu0 0.0
        %2615 = vmatprep.subr.mxu0 0.0
        %2616 = vmatpush1.xpose.msra.mxu0 0.0
        %2617 = vmatprep.subr.mxu0 0.0
        %2618 = vmatpush1.xpose.msra.mxu0 0.0
        %2619 = vmatprep.subr.mxu0 0.0
        %2620 = vmatpush1.xpose.msra.mxu0 0.0
        %2621 = vmatprep.subr.mxu0 0.0
        %2622 = vmatpush1.xpose.msra.mxu0 0.0
        %2623 = vmatprep.subr.mxu0 0.0
        %2624 = vmatpush1.xpose.msra.mxu0 0.0
        %2625 = vmatprep.subr.mxu0 0.0
        %2626 = vmatpush1.xpose.msra.mxu0 0.0
        %2627 = vmatprep.subr.mxu0 0.0
        %2628 = vmatpush1.xpose.msra.mxu0 0.0
        %2629 = vmatprep.subr.mxu0 0.0
        %2630 = vmatpush1.xpose.msra.mxu0 0.0
        %2631 = vmatprep.subr.mxu0 0.0
        %2632 = vmatpush1.xpose.msra.mxu0 0.0
        %2633 = vmatprep.subr.mxu0 0.0
        %2634 = vmatpush1.xpose.msra.mxu0 0.0
        %2635 = vmatprep.subr.mxu0 0.0
        %2636 = vmatpush1.xpose.msra.mxu0 0.0
        %2637 = vmatprep.subr.mxu0 0.0
        %2638 = vmatpush1.xpose.msra.mxu0 0.0
        %2639 = vmatprep.subr.mxu0 0.0
        %2640 = vmatpush1.xpose.msra.mxu0 0.0
        %2641 = vmatprep.subr.mxu0 0.0
        %2642 = vmatpush1.xpose.msra.mxu0 0.0
        %2643 = vmatprep.subr.mxu0 0.0
        %2644 = vmatpush1.xpose.msra.mxu0 0.0
        %2645 = vmatprep.subr.mxu0 0.0
        %2646 = vmatpush1.xpose.msra.mxu0 0.0
        %2647 = vmatprep.subr.mxu0 0.0
        %2648 = vmatpush1.xpose.msra.mxu0 0.0
        %2649 = vmatprep.subr.mxu0 0.0
        %2650 = vmatpush1.xpose.msra.mxu0 0.0
        %2651 = vmatprep.subr.mxu0 0.0
        %2652 = vmatpush1.xpose.msra.mxu0 0.0
        %2653 = vmatprep.subr.mxu0 0.0
        %2654 = vmatpush1.xpose.msra.mxu0 0.0
        %2655 = vmatprep.subr.mxu0 0.0
        %2656 = vmatpush1.xpose.msra.mxu0 0.0
        %2657 = vmatprep.subr.mxu0 0.0
        %2658 = vmatpush1.xpose.msra.mxu0 0.0
        %2659 = vmatprep.subr.mxu0 0.0
        %2660 = vmatpush1.xpose.msra.mxu0 0.0
        %2661 = vmatprep.subr.mxu0 0.0
        %2662 = vmatpush1.xpose.msra.mxu0 0.0
        %2663 = vmatprep.subr.mxu0 0.0
        %2664 = vmatpush1.xpose.msra.mxu0 0.0
        %2665 = vmatprep.subr.mxu0 0.0
        %2666 = vmatpush1.xpose.msra.mxu0 0.0
        %2667 = vmatprep.subr.mxu0 0.0
        %2668 = vmatpush1.xpose.msra.mxu0 0.0
        %2669 = vmatprep.mubr.f32.mxu0 0.0
        %2670 = vmatmul.mubr.f32.gmra.mrb[0].mxu0 %v2582
        %v2671 = vpop.f32.mrb[0].mxu0
        %v2672 = vadd.f32 0.0, %v2671
        %v2673 = vpop.f32.mrb[0].mxu0
        %2674 = vmatprep.mubr.f32.mxu0 0.0
        %2675 = vmatmul.mubr.f32.gmra.mrb[0].mxu0 %v2585
        %v2676 = vpop.f32.mrb[0].mxu0
        %v2677 = vadd.f32 0.0, %v2676
        %v2678 = vpop.f32.mrb[0].mxu0
        %2679 = vmatprep.mubr.f32.mxu0 0.0
        %2680 = vmatmul.mubr.f32.gmra.mrb[0].mxu0 %v2588
        %v2681 = vpop.f32.mrb[0].mxu0
        %v2682 = vadd.f32 0.0, %v2681
        %v2683 = vpop.f32.mrb[0].mxu0
        %2684 = vmatprep.mubr.f32.mxu0 0.0
        %2685 = vmatmul.mubr.f32.gmra.mrb[0].mxu0 %v2591
        %v2686 = vpop.f32.mrb[0].mxu0
        %v2687 = vadd.f32 0.0, %v2686
        %v2688 = vpop.f32.mrb[0].mxu0
        %2689 = vdwg.mxu0
        %v2691 = vsel %vm1242, %v993, 0
        %v2694 = vsel %vm1242, %v994, 0
        %v2697 = vsel %vm1242, %v995, 0
        %v2700 = vsel %vm1242, %v996, 0
        %v2703 = vsel %vm1242, %v1193, 0
        %v2706 = vsel %vm1242, %v1194, 0
        %v2709 = vsel %vm1242, %v1195, 0
        %v2712 = vsel %vm1242, %v1196, 0
        %2714 = vmatprep.subr.mxu0 0.0
        %2715 = vmatpush1.xpose.msra.mxu0 %v2703
        %2716 = vmatprep.subr.mxu0 0.0
        %2717 = vmatpush1.xpose.msra.mxu0 %v2706
        %2718 = vmatprep.subr.mxu0 0.0
        %2719 = vmatpush1.xpose.msra.mxu0 %v2709
        %2720 = vmatprep.subr.mxu0 0.0
        %2721 = vmatpush1.xpose.msra.mxu0 %v2712
        %2722 = vmatprep.subr.mxu0 0.0
        %2723 = vmatpush1.xpose.msra.mxu0 0.0
        %2724 = vmatprep.subr.mxu0 0.0
        %2725 = vmatpush1.xpose.msra.mxu0 0.0
        %2726 = vmatprep.subr.mxu0 0.0
        %2727 = vmatpush1.xpose.msra.mxu0 0.0
        %2728 = vmatprep.subr.mxu0 0.0
        %2729 = vmatpush1.xpose.msra.mxu0 0.0
        %2730 = vmatprep.subr.mxu0 0.0
        %2731 = vmatpush1.xpose.msra.mxu0 0.0
        %2732 = vmatprep.subr.mxu0 0.0
        %2733 = vmatpush1.xpose.msra.mxu0 0.0
        %2734 = vmatprep.subr.mxu0 0.0
        %2735 = vmatpush1.xpose.msra.mxu0 0.0
        %2736 = vmatprep.subr.mxu0 0.0
        %2737 = vmatpush1.xpose.msra.mxu0 0.0
        %2738 = vmatprep.subr.mxu0 0.0
        %2739 = vmatpush1.xpose.msra.mxu0 0.0
        %2740 = vmatprep.subr.mxu0 0.0
        %2741 = vmatpush1.xpose.msra.mxu0 0.0
        %2742 = vmatprep.subr.mxu0 0.0
        %2743 = vmatpush1.xpose.msra.mxu0 0.0
        %2744 = vmatprep.subr.mxu0 0.0
        %2745 = vmatpush1.xpose.msra.mxu0 0.0
        %2746 = vmatprep.subr.mxu0 0.0
        %2747 = vmatpush1.xpose.msra.mxu0 0.0
        %2748 = vmatprep.subr.mxu0 0.0
        %2749 = vmatpush1.xpose.msra.mxu0 0.0
        %2750 = vmatprep.subr.mxu0 0.0
        %2751 = vmatpush1.xpose.msra.mxu0 0.0
        %2752 = vmatprep.subr.mxu0 0.0
        %2753 = vmatpush1.xpose.msra.mxu0 0.0
        %2754 = vmatprep.subr.mxu0 0.0
        %2755 = vmatpush1.xpose.msra.mxu0 0.0
        %2756 = vmatprep.subr.mxu0 0.0
        %2757 = vmatpush1.xpose.msra.mxu0 0.0
        %2758 = vmatprep.subr.mxu0 0.0
        %2759 = vmatpush1.xpose.msra.mxu0 0.0
        %2760 = vmatprep.subr.mxu0 0.0
        %2761 = vmatpush1.xpose.msra.mxu0 0.0
        %2762 = vmatprep.subr.mxu0 0.0
        %2763 = vmatpush1.xpose.msra.mxu0 0.0
        %2764 = vmatprep.subr.mxu0 0.0
        %2765 = vmatpush1.xpose.msra.mxu0 0.0
        %2766 = vmatprep.subr.mxu0 0.0
        %2767 = vmatpush1.xpose.msra.mxu0 0.0
        %2768 = vmatprep.subr.mxu0 0.0
        %2769 = vmatpush1.xpose.msra.mxu0 0.0
        %2770 = vmatprep.subr.mxu0 0.0
        %2771 = vmatpush1.xpose.msra.mxu0 0.0
        %2772 = vmatprep.subr.mxu0 0.0
        %2773 = vmatpush1.xpose.msra.mxu0 0.0
        %2774 = vmatprep.subr.mxu0 0.0
        %2775 = vmatpush1.xpose.msra.mxu0 0.0
        %2776 = vmatprep.subr.mxu0 0.0
        %2777 = vmatpush1.xpose.msra.mxu0 0.0
        %2778 = vmatprep.mubr.f32.mxu0 0.0
        %2779 = vmatmul.mubr.f32.gmra.mrb[0].mxu0 %v2691
        %v2780 = vpop.f32.mrb[0].mxu0
        %v2781 = vadd.f32 0.0, %v2780
        %v2782 = vpop.f32.mrb[0].mxu0
        %2783 = vmatprep.mubr.f32.mxu0 0.0
        %2784 = vmatmul.mubr.f32.gmra.mrb[0].mxu0 %v2694
        %v2785 = vpop.f32.mrb[0].mxu0
        %v2786 = vadd.f32 0.0, %v2785
        %v2787 = vpop.f32.mrb[0].mxu0
        %2788 = vmatprep.mubr.f32.mxu0 0.0
        %2789 = vmatmul.mubr.f32.gmra.mrb[0].mxu0 %v2697
        %v2790 = vpop.f32.mrb[0].mxu0
        %v2791 = vadd.f32 0.0, %v2790
        %v2792 = vpop.f32.mrb[0].mxu0
        %2793 = vmatprep.mubr.f32.mxu0 0.0
        %2794 = vmatmul.mubr.f32.gmra.mrb[0].mxu0 %v2700
        %v2795 = vpop.f32.mrb[0].mxu0
        %v2796 = vadd.f32 0.0, %v2795
        %v2797 = vpop.f32.mrb[0].mxu0
        %2798 = vdwg.mxu0
        %v2800 = vsel %vm1242, %v997, 0
        %v2803 = vsel %vm1242, %v998, 0
        %v2806 = vsel %vm1242, %v999, 0
        %v2809 = vsel %vm1242, %v1000, 0
        %v2812 = vsel %vm1242, %v1197, 0
        %v2815 = vsel %vm1242, %v1198, 0
        %v2818 = vsel %vm1242, %v1199, 0
        %v2821 = vsel %vm1242, %v1200, 0
        %2823 = vmatprep.subr.mxu0 0.0
        %2824 = vmatpush1.xpose.msra.mxu0 %v2812
        %2825 = vmatprep.subr.mxu0 0.0
        %2826 = vmatpush1.xpose.msra.mxu0 %v2815
        %2827 = vmatprep.subr.mxu0 0.0
        %2828 = vmatpush1.xpose.msra.mxu0 %v2818
        %2829 = vmatprep.subr.mxu0 0.0
        %2830 = vmatpush1.xpose.msra.mxu0 %v2821
        %2831 = vmatprep.subr.mxu0 0.0
        %2832 = vmatpush1.xpose.msra.mxu0 0.0
        %2833 = vmatprep.subr.mxu0 0.0
        %2834 = vmatpush1.xpose.msra.mxu0 0.0
        %2835 = vmatprep.subr.mxu0 0.0
        %2836 = vmatpush1.xpose.msra.mxu0 0.0
        %2837 = vmatprep.subr.mxu0 0.0
        %2838 = vmatpush1.xpose.msra.mxu0 0.0
        %2839 = vmatprep.subr.mxu0 0.0
        %2840 = vmatpush1.xpose.msra.mxu0 0.0
        %2841 = vmatprep.subr.mxu0 0.0
        %2842 = vmatpush1.xpose.msra.mxu0 0.0
        %2843 = vmatprep.subr.mxu0 0.0
        %2844 = vmatpush1.xpose.msra.mxu0 0.0
        %2845 = vmatprep.subr.mxu0 0.0
        %2846 = vmatpush1.xpose.msra.mxu0 0.0
        %2847 = vmatprep.subr.mxu0 0.0
        %2848 = vmatpush1.xpose.msra.mxu0 0.0
        %2849 = vmatprep.subr.mxu0 0.0
        %2850 = vmatpush1.xpose.msra.mxu0 0.0
        %2851 = vmatprep.subr.mxu0 0.0
        %2852 = vmatpush1.xpose.msra.mxu0 0.0
        %2853 = vmatprep.subr.mxu0 0.0
        %2854 = vmatpush1.xpose.msra.mxu0 0.0
        %2855 = vmatprep.subr.mxu0 0.0
        %2856 = vmatpush1.xpose.msra.mxu0 0.0
        %2857 = vmatprep.subr.mxu0 0.0
        %2858 = vmatpush1.xpose.msra.mxu0 0.0
        %2859 = vmatprep.subr.mxu0 0.0
        %2860 = vmatpush1.xpose.msra.mxu0 0.0
        %2861 = vmatprep.subr.mxu0 0.0
        %2862 = vmatpush1.xpose.msra.mxu0 0.0
        %2863 = vmatprep.subr.mxu0 0.0
        %2864 = vmatpush1.xpose.msra.mxu0 0.0
        %2865 = vmatprep.subr.mxu0 0.0
        %2866 = vmatpush1.xpose.msra.mxu0 0.0
        %2867 = vmatprep.subr.mxu0 0.0
        %2868 = vmatpush1.xpose.msra.mxu0 0.0
        %2869 = vmatprep.subr.mxu0 0.0
        %2870 = vmatpush1.xpose.msra.mxu0 0.0
        %2871 = vmatprep.subr.mxu0 0.0
        %2872 = vmatpush1.xpose.msra.mxu0 0.0
        %2873 = vmatprep.subr.mxu0 0.0
        %2874 = vmatpush1.xpose.msra.mxu0 0.0
        %2875 = vmatprep.subr.mxu0 0.0
        %2876 = vmatpush1.xpose.msra.mxu0 0.0
        %2877 = vmatprep.subr.mxu0 0.0
        %2878 = vmatpush1.xpose.msra.mxu0 0.0
        %2879 = vmatprep.subr.mxu0 0.0
        %2880 = vmatpush1.xpose.msra.mxu0 0.0
        %2881 = vmatprep.subr.mxu0 0.0
        %2882 = vmatpush1.xpose.msra.mxu0 0.0
        %2883 = vmatprep.subr.mxu0 0.0
        %2884 = vmatpush1.xpose.msra.mxu0 0.0
        %2885 = vmatprep.subr.mxu0 0.0
        %2886 = vmatpush1.xpose.msra.mxu0 0.0
        %2887 = vmatprep.mubr.f32.mxu0 0.0
        %2888 = vmatmul.mubr.f32.gmra.mrb[0].mxu0 %v2800
        %v2889 = vpop.f32.mrb[0].mxu0
        %v2890 = vadd.f32 0.0, %v2889
        %v2891 = vpop.f32.mrb[0].mxu0
        %2892 = vmatprep.mubr.f32.mxu0 0.0
        %2893 = vmatmul.mubr.f32.gmra.mrb[0].mxu0 %v2803
        %v2894 = vpop.f32.mrb[0].mxu0
        %v2895 = vadd.f32 0.0, %v2894
        %v2896 = vpop.f32.mrb[0].mxu0
        %2897 = vmatprep.mubr.f32.mxu0 0.0
        %2898 = vmatmul.mubr.f32.gmra.mrb[0].mxu0 %v2806
        %v2899 = vpop.f32.mrb[0].mxu0
        %v2900 = vadd.f32 0.0, %v2899
        %v2901 = vpop.f32.mrb[0].mxu0
        %2902 = vmatprep.mubr.f32.mxu0 0.0
        %2903 = vmatmul.mubr.f32.gmra.mrb[0].mxu0 %v2809
        %v2904 = vpop.f32.mrb[0].mxu0
        %v2905 = vadd.f32 0.0, %v2904
        %v2906 = vpop.f32.mrb[0].mxu0
        %2907 = vdwg.mxu0
        %v2908 = vsel %vm2468, 1, 0
        %v2909 = vsel %vm2469, 1, 0
        %v2910 = vsel %vm2470, 1, 0
        %v2911 = vsel %vm2471, 1, 0
        %vm2912 = vcmp.eq.s32.totalorder %v2908, 1
        %vm2913 = vcmp.eq.s32.totalorder %v2909, 1
        %vm2914 = vcmp.eq.s32.totalorder %v2910, 1
        %vm2915 = vcmp.eq.s32.totalorder %v2911, 1
        %v2916 = vsel %vm2912, %v2563, -1e+30
        %v2917 = vsel %vm2913, %v2568, -1e+30
        %v2918 = vsel %vm2914, %v2573, -1e+30
        %v2919 = vsel %vm2915, %v2578, -1e+30
        %v2920 = vsel %vm2912, %v2672, -1e+30
        %v2921 = vsel %vm2913, %v2677, -1e+30
        %v2922 = vsel %vm2914, %v2682, -1e+30
        %v2923 = vsel %vm2915, %v2687, -1e+30
        %v2924 = vsel %vm2912, %v2781, -1e+30
        %v2925 = vsel %vm2913, %v2786, -1e+30
        %v2926 = vsel %vm2914, %v2791, -1e+30
        %v2927 = vsel %vm2915, %v2796, -1e+30
        %v2928 = vsel %vm2912, %v2890, -1e+30
        %v2929 = vsel %vm2913, %v2895, -1e+30
        %v2930 = vsel %vm2914, %v2900, -1e+30
        %v2931 = vsel %vm2915, %v2905, -1e+30
        %v2932 = vsel %vm1242, %v2916, -inf
        %2933 = vmax.xlane.f32.xlu0 %v2932
        %v2934 = vpop.xlane.xlu0 %2933
        %v2935 = vsel %vm1242, %v2917, -inf
        %2936 = vmax.xlane.f32.xlu0 %v2935
        %v2937 = vpop.xlane.xlu0 %2936
        %v2938 = vsel %vm1242, %v2918, -inf
        %2939 = vmax.xlane.f32.xlu0 %v2938
        %v2940 = vpop.xlane.xlu0 %2939
        %v2941 = vsel %vm1242, %v2919, -inf
        %2942 = vmax.xlane.f32.xlu0 %v2941
        %v2943 = vpop.xlane.xlu0 %2942
        %v2944 = vsel %vm1242, %v2920, -inf
        %2945 = vmax.xlane.f32.xlu0 %v2944
        %v2946 = vpop.xlane.xlu0 %2945
        %v2947 = vsel %vm1242, %v2921, -inf
        %2948 = vmax.xlane.f32.xlu0 %v2947
        %v2949 = vpop.xlane.xlu0 %2948
        %v2950 = vsel %vm1242, %v2922, -inf
        %2951 = vmax.xlane.f32.xlu0 %v2950
        %v2952 = vpop.xlane.xlu0 %2951
        %v2953 = vsel %vm1242, %v2923, -inf
        %2954 = vmax.xlane.f32.xlu0 %v2953
        %v2955 = vpop.xlane.xlu0 %2954
        %v2956 = vsel %vm1242, %v2924, -inf
        %2957 = vmax.xlane.f32.xlu0 %v2956
        %v2958 = vpop.xlane.xlu0 %2957
        %v2959 = vsel %vm1242, %v2925, -inf
        %2960 = vmax.xlane.f32.xlu0 %v2959
        %v2961 = vpop.xlane.xlu0 %2960
        %v2962 = vsel %vm1242, %v2926, -inf
        %2963 = vmax.xlane.f32.xlu0 %v2962
        %v2964 = vpop.xlane.xlu0 %2963
        %v2965 = vsel %vm1242, %v2927, -inf
        %2966 = vmax.xlane.f32.xlu0 %v2965
        %v2967 = vpop.xlane.xlu0 %2966
        %v2968 = vsel %vm1242, %v2928, -inf
        %2969 = vmax.xlane.f32.xlu0 %v2968
        %v2970 = vpop.xlane.xlu0 %2969
        %v2971 = vsel %vm1242, %v2929, -inf
        %2972 = vmax.xlane.f32.xlu0 %v2971
        %v2973 = vpop.xlane.xlu0 %2972
        %v2974 = vsel %vm1242, %v2930, -inf
        %2975 = vmax.xlane.f32.xlu0 %v2974
        %v2976 = vpop.xlane.xlu0 %2975
        %v2977 = vsel %vm1242, %v2931, -inf
        %2978 = vmax.xlane.f32.xlu0 %v2977
        %v2979 = vpop.xlane.xlu0 %2978
        %v2980 = vmax.f32 %v1282, %v2934
        %v2981 = vmax.f32 %v1283, %v2937
        %v2982 = vmax.f32 %v1284, %v2940
        %v2983 = vmax.f32 %v1285, %v2943
        %v2984 = vmax.f32 %v1286, %v2946
        %v2985 = vmax.f32 %v1287, %v2949
        %v2986 = vmax.f32 %v1288, %v2952
        %v2987 = vmax.f32 %v1289, %v2955
        %v2988 = vmax.f32 %v1290, %v2958
        %v2989 = vmax.f32 %v1291, %v2961
        %v2990 = vmax.f32 %v1292, %v2964
        %v2991 = vmax.f32 %v1293, %v2967
        %v2992 = vmax.f32 %v1294, %v2970
        %v2993 = vmax.f32 %v1295, %v2973
        %v2994 = vmax.f32 %v1296, %v2976
        %v2995 = vmax.f32 %v1297, %v2979
        %v2996 = vsub.f32 %v1282, %v2980
        %v2997 = vsub.f32 %v1283, %v2981
        %v2998 = vsub.f32 %v1284, %v2982
        %v2999 = vsub.f32 %v1285, %v2983
        %v3000 = vsub.f32 %v1286, %v2984
        %v3001 = vsub.f32 %v1287, %v2985
        %v3002 = vsub.f32 %v1288, %v2986
        %v3003 = vsub.f32 %v1289, %v2987
        %v3004 = vsub.f32 %v1290, %v2988
        %v3005 = vsub.f32 %v1291, %v2989
        %v3006 = vsub.f32 %v1292, %v2990
        %v3007 = vsub.f32 %v1293, %v2991
        %v3008 = vsub.f32 %v1294, %v2992
        %v3009 = vsub.f32 %v1295, %v2993
        %v3010 = vsub.f32 %v1296, %v2994
        %v3011 = vsub.f32 %v1297, %v2995
        %v3012 = vmul.f32 %v2996, 1.442695
        %v3013 = vpow.pop %v3012
        %v3014 = vmul.f32 %v2997, 1.442695
        %v3015 = vpow.pop %v3014
        %v3016 = vmul.f32 %v2998, 1.442695
        %v3017 = vpow.pop %v3016
        %v3018 = vmul.f32 %v2999, 1.442695
        %v3019 = vpow.pop %v3018
        %v3020 = vmul.f32 %v3000, 1.442695
        %v3021 = vpow.pop %v3020
        %v3022 = vmul.f32 %v3001, 1.442695
        %v3023 = vpow.pop %v3022
        %v3024 = vmul.f32 %v3002, 1.442695
        %v3025 = vpow.pop %v3024
        %v3026 = vmul.f32 %v3003, 1.442695
        %v3027 = vpow.pop %v3026
        %v3028 = vmul.f32 %v3004, 1.442695
        %v3029 = vpow.pop %v3028
        %v3030 = vmul.f32 %v3005, 1.442695
        %v3031 = vpow.pop %v3030
        %v3032 = vmul.f32 %v3006, 1.442695
        %v3033 = vpow.pop %v3032
        %v3034 = vmul.f32 %v3007, 1.442695
        %v3035 = vpow.pop %v3034
        %v3036 = vmul.f32 %v3008, 1.442695
        %v3037 = vpow.pop %v3036
        %v3038 = vmul.f32 %v3009, 1.442695
        %v3039 = vpow.pop %v3038
        %v3040 = vmul.f32 %v3010, 1.442695
        %v3041 = vpow.pop %v3040
        %v3042 = vmul.f32 %v3011, 1.442695
        %v3043 = vpow.pop %v3042
        %v3044 = vsub.f32 %v2916, %v2980
        %v3045 = vsub.f32 %v2917, %v2981
        %v3046 = vsub.f32 %v2918, %v2982
        %v3047 = vsub.f32 %v2919, %v2983
        %v3048 = vsub.f32 %v2920, %v2984
        %v3049 = vsub.f32 %v2921, %v2985
        %v3050 = vsub.f32 %v2922, %v2986
        %v3051 = vsub.f32 %v2923, %v2987
        %v3052 = vsub.f32 %v2924, %v2988
        %v3053 = vsub.f32 %v2925, %v2989
        %v3054 = vsub.f32 %v2926, %v2990
        %v3055 = vsub.f32 %v2927, %v2991
        %v3056 = vsub.f32 %v2928, %v2992
        %v3057 = vsub.f32 %v2929, %v2993
        %v3058 = vsub.f32 %v2930, %v2994
        %v3059 = vsub.f32 %v2931, %v2995
        %v3060 = vmul.f32 %v3044, 1.442695
        %v3061 = vpow.pop %v3060
        %v3062 = vmul.f32 %v3045, 1.442695
        %v3063 = vpow.pop %v3062
        %v3064 = vmul.f32 %v3046, 1.442695
        %v3065 = vpow.pop %v3064
        %v3066 = vmul.f32 %v3047, 1.442695
        %v3067 = vpow.pop %v3066
        %v3068 = vmul.f32 %v3048, 1.442695
        %v3069 = vpow.pop %v3068
        %v3070 = vmul.f32 %v3049, 1.442695
        %v3071 = vpow.pop %v3070
        %v3072 = vmul.f32 %v3050, 1.442695
        %v3073 = vpow.pop %v3072
        %v3074 = vmul.f32 %v3051, 1.442695
        %v3075 = vpow.pop %v3074
        %v3076 = vmul.f32 %v3052, 1.442695
        %v3077 = vpow.pop %v3076
        %v3078 = vmul.f32 %v3053, 1.442695
        %v3079 = vpow.pop %v3078
        %v3080 = vmul.f32 %v3054, 1.442695
        %v3081 = vpow.pop %v3080
        %v3082 = vmul.f32 %v3055, 1.442695
        %v3083 = vpow.pop %v3082
        %v3084 = vmul.f32 %v3056, 1.442695
        %v3085 = vpow.pop %v3084
        %v3086 = vmul.f32 %v3057, 1.442695
        %v3087 = vpow.pop %v3086
        %v3088 = vmul.f32 %v3058, 1.442695
        %v3089 = vpow.pop %v3088
        %v3090 = vmul.f32 %v3059, 1.442695
        %v3091 = vpow.pop %v3090
        %v3092 = vmul.f32 %v3013, %v1298
        %v3093 = vmul.f32 %v3015, %v1299
        %v3094 = vmul.f32 %v3017, %v1300
        %v3095 = vmul.f32 %v3019, %v1301
        %v3096 = vmul.f32 %v3021, %v1302
        %v3097 = vmul.f32 %v3023, %v1303
        %v3098 = vmul.f32 %v3025, %v1304
        %v3099 = vmul.f32 %v3027, %v1305
        %v3100 = vmul.f32 %v3029, %v1306
        %v3101 = vmul.f32 %v3031, %v1307
        %v3102 = vmul.f32 %v3033, %v1308
        %v3103 = vmul.f32 %v3035, %v1309
        %v3104 = vmul.f32 %v3037, %v1310
        %v3105 = vmul.f32 %v3039, %v1311
        %v3106 = vmul.f32 %v3041, %v1312
        %v3107 = vmul.f32 %v3043, %v1313
        %v3108 = vsel %vm1242, %v3061, 0.0
        %3109 = vadd.xlane.f32.xlu0 %v3108
        %v3110 = vpop.xlane.xlu0 %3109
        %v3111 = vsel %vm1242, %v3063, 0.0
        %3112 = vadd.xlane.f32.xlu0 %v3111
        %v3113 = vpop.xlane.xlu0 %3112
        %v3114 = vsel %vm1242, %v3065, 0.0
        %3115 = vadd.xlane.f32.xlu0 %v3114
        %v3116 = vpop.xlane.xlu0 %3115
        %v3117 = vsel %vm1242, %v3067, 0.0
        %3118 = vadd.xlane.f32.xlu0 %v3117
        %v3119 = vpop.xlane.xlu0 %3118
        %v3120 = vsel %vm1242, %v3069, 0.0
        %3121 = vadd.xlane.f32.xlu0 %v3120
        %v3122 = vpop.xlane.xlu0 %3121
        %v3123 = vsel %vm1242, %v3071, 0.0
        %3124 = vadd.xlane.f32.xlu0 %v3123
        %v3125 = vpop.xlane.xlu0 %3124
        %v3126 = vsel %vm1242, %v3073, 0.0
        %3127 = vadd.xlane.f32.xlu0 %v3126
        %v3128 = vpop.xlane.xlu0 %3127
        %v3129 = vsel %vm1242, %v3075, 0.0
        %3130 = vadd.xlane.f32.xlu0 %v3129
        %v3131 = vpop.xlane.xlu0 %3130
        %v3132 = vsel %vm1242, %v3077, 0.0
        %3133 = vadd.xlane.f32.xlu0 %v3132
        %v3134 = vpop.xlane.xlu0 %3133
        %v3135 = vsel %vm1242, %v3079, 0.0
        %3136 = vadd.xlane.f32.xlu0 %v3135
        %v3137 = vpop.xlane.xlu0 %3136
        %v3138 = vsel %vm1242, %v3081, 0.0
        %3139 = vadd.xlane.f32.xlu0 %v3138
        %v3140 = vpop.xlane.xlu0 %3139
        %v3141 = vsel %vm1242, %v3083, 0.0
        %3142 = vadd.xlane.f32.xlu0 %v3141
        %v3143 = vpop.xlane.xlu0 %3142
        %v3144 = vsel %vm1242, %v3085, 0.0
        %3145 = vadd.xlane.f32.xlu0 %v3144
        %v3146 = vpop.xlane.xlu0 %3145
        %v3147 = vsel %vm1242, %v3087, 0.0
        %3148 = vadd.xlane.f32.xlu0 %v3147
        %v3149 = vpop.xlane.xlu0 %3148
        %v3150 = vsel %vm1242, %v3089, 0.0
        %3151 = vadd.xlane.f32.xlu0 %v3150
        %v3152 = vpop.xlane.xlu0 %3151
        %v3153 = vsel %vm1242, %v3091, 0.0
        %3154 = vadd.xlane.f32.xlu0 %v3153
        %v3155 = vpop.xlane.xlu0 %3154
        %v3156 = vadd.f32 %v3092, %v3110
        %v3157 = vadd.f32 %v3093, %v3113
        %v3158 = vadd.f32 %v3094, %v3116
        %v3159 = vadd.f32 %v3095, %v3119
        %v3160 = vadd.f32 %v3096, %v3122
        %v3161 = vadd.f32 %v3097, %v3125
        %v3162 = vadd.f32 %v3098, %v3128
        %v3163 = vadd.f32 %v3099, %v3131
        %v3164 = vadd.f32 %v3100, %v3134
        %v3165 = vadd.f32 %v3101, %v3137
        %v3166 = vadd.f32 %v3102, %v3140
        %v3167 = vadd.f32 %v3103, %v3143
        %v3168 = vadd.f32 %v3104, %v3146
        %v3169 = vadd.f32 %v3105, %v3149
        %v3170 = vadd.f32 %v3106, %v3152
        %v3171 = vadd.f32 %v3107, %v3155
        %v3172 = vmul.f32 %v3013, %v1314
        %v3173 = vmul.f32 %v3015, %v1315
        %v3174 = vmul.f32 %v3017, %v1316
        %v3175 = vmul.f32 %v3019, %v1317
        %v3176 = vmul.f32 %v3021, %v1318
        %v3177 = vmul.f32 %v3023, %v1319
        %v3178 = vmul.f32 %v3025, %v1320
        %v3179 = vmul.f32 %v3027, %v1321
        %v3180 = vmul.f32 %v3029, %v1322
        %v3181 = vmul.f32 %v3031, %v1323
        %v3182 = vmul.f32 %v3033, %v1324
        %v3183 = vmul.f32 %v3035, %v1325
        %v3184 = vmul.f32 %v3037, %v1326
        %v3185 = vmul.f32 %v3039, %v1327
        %v3186 = vmul.f32 %v3041, %v1328
        %v3187 = vmul.f32 %v3043, %v1329
        %v3189 = vsel %vm1242, %v3061, 0
        %v3192 = vsel %vm1242, %v3063, 0
        %v3195 = vsel %vm1242, %v3065, 0
        %v3198 = vsel %vm1242, %v3067, 0
        %3200 = vmatprep.subr.mxu0 0.0
        %3201 = vmatpush1.msra.mxu0 %v758
        %3202 = vmatprep.subr.mxu0 0.0
        %3203 = vmatpush1.msra.mxu0 %v763
        %3204 = vmatprep.subr.mxu0 0.0
        %3205 = vmatpush1.msra.mxu0 %v768
        %3206 = vmatprep.subr.mxu0 0.0
        %3207 = vmatpush1.msra.mxu0 %v773
        %3208 = vmatprep.subr.mxu0 0.0
        %3209 = vmatpush1.msra.mxu0 0.0
        %3210 = vmatprep.subr.mxu0 0.0
        %3211 = vmatpush1.msra.mxu0 0.0
        %3212 = vmatprep.subr.mxu0 0.0
        %3213 = vmatpush1.msra.mxu0 0.0
        %3214 = vmatprep.subr.mxu0 0.0
        %3215 = vmatpush1.msra.mxu0 0.0
        %3216 = vmatprep.subr.mxu0 0.0
        %3217 = vmatpush1.msra.mxu0 0.0
        %3218 = vmatprep.subr.mxu0 0.0
        %3219 = vmatpush1.msra.mxu0 0.0
        %3220 = vmatprep.subr.mxu0 0.0
        %3221 = vmatpush1.msra.mxu0 0.0
        %3222 = vmatprep.subr.mxu0 0.0
        %3223 = vmatpush1.msra.mxu0 0.0
        %3224 = vmatprep.subr.mxu0 0.0
        %3225 = vmatpush1.msra.mxu0 0.0
        %3226 = vmatprep.subr.mxu0 0.0
        %3227 = vmatpush1.msra.mxu0 0.0
        %3228 = vmatprep.subr.mxu0 0.0
        %3229 = vmatpush1.msra.mxu0 0.0
        %3230 = vmatprep.subr.mxu0 0.0
        %3231 = vmatpush1.msra.mxu0 0.0
        %3232 = vmatprep.subr.mxu0 0.0
        %3233 = vmatpush1.msra.mxu0 0.0
        %3234 = vmatprep.subr.mxu0 0.0
        %3235 = vmatpush1.msra.mxu0 0.0
        %3236 = vmatprep.subr.mxu0 0.0
        %3237 = vmatpush1.msra.mxu0 0.0
        %3238 = vmatprep.subr.mxu0 0.0
        %3239 = vmatpush1.msra.mxu0 0.0
        %3240 = vmatprep.subr.mxu0 0.0
        %3241 = vmatpush1.msra.mxu0 0.0
        %3242 = vmatprep.subr.mxu0 0.0
        %3243 = vmatpush1.msra.mxu0 0.0
        %3244 = vmatprep.subr.mxu0 0.0
        %3245 = vmatpush1.msra.mxu0 0.0
        %3246 = vmatprep.subr.mxu0 0.0
        %3247 = vmatpush1.msra.mxu0 0.0
        %3248 = vmatprep.subr.mxu0 0.0
        %3249 = vmatpush1.msra.mxu0 0.0
        %3250 = vmatprep.subr.mxu0 0.0
        %3251 = vmatpush1.msra.mxu0 0.0
        %3252 = vmatprep.subr.mxu0 0.0
        %3253 = vmatpush1.msra.mxu0 0.0
        %3254 = vmatprep.subr.mxu0 0.0
        %3255 = vmatpush1.msra.mxu0 0.0
        %3256 = vmatprep.subr.mxu0 0.0
        %3257 = vmatpush1.msra.mxu0 0.0
        %3258 = vmatprep.subr.mxu0 0.0
        %3259 = vmatpush1.msra.mxu0 0.0
        %3260 = vmatprep.subr.mxu0 0.0
        %3261 = vmatpush1.msra.mxu0 0.0
        %3262 = vmatprep.subr.mxu0 0.0
        %3263 = vmatpush1.msra.mxu0 0.0
        %3264 = vmatprep.mubr.f32.mxu0 0.0
        %3265 = vmatmul.mubr.f32.gmra.mrb[0].mxu0 %v3189
        %v3266 = vpop.f32.mrb[0].mxu0
        %v3267 = vadd.f32 0.0, %v3266
        %v3268 = vpop.f32.mrb[0].mxu0
        %3269 = vmatprep.mubr.f32.mxu0 0.0
        %3270 = vmatmul.mubr.f32.gmra.mrb[0].mxu0 %v3192
        %v3271 = vpop.f32.mrb[0].mxu0
        %v3272 = vadd.f32 0.0, %v3271
        %v3273 = vpop.f32.mrb[0].mxu0
        %3274 = vmatprep.mubr.f32.mxu0 0.0
        %3275 = vmatmul.mubr.f32.gmra.mrb[0].mxu0 %v3195
        %v3276 = vpop.f32.mrb[0].mxu0
        %v3277 = vadd.f32 0.0, %v3276
        %v3278 = vpop.f32.mrb[0].mxu0
        %3279 = vmatprep.mubr.f32.mxu0 0.0
        %3280 = vmatmul.mubr.f32.gmra.mrb[0].mxu0 %v3198
        %v3281 = vpop.f32.mrb[0].mxu0
        %v3282 = vadd.f32 0.0, %v3281
        %v3283 = vpop.f32.mrb[0].mxu0
        %3284 = vdwg.mxu0
        %v3286 = vsel %vm1242, %v3069, 0
        %v3289 = vsel %vm1242, %v3071, 0
        %v3292 = vsel %vm1242, %v3073, 0
        %v3295 = vsel %vm1242, %v3075, 0
        %3297 = vmatprep.subr.mxu0 0.0
        %3298 = vmatpush1.msra.mxu0 %v1206
        %3299 = vmatprep.subr.mxu0 0.0
        %3300 = vmatpush1.msra.mxu0 %v1208
        %3301 = vmatprep.subr.mxu0 0.0
        %3302 = vmatpush1.msra.mxu0 %v1210
        %3303 = vmatprep.subr.mxu0 0.0
        %3304 = vmatpush1.msra.mxu0 %v1212
        %3305 = vmatprep.subr.mxu0 0.0
        %3306 = vmatpush1.msra.mxu0 0.0
        %3307 = vmatprep.subr.mxu0 0.0
        %3308 = vmatpush1.msra.mxu0 0.0
        %3309 = vmatprep.subr.mxu0 0.0
        %3310 = vmatpush1.msra.mxu0 0.0
        %3311 = vmatprep.subr.mxu0 0.0
        %3312 = vmatpush1.msra.mxu0 0.0
        %3313 = vmatprep.subr.mxu0 0.0
        %3314 = vmatpush1.msra.mxu0 0.0
        %3315 = vmatprep.subr.mxu0 0.0
        %3316 = vmatpush1.msra.mxu0 0.0
        %3317 = vmatprep.subr.mxu0 0.0
        %3318 = vmatpush1.msra.mxu0 0.0
        %3319 = vmatprep.subr.mxu0 0.0
        %3320 = vmatpush1.msra.mxu0 0.0
        %3321 = vmatprep.subr.mxu0 0.0
        %3322 = vmatpush1.msra.mxu0 0.0
        %3323 = vmatprep.subr.mxu0 0.0
        %3324 = vmatpush1.msra.mxu0 0.0
        %3325 = vmatprep.subr.mxu0 0.0
        %3326 = vmatpush1.msra.mxu0 0.0
        %3327 = vmatprep.subr.mxu0 0.0
        %3328 = vmatpush1.msra.mxu0 0.0
        %3329 = vmatprep.subr.mxu0 0.0
        %3330 = vmatpush1.msra.mxu0 0.0
        %3331 = vmatprep.subr.mxu0 0.0
        %3332 = vmatpush1.msra.mxu0 0.0
        %3333 = vmatprep.subr.mxu0 0.0
        %3334 = vmatpush1.msra.mxu0 0.0
        %3335 = vmatprep.subr.mxu0 0.0
        %3336 = vmatpush1.msra.mxu0 0.0
        %3337 = vmatprep.subr.mxu0 0.0
        %3338 = vmatpush1.msra.mxu0 0.0
        %3339 = vmatprep.subr.mxu0 0.0
        %3340 = vmatpush1.msra.mxu0 0.0
        %3341 = vmatprep.subr.mxu0 0.0
        %3342 = vmatpush1.msra.mxu0 0.0
        %3343 = vmatprep.subr.mxu0 0.0
        %3344 = vmatpush1.msra.mxu0 0.0
        %3345 = vmatprep.subr.mxu0 0.0
        %3346 = vmatpush1.msra.mxu0 0.0
        %3347 = vmatprep.subr.mxu0 0.0
        %3348 = vmatpush1.msra.mxu0 0.0
        %3349 = vmatprep.subr.mxu0 0.0
        %3350 = vmatpush1.msra.mxu0 0.0
        %3351 = vmatprep.subr.mxu0 0.0
        %3352 = vmatpush1.msra.mxu0 0.0
        %3353 = vmatprep.subr.mxu0 0.0
        %3354 = vmatpush1.msra.mxu0 0.0
        %3355 = vmatprep.subr.mxu0 0.0
        %3356 = vmatpush1.msra.mxu0 0.0
        %3357 = vmatprep.subr.mxu0 0.0
        %3358 = vmatpush1.msra.mxu0 0.0
        %3359 = vmatprep.subr.mxu0 0.0
        %3360 = vmatpush1.msra.mxu0 0.0
        %3361 = vmatprep.mubr.f32.mxu0 0.0
        %3362 = vmatmul.mubr.f32.gmra.mrb[0].mxu0 %v3286
        %v3363 = vpop.f32.mrb[0].mxu0
        %v3364 = vadd.f32 0.0, %v3363
        %v3365 = vpop.f32.mrb[0].mxu0
        %3366 = vmatprep.mubr.f32.mxu0 0.0
        %3367 = vmatmul.mubr.f32.gmra.mrb[0].mxu0 %v3289
        %v3368 = vpop.f32.mrb[0].mxu0
        %v3369 = vadd.f32 0.0, %v3368
        %v3370 = vpop.f32.mrb[0].mxu0
        %3371 = vmatprep.mubr.f32.mxu0 0.0
        %3372 = vmatmul.mubr.f32.gmra.mrb[0].mxu0 %v3292
        %v3373 = vpop.f32.mrb[0].mxu0
        %v3374 = vadd.f32 0.0, %v3373
        %v3375 = vpop.f32.mrb[0].mxu0
        %3376 = vmatprep.mubr.f32.mxu0 0.0
        %3377 = vmatmul.mubr.f32.gmra.mrb[0].mxu0 %v3295
        %v3378 = vpop.f32.mrb[0].mxu0
        %v3379 = vadd.f32 0.0, %v3378
        %v3380 = vpop.f32.mrb[0].mxu0
        %3381 = vdwg.mxu0
        %v3383 = vsel %vm1242, %v3077, 0
        %v3386 = vsel %vm1242, %v3079, 0
        %v3389 = vsel %vm1242, %v3081, 0
        %v3392 = vsel %vm1242, %v3083, 0
        %3394 = vmatprep.subr.mxu0 0.0
        %3395 = vmatpush1.msra.mxu0 %v1218
        %3396 = vmatprep.subr.mxu0 0.0
        %3397 = vmatpush1.msra.mxu0 %v1220
        %3398 = vmatprep.subr.mxu0 0.0
        %3399 = vmatpush1.msra.mxu0 %v1222
        %3400 = vmatprep.subr.mxu0 0.0
        %3401 = vmatpush1.msra.mxu0 %v1224
        %3402 = vmatprep.subr.mxu0 0.0
        %3403 = vmatpush1.msra.mxu0 0.0
        %3404 = vmatprep.subr.mxu0 0.0
        %3405 = vmatpush1.msra.mxu0 0.0
        %3406 = vmatprep.subr.mxu0 0.0
        %3407 = vmatpush1.msra.mxu0 0.0
        %3408 = vmatprep.subr.mxu0 0.0
        %3409 = vmatpush1.msra.mxu0 0.0
        %3410 = vmatprep.subr.mxu0 0.0
        %3411 = vmatpush1.msra.mxu0 0.0
        %3412 = vmatprep.subr.mxu0 0.0
        %3413 = vmatpush1.msra.mxu0 0.0
        %3414 = vmatprep.subr.mxu0 0.0
        %3415 = vmatpush1.msra.mxu0 0.0
        %3416 = vmatprep.subr.mxu0 0.0
        %3417 = vmatpush1.msra.mxu0 0.0
        %3418 = vmatprep.subr.mxu0 0.0
        %3419 = vmatpush1.msra.mxu0 0.0
        %3420 = vmatprep.subr.mxu0 0.0
        %3421 = vmatpush1.msra.mxu0 0.0
        %3422 = vmatprep.subr.mxu0 0.0
        %3423 = vmatpush1.msra.mxu0 0.0
        %3424 = vmatprep.subr.mxu0 0.0
        %3425 = vmatpush1.msra.mxu0 0.0
        %3426 = vmatprep.subr.mxu0 0.0
        %3427 = vmatpush1.msra.mxu0 0.0
        %3428 = vmatprep.subr.mxu0 0.0
        %3429 = vmatpush1.msra.mxu0 0.0
        %3430 = vmatprep.subr.mxu0 0.0
        %3431 = vmatpush1.msra.mxu0 0.0
        %3432 = vmatprep.subr.mxu0 0.0
        %3433 = vmatpush1.msra.mxu0 0.0
        %3434 = vmatprep.subr.mxu0 0.0
        %3435 = vmatpush1.msra.mxu0 0.0
        %3436 = vmatprep.subr.mxu0 0.0
        %3437 = vmatpush1.msra.mxu0 0.0
        %3438 = vmatprep.subr.mxu0 0.0
        %3439 = vmatpush1.msra.mxu0 0.0
        %3440 = vmatprep.subr.mxu0 0.0
        %3441 = vmatpush1.msra.mxu0 0.0
        %3442 = vmatprep.subr.mxu0 0.0
        %3443 = vmatpush1.msra.mxu0 0.0
        %3444 = vmatprep.subr.mxu0 0.0
        %3445 = vmatpush1.msra.mxu0 0.0
        %3446 = vmatprep.subr.mxu0 0.0
        %3447 = vmatpush1.msra.mxu0 0.0
        %3448 = vmatprep.subr.mxu0 0.0
        %3449 = vmatpush1.msra.mxu0 0.0
        %3450 = vmatprep.subr.mxu0 0.0
        %3451 = vmatpush1.msra.mxu0 0.0
        %3452 = vmatprep.subr.mxu0 0.0
        %3453 = vmatpush1.msra.mxu0 0.0
        %3454 = vmatprep.subr.mxu0 0.0
        %3455 = vmatpush1.msra.mxu0 0.0
        %3456 = vmatprep.subr.mxu0 0.0
        %3457 = vmatpush1.msra.mxu0 0.0
        %3458 = vmatprep.mubr.f32.mxu0 0.0
        %3459 = vmatmul.mubr.f32.gmra.mrb[0].mxu0 %v3383
        %v3460 = vpop.f32.mrb[0].mxu0
        %v3461 = vadd.f32 0.0, %v3460
        %v3462 = vpop.f32.mrb[0].mxu0
        %3463 = vmatprep.mubr.f32.mxu0 0.0
        %3464 = vmatmul.mubr.f32.gmra.mrb[0].mxu0 %v3386
        %v3465 = vpop.f32.mrb[0].mxu0
        %v3466 = vadd.f32 0.0, %v3465
        %v3467 = vpop.f32.mrb[0].mxu0
        %3468 = vmatprep.mubr.f32.mxu0 0.0
        %3469 = vmatmul.mubr.f32.gmra.mrb[0].mxu0 %v3389
        %v3470 = vpop.f32.mrb[0].mxu0
        %v3471 = vadd.f32 0.0, %v3470
        %v3472 = vpop.f32.mrb[0].mxu0
        %3473 = vmatprep.mubr.f32.mxu0 0.0
        %3474 = vmatmul.mubr.f32.gmra.mrb[0].mxu0 %v3392
        %v3475 = vpop.f32.mrb[0].mxu0
        %v3476 = vadd.f32 0.0, %v3475
        %v3477 = vpop.f32.mrb[0].mxu0
        %3478 = vdwg.mxu0
        %v3480 = vsel %vm1242, %v3085, 0
        %v3483 = vsel %vm1242, %v3087, 0
        %v3486 = vsel %vm1242, %v3089, 0
        %v3489 = vsel %vm1242, %v3091, 0
        %3491 = vmatprep.subr.mxu0 0.0
        %3492 = vmatpush1.msra.mxu0 %v1230
        %3493 = vmatprep.subr.mxu0 0.0
        %3494 = vmatpush1.msra.mxu0 %v1232
        %3495 = vmatprep.subr.mxu0 0.0
        %3496 = vmatpush1.msra.mxu0 %v1234
        %3497 = vmatprep.subr.mxu0 0.0
        %3498 = vmatpush1.msra.mxu0 %v1236
        %3499 = vmatprep.subr.mxu0 0.0
        %3500 = vmatpush1.msra.mxu0 0.0
        %3501 = vmatprep.subr.mxu0 0.0
        %3502 = vmatpush1.msra.mxu0 0.0
        %3503 = vmatprep.subr.mxu0 0.0
        %3504 = vmatpush1.msra.mxu0 0.0
        %3505 = vmatprep.subr.mxu0 0.0
        %3506 = vmatpush1.msra.mxu0 0.0
        %3507 = vmatprep.subr.mxu0 0.0
        %3508 = vmatpush1.msra.mxu0 0.0
        %3509 = vmatprep.subr.mxu0 0.0
        %3510 = vmatpush1.msra.mxu0 0.0
        %3511 = vmatprep.subr.mxu0 0.0
        %3512 = vmatpush1.msra.mxu0 0.0
        %3513 = vmatprep.subr.mxu0 0.0
        %3514 = vmatpush1.msra.mxu0 0.0
        %3515 = vmatprep.subr.mxu0 0.0
        %3516 = vmatpush1.msra.mxu0 0.0
        %3517 = vmatprep.subr.mxu0 0.0
        %3518 = vmatpush1.msra.mxu0 0.0
        %3519 = vmatprep.subr.mxu0 0.0
        %3520 = vmatpush1.msra.mxu0 0.0
        %3521 = vmatprep.subr.mxu0 0.0
        %3522 = vmatpush1.msra.mxu0 0.0
        %3523 = vmatprep.subr.mxu0 0.0
        %3524 = vmatpush1.msra.mxu0 0.0
        %3525 = vmatprep.subr.mxu0 0.0
        %3526 = vmatpush1.msra.mxu0 0.0
        %3527 = vmatprep.subr.mxu0 0.0
        %3528 = vmatpush1.msra.mxu0 0.0
        %3529 = vmatprep.subr.mxu0 0.0
        %3530 = vmatpush1.msra.mxu0 0.0
        %3531 = vmatprep.subr.mxu0 0.0
        %3532 = vmatpush1.msra.mxu0 0.0
        %3533 = vmatprep.subr.mxu0 0.0
        %3534 = vmatpush1.msra.mxu0 0.0
        %3535 = vmatprep.subr.mxu0 0.0
        %3536 = vmatpush1.msra.mxu0 0.0
        %3537 = vmatprep.subr.mxu0 0.0
        %3538 = vmatpush1.msra.mxu0 0.0
        %3539 = vmatprep.subr.mxu0 0.0
        %3540 = vmatpush1.msra.mxu0 0.0
        %3541 = vmatprep.subr.mxu0 0.0
        %3542 = vmatpush1.msra.mxu0 0.0
        %3543 = vmatprep.subr.mxu0 0.0
        %3544 = vmatpush1.msra.mxu0 0.0
        %3545 = vmatprep.subr.mxu0 0.0
        %3546 = vmatpush1.msra.mxu0 0.0
        %3547 = vmatprep.subr.mxu0 0.0
        %3548 = vmatpush1.msra.mxu0 0.0
        %3549 = vmatprep.subr.mxu0 0.0
        %3550 = vmatpush1.msra.mxu0 0.0
        %3551 = vmatprep.subr.mxu0 0.0
        %3552 = vmatpush1.msra.mxu0 0.0
        %3553 = vmatprep.subr.mxu0 0.0
        %3554 = vmatpush1.msra.mxu0 0.0
        %3555 = vmatprep.mubr.f32.mxu0 0.0
        %3556 = vmatmul.mubr.f32.gmra.mrb[0].mxu0 %v3480
        %v3557 = vpop.f32.mrb[0].mxu0
        %v3558 = vadd.f32 0.0, %v3557
        %v3559 = vpop.f32.mrb[0].mxu0
        %3560 = vmatprep.mubr.f32.mxu0 0.0
        %3561 = vmatmul.mubr.f32.gmra.mrb[0].mxu0 %v3483
        %v3562 = vpop.f32.mrb[0].mxu0
        %v3563 = vadd.f32 0.0, %v3562
        %v3564 = vpop.f32.mrb[0].mxu0
        %3565 = vmatprep.mubr.f32.mxu0 0.0
        %3566 = vmatmul.mubr.f32.gmra.mrb[0].mxu0 %v3486
        %v3567 = vpop.f32.mrb[0].mxu0
        %v3568 = vadd.f32 0.0, %v3567
        %v3569 = vpop.f32.mrb[0].mxu0
        %3570 = vmatprep.mubr.f32.mxu0 0.0
        %3571 = vmatmul.mubr.f32.gmra.mrb[0].mxu0 %v3489
        %v3572 = vpop.f32.mrb[0].mxu0
        %v3573 = vadd.f32 0.0, %v3572
        %v3574 = vpop.f32.mrb[0].mxu0
        %3575 = vdwg.mxu0
        %v3576 = vadd.f32 %v3172, %v3267
        %v3577 = vadd.f32 %v3173, %v3272
        %v3578 = vadd.f32 %v3174, %v3277
        %v3579 = vadd.f32 %v3175, %v3282
        %v3580 = vadd.f32 %v3176, %v3364
        %v3581 = vadd.f32 %v3177, %v3369
        %v3582 = vadd.f32 %v3178, %v3374
        %v3583 = vadd.f32 %v3179, %v3379
        %v3584 = vadd.f32 %v3180, %v3461
        %v3585 = vadd.f32 %v3181, %v3466
        %v3586 = vadd.f32 %v3182, %v3471
        %v3587 = vadd.f32 %v3183, %v3476
        %v3588 = vadd.f32 %v3184, %v3558
        %v3589 = vadd.f32 %v3185, %v3563
        %v3590 = vadd.f32 %v3186, %v3568
        %v3591 = vadd.f32 %v3187, %v3573
        %v3592 = vrcp.pop %v3156
        %v3593 = vrcp.pop %v3157
        %v3594 = vrcp.pop %v3158
        %v3595 = vrcp.pop %v3159
        %v3596 = vrcp.pop %v3160
        %v3597 = vrcp.pop %v3161
        %v3598 = vrcp.pop %v3162
        %v3599 = vrcp.pop %v3163
        %v3600 = vrcp.pop %v3164
        %v3601 = vrcp.pop %v3165
        %v3602 = vrcp.pop %v3166
        %v3603 = vrcp.pop %v3167
        %v3604 = vrcp.pop %v3168
        %v3605 = vrcp.pop %v3169
        %v3606 = vrcp.pop %v3170
        %v3607 = vrcp.pop %v3171
        %v3608 = vmul.f32 %v3576, %v3592
        %v3609 = vmul.f32 %v3577, %v3593
        %v3610 = vmul.f32 %v3578, %v3594
        %v3611 = vmul.f32 %v3579, %v3595
        %v3612 = vmul.f32 %v3580, %v3596
        %v3613 = vmul.f32 %v3581, %v3597
        %v3614 = vmul.f32 %v3582, %v3598
        %v3615 = vmul.f32 %v3583, %v3599
        %v3616 = vmul.f32 %v3584, %v3600
        %v3617 = vmul.f32 %v3585, %v3601
        %v3618 = vmul.f32 %v3586, %v3602
        %v3619 = vmul.f32 %v3587, %v3603
        %v3620 = vmul.f32 %v3588, %v3604
        %v3621 = vmul.f32 %v3589, %v3605
        %v3622 = vmul.f32 %v3590, %v3606
        %v3623 = vmul.f32 %v3591, %v3607
        %3628 = vrot.lane.b32.xlu0 %v3612, 32
        %v3629 = vpop.permute.xlu0 %3628
        %3630 = vrot.lane.b32.xlu0 %v3613, 32
        %v3631 = vpop.permute.xlu0 %3630
        %3632 = vrot.lane.b32.xlu0 %v3614, 32
        %v3633 = vpop.permute.xlu0 %3632
        %3634 = vrot.lane.b32.xlu0 %v3615, 32
        %v3635 = vpop.permute.xlu0 %3634
        %3644 = vrot.lane.b32.xlu0 %v3616, 64
        %v3645 = vpop.permute.xlu0 %3644
        %3646 = vrot.lane.b32.xlu0 %v3617, 64
        %v3647 = vpop.permute.xlu0 %3646
        %3648 = vrot.lane.b32.xlu0 %v3618, 64
        %v3649 = vpop.permute.xlu0 %3648
        %3650 = vrot.lane.b32.xlu0 %v3619, 64
        %v3651 = vpop.permute.xlu0 %3650
        %3660 = vrot.lane.b32.xlu0 %v3620, 96
        %v3661 = vpop.permute.xlu0 %3660
        %3662 = vrot.lane.b32.xlu0 %v3621, 96
        %v3663 = vpop.permute.xlu0 %3662
        %3664 = vrot.lane.b32.xlu0 %v3622, 96
        %v3665 = vpop.permute.xlu0 %3664
        %3666 = vrot.lane.b32.xlu0 %v3623, 96
        %v3667 = vpop.permute.xlu0 %3666
        %v3672 = vsel %vm1242, %v3608, %v3629
        %v3673 = vsel %vm1242, %v3609, %v3631
        %v3674 = vsel %vm1242, %v3610, %v3633
        %v3675 = vsel %vm1242, %v3611, %v3635
        %vm3676 = vcmask 523264
        %v3677 = vsel %vm3676, %v3672, %v3645
        %v3678 = vsel %vm3676, %v3673, %v3647
        %v3679 = vsel %vm3676, %v3674, %v3649
        %v3680 = vsel %vm3676, %v3675, %v3651
        %vm3681 = vcmask 785408
        %v3682 = vsel %vm3681, %v3677, %v3661
        %v3683 = vsel %vm3681, %v3678, %v3663
        %v3684 = vsel %vm3681, %v3679, %v3665
        %v3685 = vsel %vm3681, %v3680, %v3667
        %v3686 = vld [vmem:[#allocation7] sm:$0xff]
        %v3687 = vld [vmem:[#allocation7 + $0x8] sm:$0xff]
        %v3688 = vld [vmem:[#allocation7 + $0x10] sm:$0xff]
        %v3689 = vld [vmem:[#allocation7 + $0x18] sm:$0xff]
        %v3690 = vld [vmem:[#allocation7 + $0x20] sm:$0xff]
        %v3691 = vld [vmem:[#allocation7 + $0x28] sm:$0xff]
        %v3692 = vld [vmem:[#allocation7 + $0x30] sm:$0xff]
        %v3693 = vld [vmem:[#allocation7 + $0x38] sm:$0xff]
        %v3694 = vld [vmem:[#allocation7 + $0x40] sm:$0xff]
        %v3695 = vld [vmem:[#allocation7 + $0x48] sm:$0xff]
        %v3696 = vld [vmem:[#allocation7 + $0x50] sm:$0xff]
        %v3697 = vld [vmem:[#allocation7 + $0x58] sm:$0xff]
        %v3698 = vld [vmem:[#allocation7 + $0x60] sm:$0xff]
        %v3699 = vld [vmem:[#allocation7 + $0x68] sm:$0xff]
        %v3700 = vld [vmem:[#allocation7 + $0x70] sm:$0xff]
        %v3701 = vld [vmem:[#allocation7 + $0x78] sm:$0xff]
        %3702 = vmatprep.subr.mxu0 0.0
        %3703 = vmatpush1.msra.mxu0 %v3686
        %3704 = vmatprep.subr.mxu0 0.0
        %3705 = vmatpush1.msra.mxu0 %v3687
        %3706 = vmatprep.subr.mxu0 0.0
        %3707 = vmatpush1.msra.mxu0 %v3688
        %3708 = vmatprep.subr.mxu0 0.0
        %3709 = vmatpush1.msra.mxu0 %v3689
        %3710 = vmatprep.subr.mxu0 0.0
        %3711 = vmatpush1.msra.mxu0 %v3690
        %3712 = vmatprep.subr.mxu0 0.0
        %3713 = vmatpush1.msra.mxu0 %v3691
        %3714 = vmatprep.subr.mxu0 0.0
        %3715 = vmatpush1.msra.mxu0 %v3692
        %3716 = vmatprep.subr.mxu0 0.0
        %3717 = vmatpush1.msra.mxu0 %v3693
        %3718 = vmatprep.subr.mxu0 0.0
        %3719 = vmatpush1.msra.mxu0 %v3694
        %3720 = vmatprep.subr.mxu0 0.0
        %3721 = vmatpush1.msra.mxu0 %v3695
        %3722 = vmatprep.subr.mxu0 0.0
        %3723 = vmatpush1.msra.mxu0 %v3696
        %3724 = vmatprep.subr.mxu0 0.0
        %3725 = vmatpush1.msra.mxu0 %v3697
        %3726 = vmatprep.subr.mxu0 0.0
        %3727 = vmatpush1.msra.mxu0 %v3698
        %3728 = vmatprep.subr.mxu0 0.0
        %3729 = vmatpush1.msra.mxu0 %v3699
        %3730 = vmatprep.subr.mxu0 0.0
        %3731 = vmatpush1.msra.mxu0 %v3700
        %3732 = vmatprep.subr.mxu0 0.0
        %3733 = vmatpush1.msra.mxu0 %v3701
        %3734 = vmatprep.subr.mxu0 0.0
        %3735 = vmatpush1.msra.mxu0 0.0
        %3736 = vmatprep.subr.mxu0 0.0
        %3737 = vmatpush1.msra.mxu0 0.0
        %3738 = vmatprep.subr.mxu0 0.0
        %3739 = vmatpush1.msra.mxu0 0.0
        %3740 = vmatprep.subr.mxu0 0.0
        %3741 = vmatpush1.msra.mxu0 0.0
        %3742 = vmatprep.subr.mxu0 0.0
        %3743 = vmatpush1.msra.mxu0 0.0
        %3744 = vmatprep.subr.mxu0 0.0
        %3745 = vmatpush1.msra.mxu0 0.0
        %3746 = vmatprep.subr.mxu0 0.0
        %3747 = vmatpush1.msra.mxu0 0.0
        %3748 = vmatprep.subr.mxu0 0.0
        %3749 = vmatpush1.msra.mxu0 0.0
        %3750 = vmatprep.subr.mxu0 0.0
        %3751 = vmatpush1.msra.mxu0 0.0
        %3752 = vmatprep.subr.mxu0 0.0
        %3753 = vmatpush1.msra.mxu0 0.0
        %3754 = vmatprep.subr.mxu0 0.0
        %3755 = vmatpush1.msra.mxu0 0.0
        %3756 = vmatprep.subr.mxu0 0.0
        %3757 = vmatpush1.msra.mxu0 0.0
        %3758 = vmatprep.subr.mxu0 0.0
        %3759 = vmatpush1.msra.mxu0 0.0
        %3760 = vmatprep.subr.mxu0 0.0
        %3761 = vmatpush1.msra.mxu0 0.0
        %3762 = vmatprep.subr.mxu0 0.0
        %3763 = vmatpush1.msra.mxu0 0.0
        %3764 = vmatprep.subr.mxu0 0.0
        %3765 = vmatpush1.msra.mxu0 0.0
        %3766 = vmatprep.mubr.f32.mxu0 0.0
        %3767 = vmatmul.mubr.f32.gmra.mrb[0].mxu0 %v3682
        %v3768 = vpop.f32.mrb[0].mxu0
        %v3769 = vadd.f32 0.0, %v3768
        %v3770 = vpop.f32.mrb[0].mxu0
        %3771 = vmatprep.mubr.f32.mxu0 0.0
        %3772 = vmatmul.mubr.f32.gmra.mrb[0].mxu0 %v3683
        %v3773 = vpop.f32.mrb[0].mxu0
        %v3774 = vadd.f32 0.0, %v3773
        %v3775 = vpop.f32.mrb[0].mxu0
        %3776 = vmatprep.mubr.f32.mxu0 0.0
        %3777 = vmatmul.mubr.f32.gmra.mrb[0].mxu0 %v3684
        %v3778 = vpop.f32.mrb[0].mxu0
        %v3779 = vadd.f32 0.0, %v3778
        %v3780 = vpop.f32.mrb[0].mxu0
        %3781 = vmatprep.mubr.f32.mxu0 0.0
        %3782 = vmatmul.mubr.f32.gmra.mrb[0].mxu0 %v3685
        %v3783 = vpop.f32.mrb[0].mxu0
        %v3784 = vadd.f32 0.0, %v3783
        %v3785 = vpop.f32.mrb[0].mxu0
        %3786 = vdwg.mxu0
        %v3787 = vadd.f32 %v493, %v3769
        %v3788 = vadd.f32 %v494, %v3774
        %v3789 = vadd.f32 %v495, %v3779
        %v3790 = vadd.f32 %v496, %v3784
        %v3791 = vld [vmem:[%s5] sm:$0x1]
        %v3792 = vmul.f32 %v3787, %v3787
        %v3793 = vmul.f32 %v3788, %v3788
        %v3794 = vmul.f32 %v3789, %v3789
        %v3795 = vmul.f32 %v3790, %v3790
        %3796 = vadd.xlane.f32.xlu0 %v3792
        %v3797 = vpop.xlane.xlu0 %3796
        %3798 = vadd.xlane.f32.xlu0 %v3793
        %v3799 = vpop.xlane.xlu0 %3798
        %3800 = vadd.xlane.f32.xlu0 %v3794
        %v3801 = vpop.xlane.xlu0 %3800
        %3802 = vadd.xlane.f32.xlu0 %v3795
        %v3803 = vpop.xlane.xlu0 %3802
        %v3804 = vmul.f32 %v3797, %v510
        %v3805 = vmul.f32 %v3799, %v510
        %v3806 = vmul.f32 %v3801, %v510
        %v3807 = vmul.f32 %v3803, %v510
        %v3808 = vadd.f32 %v3804, 1e-06
        %v3809 = vadd.f32 %v3805, 1e-06
        %v3810 = vadd.f32 %v3806, 1e-06
        %v3811 = vadd.f32 %v3807, 1e-06
        %v3812 = vrsqrt.pop %v3808
        %v3813 = vrsqrt.pop %v3809
        %v3814 = vrsqrt.pop %v3810
        %v3815 = vrsqrt.pop %v3811
        %v3816 = vmul.f32 %v3787, %v3812
        %v3817 = vmul.f32 %v3788, %v3813
        %v3818 = vmul.f32 %v3789, %v3814
        %v3819 = vmul.f32 %v3790, %v3815
        %v3821 = vlaneseq
        %v3822 = vshrl.u32 %v3821, 7
        %v3823 = vsub.s32 0, %v3822
        %v3824 = vrot.slane %v3791, %v3823
        %v3826 = vmul.f32 %v3816, %v3824
        %v3827 = vmul.f32 %v3817, %v3824
        %v3828 = vmul.f32 %v3818, %v3824
        %v3829 = vmul.f32 %v3819, %v3824
        %v3830 = vld [vmem:[#allocation9] sm:$0xff]
        %v3831 = vld [vmem:[#allocation9 + $0x8] sm:$0xff]
        %v3832 = vld [vmem:[#allocation9 + $0x10] sm:$0xff]
        %v3833 = vld [vmem:[#allocation9 + $0x18] sm:$0xff]
        %v3834 = vld [vmem:[#allocation9 + $0x20] sm:$0xff]
        %v3835 = vld [vmem:[#allocation9 + $0x28] sm:$0xff]
        %v3836 = vld [vmem:[#allocation9 + $0x30] sm:$0xff]
        %v3837 = vld [vmem:[#allocation9 + $0x38] sm:$0xff]
        %v3838 = vld [vmem:[#allocation9 + $0x40] sm:$0xff]
        %v3839 = vld [vmem:[#allocation9 + $0x48] sm:$0xff]
        %v3840 = vld [vmem:[#allocation9 + $0x50] sm:$0xff]
        %v3841 = vld [vmem:[#allocation9 + $0x58] sm:$0xff]
        %v3842 = vld [vmem:[#allocation9 + $0x60] sm:$0xff]
        %v3843 = vld [vmem:[#allocation9 + $0x68] sm:$0xff]
        %v3844 = vld [vmem:[#allocation9 + $0x70] sm:$0xff]
        %v3845 = vld [vmem:[#allocation9 + $0x78] sm:$0xff]
        %v3846 = vld [vmem:[#allocation9 + $0x80] sm:$0xff]
        %v3847 = vld [vmem:[#allocation9 + $0x88] sm:$0xff]
        %v3848 = vld [vmem:[#allocation9 + $0x90] sm:$0xff]
        %v3849 = vld [vmem:[#allocation9 + $0x98] sm:$0xff]
        %v3850 = vld [vmem:[#allocation9 + $0xa0] sm:$0xff]
        %v3851 = vld [vmem:[#allocation9 + $0xa8] sm:$0xff]
        %v3852 = vld [vmem:[#allocation9 + $0xb0] sm:$0xff]
        %v3853 = vld [vmem:[#allocation9 + $0xb8] sm:$0xff]
        %v3854 = vld [vmem:[#allocation9 + $0xc0] sm:$0xff]
        %v3855 = vld [vmem:[#allocation9 + $0xc8] sm:$0xff]
        %v3856 = vld [vmem:[#allocation9 + $0xd0] sm:$0xff]
        %v3857 = vld [vmem:[#allocation9 + $0xd8] sm:$0xff]
        %v3858 = vld [vmem:[#allocation9 + $0xe0] sm:$0xff]
        %v3859 = vld [vmem:[#allocation9 + $0xe8] sm:$0xff]
        %v3860 = vld [vmem:[#allocation9 + $0xf0] sm:$0xff]
        %v3861 = vld [vmem:[#allocation9 + $0xf8] sm:$0xff]
        %v3862 = vld [vmem:[#allocation9 + $0x100] sm:$0xff]
        %v3863 = vld [vmem:[#allocation9 + $0x108] sm:$0xff]
        %v3864 = vld [vmem:[#allocation9 + $0x110] sm:$0xff]
        %v3865 = vld [vmem:[#allocation9 + $0x118] sm:$0xff]
        %v3866 = vld [vmem:[#allocation9 + $0x120] sm:$0xff]
        %v3867 = vld [vmem:[#allocation9 + $0x128] sm:$0xff]
        %v3868 = vld [vmem:[#allocation9 + $0x130] sm:$0xff]
        %v3869 = vld [vmem:[#allocation9 + $0x138] sm:$0xff]
        %v3870 = vld [vmem:[#allocation9 + $0x140] sm:$0xff]
        %v3871 = vld [vmem:[#allocation9 + $0x148] sm:$0xff]
        %v3872 = vld [vmem:[#allocation9 + $0x150] sm:$0xff]
        %v3873 = vld [vmem:[#allocation9 + $0x158] sm:$0xff]
        %v3874 = vld [vmem:[#allocation9 + $0x160] sm:$0xff]
        %v3875 = vld [vmem:[#allocation9 + $0x168] sm:$0xff]
        %v3876 = vld [vmem:[#allocation9 + $0x170] sm:$0xff]
        %v3877 = vld [vmem:[#allocation9 + $0x178] sm:$0xff]
        %v3878 = vld [vmem:[#allocation9 + $0x180] sm:$0xff]
        %v3879 = vld [vmem:[#allocation9 + $0x188] sm:$0xff]
        %v3880 = vld [vmem:[#allocation9 + $0x190] sm:$0xff]
        %v3881 = vld [vmem:[#allocation9 + $0x198] sm:$0xff]
        %v3882 = vld [vmem:[#allocation9 + $0x1a0] sm:$0xff]
        %v3883 = vld [vmem:[#allocation9 + $0x1a8] sm:$0xff]
        %v3884 = vld [vmem:[#allocation9 + $0x1b0] sm:$0xff]
        %v3885 = vld [vmem:[#allocation9 + $0x1b8] sm:$0xff]
        %v3886 = vld [vmem:[#allocation9 + $0x1c0] sm:$0xff]
        %v3887 = vld [vmem:[#allocation9 + $0x1c8] sm:$0xff]
        %v3888 = vld [vmem:[#allocation9 + $0x1d0] sm:$0xff]
        %v3889 = vld [vmem:[#allocation9 + $0x1d8] sm:$0xff]
        %v3890 = vld [vmem:[#allocation9 + $0x1e0] sm:$0xff]
        %v3891 = vld [vmem:[#allocation9 + $0x1e8] sm:$0xff]
        %v3892 = vld [vmem:[#allocation9 + $0x1f0] sm:$0xff]
        %v3893 = vld [vmem:[#allocation9 + $0x1f8] sm:$0xff]
        %3894 = vmatprep.subr.mxu0 %v3831
        %3895 = vmatpush1.msra.mxu0 %v3830
        %3896 = vmatprep.subr.mxu0 %v3835
        %3897 = vmatpush1.msra.mxu0 %v3834
        %3898 = vmatprep.subr.mxu0 %v3839
        %3899 = vmatpush1.msra.mxu0 %v3838
        %3900 = vmatprep.subr.mxu0 %v3843
        %3901 = vmatpush1.msra.mxu0 %v3842
        %3902 = vmatprep.subr.mxu0 %v3847
        %3903 = vmatpush1.msra.mxu0 %v3846
        %3904 = vmatprep.subr.mxu0 %v3851
        %3905 = vmatpush1.msra.mxu0 %v3850
        %3906 = vmatprep.subr.mxu0 %v3855
        %3907 = vmatpush1.msra.mxu0 %v3854
        %3908 = vmatprep.subr.mxu0 %v3859
        %3909 = vmatpush1.msra.mxu0 %v3858
        %3910 = vmatprep.subr.mxu0 %v3863
        %3911 = vmatpush1.msra.mxu0 %v3862
        %3912 = vmatprep.subr.mxu0 %v3867
        %3913 = vmatpush1.msra.mxu0 %v3866
        %3914 = vmatprep.subr.mxu0 %v3871
        %3915 = vmatpush1.msra.mxu0 %v3870
        %3916 = vmatprep.subr.mxu0 %v3875
        %3917 = vmatpush1.msra.mxu0 %v3874
        %3918 = vmatprep.subr.mxu0 %v3879
        %3919 = vmatpush1.msra.mxu0 %v3878
        %3920 = vmatprep.subr.mxu0 %v3883
        %3921 = vmatpush1.msra.mxu0 %v3882
        %3922 = vmatprep.subr.mxu0 %v3887
        %3923 = vmatpush1.msra.mxu0 %v3886
        %3924 = vmatprep.subr.mxu0 %v3891
        %3925 = vmatpush1.msra.mxu0 %v3890
        %3926 = vmatprep.subr.mxu0 0.0
        %3927 = vmatpush1.msra.mxu0 0.0
        %3928 = vmatprep.subr.mxu0 0.0
        %3929 = vmatpush1.msra.mxu0 0.0
        %3930 = vmatprep.subr.mxu0 0.0
        %3931 = vmatpush1.msra.mxu0 0.0
        %3932 = vmatprep.subr.mxu0 0.0
        %3933 = vmatpush1.msra.mxu0 0.0
        %3934 = vmatprep.subr.mxu0 0.0
        %3935 = vmatpush1.msra.mxu0 0.0
        %3936 = vmatprep.subr.mxu0 0.0
        %3937 = vmatpush1.msra.mxu0 0.0
        %3938 = vmatprep.subr.mxu0 0.0
        %3939 = vmatpush1.msra.mxu0 0.0
        %3940 = vmatprep.subr.mxu0 0.0
        %3941 = vmatpush1.msra.mxu0 0.0
        %3942 = vmatprep.subr.mxu0 0.0
        %3943 = vmatpush1.msra.mxu0 0.0
        %3944 = vmatprep.subr.mxu0 0.0
        %3945 = vmatpush1.msra.mxu0 0.0
        %3946 = vmatprep.subr.mxu0 0.0
        %3947 = vmatpush1.msra.mxu0 0.0
        %3948 = vmatprep.subr.mxu0 0.0
        %3949 = vmatpush1.msra.mxu0 0.0
        %3950 = vmatprep.subr.mxu0 0.0
        %3951 = vmatpush1.msra.mxu0 0.0
        %3952 = vmatprep.subr.mxu0 0.0
        %3953 = vmatpush1.msra.mxu0 0.0
        %3954 = vmatprep.subr.mxu0 0.0
        %3955 = vmatpush1.msra.mxu0 0.0
        %3956 = vmatprep.subr.mxu0 0.0
        %3957 = vmatpush1.msra.mxu0 0.0
        %3958 = vmatprep.mubr.f32.mxu0 0.0
        %3959 = vmatmul.mubr.f32.gmra.mrb[0].mxu0 %v3826
        %v3960 = vpop.f32.mrb[0].mxu0
        %v3961 = vadd.f32 0.0, %v3960
        %v3962 = vpop.f32.mrb[0].mxu0
        %v3963 = vadd.f32 0.0, %v3962
        %3964 = vmatprep.mubr.f32.mxu0 0.0
        %3965 = vmatmul.mubr.f32.gmra.mrb[0].mxu0 %v3827
        %v3966 = vpop.f32.mrb[0].mxu0
        %v3967 = vadd.f32 0.0, %v3966
        %v3968 = vpop.f32.mrb[0].mxu0
        %v3969 = vadd.f32 0.0, %v3968
        %3970 = vmatprep.mubr.f32.mxu0 0.0
        %3971 = vmatmul.mubr.f32.gmra.mrb[0].mxu0 %v3828
        %v3972 = vpop.f32.mrb[0].mxu0
        %v3973 = vadd.f32 0.0, %v3972
        %v3974 = vpop.f32.mrb[0].mxu0
        %v3975 = vadd.f32 0.0, %v3974
        %3976 = vmatprep.mubr.f32.mxu0 0.0
        %3977 = vmatmul.mubr.f32.gmra.mrb[0].mxu0 %v3829
        %v3978 = vpop.f32.mrb[0].mxu0
        %v3979 = vadd.f32 0.0, %v3978
        %v3980 = vpop.f32.mrb[0].mxu0
        %v3981 = vadd.f32 0.0, %v3980
        %3982 = vdwg.mxu0
        %3983 = vmatprep.subr.mxu0 %v3833
        %3984 = vmatpush1.msra.mxu0 %v3832
        %3985 = vmatprep.subr.mxu0 %v3837
        %3986 = vmatpush1.msra.mxu0 %v3836
        %3987 = vmatprep.subr.mxu0 %v3841
        %3988 = vmatpush1.msra.mxu0 %v3840
        %3989 = vmatprep.subr.mxu0 %v3845
        %3990 = vmatpush1.msra.mxu0 %v3844
        %3991 = vmatprep.subr.mxu0 %v3849
        %3992 = vmatpush1.msra.mxu0 %v3848
        %3993 = vmatprep.subr.mxu0 %v3853
        %3994 = vmatpush1.msra.mxu0 %v3852
        %3995 = vmatprep.subr.mxu0 %v3857
        %3996 = vmatpush1.msra.mxu0 %v3856
        %3997 = vmatprep.subr.mxu0 %v3861
        %3998 = vmatpush1.msra.mxu0 %v3860
        %3999 = vmatprep.subr.mxu0 %v3865
        %4000 = vmatpush1.msra.mxu0 %v3864
        %4001 = vmatprep.subr.mxu0 %v3869
        %4002 = vmatpush1.msra.mxu0 %v3868
        %4003 = vmatprep.subr.mxu0 %v3873
        %4004 = vmatpush1.msra.mxu0 %v3872
        %4005 = vmatprep.subr.mxu0 %v3877
        %4006 = vmatpush1.msra.mxu0 %v3876
        %4007 = vmatprep.subr.mxu0 %v3881
        %4008 = vmatpush1.msra.mxu0 %v3880
        %4009 = vmatprep.subr.mxu0 %v3885
        %4010 = vmatpush1.msra.mxu0 %v3884
        %4011 = vmatprep.subr.mxu0 %v3889
        %4012 = vmatpush1.msra.mxu0 %v3888
        %4013 = vmatprep.subr.mxu0 %v3893
        %4014 = vmatpush1.msra.mxu0 %v3892
        %4015 = vmatprep.subr.mxu0 0.0
        %4016 = vmatpush1.msra.mxu0 0.0
        %4017 = vmatprep.subr.mxu0 0.0
        %4018 = vmatpush1.msra.mxu0 0.0
        %4019 = vmatprep.subr.mxu0 0.0
        %4020 = vmatpush1.msra.mxu0 0.0
        %4021 = vmatprep.subr.mxu0 0.0
        %4022 = vmatpush1.msra.mxu0 0.0
        %4023 = vmatprep.subr.mxu0 0.0
        %4024 = vmatpush1.msra.mxu0 0.0
        %4025 = vmatprep.subr.mxu0 0.0
        %4026 = vmatpush1.msra.mxu0 0.0
        %4027 = vmatprep.subr.mxu0 0.0
        %4028 = vmatpush1.msra.mxu0 0.0
        %4029 = vmatprep.subr.mxu0 0.0
        %4030 = vmatpush1.msra.mxu0 0.0
        %4031 = vmatprep.subr.mxu0 0.0
        %4032 = vmatpush1.msra.mxu0 0.0
        %4033 = vmatprep.subr.mxu0 0.0
        %4034 = vmatpush1.msra.mxu0 0.0
        %4035 = vmatprep.subr.mxu0 0.0
        %4036 = vmatpush1.msra.mxu0 0.0
        %4037 = vmatprep.subr.mxu0 0.0
        %4038 = vmatpush1.msra.mxu0 0.0
        %4039 = vmatprep.subr.mxu0 0.0
        %4040 = vmatpush1.msra.mxu0 0.0
        %4041 = vmatprep.subr.mxu0 0.0
        %4042 = vmatpush1.msra.mxu0 0.0
        %4043 = vmatprep.subr.mxu0 0.0
        %4044 = vmatpush1.msra.mxu0 0.0
        %4045 = vmatprep.subr.mxu0 0.0
        %4046 = vmatpush1.msra.mxu0 0.0
        %4047 = vmatprep.mubr.f32.mxu0 0.0
        %4048 = vmatmul.mubr.f32.gmra.mrb[0].mxu0 %v3826
        %v4049 = vpop.f32.mrb[0].mxu0
        %v4050 = vadd.f32 0.0, %v4049
        %v4051 = vpop.f32.mrb[0].mxu0
        %v4052 = vadd.f32 0.0, %v4051
        %4053 = vmatprep.mubr.f32.mxu0 0.0
        %4054 = vmatmul.mubr.f32.gmra.mrb[0].mxu0 %v3827
        %v4055 = vpop.f32.mrb[0].mxu0
        %v4056 = vadd.f32 0.0, %v4055
        %v4057 = vpop.f32.mrb[0].mxu0
        %v4058 = vadd.f32 0.0, %v4057
        %4059 = vmatprep.mubr.f32.mxu0 0.0
        %4060 = vmatmul.mubr.f32.gmra.mrb[0].mxu0 %v3828
        %v4061 = vpop.f32.mrb[0].mxu0
        %v4062 = vadd.f32 0.0, %v4061
        %v4063 = vpop.f32.mrb[0].mxu0
        %v4064 = vadd.f32 0.0, %v4063
        %4065 = vmatprep.mubr.f32.mxu0 0.0
        %4066 = vmatmul.mubr.f32.gmra.mrb[0].mxu0 %v3829
        %v4067 = vpop.f32.mrb[0].mxu0
        %v4068 = vadd.f32 0.0, %v4067
        %v4069 = vpop.f32.mrb[0].mxu0
        %v4070 = vadd.f32 0.0, %v4069
        %4071 = vdwg.mxu0
        %v4072 = vxor.u32 %v4050, 2147483648
        %v4073 = vxor.u32 %v4052, 2147483648
        %v4074 = vxor.u32 %v4056, 2147483648
        %v4075 = vxor.u32 %v4058, 2147483648
        %v4076 = vxor.u32 %v4062, 2147483648
        %v4077 = vxor.u32 %v4064, 2147483648
        %v4078 = vxor.u32 %v4068, 2147483648
        %v4079 = vxor.u32 %v4070, 2147483648
        %v4080 = vmul.f32 %v4072, 1.442695
        %v4081 = vpow.pop %v4080
        %v4082 = vmul.f32 %v4073, 1.442695
        %v4083 = vpow.pop %v4082
        %v4084 = vmul.f32 %v4074, 1.442695
        %v4085 = vpow.pop %v4084
        %v4086 = vmul.f32 %v4075, 1.442695
        %v4087 = vpow.pop %v4086
        %v4088 = vmul.f32 %v4076, 1.442695
        %v4089 = vpow.pop %v4088
        %v4090 = vmul.f32 %v4077, 1.442695
        %v4091 = vpow.pop %v4090
        %v4092 = vmul.f32 %v4078, 1.442695
        %v4093 = vpow.pop %v4092
        %v4094 = vmul.f32 %v4079, 1.442695
        %v4095 = vpow.pop %v4094
        %v4096 = vadd.f32 %v4081, 1.0
        %v4097 = vadd.f32 %v4083, 1.0
        %v4098 = vadd.f32 %v4085, 1.0
        %v4099 = vadd.f32 %v4087, 1.0
        %v4100 = vadd.f32 %v4089, 1.0
        %v4101 = vadd.f32 %v4091, 1.0
        %v4102 = vadd.f32 %v4093, 1.0
        %v4103 = vadd.f32 %v4095, 1.0
        %v4104 = vrcp.pop %v4096
        %v4105 = vmul.f32 1.0, %v4104
        %v4106 = vrcp.pop %v4097
        %v4107 = vmul.f32 1.0, %v4106
        %v4108 = vrcp.pop %v4098
        %v4109 = vmul.f32 1.0, %v4108
        %v4110 = vrcp.pop %v4099
        %v4111 = vmul.f32 1.0, %v4110
        %v4112 = vrcp.pop %v4100
        %v4113 = vmul.f32 1.0, %v4112
        %v4114 = vrcp.pop %v4101
        %v4115 = vmul.f32 1.0, %v4114
        %v4116 = vrcp.pop %v4102
        %v4117 = vmul.f32 1.0, %v4116
        %v4118 = vrcp.pop %v4103
        %v4119 = vmul.f32 1.0, %v4118
        %v4120 = vmul.f32 %v4050, %v4105
        %v4121 = vmul.f32 %v4052, %v4107
        %v4122 = vmul.f32 %v4056, %v4109
        %v4123 = vmul.f32 %v4058, %v4111
        %v4124 = vmul.f32 %v4062, %v4113
        %v4125 = vmul.f32 %v4064, %v4115
        %v4126 = vmul.f32 %v4068, %v4117
        %v4127 = vmul.f32 %v4070, %v4119
        %v4128 = vmul.f32 %v3961, %v4120
        %v4129 = vmul.f32 %v3963, %v4121
        %v4130 = vmul.f32 %v3967, %v4122
        %v4131 = vmul.f32 %v3969, %v4123
        %v4132 = vmul.f32 %v3973, %v4124
        %v4133 = vmul.f32 %v3975, %v4125
        %v4134 = vmul.f32 %v3979, %v4126
        %v4135 = vmul.f32 %v3981, %v4127
        %v4136 = vld [vmem:[#allocation10] sm:$0xff]
        %v4137 = vld [vmem:[#allocation10 + $0x8] sm:$0xff]
        %v4138 = vld [vmem:[#allocation10 + $0x10] sm:$0xff]
        %v4139 = vld [vmem:[#allocation10 + $0x18] sm:$0xff]
        %v4140 = vld [vmem:[#allocation10 + $0x20] sm:$0xff]
        %v4141 = vld [vmem:[#allocation10 + $0x28] sm:$0xff]
        %v4142 = vld [vmem:[#allocation10 + $0x30] sm:$0xff]
        %v4143 = vld [vmem:[#allocation10 + $0x38] sm:$0xff]
        %v4144 = vld [vmem:[#allocation10 + $0x40] sm:$0xff]
        %v4145 = vld [vmem:[#allocation10 + $0x48] sm:$0xff]
        %v4146 = vld [vmem:[#allocation10 + $0x50] sm:$0xff]
        %v4147 = vld [vmem:[#allocation10 + $0x58] sm:$0xff]
        %v4148 = vld [vmem:[#allocation10 + $0x60] sm:$0xff]
        %v4149 = vld [vmem:[#allocation10 + $0x68] sm:$0xff]
        %v4150 = vld [vmem:[#allocation10 + $0x70] sm:$0xff]
        %v4151 = vld [vmem:[#allocation10 + $0x78] sm:$0xff]
        %v4152 = vld [vmem:[#allocation10 + $0x80] sm:$0xff]
        %v4153 = vld [vmem:[#allocation10 + $0x88] sm:$0xff]
        %v4154 = vld [vmem:[#allocation10 + $0x90] sm:$0xff]
        %v4155 = vld [vmem:[#allocation10 + $0x98] sm:$0xff]
        %v4156 = vld [vmem:[#allocation10 + $0xa0] sm:$0xff]
        %v4157 = vld [vmem:[#allocation10 + $0xa8] sm:$0xff]
        %v4158 = vld [vmem:[#allocation10 + $0xb0] sm:$0xff]
        %v4159 = vld [vmem:[#allocation10 + $0xb8] sm:$0xff]
        %v4160 = vld [vmem:[#allocation10 + $0xc0] sm:$0xff]
        %v4161 = vld [vmem:[#allocation10 + $0xc8] sm:$0xff]
        %v4162 = vld [vmem:[#allocation10 + $0xd0] sm:$0xff]
        %v4163 = vld [vmem:[#allocation10 + $0xd8] sm:$0xff]
        %v4164 = vld [vmem:[#allocation10 + $0xe0] sm:$0xff]
        %v4165 = vld [vmem:[#allocation10 + $0xe8] sm:$0xff]
        %v4166 = vld [vmem:[#allocation10 + $0xf0] sm:$0xff]
        %v4167 = vld [vmem:[#allocation10 + $0xf8] sm:$0xff]
        %4168 = vmatprep.subr.mxu0 0.0
        %4169 = vmatpush1.msra.mxu0 %v4136
        %4170 = vmatprep.subr.mxu0 0.0
        %4171 = vmatpush1.msra.mxu0 %v4137
        %4172 = vmatprep.subr.mxu0 0.0
        %4173 = vmatpush1.msra.mxu0 %v4138
        %4174 = vmatprep.subr.mxu0 0.0
        %4175 = vmatpush1.msra.mxu0 %v4139
        %4176 = vmatprep.subr.mxu0 0.0
        %4177 = vmatpush1.msra.mxu0 %v4140
        %4178 = vmatprep.subr.mxu0 0.0
        %4179 = vmatpush1.msra.mxu0 %v4141
        %4180 = vmatprep.subr.mxu0 0.0
        %4181 = vmatpush1.msra.mxu0 %v4142
        %4182 = vmatprep.subr.mxu0 0.0
        %4183 = vmatpush1.msra.mxu0 %v4143
        %4184 = vmatprep.subr.mxu0 0.0
        %4185 = vmatpush1.msra.mxu0 %v4144
        %4186 = vmatprep.subr.mxu0 0.0
        %4187 = vmatpush1.msra.mxu0 %v4145
        %4188 = vmatprep.subr.mxu0 0.0
        %4189 = vmatpush1.msra.mxu0 %v4146
        %4190 = vmatprep.subr.mxu0 0.0
        %4191 = vmatpush1.msra.mxu0 %v4147
        %4192 = vmatprep.subr.mxu0 0.0
        %4193 = vmatpush1.msra.mxu0 %v4148
        %4194 = vmatprep.subr.mxu0 0.0
        %4195 = vmatpush1.msra.mxu0 %v4149
        %4196 = vmatprep.subr.mxu0 0.0
        %4197 = vmatpush1.msra.mxu0 %v4150
        %4198 = vmatprep.subr.mxu0 0.0
        %4199 = vmatpush1.msra.mxu0 %v4151
        %4200 = vmatprep.subr.mxu0 0.0
        %4201 = vmatpush1.msra.mxu0 %v4152
        %4202 = vmatprep.subr.mxu0 0.0
        %4203 = vmatpush1.msra.mxu0 %v4153
        %4204 = vmatprep.subr.mxu0 0.0
        %4205 = vmatpush1.msra.mxu0 %v4154
        %4206 = vmatprep.subr.mxu0 0.0
        %4207 = vmatpush1.msra.mxu0 %v4155
        %4208 = vmatprep.subr.mxu0 0.0
        %4209 = vmatpush1.msra.mxu0 %v4156
        %4210 = vmatprep.subr.mxu0 0.0
        %4211 = vmatpush1.msra.mxu0 %v4157
        %4212 = vmatprep.subr.mxu0 0.0
        %4213 = vmatpush1.msra.mxu0 %v4158
        %4214 = vmatprep.subr.mxu0 0.0
        %4215 = vmatpush1.msra.mxu0 %v4159
        %4216 = vmatprep.subr.mxu0 0.0
        %4217 = vmatpush1.msra.mxu0 %v4160
        %4218 = vmatprep.subr.mxu0 0.0
        %4219 = vmatpush1.msra.mxu0 %v4161
        %4220 = vmatprep.subr.mxu0 0.0
        %4221 = vmatpush1.msra.mxu0 %v4162
        %4222 = vmatprep.subr.mxu0 0.0
        %4223 = vmatpush1.msra.mxu0 %v4163
        %4224 = vmatprep.subr.mxu0 0.0
        %4225 = vmatpush1.msra.mxu0 %v4164
        %4226 = vmatprep.subr.mxu0 0.0
        %4227 = vmatpush1.msra.mxu0 %v4165
        %4228 = vmatprep.subr.mxu0 0.0
        %4229 = vmatpush1.msra.mxu0 %v4166
        %4230 = vmatprep.subr.mxu0 0.0
        %4231 = vmatpush1.msra.mxu0 %v4167
        %4232 = vmatprep.mubr.f32.mxu0 %v4129
        %4233 = vmatmul.mubr.f32.gmra.mrb[0].mxu0 %v4128
        %v4234 = vpop.f32.mrb[0].mxu0
        %v4235 = vadd.f32 0.0, %v4234
        %v4236 = vpop.f32.mrb[0].mxu0
        %4237 = vmatprep.mubr.f32.mxu0 %v4131
        %4238 = vmatmul.mubr.f32.gmra.mrb[0].mxu0 %v4130
        %v4239 = vpop.f32.mrb[0].mxu0
        %v4240 = vadd.f32 0.0, %v4239
        %v4241 = vpop.f32.mrb[0].mxu0
        %4242 = vmatprep.mubr.f32.mxu0 %v4133
        %4243 = vmatmul.mubr.f32.gmra.mrb[0].mxu0 %v4132
        %v4244 = vpop.f32.mrb[0].mxu0
        %v4245 = vadd.f32 0.0, %v4244
        %v4246 = vpop.f32.mrb[0].mxu0
        %4247 = vmatprep.mubr.f32.mxu0 %v4135
        %4248 = vmatmul.mubr.f32.gmra.mrb[0].mxu0 %v4134
        %v4249 = vpop.f32.mrb[0].mxu0
        %v4250 = vadd.f32 0.0, %v4249
        %v4251 = vpop.f32.mrb[0].mxu0
        %4252 = vdwg.mxu0
        %v4253 = vadd.f32 %v3787, %v4235
        %v4254 = vadd.f32 %v3788, %v4240
        %v4255 = vadd.f32 %v3789, %v4245
        %v4256 = vadd.f32 %v3790, %v4250
        %4257 = vst [vmem:[%s468] sm:$0xff] %v4253
        %4258 = vst [vmem:[%s468 + $0x8] sm:$0xff] %v4254
        %4259 = vst [vmem:[%s468 + $0x10] sm:$0xff] %v4255
        %4260 = vst [vmem:[%s468 + $0x18] sm:$0xff] %v4256
        %s4261 = sand.u32 %s276, 1
        %s4262 = scalar_lea.sflag [#allocation6], %s4261
        %s4263 = sand.u32 %s276, 1
        %s4264 = smul.addr %s4263, 32
        %s4265 = scalar_lea.vmem [#allocation12], %s4264
        // Predicated region
        $region84: #{tpu_custom_call.1} parent=59 // pred_check
          %p4266 = pneg %p286
        $region85: #{tpu_custom_call.1} parent=59 // pred_check_branch
          %4268 = sbr.rel (%p4266) target = $region87
        $region86: #{tpu_custom_call.1} parent=59 // pred_region
          %s4269 = smul.u32 4, %s32
          %s4271 = ssub.s32 512, 512
          %4272 = vsyncadd %s4262, %s4271
          %s4273 = smul.addr %s31, 8
          %s4274 = sadd.s32 %s4269, %s4273
          %s4275 = smul.addr %s4274, 128
          %s4276 = scalar_lea.hbm %s10, %s4275
          %s4277 = sshll.u32 %s4265, 4
          %s4278 = int_to_ptr.vmem [resolvable:$true] %s4277
          %4283 = dma.vmem_to_hbm [thread:$0]  %s4278, 512, %s4276, %s4262, 128, 128, 8
        $region87: #{tpu_custom_call.1} parent=59 // pred_fallthru
          _
      $region60: #{tpu_custom_call.1} parent=5 // pred_fallthru
        _
      %p4284 = scmp.le.s32.totalorder 2, %s22
      // Predicated region
      $region88: #{tpu_custom_call.1} parent=5 // pred_check
        %p4285 = pneg %p4284
      $region89: #{tpu_custom_call.1} parent=5 // pred_check_branch
        %4287 = sbr.rel (%p4285) target = $region91
      $region90: #{tpu_custom_call.1} parent=5 // pred_region
        %s4288 = ssub.s32 %s22, 2
        // Predicated region
        $region92: #{tpu_custom_call.1} parent=90 // pred_check
          %p4289 = pneg %p292
        $region93: #{tpu_custom_call.1} parent=90 // pred_check_branch
          %4291 = sbr.rel (%p4289) target = $region95
        $region94: #{tpu_custom_call.1} parent=90 // pred_region
          %s4292 = sand.u32 %s277, 1
          %s4293 = scalar_lea.sflag [#allocation6], %s4292
          %s4294 = sand.u32 %s277, 1
          %s4295 = smul.addr %s4294, 32
          %s4296 = scalar_lea.vmem [#allocation12], %s4295
          %4297 = dma.done %s4293, 512
        $region95: #{tpu_custom_call.1} parent=90 // pred_fallthru
          _
      $region91: #{tpu_custom_call.1} parent=5 // pred_fallthru
        _
    $region6: #{tpu_custom_call.1} parent=1 // loop_footer
      %s26 = sadd.s32 1, %s22
    $region7: #{tpu_custom_call.1} parent=1 // loop_footer_branch
      %21 = sbr.rel target = $region3
    $region8: #{tpu_custom_call.1} parent=1 // loop_exit
      _
    %4298 = vsyncpa [#allocation5], 1
    %s4299 = scalar_lea.sflag [#allocation5], 1
    %4300 = vsyncpa %s4299, 1
    %4301 = vsyncpa [#allocation8], 1
    %4302 = vsyncpa [#allocation11], 1
    %4303 = vsyncpa [#allocation6], 1
    %s4304 = scalar_lea.sflag [#allocation6], 1
    %4305 = vsyncpa %s4304, 1

// kernel: tpu_custom_call.1
$region0: #{tpu_custom_call.1}
  #allocation0 [shape = 'u32[]', space=smem, size = 0x4, offset = 0x4, fixed_abs, tag = 'smem constant byte address 0x4 - core index']
  #allocation1 [shape = 'u32[144,128]{1,0:T(1,128)}', space=vmem, size = 0x12000, scoped, tag = 'internal scratch']
  #allocation2 [shape = 'f32[4,64,32]{2,1,0:T(8,128)}', space=vmem, size = 0x20000, scoped, tag = 'scratch operand']
  #allocation3 [shape = 'f32[4,64,32]{2,1,0:T(8,128)}', space=vmem, size = 0x20000, scoped, tag = 'scratch operand']
  %s0 = inlined_call_operand.vmem [shape: f32[2,64,128], index: 0, kind: input, shape index: {}]
  %s1 = inlined_call_operand.vmem [shape: f32[1,128], index: 1, kind: input, shape index: {}]
  %s2 = inlined_call_operand.hbm [shape: f32[128,384], index: 2, kind: input, shape index: {}]
  %s3 = inlined_call_operand.vmem [shape: f32[1,384], index: 3, kind: input, shape index: {}]
  %s4 = inlined_call_operand.hbm [shape: f32[128,128], index: 4, kind: input, shape index: {}]
  %s5 = inlined_call_operand.vmem [shape: f32[1,128], index: 5, kind: input, shape index: {}]
  %s6 = inlined_call_operand.hbm [shape: f32[128,512], index: 6, kind: input, shape index: {}]
  %s7 = inlined_call_operand.hbm [shape: f32[256,128], index: 7, kind: input, shape index: {}]
  %s8 = inlined_call_operand.vmem [shape: f32[64,32], index: 8, kind: input, shape index: {}]
  %s9 = inlined_call_operand.vmem [shape: f32[64,32], index: 9, kind: input, shape index: {}]
  %s10 = inlined_call_operand.hbm [shape: f32[2,64,128], index: 10, kind: output, shape index: {}]
  %s11 = sld [smem:[#allocation0]]
  $region96: #{tpu_custom_call.1} parent=0
    _
  %s13 = ssub.s32 1, %s11
  %s14 = scalar_select 0, %s13, %s11
  $region1: #{tpu_custom_call.1} parent=0
    #allocation4 [shape = 'u8[196608]{0}', space=vmem, size = 0x30000, scoped, tag = 'input window, operand 2, single buffered']
    #allocation5 [shape = 's32[2]{0}', space=sflag, size = 0x8, scoped, tag = 'scoped memory for tpu_custom_call.1']
    #allocation6 [shape = 's32[2]{0}', space=sflag, size = 0x8, scoped, tag = 'scoped memory for tpu_custom_call.1']
    #allocation7 [shape = 'u8[65536]{0}', space=vmem, size = 0x10000, scoped, tag = 'input window, operand 4, single buffered']
    #allocation8 [shape = 's32[1]{0}', space=sflag, size = 0x4, scoped, tag = 'scoped memory for tpu_custom_call.1']
    #allocation9 [shape = 'u8[262144]{0}', space=vmem, size = 0x40000, scoped, tag = 'input window, operand 6, single buffered']
    #allocation10 [shape = 'u8[131072]{0}', space=vmem, size = 0x20000, scoped, tag = 'input window, operand 7, single buffered']
    #allocation11 [shape = 's32[1]{0}', space=sflag, size = 0x4, scoped, tag = 'scoped memory for tpu_custom_call.1']
    #allocation12 [shape = 'u8[32768]{0}', space=vmem, size = 0x8000, scoped, tag = 'output window, operand 0']
    %15 = vsyncpa [#allocation5], 0
    %16 = vsyncpa [#allocation8], 0
    %17 = vsyncpa [#allocation11], 0
    %18 = vsyncpa [#allocation6], 0
    %s19 = scalar_lea.sflag [#allocation6], 1
    %20 = vsyncpa %s19, 0
    loop: start=0, step=1, limit=6
    $region2: #{tpu_custom_call.1} parent=1 // loop_pre_header
      _
    $region3: #{tpu_custom_call.1} parent=1 // loop_header
      %s22 = sphi 0, %s26
      %p23 = scmp.ge.s32.totalorder %s22, 6
      %s29 = sphi 0, %s41
      %s30 = sphi 0, %s37
      %s31 = sphi 0, %s29
      %s32 = sphi 0, %s30
      %s33 = sphi 0, %s31
      %s34 = sphi 0, %s32
      %s46 = sphi 0, %s48
      %s49 = sphi 0, %s46
      %s50 = sphi 0, %s49
      %s66 = sphi 0, %s50
      %s70 = sphi 0, %s70
      %s72 = sphi 0, %s70
      %s73 = sphi 0, %s72
      %s87 = sphi 0, %s73
      %s91 = sphi 0, %s91
      %s93 = sphi 0, %s91
      %s94 = sphi 0, %s93
      %s108 = sphi 0, %s94
      %s112 = sphi 0, %s112
      %s114 = sphi 0, %s112
      %s115 = sphi 0, %s114
      %s129 = sphi 0, %s115
      %s133 = sphi 0, %s133
      %s135 = sphi 0, %s133
      %s136 = sphi 0, %s135
      %s150 = sphi 0, %s136
      %s154 = sphi 0, %s154
      %s156 = sphi 0, %s154
      %s157 = sphi 0, %s156
      %s171 = sphi 0, %s157
      %s175 = sphi 0, %s175
      %s177 = sphi 0, %s175
      %s178 = sphi 0, %s177
      %s192 = sphi 0, %s178
      %s196 = sphi 0, %s196
      %s198 = sphi 0, %s196
      %s199 = sphi 0, %s198
      %s213 = sphi 0, %s199
      %s219 = sphi 0, %s221
      %s222 = sphi 0, %s219
      %s223 = sphi 0, %s222
      %s239 = sphi 0, %s223
      %s245 = sphi 0, %s247
      %s248 = sphi 0, %s245
      %s249 = sphi 0, %s248
      %s265 = sphi 0, %s249
      %s273 = sphi 0, %s275
      %s276 = sphi 0, %s273
      %s277 = sphi 0, %s276
      %s293 = sphi 0, %s277
    $region4: #{tpu_custom_call.1} parent=1 // loop_header_branch
      %25 = sbr.rel (%p23) target = $region8
    $region5: #{tpu_custom_call.1} parent=1 // loop_body
      %s27 = ssub.s32 %s22, 1
      %s28 = ssub.s32 %s22, 2
      %s35 = sadd.s32 1, %s30
      %p36 = scmp.ge.s32.totalorder %s35, 2
      %s37 = scalar_select %p36, 0, %s35
      %s38 = sadd.s32 1, %s29
      %s39 = scalar_select %p36, %s38, %s29
      %p40 = scmp.ge.s32.totalorder %s39, 2
      %s41 = scalar_select %p40, 0, %s39
      %s42 = ssub.s32 %s29, %s41
      %s43 = ssub.s32 %s30, %s37
      %s44 = sor.u32 %s42, %s43
      %p45 = scmp.eq.s32.totalorder %s44, 0
      %s47 = sadd.s32 %s46, 1
      %s48 = scalar_select %p45, %s46, %s47
      %p51 = pneg %p45
      %p52 = scmp.eq.s32.totalorder %s22, 3
      %p53 = por %p51, %p52
      %p54 = scmp.ne.s32.totalorder %s46, %s49
      %p55 = scmp.eq.s32.totalorder %s22, 0
      %p56 = por %p54, %p55
      %p57 = scmp.ne.s32.totalorder %s46, %s49
      %p58 = scmp.eq.s32.totalorder %s27, 3
      %p59 = por %p57, %p58
      %p60 = scmp.ne.s32.totalorder %s49, %s50
      %p61 = scmp.eq.s32.totalorder %s27, 0
      %p62 = por %p60, %p61
      %p63 = scmp.ne.s32.totalorder %s49, %s50
      %p64 = scmp.eq.s32.totalorder %s28, 3
      %p65 = por %p63, %p64
      %p67 = scmp.ne.s32.totalorder %s50, %s66
      %p68 = scmp.eq.s32.totalorder %s28, 0
      %p69 = por %p67, %p68
      %s71 = sadd.s32 %s70, 1
      %p74 = scmp.eq.s32.totalorder %s22, 3
      %p75 = scmp.ne.s32.totalorder %s70, %s72
      %p76 = scmp.eq.s32.totalorder %s22, 0
      %p77 = por %p75, %p76
      %p78 = scmp.ne.s32.totalorder %s70, %s72
      %p79 = scmp.eq.s32.totalorder %s27, 3
      %p80 = por %p78, %p79
      %p81 = scmp.ne.s32.totalorder %s72, %s73
      %p82 = scmp.eq.s32.totalorder %s27, 0
      %p83 = por %p81, %p82
      %p84 = scmp.ne.s32.totalorder %s72, %s73
      %p85 = scmp.eq.s32.totalorder %s28, 3
      %p86 = por %p84, %p85
      %p88 = scmp.ne.s32.totalorder %s73, %s87
      %p89 = scmp.eq.s32.totalorder %s28, 0
      %p90 = por %p88, %p89
      %s92 = sadd.s32 %s91, 1
      %p95 = scmp.eq.s32.totalorder %s22, 3
      %p96 = scmp.ne.s32.totalorder %s91, %s93
      %p97 = scmp.eq.s32.totalorder %s22, 0
      %p98 = por %p96, %p97
      %p99 = scmp.ne.s32.totalorder %s91, %s93
      %p100 = scmp.eq.s32.totalorder %s27, 3
      %p101 = por %p99, %p100
      %p102 = scmp.ne.s32.totalorder %s93, %s94
      %p103 = scmp.eq.s32.totalorder %s27, 0
      %p104 = por %p102, %p103
      %p105 = scmp.ne.s32.totalorder %s93, %s94
      %p106 = scmp.eq.s32.totalorder %s28, 3
      %p107 = por %p105, %p106
      %p109 = scmp.ne.s32.totalorder %s94, %s108
      %p110 = scmp.eq.s32.totalorder %s28, 0
      %p111 = por %p109, %p110
      %s113 = sadd.s32 %s112, 1
      %p116 = scmp.eq.s32.totalorder %s22, 3
      %p117 = scmp.ne.s32.totalorder %s112, %s114
      %p118 = scmp.eq.s32.totalorder %s22, 0
      %p119 = por %p117, %p118
      %p120 = scmp.ne.s32.totalorder %s112, %s114
      %p121 = scmp.eq.s32.totalorder %s27, 3
      %p122 = por %p120, %p121
      %p123 = scmp.ne.s32.totalorder %s114, %s115
      %p124 = scmp.eq.s32.totalorder %s27, 0
      %p125 = por %p123, %p124
      %p126 = scmp.ne.s32.totalorder %s114, %s115
      %p127 = scmp.eq.s32.totalorder %s28, 3
      %p128 = por %p126, %p127
      %p130 = scmp.ne.s32.totalorder %s115, %s129
      %p131 = scmp.eq.s32.totalorder %s28, 0
      %p132 = por %p130, %p131
      %s134 = sadd.s32 %s133, 1
      %p137 = scmp.eq.s32.totalorder %s22, 3
      %p138 = scmp.ne.s32.totalorder %s133, %s135
      %p139 = scmp.eq.s32.totalorder %s22, 0
      %p140 = por %p138, %p139
      %p141 = scmp.ne.s32.totalorder %s133, %s135
      %p142 = scmp.eq.s32.totalorder %s27, 3
      %p143 = por %p141, %p142
      %p144 = scmp.ne.s32.totalorder %s135, %s136
      %p145 = scmp.eq.s32.totalorder %s27, 0
      %p146 = por %p144, %p145
      %p147 = scmp.ne.s32.totalorder %s135, %s136
      %p148 = scmp.eq.s32.totalorder %s28, 3
      %p149 = por %p147, %p148
      %p151 = scmp.ne.s32.totalorder %s136, %s150
      %p152 = scmp.eq.s32.totalorder %s28, 0
      %p153 = por %p151, %p152
      %s155 = sadd.s32 %s154, 1
      %p158 = scmp.eq.s32.totalorder %s22, 3
      %p159 = scmp.ne.s32.totalorder %s154, %s156
      %p160 = scmp.eq.s32.totalorder %s22, 0
      %p161 = por %p159, %p160
      %p162 = scmp.ne.s32.totalorder %s154, %s156
      %p163 = scmp.eq.s32.totalorder %s27, 3
      %p164 = por %p162, %p163
      %p165 = scmp.ne.s32.totalorder %s156, %s157
      %p166 = scmp.eq.s32.totalorder %s27, 0
      %p167 = por %p165, %p166
      %p168 = scmp.ne.s32.totalorder %s156, %s157
      %p169 = scmp.eq.s32.totalorder %s28, 3
      %p170 = por %p168, %p169
      %p172 = scmp.ne.s32.totalorder %s157, %s171
      %p173 = scmp.eq.s32.totalorder %s28, 0
      %p174 = por %p172, %p173
      %s176 = sadd.s32 %s175, 1
      %p179 = scmp.eq.s32.totalorder %s22, 3
      %p180 = scmp.ne.s32.totalorder %s175, %s177
      %p181 = scmp.eq.s32.totalorder %s22, 0
      %p182 = por %p180, %p181
      %p183 = scmp.ne.s32.totalorder %s175, %s177
      %p184 = scmp.eq.s32.totalorder %s27, 3
      %p185 = por %p183, %p184
      %p186 = scmp.ne.s32.totalorder %s177, %s178
      %p187 = scmp.eq.s32.totalorder %s27, 0
      %p188 = por %p186, %p187
      %p189 = scmp.ne.s32.totalorder %s177, %s178
      %p190 = scmp.eq.s32.totalorder %s28, 3
      %p191 = por %p189, %p190
      %p193 = scmp.ne.s32.totalorder %s178, %s192
      %p194 = scmp.eq.s32.totalorder %s28, 0
      %p195 = por %p193, %p194
      %s197 = sadd.s32 %s196, 1
      %p200 = scmp.eq.s32.totalorder %s22, 3
      %p201 = scmp.ne.s32.totalorder %s196, %s198
      %p202 = scmp.eq.s32.totalorder %s22, 0
      %p203 = por %p201, %p202
      %p204 = scmp.ne.s32.totalorder %s196, %s198
      %p205 = scmp.eq.s32.totalorder %s27, 3
      %p206 = por %p204, %p205
      %p207 = scmp.ne.s32.totalorder %s198, %s199
      %p208 = scmp.eq.s32.totalorder %s27, 0
      %p209 = por %p207, %p208
      %p210 = scmp.ne.s32.totalorder %s198, %s199
      %p211 = scmp.eq.s32.totalorder %s28, 3
      %p212 = por %p210, %p211
      %p214 = scmp.ne.s32.totalorder %s199, %s213
      %p215 = scmp.eq.s32.totalorder %s28, 0
      %p216 = por %p214, %p215
      %s217 = ssub.s32 %s30, %s37
      %p218 = scmp.eq.s32.totalorder %s217, 0
      %s220 = sadd.s32 %s219, 1
      %s221 = scalar_select %p218, %s219, %s220
      %p224 = pneg %p218
      %p225 = scmp.eq.s32.totalorder %s22, 3
      %p226 = por %p224, %p225
      %p227 = scmp.ne.s32.totalorder %s219, %s222
      %p228 = scmp.eq.s32.totalorder %s22, 0
      %p229 = por %p227, %p228
      %p230 = scmp.ne.s32.totalorder %s219, %s222
      %p231 = scmp.eq.s32.totalorder %s27, 3
      %p232 = por %p230, %p231
      %p233 = scmp.ne.s32.totalorder %s222, %s223
      %p234 = scmp.eq.s32.totalorder %s27, 0
      %p235 = por %p233, %p234
      %p236 = scmp.ne.s32.totalorder %s222, %s223
      %p237 = scmp.eq.s32.totalorder %s28, 3
      %p238 = por %p236, %p237
      %p240 = scmp.ne.s32.totalorder %s223, %s239
      %p241 = scmp.eq.s32.totalorder %s28, 0
      %p242 = por %p240, %p241
      %s243 = ssub.s32 %s30, %s37
      %p244 = scmp.eq.s32.totalorder %s243, 0
      %s246 = sadd.s32 %s245, 1
      %s247 = scalar_select %p244, %s245, %s246
      %p250 = pneg %p244
      %p251 = scmp.eq.s32.totalorder %s22, 3
      %p252 = por %p250, %p251
      %p253 = scmp.ne.s32.totalorder %s245, %s248
      %p254 = scmp.eq.s32.totalorder %s22, 0
      %p255 = por %p253, %p254
      %p256 = scmp.ne.s32.totalorder %s245, %s248
      %p257 = scmp.eq.s32.totalorder %s27, 3
      %p258 = por %p256, %p257
      %p259 = scmp.ne.s32.totalorder %s248, %s249
      %p260 = scmp.eq.s32.totalorder %s27, 0
      %p261 = por %p259, %p260
      %p262 = scmp.ne.s32.totalorder %s248, %s249
      %p263 = scmp.eq.s32.totalorder %s28, 3
      %p264 = por %p262, %p263
      %p266 = scmp.ne.s32.totalorder %s249, %s265
      %p267 = scmp.eq.s32.totalorder %s28, 0
      %p268 = por %p266, %p267
      %s269 = ssub.s32 %s29, %s41
      %s270 = ssub.s32 %s30, %s37
      %s271 = sor.u32 %s269, %s270
      %p272 = scmp.eq.s32.totalorder %s271, 0
      %s274 = sadd.s32 %s273, 1
      %s275 = scalar_select %p272, %s273, %s274
      %p278 = pneg %p272
      %p279 = scmp.eq.s32.totalorder %s22, 3
      %p280 = por %p278, %p279
      %p281 = scmp.ne.s32.totalorder %s273, %s276
      %p282 = scmp.eq.s32.totalorder %s22, 0
      %p283 = por %p281, %p282
      %p284 = scmp.ne.s32.totalorder %s273, %s276
      %p285 = scmp.eq.s32.totalorder %s27, 3
      %p286 = por %p284, %p285
      %p287 = scmp.ne.s32.totalorder %s276, %s277
      %p288 = scmp.eq.s32.totalorder %s27, 0
      %p289 = por %p287, %p288
      %p290 = scmp.ne.s32.totalorder %s276, %s277
      %p291 = scmp.eq.s32.totalorder %s28, 3
      %p292 = por %p290, %p291
      %p294 = scmp.ne.s32.totalorder %s277, %s293
      %p295 = scmp.eq.s32.totalorder %s28, 0
      %p296 = por %p294, %p295
      %p297 = scmp.le.s32.totalorder 1, %s22
      %p298 = scmp.lt.s32.totalorder %s22, 5
      %p299 = pnand %p297, %p298
      %p300 = pneg %p299
      // Predicated region
      $region9: #{tpu_custom_call.1} parent=5 // pred_check
        _
      $region10: #{tpu_custom_call.1} parent=5 // pred_check_branch
        %302 = sbr.rel (%p299) target = $region12
      $region11: #{tpu_custom_call.1} parent=5 // pred_region
        %s303 = ssub.s32 %s22, 1
        // Predicated region
        $region13: #{tpu_custom_call.1} parent=11 // pred_check
          %p304 = pneg %p83
        $region14: #{tpu_custom_call.1} parent=11 // pred_check_branch
          %306 = sbr.rel (%p304) target = $region16
        $region15: #{tpu_custom_call.1} parent=11 // pred_region
          _
        $region16: #{tpu_custom_call.1} parent=11 // pred_fallthru
          _
        // Predicated region
        $region17: #{tpu_custom_call.1} parent=11 // pred_check
          %p307 = pneg %p104
        $region18: #{tpu_custom_call.1} parent=11 // pred_check_branch
          %309 = sbr.rel (%p307) target = $region20
        $region19: #{tpu_custom_call.1} parent=11 // pred_region
          %s311 = ssub.s32 6144, 6144
          %312 = vsyncadd [#allocation5], %s311
          %s313 = sshll.u32 [#allocation4], 4
          %s314 = int_to_ptr.vmem [resolvable:$true] %s313
          %319 = dma.hbm_to_vmem [thread:$0]  %s2, 6144, %s314, [#allocation5], 384, 384, 24
        $region20: #{tpu_custom_call.1} parent=11 // pred_fallthru
          _
        // Predicated region
        $region21: #{tpu_custom_call.1} parent=11 // pred_check
          %p320 = pneg %p125
        $region22: #{tpu_custom_call.1} parent=11 // pred_check_branch
          %322 = sbr.rel (%p320) target = $region24
        $region23: #{tpu_custom_call.1} parent=11 // pred_region
          _
        $region24: #{tpu_custom_call.1} parent=11 // pred_fallthru
          _
        // Predicated region
        $region25: #{tpu_custom_call.1} parent=11 // pred_check
          %p323 = pneg %p146
        $region26: #{tpu_custom_call.1} parent=11 // pred_check_branch
          %325 = sbr.rel (%p323) target = $region28
        $region27: #{tpu_custom_call.1} parent=11 // pred_region
          %s327 = ssub.s32 2048, 2048
          %328 = vsyncadd [#allocation8], %s327
          %s329 = sshll.u32 [#allocation7], 4
          %s330 = int_to_ptr.vmem [resolvable:$true] %s329
          %335 = dma.hbm_to_vmem [thread:$0]  %s4, 2048, %s330, [#allocation8], 128, 128, 8
        $region28: #{tpu_custom_call.1} parent=11 // pred_fallthru
          _
        // Predicated region
        $region29: #{tpu_custom_call.1} parent=11 // pred_check
          %p336 = pneg %p167
        $region30: #{tpu_custom_call.1} parent=11 // pred_check_branch
          %338 = sbr.rel (%p336) target = $region32
        $region31: #{tpu_custom_call.1} parent=11 // pred_region
          _
        $region32: #{tpu_custom_call.1} parent=11 // pred_fallthru
          _
        // Predicated region
        $region33: #{tpu_custom_call.1} parent=11 // pred_check
          %p339 = pneg %p188
        $region34: #{tpu_custom_call.1} parent=11 // pred_check_branch
          %341 = sbr.rel (%p339) target = $region36
        $region35: #{tpu_custom_call.1} parent=11 // pred_region
          %s343 = ssub.s32 8192, 8192
          %344 = vsyncadd [#allocation8], %s343
          %s345 = sshll.u32 [#allocation9], 4
          %s346 = int_to_ptr.vmem [resolvable:$true] %s345
          %351 = dma.hbm_to_vmem [thread:$0]  %s6, 8192, %s346, [#allocation8], 512, 512, 32
        $region36: #{tpu_custom_call.1} parent=11 // pred_fallthru
          _
        // Predicated region
        $region37: #{tpu_custom_call.1} parent=11 // pred_check
          %p352 = pneg %p209
        $region38: #{tpu_custom_call.1} parent=11 // pred_check_branch
          %354 = sbr.rel (%p352) target = $region40
        $region39: #{tpu_custom_call.1} parent=11 // pred_region
          %s356 = ssub.s32 4096, 4096
          %357 = vsyncadd [#allocation11], %s356
          %s358 = sshll.u32 [#allocation10], 4
          %s359 = int_to_ptr.vmem [resolvable:$true] %s358
          %364 = dma.hbm_to_vmem [thread:$0]  %s7, 4096, %s359, [#allocation11], 128, 128, 8
        $region40: #{tpu_custom_call.1} parent=11 // pred_fallthru
          _
      $region12: #{tpu_custom_call.1} parent=5 // pred_fallthru
        _
      %p365 = scmp.lt.s32.totalorder %s22, 4
      // Predicated region
      $region41: #{tpu_custom_call.1} parent=5 // pred_check
        %p366 = pneg %p365
      $region42: #{tpu_custom_call.1} parent=5 // pred_check_branch
        %368 = sbr.rel (%p366) target = $region44
      $region43: #{tpu_custom_call.1} parent=5 // pred_region
        // Predicated region
        $region45: #{tpu_custom_call.1} parent=43 // pred_check
          %p369 = pneg %p56
        $region46: #{tpu_custom_call.1} parent=43 // pred_check_branch
          %371 = sbr.rel (%p369) target = $region48
        $region47: #{tpu_custom_call.1} parent=43 // pred_region
          %s372 = smul.u32 4, %s30
          %p373 = scmp.lt.s32.totalorder %s29, 1
          %s374 = scalar_select %p373, %s29, 1
          %p375 = scmp.lt.s32.totalorder %s372, 7
          %s376 = scalar_select %p375, %s372, 7
          %s377 = smul.addr %s374, 8
          %s378 = sadd.s32 %s376, %s377
          %s379 = smul.addr %s378, 8
          %s380 = scalar_lea.vmem %s0, %s379
          %s381 = smul.u32 4, %s30
        $region48: #{tpu_custom_call.1} parent=43 // pred_fallthru
          _
        // Predicated region
        $region49: #{tpu_custom_call.1} parent=43 // pred_check
          %p382 = pneg %p229
        $region50: #{tpu_custom_call.1} parent=43 // pred_check_branch
          %384 = sbr.rel (%p382) target = $region52
        $region51: #{tpu_custom_call.1} parent=43 // pred_region
          %s385 = smul.u32 4, %s30
          %p386 = scmp.lt.s32.totalorder %s385, 7
          %s387 = scalar_select %p386, %s385, 7
          %s388 = smul.addr %s387, 8
          %s389 = scalar_lea.vmem %s8, %s388
          %s390 = smul.u32 4, %s30
        $region52: #{tpu_custom_call.1} parent=43 // pred_fallthru
          _
        // Predicated region
        $region53: #{tpu_custom_call.1} parent=43 // pred_check
          %p391 = pneg %p255
        $region54: #{tpu_custom_call.1} parent=43 // pred_check_branch
          %393 = sbr.rel (%p391) target = $region56
        $region55: #{tpu_custom_call.1} parent=43 // pred_region
          %s394 = smul.u32 4, %s30
          %p395 = scmp.lt.s32.totalorder %s394, 7
          %s396 = scalar_select %p395, %s394, 7
          %s397 = smul.addr %s396, 8
          %s398 = scalar_lea.vmem %s9, %s397
          %s399 = smul.u32 4, %s30
        $region56: #{tpu_custom_call.1} parent=43 // pred_fallthru
          _
      $region44: #{tpu_custom_call.1} parent=5 // pred_fallthru
        _
      %p400 = scmp.le.s32.totalorder 1, %s22
      %p401 = scmp.lt.s32.totalorder %s22, 5
      %p402 = pnand %p400, %p401
      %p403 = pneg %p402
      // Predicated region
      $region57: #{tpu_custom_call.1} parent=5 // pred_check
        _
      $region58: #{tpu_custom_call.1} parent=5 // pred_check_branch
        %405 = sbr.rel (%p402) target = $region60
      $region59: #{tpu_custom_call.1} parent=5 // pred_region
        %s406 = ssub.s32 %s22, 1
        // Predicated region
        $region61: #{tpu_custom_call.1} parent=59 // pred_check
          %p407 = pneg %p104
        $region62: #{tpu_custom_call.1} parent=59 // pred_check_branch
          %409 = sbr.rel (%p407) target = $region64
        $region63: #{tpu_custom_call.1} parent=59 // pred_region
          %410 = dma.done [#allocation5], 6144
        $region64: #{tpu_custom_call.1} parent=59 // pred_fallthru
          _
        // Predicated region
        $region65: #{tpu_custom_call.1} parent=59 // pred_check
          %p411 = pneg %p146
        $region66: #{tpu_custom_call.1} parent=59 // pred_check_branch
          %413 = sbr.rel (%p411) target = $region68
        $region67: #{tpu_custom_call.1} parent=59 // pred_region
          %414 = dma.done [#allocation8], 2048
        $region68: #{tpu_custom_call.1} parent=59 // pred_fallthru
          _
        // Predicated region
        $region69: #{tpu_custom_call.1} parent=59 // pred_check
          %p415 = pneg %p188
        $region70: #{tpu_custom_call.1} parent=59 // pred_check_branch
          %417 = sbr.rel (%p415) target = $region72
        $region71: #{tpu_custom_call.1} parent=59 // pred_region
          %418 = dma.done [#allocation8], 8192
        $region72: #{tpu_custom_call.1} parent=59 // pred_fallthru
          _
        // Predicated region
        $region73: #{tpu_custom_call.1} parent=59 // pred_check
          %p419 = pneg %p209
        $region74: #{tpu_custom_call.1} parent=59 // pred_check_branch
          %421 = sbr.rel (%p419) target = $region76
        $region75: #{tpu_custom_call.1} parent=59 // pred_region
          %422 = dma.done [#allocation11], 4096
        $region76: #{tpu_custom_call.1} parent=59 // pred_fallthru
          _
        %s423 = smul.u32 4, %s32
        %p424 = scmp.lt.s32.totalorder %s31, 1
        %s425 = scalar_select %p424, %s31, 1
        %p426 = scmp.lt.s32.totalorder %s423, 7
        %s427 = scalar_select %p426, %s423, 7
        %s428 = smul.addr %s425, 8
        %s429 = sadd.s32 %s427, %s428
        %s430 = smul.addr %s429, 8
        %s431 = scalar_lea.vmem %s0, %s430
        %p432 = pneg %p62
        %p433 = pneg %p59
        %p434 = pneg %p83
        %p435 = pneg %p80
        %p436 = pneg %p104
        %p437 = pneg %p101
        %p438 = pneg %p125
        %p439 = pneg %p122
        %p440 = pneg %p146
        %p441 = pneg %p143
        %p442 = pneg %p167
        %p443 = pneg %p164
        %p444 = pneg %p188
        %p445 = pneg %p185
        %p446 = pneg %p209
        %p447 = pneg %p206
        %s448 = smul.u32 4, %s32
        %p449 = scmp.lt.s32.totalorder %s448, 7
        %s450 = scalar_select %p449, %s448, 7
        %s451 = smul.addr %s450, 8
        %s452 = scalar_lea.vmem %s8, %s451
        %p453 = pneg %p235
        %p454 = pneg %p232
        %s455 = smul.u32 4, %s32
        %p456 = scmp.lt.s32.totalorder %s455, 7
        %s457 = scalar_select %p456, %s455, 7
        %s458 = smul.addr %s457, 8
        %s459 = scalar_lea.vmem %s9, %s458
        %p460 = pneg %p261
        %p461 = pneg %p258
        %p462 = pneg %p289
        %p463 = pneg %p286
        %s464 = sand.u32 %s276, 1
        %s465 = scalar_lea.sflag [#allocation6], %s464
        %s466 = sand.u32 %s276, 1
        %s467 = smul.addr %s466, 32
        %s468 = scalar_lea.vmem [#allocation12], %s467
        %s469 = smul.u32 4, %s32
        %p470 = scmp.lt.s32.totalorder %s31, 1
        %s471 = scalar_select %p470, %s31, 1
        %p472 = scmp.lt.s32.totalorder %s469, 7
        %s473 = scalar_select %p472, %s469, 7
        %s474 = smul.addr %s471, 8
        %s475 = sadd.s32 %s473, %s474
        %s476 = smul.addr %s475, 8
        %s477 = scalar_lea.vmem %s0, %s476
        %s478 = smul.u32 4, %s32
        %s479 = smul.u32 4, %s32
        %p480 = scmp.lt.s32.totalorder %s479, 7
        %s481 = scalar_select %p480, %s479, 7
        %s482 = smul.addr %s481, 8
        %s483 = scalar_lea.vmem %s8, %s482
        %s484 = smul.u32 4, %s32
        %s485 = smul.u32 4, %s32
        %p486 = scmp.lt.s32.totalorder %s485, 7
        %s487 = scalar_select %p486, %s485, 7
        %s488 = smul.addr %s487, 8
        %s489 = scalar_lea.vmem %s9, %s488
        %s490 = smul.u32 4, %s32
        %s491 = smul.u32 4, %s32
        %s492 = smul.u32 %s32, 32
        %v493 = vld [vmem:[%s477] sm:$0xff]
        %v494 = vld [vmem:[%s477 + $0x8] sm:$0xff]
        %v495 = vld [vmem:[%s477 + $0x10] sm:$0xff]
        %v496 = vld [vmem:[%s477 + $0x18] sm:$0xff]
        %v497 = vld [vmem:[%s1] sm:$0x1]
        %v498 = vmul.f32 %v493, %v493
        %v499 = vmul.f32 %v494, %v494
        %v500 = vmul.f32 %v495, %v495
        %v501 = vmul.f32 %v496, %v496
        %502 = vadd.xlane.f32.xlu0 %v498
        %v503 = vpop.xlane.xlu0 %502
        %504 = vadd.xlane.f32.xlu0 %v499
        %v505 = vpop.xlane.xlu0 %504
        %506 = vadd.xlane.f32.xlu0 %v500
        %v507 = vpop.xlane.xlu0 %506
        %508 = vadd.xlane.f32.xlu0 %v501
        %v509 = vpop.xlane.xlu0 %508
        %v510 = vrcp.pop 128.0
        %v511 = vmul.f32 %v503, %v510
        %v512 = vmul.f32 %v505, %v510
        %v513 = vmul.f32 %v507, %v510
        %v514 = vmul.f32 %v509, %v510
        %v515 = vadd.f32 %v511, 1e-06
        %v516 = vadd.f32 %v512, 1e-06
        %v517 = vadd.f32 %v513, 1e-06
        %v518 = vadd.f32 %v514, 1e-06
        %v519 = vrsqrt.pop %v515
        %v520 = vrsqrt.pop %v516
        %v521 = vrsqrt.pop %v517
        %v522 = vrsqrt.pop %v518
        %v523 = vmul.f32 %v493, %v519
        %v524 = vmul.f32 %v494, %v520
        %v525 = vmul.f32 %v495, %v521
        %v526 = vmul.f32 %v496, %v522
        %v528 = vlaneseq
        %v529 = vshrl.u32 %v528, 7
        %v530 = vsub.s32 0, %v529
        %v531 = vrot.slane %v497, %v530
        %v533 = vmul.f32 %v523, %v531
        %v534 = vmul.f32 %v524, %v531
        %v535 = vmul.f32 %v525, %v531
        %v536 = vmul.f32 %v526, %v531
        %v537 = vld [vmem:[#allocation4] sm:$0xff]
        %v538 = vld [vmem:[#allocation4 + $0x8] sm:$0xff]
        %v539 = vld [vmem:[#allocation4 + $0x10] sm:$0xff]
        %v540 = vld [vmem:[#allocation4 + $0x18] sm:$0xff]
        %v541 = vld [vmem:[#allocation4 + $0x20] sm:$0xff]
        %v542 = vld [vmem:[#allocation4 + $0x28] sm:$0xff]
        %v543 = vld [vmem:[#allocation4 + $0x30] sm:$0xff]
        %v544 = vld [vmem:[#allocation4 + $0x38] sm:$0xff]
        %v545 = vld [vmem:[#allocation4 + $0x40] sm:$0xff]
        %v546 = vld [vmem:[#allocation4 + $0x48] sm:$0xff]
        %v547 = vld [vmem:[#allocation4 + $0x50] sm:$0xff]
        %v548 = vld [vmem:[#allocation4 + $0x58] sm:$0xff]
        %v549 = vld [vmem:[#allocation4 + $0x60] sm:$0xff]
        %v550 = vld [vmem:[#allocation4 + $0x68] sm:$0xff]
        %v551 = vld [vmem:[#allocation4 + $0x70] sm:$0xff]
        %v552 = vld [vmem:[#allocation4 + $0x78] sm:$0xff]
        %v553 = vld [vmem:[#allocation4 + $0x80] sm:$0xff]
        %v554 = vld [vmem:[#allocation4 + $0x88] sm:$0xff]
        %v555 = vld [vmem:[#allocation4 + $0x90] sm:$0xff]
        %v556 = vld [vmem:[#allocation4 + $0x98] sm:$0xff]
        %v557 = vld [vmem:[#allocation4 + $0xa0] sm:$0xff]
        %v558 = vld [vmem:[#allocation4 + $0xa8] sm:$0xff]
        %v559 = vld [vmem:[#allocation4 + $0xb0] sm:$0xff]
        %v560 = vld [vmem:[#allocation4 + $0xb8] sm:$0xff]
        %v561 = vld [vmem:[#allocation4 + $0xc0] sm:$0xff]
        %v562 = vld [vmem:[#allocation4 + $0xc8] sm:$0xff]
        %v563 = vld [vmem:[#allocation4 + $0xd0] sm:$0xff]
        %v564 = vld [vmem:[#allocation4 + $0xd8] sm:$0xff]
        %v565 = vld [vmem:[#allocation4 + $0xe0] sm:$0xff]
        %v566 = vld [vmem:[#allocation4 + $0xe8] sm:$0xff]
        %v567 = vld [vmem:[#allocation4 + $0xf0] sm:$0xff]
        %v568 = vld [vmem:[#allocation4 + $0xf8] sm:$0xff]
        %v569 = vld [vmem:[#allocation4 + $0x100] sm:$0xff]
        %v570 = vld [vmem:[#allocation4 + $0x108] sm:$0xff]
        %v571 = vld [vmem:[#allocation4 + $0x110] sm:$0xff]
        %v572 = vld [vmem:[#allocation4 + $0x118] sm:$0xff]
        %v573 = vld [vmem:[#allocation4 + $0x120] sm:$0xff]
        %v574 = vld [vmem:[#allocation4 + $0x128] sm:$0xff]
        %v575 = vld [vmem:[#allocation4 + $0x130] sm:$0xff]
        %v576 = vld [vmem:[#allocation4 + $0x138] sm:$0xff]
        %v577 = vld [vmem:[#allocation4 + $0x140] sm:$0xff]
        %v578 = vld [vmem:[#allocation4 + $0x148] sm:$0xff]
        %v579 = vld [vmem:[#allocation4 + $0x150] sm:$0xff]
        %v580 = vld [vmem:[#allocation4 + $0x158] sm:$0xff]
        %v581 = vld [vmem:[#allocation4 + $0x160] sm:$0xff]
        %v582 = vld [vmem:[#allocation4 + $0x168] sm:$0xff]
        %v583 = vld [vmem:[#allocation4 + $0x170] sm:$0xff]
        %v584 = vld [vmem:[#allocation4 + $0x178] sm:$0xff]
        %v585 = vld [vmem:[%s3] sm:$0x7]
        %v587 = vlaneseq
        %v588 = vshrl.u32 %v587, 7
        %v589 = vsub.s32 0, %v588
        %v590 = vrot.slane %v585, %v589
        %v591 = vlaneseq
        %v592 = vshrl.u32 %v591, 7
        %v593 = vsub.s32 1, %v592
        %v594 = vrot.slane %v585, %v593
        %v595 = vlaneseq
        %v596 = vshrl.u32 %v595, 7
        %v597 = vsub.s32 2, %v596
        %v598 = vrot.slane %v585, %v597
        %602 = vmatprep.subr.mxu0 %v538
        %603 = vmatpush1.msra.mxu0 %v537
        %604 = vmatprep.subr.mxu0 %v541
        %605 = vmatpush1.msra.mxu0 %v540
        %606 = vmatprep.subr.mxu0 %v544
        %607 = vmatpush1.msra.mxu0 %v543
        %608 = vmatprep.subr.mxu0 %v547
        %609 = vmatpush1.msra.mxu0 %v546
        %610 = vmatprep.subr.mxu0 %v550
        %611 = vmatpush1.msra.mxu0 %v549
        %612 = vmatprep.subr.mxu0 %v553
        %613 = vmatpush1.msra.mxu0 %v552
        %614 = vmatprep.subr.mxu0 %v556
        %615 = vmatpush1.msra.mxu0 %v555
        %616 = vmatprep.subr.mxu0 %v559
        %617 = vmatpush1.msra.mxu0 %v558
        %618 = vmatprep.subr.mxu0 %v562
        %619 = vmatpush1.msra.mxu0 %v561
        %620 = vmatprep.subr.mxu0 %v565
        %621 = vmatpush1.msra.mxu0 %v564
        %622 = vmatprep.subr.mxu0 %v568
        %623 = vmatpush1.msra.mxu0 %v567
        %624 = vmatprep.subr.mxu0 %v571
        %625 = vmatpush1.msra.mxu0 %v570
        %626 = vmatprep.subr.mxu0 %v574
        %627 = vmatpush1.msra.mxu0 %v573
        %628 = vmatprep.subr.mxu0 %v577
        %629 = vmatpush1.msra.mxu0 %v576
        %630 = vmatprep.subr.mxu0 %v580
        %631 = vmatpush1.msra.mxu0 %v579
        %632 = vmatprep.subr.mxu0 %v583
        %633 = vmatpush1.msra.mxu0 %v582
        %634 = vmatprep.subr.mxu0 0.0
        %635 = vmatpush1.msra.mxu0 0.0
        %636 = vmatprep.subr.mxu0 0.0
        %637 = vmatpush1.msra.mxu0 0.0
        %638 = vmatprep.subr.mxu0 0.0
        %639 = vmatpush1.msra.mxu0 0.0
        %640 = vmatprep.subr.mxu0 0.0
        %641 = vmatpush1.msra.mxu0 0.0
        %642 = vmatprep.subr.mxu0 0.0
        %643 = vmatpush1.msra.mxu0 0.0
        %644 = vmatprep.subr.mxu0 0.0
        %645 = vmatpush1.msra.mxu0 0.0
        %646 = vmatprep.subr.mxu0 0.0
        %647 = vmatpush1.msra.mxu0 0.0
        %648 = vmatprep.subr.mxu0 0.0
        %649 = vmatpush1.msra.mxu0 0.0
        %650 = vmatprep.subr.mxu0 0.0
        %651 = vmatpush1.msra.mxu0 0.0
        %652 = vmatprep.subr.mxu0 0.0
        %653 = vmatpush1.msra.mxu0 0.0
        %654 = vmatprep.subr.mxu0 0.0
        %655 = vmatpush1.msra.mxu0 0.0
        %656 = vmatprep.subr.mxu0 0.0
        %657 = vmatpush1.msra.mxu0 0.0
        %658 = vmatprep.subr.mxu0 0.0
        %659 = vmatpush1.msra.mxu0 0.0
        %660 = vmatprep.subr.mxu0 0.0
        %661 = vmatpush1.msra.mxu0 0.0
        %662 = vmatprep.subr.mxu0 0.0
        %663 = vmatpush1.msra.mxu0 0.0
        %664 = vmatprep.subr.mxu0 0.0
        %665 = vmatpush1.msra.mxu0 0.0
        %666 = vmatprep.mubr.f32.mxu0 0.0
        %667 = vmatmul.mubr.f32.gmra.mrb[0].mxu0 %v533
        %v668 = vpop.f32.mrb[0].mxu0
        %v669 = vadd.f32 %v590, %v668
        %v670 = vpop.f32.mrb[0].mxu0
        %v671 = vadd.f32 %v594, %v670
        %672 = vmatprep.mubr.f32.mxu0 0.0
        %673 = vmatmul.mubr.f32.gmra.mrb[0].mxu0 %v534
        %v674 = vpop.f32.mrb[0].mxu0
        %v675 = vadd.f32 %v590, %v674
        %v676 = vpop.f32.mrb[0].mxu0
        %v677 = vadd.f32 %v594, %v676
        %678 = vmatprep.mubr.f32.mxu0 0.0
        %679 = vmatmul.mubr.f32.gmra.mrb[0].mxu0 %v535
        %v680 = vpop.f32.mrb[0].mxu0
        %v681 = vadd.f32 %v590, %v680
        %v682 = vpop.f32.mrb[0].mxu0
        %v683 = vadd.f32 %v594, %v682
        %684 = vmatprep.mubr.f32.mxu0 0.0
        %685 = vmatmul.mubr.f32.gmra.mrb[0].mxu0 %v536
        %v686 = vpop.f32.mrb[0].mxu0
        %v687 = vadd.f32 %v590, %v686
        %v688 = vpop.f32.mrb[0].mxu0
        %v689 = vadd.f32 %v594, %v688
        %690 = vdwg.mxu0
        %691 = vmatprep.subr.mxu0 0.0
        %692 = vmatpush1.msra.mxu0 %v539
        %693 = vmatprep.subr.mxu0 0.0
        %694 = vmatpush1.msra.mxu0 %v542
        %695 = vmatprep.subr.mxu0 0.0
        %696 = vmatpush1.msra.mxu0 %v545
        %697 = vmatprep.subr.mxu0 0.0
        %698 = vmatpush1.msra.mxu0 %v548
        %699 = vmatprep.subr.mxu0 0.0
        %700 = vmatpush1.msra.mxu0 %v551
        %701 = vmatprep.subr.mxu0 0.0
        %702 = vmatpush1.msra.mxu0 %v554
        %703 = vmatprep.subr.mxu0 0.0
        %704 = vmatpush1.msra.mxu0 %v557
        %705 = vmatprep.subr.mxu0 0.0
        %706 = vmatpush1.msra.mxu0 %v560
        %707 = vmatprep.subr.mxu0 0.0
        %708 = vmatpush1.msra.mxu0 %v563
        %709 = vmatprep.subr.mxu0 0.0
        %710 = vmatpush1.msra.mxu0 %v566
        %711 = vmatprep.subr.mxu0 0.0
        %712 = vmatpush1.msra.mxu0 %v569
        %713 = vmatprep.subr.mxu0 0.0
        %714 = vmatpush1.msra.mxu0 %v572
        %715 = vmatprep.subr.mxu0 0.0
        %716 = vmatpush1.msra.mxu0 %v575
        %717 = vmatprep.subr.mxu0 0.0
        %718 = vmatpush1.msra.mxu0 %v578
        %719 = vmatprep.subr.mxu0 0.0
        %720 = vmatpush1.msra.mxu0 %v581
        %721 = vmatprep.subr.mxu0 0.0
        %722 = vmatpush1.msra.mxu0 %v584
        %723 = vmatprep.subr.mxu0 0.0
        %724 = vmatpush1.msra.mxu0 0.0
        %725 = vmatprep.subr.mxu0 0.0
        %726 = vmatpush1.msra.mxu0 0.0
        %727 = vmatprep.subr.mxu0 0.0
        %728 = vmatpush1.msra.mxu0 0.0
        %729 = vmatprep.subr.mxu0 0.0
        %730 = vmatpush1.msra.mxu0 0.0
        %731 = vmatprep.subr.mxu0 0.0
        %732 = vmatpush1.msra.mxu0 0.0
        %733 = vmatprep.subr.mxu0 0.0
        %734 = vmatpush1.msra.mxu0 0.0
        %735 = vmatprep.subr.mxu0 0.0
        %736 = vmatpush1.msra.mxu0 0.0
        %737 = vmatprep.subr.mxu0 0.0
        %738 = vmatpush1.msra.mxu0 0.0
        %739 = vmatprep.subr.mxu0 0.0
        %740 = vmatpush1.msra.mxu0 0.0
        %741 = vmatprep.subr.mxu0 0.0
        %742 = vmatpush1.msra.mxu0 0.0
        %743 = vmatprep.subr.mxu0 0.0
        %744 = vmatpush1.msra.mxu0 0.0
        %745 = vmatprep.subr.mxu0 0.0
        %746 = vmatpush1.msra.mxu0 0.0
        %747 = vmatprep.subr.mxu0 0.0
        %748 = vmatpush1.msra.mxu0 0.0
        %749 = vmatprep.subr.mxu0 0.0
        %750 = vmatpush1.msra.mxu0 0.0
        %751 = vmatprep.subr.mxu0 0.0
        %752 = vmatpush1.msra.mxu0 0.0
        %753 = vmatprep.subr.mxu0 0.0
        %754 = vmatpush1.msra.mxu0 0.0
        %755 = vmatprep.mubr.f32.mxu0 0.0
        %756 = vmatmul.mubr.f32.gmra.mrb[0].mxu0 %v533
        %v757 = vpop.f32.mrb[0].mxu0
        %v758 = vadd.f32 %v598, %v757
        %v759 = vpop.f32.mrb[0].mxu0
        %760 = vmatprep.mubr.f32.mxu0 0.0
        %761 = vmatmul.mubr.f32.gmra.mrb[0].mxu0 %v534
        %v762 = vpop.f32.mrb[0].mxu0
        %v763 = vadd.f32 %v598, %v762
        %v764 = vpop.f32.mrb[0].mxu0
        %765 = vmatprep.mubr.f32.mxu0 0.0
        %766 = vmatmul.mubr.f32.gmra.mrb[0].mxu0 %v535
        %v767 = vpop.f32.mrb[0].mxu0
        %v768 = vadd.f32 %v598, %v767
        %v769 = vpop.f32.mrb[0].mxu0
        %770 = vmatprep.mubr.f32.mxu0 0.0
        %771 = vmatmul.mubr.f32.gmra.mrb[0].mxu0 %v536
        %v772 = vpop.f32.mrb[0].mxu0
        %v773 = vadd.f32 %v598, %v772
        %v774 = vpop.f32.mrb[0].mxu0
        %775 = vdwg.mxu0
        %v776 = vld [vmem:[%s483] sm:$0xff]
        %v777 = vld [vmem:[%s483 + $0x8] sm:$0xff]
        %v778 = vld [vmem:[%s483 + $0x10] sm:$0xff]
        %v779 = vld [vmem:[%s483 + $0x18] sm:$0xff]
        %v780 = vld [vmem:[%s489] sm:$0xff]
        %v781 = vld [vmem:[%s489 + $0x8] sm:$0xff]
        %v782 = vld [vmem:[%s489 + $0x10] sm:$0xff]
        %v783 = vld [vmem:[%s489 + $0x18] sm:$0xff]
        %788 = vrot.lane.b32.xlu0 %v669, 96
        %v789 = vpop.permute.xlu0 %788
        %790 = vrot.lane.b32.xlu0 %v675, 96
        %v791 = vpop.permute.xlu0 %790
        %792 = vrot.lane.b32.xlu0 %v681, 96
        %v793 = vpop.permute.xlu0 %792
        %794 = vrot.lane.b32.xlu0 %v687, 96
        %v795 = vpop.permute.xlu0 %794
        %800 = vrot.lane.b32.xlu0 %v669, 64
        %v801 = vpop.permute.xlu0 %800
        %802 = vrot.lane.b32.xlu0 %v675, 64
        %v803 = vpop.permute.xlu0 %802
        %804 = vrot.lane.b32.xlu0 %v681, 64
        %v805 = vpop.permute.xlu0 %804
        %806 = vrot.lane.b32.xlu0 %v687, 64
        %v807 = vpop.permute.xlu0 %806
        %812 = vrot.lane.b32.xlu0 %v669, 32
        %v813 = vpop.permute.xlu0 %812
        %814 = vrot.lane.b32.xlu0 %v675, 32
        %v815 = vpop.permute.xlu0 %814
        %816 = vrot.lane.b32.xlu0 %v681, 32
        %v817 = vpop.permute.xlu0 %816
        %818 = vrot.lane.b32.xlu0 %v687, 32
        %v819 = vpop.permute.xlu0 %818
        %824 = vrot.lane.b32.xlu0 %v669, 112
        %v825 = vpop.permute.xlu0 %824
        %826 = vrot.lane.b32.xlu0 %v675, 112
        %v827 = vpop.permute.xlu0 %826
        %828 = vrot.lane.b32.xlu0 %v681, 112
        %v829 = vpop.permute.xlu0 %828
        %830 = vrot.lane.b32.xlu0 %v687, 112
        %v831 = vpop.permute.xlu0 %830
        %832 = vrot.lane.b32.xlu0 %v789, 112
        %v833 = vpop.permute.xlu0 %832
        %834 = vrot.lane.b32.xlu0 %v791, 112
        %v835 = vpop.permute.xlu0 %834
        %836 = vrot.lane.b32.xlu0 %v793, 112
        %v837 = vpop.permute.xlu0 %836
        %838 = vrot.lane.b32.xlu0 %v795, 112
        %v839 = vpop.permute.xlu0 %838
        %840 = vrot.lane.b32.xlu0 %v801, 112
        %v841 = vpop.permute.xlu0 %840
        %842 = vrot.lane.b32.xlu0 %v803, 112
        %v843 = vpop.permute.xlu0 %842
        %844 = vrot.lane.b32.xlu0 %v805, 112
        %v845 = vpop.permute.xlu0 %844
        %846 = vrot.lane.b32.xlu0 %v807, 112
        %v847 = vpop.permute.xlu0 %846
        %848 = vrot.lane.b32.xlu0 %v813, 112
        %v849 = vpop.permute.xlu0 %848
        %850 = vrot.lane.b32.xlu0 %v815, 112
        %v851 = vpop.permute.xlu0 %850
        %852 = vrot.lane.b32.xlu0 %v817, 112
        %v853 = vpop.permute.xlu0 %852
        %854 = vrot.lane.b32.xlu0 %v819, 112
        %v855 = vpop.permute.xlu0 %854
        %872 = vrot.lane.b32.xlu0 %v669, 16
        %v873 = vpop.permute.xlu0 %872
        %874 = vrot.lane.b32.xlu0 %v675, 16
        %v875 = vpop.permute.xlu0 %874
        %876 = vrot.lane.b32.xlu0 %v681, 16
        %v877 = vpop.permute.xlu0 %876
        %878 = vrot.lane.b32.xlu0 %v687, 16
        %v879 = vpop.permute.xlu0 %878
        %880 = vrot.lane.b32.xlu0 %v789, 16
        %v881 = vpop.permute.xlu0 %880
        %882 = vrot.lane.b32.xlu0 %v791, 16
        %v883 = vpop.permute.xlu0 %882
        %884 = vrot.lane.b32.xlu0 %v793, 16
        %v885 = vpop.permute.xlu0 %884
        %886 = vrot.lane.b32.xlu0 %v795, 16
        %v887 = vpop.permute.xlu0 %886
        %888 = vrot.lane.b32.xlu0 %v801, 16
        %v889 = vpop.permute.xlu0 %888
        %890 = vrot.lane.b32.xlu0 %v803, 16
        %v891 = vpop.permute.xlu0 %890
        %892 = vrot.lane.b32.xlu0 %v805, 16
        %v893 = vpop.permute.xlu0 %892
        %894 = vrot.lane.b32.xlu0 %v807, 16
        %v895 = vpop.permute.xlu0 %894
        %896 = vrot.lane.b32.xlu0 %v813, 16
        %v897 = vpop.permute.xlu0 %896
        %898 = vrot.lane.b32.xlu0 %v815, 16
        %v899 = vpop.permute.xlu0 %898
        %900 = vrot.lane.b32.xlu0 %v817, 16
        %v901 = vpop.permute.xlu0 %900
        %902 = vrot.lane.b32.xlu0 %v819, 16
        %v903 = vpop.permute.xlu0 %902
        %vm920 = vcmask 130048
        %v921 = vsel %vm920, %v825, %v873
        %v922 = vsel %vm920, %v827, %v875
        %v923 = vsel %vm920, %v829, %v877
        %v924 = vsel %vm920, %v831, %v879
        %v925 = vsel %vm920, %v833, %v881
        %v926 = vsel %vm920, %v835, %v883
        %v927 = vsel %vm920, %v837, %v885
        %v928 = vsel %vm920, %v839, %v887
        %v929 = vsel %vm920, %v841, %v889
        %v930 = vsel %vm920, %v843, %v891
        %v931 = vsel %vm920, %v845, %v893
        %v932 = vsel %vm920, %v847, %v895
        %v933 = vsel %vm920, %v849, %v897
        %v934 = vsel %vm920, %v851, %v899
        %v935 = vsel %vm920, %v853, %v901
        %v936 = vsel %vm920, %v855, %v903
        %v937 = vmul.f32 %v669, %v776
        %v938 = vmul.f32 %v675, %v777
        %v939 = vmul.f32 %v681, %v778
        %v940 = vmul.f32 %v687, %v779
        %v941 = vmul.f32 %v789, %v776
        %v942 = vmul.f32 %v791, %v777
        %v943 = vmul.f32 %v793, %v778
        %v944 = vmul.f32 %v795, %v779
        %v945 = vmul.f32 %v801, %v776
        %v946 = vmul.f32 %v803, %v777
        %v947 = vmul.f32 %v805, %v778
        %v948 = vmul.f32 %v807, %v779
        %v949 = vmul.f32 %v813, %v776
        %v950 = vmul.f32 %v815, %v777
        %v951 = vmul.f32 %v817, %v778
        %v952 = vmul.f32 %v819, %v779
        %v953 = vmul.f32 %v921, %v780
        %v954 = vmul.f32 %v922, %v781
        %v955 = vmul.f32 %v923, %v782
        %v956 = vmul.f32 %v924, %v783
        %v957 = vmul.f32 %v925, %v780
        %v958 = vmul.f32 %v926, %v781
        %v959 = vmul.f32 %v927, %v782
        %v960 = vmul.f32 %v928, %v783
        %v961 = vmul.f32 %v929, %v780
        %v962 = vmul.f32 %v930, %v781
        %v963 = vmul.f32 %v931, %v782
        %v964 = vmul.f32 %v932, %v783
        %v965 = vmul.f32 %v933, %v780
        %v966 = vmul.f32 %v934, %v781
        %v967 = vmul.f32 %v935, %v782
        %v968 = vmul.f32 %v936, %v783
        %v969 = vadd.f32 %v937, %v953
        %v970 = vadd.f32 %v938, %v954
        %v971 = vadd.f32 %v939, %v955
        %v972 = vadd.f32 %v940, %v956
        %v973 = vadd.f32 %v941, %v957
        %v974 = vadd.f32 %v942, %v958
        %v975 = vadd.f32 %v943, %v959
        %v976 = vadd.f32 %v944, %v960
        %v977 = vadd.f32 %v945, %v961
        %v978 = vadd.f32 %v946, %v962
        %v979 = vadd.f32 %v947, %v963
        %v980 = vadd.f32 %v948, %v964
        %v981 = vadd.f32 %v949, %v965
        %v982 = vadd.f32 %v950, %v966
        %v983 = vadd.f32 %v951, %v967
        %v984 = vadd.f32 %v952, %v968
        %v985 = vmul.f32 %v969, 0.17677669
        %v986 = vmul.f32 %v970, 0.17677669
        %v987 = vmul.f32 %v971, 0.17677669
        %v988 = vmul.f32 %v972, 0.17677669
        %v989 = vmul.f32 %v973, 0.17677669
        %v990 = vmul.f32 %v974, 0.17677669
        %v991 = vmul.f32 %v975, 0.17677669
        %v992 = vmul.f32 %v976, 0.17677669
        %v993 = vmul.f32 %v977, 0.17677669
        %v994 = vmul.f32 %v978, 0.17677669
        %v995 = vmul.f32 %v979, 0.17677669
        %v996 = vmul.f32 %v980, 0.17677669
        %v997 = vmul.f32 %v981, 0.17677669
        %v998 = vmul.f32 %v982, 0.17677669
        %v999 = vmul.f32 %v983, 0.17677669
        %v1000 = vmul.f32 %v984, 0.17677669
        %1005 = vrot.lane.b32.xlu0 %v671, 96
        %v1006 = vpop.permute.xlu0 %1005
        %1007 = vrot.lane.b32.xlu0 %v677, 96
        %v1008 = vpop.permute.xlu0 %1007
        %1009 = vrot.lane.b32.xlu0 %v683, 96
        %v1010 = vpop.permute.xlu0 %1009
        %1011 = vrot.lane.b32.xlu0 %v689, 96
        %v1012 = vpop.permute.xlu0 %1011
        %1017 = vrot.lane.b32.xlu0 %v671, 64
        %v1018 = vpop.permute.xlu0 %1017
        %1019 = vrot.lane.b32.xlu0 %v677, 64
        %v1020 = vpop.permute.xlu0 %1019
        %1021 = vrot.lane.b32.xlu0 %v683, 64
        %v1022 = vpop.permute.xlu0 %1021
        %1023 = vrot.lane.b32.xlu0 %v689, 64
        %v1024 = vpop.permute.xlu0 %1023
        %1029 = vrot.lane.b32.xlu0 %v671, 32
        %v1030 = vpop.permute.xlu0 %1029
        %1031 = vrot.lane.b32.xlu0 %v677, 32
        %v1032 = vpop.permute.xlu0 %1031
        %1033 = vrot.lane.b32.xlu0 %v683, 32
        %v1034 = vpop.permute.xlu0 %1033
        %1035 = vrot.lane.b32.xlu0 %v689, 32
        %v1036 = vpop.permute.xlu0 %1035
        %1041 = vrot.lane.b32.xlu0 %v671, 112
        %v1042 = vpop.permute.xlu0 %1041
        %1043 = vrot.lane.b32.xlu0 %v677, 112
        %v1044 = vpop.permute.xlu0 %1043
        %1045 = vrot.lane.b32.xlu0 %v683, 112
        %v1046 = vpop.permute.xlu0 %1045
        %1047 = vrot.lane.b32.xlu0 %v689, 112
        %v1048 = vpop.permute.xlu0 %1047
        %1049 = vrot.lane.b32.xlu0 %v1006, 112
        %v1050 = vpop.permute.xlu0 %1049
        %1051 = vrot.lane.b32.xlu0 %v1008, 112
        %v1052 = vpop.permute.xlu0 %1051
        %1053 = vrot.lane.b32.xlu0 %v1010, 112
        %v1054 = vpop.permute.xlu0 %1053
        %1055 = vrot.lane.b32.xlu0 %v1012, 112
        %v1056 = vpop.permute.xlu0 %1055
        %1057 = vrot.lane.b32.xlu0 %v1018, 112
        %v1058 = vpop.permute.xlu0 %1057
        %1059 = vrot.lane.b32.xlu0 %v1020, 112
        %v1060 = vpop.permute.xlu0 %1059
        %1061 = vrot.lane.b32.xlu0 %v1022, 112
        %v1062 = vpop.permute.xlu0 %1061
        %1063 = vrot.lane.b32.xlu0 %v1024, 112
        %v1064 = vpop.permute.xlu0 %1063
        %1065 = vrot.lane.b32.xlu0 %v1030, 112
        %v1066 = vpop.permute.xlu0 %1065
        %1067 = vrot.lane.b32.xlu0 %v1032, 112
        %v1068 = vpop.permute.xlu0 %1067
        %1069 = vrot.lane.b32.xlu0 %v1034, 112
        %v1070 = vpop.permute.xlu0 %1069
        %1071 = vrot.lane.b32.xlu0 %v1036, 112
        %v1072 = vpop.permute.xlu0 %1071
        %1089 = vrot.lane.b32.xlu0 %v671, 16
        %v1090 = vpop.permute.xlu0 %1089
        %1091 = vrot.lane.b32.xlu0 %v677, 16
        %v1092 = vpop.permute.xlu0 %1091
        %1093 = vrot.lane.b32.xlu0 %v683, 16
        %v1094 = vpop.permute.xlu0 %1093
        %1095 = vrot.lane.b32.xlu0 %v689, 16
        %v1096 = vpop.permute.xlu0 %1095
        %1097 = vrot.lane.b32.xlu0 %v1006, 16
        %v1098 = vpop.permute.xlu0 %1097
        %1099 = vrot.lane.b32.xlu0 %v1008, 16
        %v1100 = vpop.permute.xlu0 %1099
        %1101 = vrot.lane.b32.xlu0 %v1010, 16
        %v1102 = vpop.permute.xlu0 %1101
        %1103 = vrot.lane.b32.xlu0 %v1012, 16
        %v1104 = vpop.permute.xlu0 %1103
        %1105 = vrot.lane.b32.xlu0 %v1018, 16
        %v1106 = vpop.permute.xlu0 %1105
        %1107 = vrot.lane.b32.xlu0 %v1020, 16
        %v1108 = vpop.permute.xlu0 %1107
        %1109 = vrot.lane.b32.xlu0 %v1022, 16
        %v1110 = vpop.permute.xlu0 %1109
        %1111 = vrot.lane.b32.xlu0 %v1024, 16
        %v1112 = vpop.permute.xlu0 %1111
        %1113 = vrot.lane.b32.xlu0 %v1030, 16
        %v1114 = vpop.permute.xlu0 %1113
        %1115 = vrot.lane.b32.xlu0 %v1032, 16
        %v1116 = vpop.permute.xlu0 %1115
        %1117 = vrot.lane.b32.xlu0 %v1034, 16
        %v1118 = vpop.permute.xlu0 %1117
        %1119 = vrot.lane.b32.xlu0 %v1036, 16
        %v1120 = vpop.permute.xlu0 %1119
        %v1137 = vsel %vm920, %v1042, %v1090
        %v1138 = vsel %vm920, %v1044, %v1092
        %v1139 = vsel %vm920, %v1046, %v1094
        %v1140 = vsel %vm920, %v1048, %v1096
        %v1141 = vsel %vm920, %v1050, %v1098
        %v1142 = vsel %vm920, %v1052, %v1100
        %v1143 = vsel %vm920, %v1054, %v1102
        %v1144 = vsel %vm920, %v1056, %v1104
        %v1145 = vsel %vm920, %v1058, %v1106
        %v1146 = vsel %vm920, %v1060, %v1108
        %v1147 = vsel %vm920, %v1062, %v1110
        %v1148 = vsel %vm920, %v1064, %v1112
        %v1149 = vsel %vm920, %v1066, %v1114
        %v1150 = vsel %vm920, %v1068, %v1116
        %v1151 = vsel %vm920, %v1070, %v1118
        %v1152 = vsel %vm920, %v1072, %v1120
        %v1153 = vmul.f32 %v671, %v776
        %v1154 = vmul.f32 %v677, %v777
        %v1155 = vmul.f32 %v683, %v778
        %v1156 = vmul.f32 %v689, %v779
        %v1157 = vmul.f32 %v1006, %v776
        %v1158 = vmul.f32 %v1008, %v777
        %v1159 = vmul.f32 %v1010, %v778
        %v1160 = vmul.f32 %v1012, %v779
        %v1161 = vmul.f32 %v1018, %v776
        %v1162 = vmul.f32 %v1020, %v777
        %v1163 = vmul.f32 %v1022, %v778
        %v1164 = vmul.f32 %v1024, %v779
        %v1165 = vmul.f32 %v1030, %v776
        %v1166 = vmul.f32 %v1032, %v777
        %v1167 = vmul.f32 %v1034, %v778
        %v1168 = vmul.f32 %v1036, %v779
        %v1169 = vmul.f32 %v1137, %v780
        %v1170 = vmul.f32 %v1138, %v781
        %v1171 = vmul.f32 %v1139, %v782
        %v1172 = vmul.f32 %v1140, %v783
        %v1173 = vmul.f32 %v1141, %v780
        %v1174 = vmul.f32 %v1142, %v781
        %v1175 = vmul.f32 %v1143, %v782
        %v1176 = vmul.f32 %v1144, %v783
        %v1177 = vmul.f32 %v1145, %v780
        %v1178 = vmul.f32 %v1146, %v781
        %v1179 = vmul.f32 %v1147, %v782
        %v1180 = vmul.f32 %v1148, %v783
        %v1181 = vmul.f32 %v1149, %v780
        %v1182 = vmul.f32 %v1150, %v781
        %v1183 = vmul.f32 %v1151, %v782
        %v1184 = vmul.f32 %v1152, %v783
        %v1185 = vadd.f32 %v1153, %v1169
        %v1186 = vadd.f32 %v1154, %v1170
        %v1187 = vadd.f32 %v1155, %v1171
        %v1188 = vadd.f32 %v1156, %v1172
        %v1189 = vadd.f32 %v1157, %v1173
        %v1190 = vadd.f32 %v1158, %v1174
        %v1191 = vadd.f32 %v1159, %v1175
        %v1192 = vadd.f32 %v1160, %v1176
        %v1193 = vadd.f32 %v1161, %v1177
        %v1194 = vadd.f32 %v1162, %v1178
        %v1195 = vadd.f32 %v1163, %v1179
        %v1196 = vadd.f32 %v1164, %v1180
        %v1197 = vadd.f32 %v1165, %v1181
        %v1198 = vadd.f32 %v1166, %v1182
        %v1199 = vadd.f32 %v1167, %v1183
        %v1200 = vadd.f32 %v1168, %v1184
        %1205 = vrot.lane.b32.xlu0 %v758, 96
        %v1206 = vpop.permute.xlu0 %1205
        %1207 = vrot.lane.b32.xlu0 %v763, 96
        %v1208 = vpop.permute.xlu0 %1207
        %1209 = vrot.lane.b32.xlu0 %v768, 96
        %v1210 = vpop.permute.xlu0 %1209
        %1211 = vrot.lane.b32.xlu0 %v773, 96
        %v1212 = vpop.permute.xlu0 %1211
        %1217 = vrot.lane.b32.xlu0 %v758, 64
        %v1218 = vpop.permute.xlu0 %1217
        %1219 = vrot.lane.b32.xlu0 %v763, 64
        %v1220 = vpop.permute.xlu0 %1219
        %1221 = vrot.lane.b32.xlu0 %v768, 64
        %v1222 = vpop.permute.xlu0 %1221
        %1223 = vrot.lane.b32.xlu0 %v773, 64
        %v1224 = vpop.permute.xlu0 %1223
        %1229 = vrot.lane.b32.xlu0 %v758, 32
        %v1230 = vpop.permute.xlu0 %1229
        %1231 = vrot.lane.b32.xlu0 %v763, 32
        %v1232 = vpop.permute.xlu0 %1231
        %1233 = vrot.lane.b32.xlu0 %v768, 32
        %v1234 = vpop.permute.xlu0 %1233
        %1235 = vrot.lane.b32.xlu0 %v773, 32
        %v1236 = vpop.permute.xlu0 %1235
        %s1241 = scalar_lea.vmem [#allocation2], %s492
        %vm1242 = vcmask 261120
        %1243 = vst.msk [vmem:[%s1241] sm:$0xff] %vm1242, %v1185
        %1244 = vst.msk [vmem:[%s1241 + $0x8] sm:$0xff] %vm1242, %v1186
        %1245 = vst.msk [vmem:[%s1241 + $0x10] sm:$0xff] %vm1242, %v1187
        %1246 = vst.msk [vmem:[%s1241 + $0x18] sm:$0xff] %vm1242, %v1188
        %1247 = vst.msk [vmem:[%s1241 + $0x40] sm:$0xff] %vm1242, %v1189
        %1248 = vst.msk [vmem:[%s1241 + $0x48] sm:$0xff] %vm1242, %v1190
        %1249 = vst.msk [vmem:[%s1241 + $0x50] sm:$0xff] %vm1242, %v1191
        %1250 = vst.msk [vmem:[%s1241 + $0x58] sm:$0xff] %vm1242, %v1192
        %1251 = vst.msk [vmem:[%s1241 + $0x80] sm:$0xff] %vm1242, %v1193
        %1252 = vst.msk [vmem:[%s1241 + $0x88] sm:$0xff] %vm1242, %v1194
        %1253 = vst.msk [vmem:[%s1241 + $0x90] sm:$0xff] %vm1242, %v1195
        %1254 = vst.msk [vmem:[%s1241 + $0x98] sm:$0xff] %vm1242, %v1196
        %1255 = vst.msk [vmem:[%s1241 + $0xc0] sm:$0xff] %vm1242, %v1197
        %1256 = vst.msk [vmem:[%s1241 + $0xc8] sm:$0xff] %vm1242, %v1198
        %1257 = vst.msk [vmem:[%s1241 + $0xd0] sm:$0xff] %vm1242, %v1199
        %1258 = vst.msk [vmem:[%s1241 + $0xd8] sm:$0xff] %vm1242, %v1200
        %s1259 = scalar_lea.vmem [#allocation3], %s492
        %1260 = vst.msk [vmem:[%s1259] sm:$0xff] %vm1242, %v758
        %1261 = vst.msk [vmem:[%s1259 + $0x8] sm:$0xff] %vm1242, %v763
        %1262 = vst.msk [vmem:[%s1259 + $0x10] sm:$0xff] %vm1242, %v768
        %1263 = vst.msk [vmem:[%s1259 + $0x18] sm:$0xff] %vm1242, %v773
        %1264 = vst.msk [vmem:[%s1259 + $0x40] sm:$0xff] %vm1242, %v1206
        %1265 = vst.msk [vmem:[%s1259 + $0x48] sm:$0xff] %vm1242, %v1208
        %1266 = vst.msk [vmem:[%s1259 + $0x50] sm:$0xff] %vm1242, %v1210
        %1267 = vst.msk [vmem:[%s1259 + $0x58] sm:$0xff] %vm1242, %v1212
        %1268 = vst.msk [vmem:[%s1259 + $0x80] sm:$0xff] %vm1242, %v1218
        %1269 = vst.msk [vmem:[%s1259 + $0x88] sm:$0xff] %vm1242, %v1220
        %1270 = vst.msk [vmem:[%s1259 + $0x90] sm:$0xff] %vm1242, %v1222
        %1271 = vst.msk [vmem:[%s1259 + $0x98] sm:$0xff] %vm1242, %v1224
        %1272 = vst.msk [vmem:[%s1259 + $0xc0] sm:$0xff] %vm1242, %v1230
        %1273 = vst.msk [vmem:[%s1259 + $0xc8] sm:$0xff] %vm1242, %v1232
        %1274 = vst.msk [vmem:[%s1259 + $0xd0] sm:$0xff] %vm1242, %v1234
        %1275 = vst.msk [vmem:[%s1259 + $0xd8] sm:$0xff] %vm1242, %v1236
        // While loop
        $region77: #{tpu_custom_call.1} parent=59 // loop_pre_header
          _
        $region78: #{tpu_custom_call.1} parent=59 // loop_header
          %s1277 = sphi 0, %s1279
          %p1278 = scmp.ge.s32.totalorder %s1277, %s32
          %v1282 = vphi -inf, %v1849
          %v1283 = vphi -inf, %v1850
          %v1284 = vphi -inf, %v1851
          %v1285 = vphi -inf, %v1852
          %v1286 = vphi -inf, %v1853
          %v1287 = vphi -inf, %v1854
          %v1288 = vphi -inf, %v1855
          %v1289 = vphi -inf, %v1856
          %v1290 = vphi -inf, %v1857
          %v1291 = vphi -inf, %v1858
          %v1292 = vphi -inf, %v1859
          %v1293 = vphi -inf, %v1860
          %v1294 = vphi -inf, %v1861
          %v1295 = vphi -inf, %v1862
          %v1296 = vphi -inf, %v1863
          %v1297 = vphi -inf, %v1864
          %v1298 = vphi 0.0, %v2025
          %v1299 = vphi 0.0, %v2026
          %v1300 = vphi 0.0, %v2027
          %v1301 = vphi 0.0, %v2028
          %v1302 = vphi 0.0, %v2029
          %v1303 = vphi 0.0, %v2030
          %v1304 = vphi 0.0, %v2031
          %v1305 = vphi 0.0, %v2032
          %v1306 = vphi 0.0, %v2033
          %v1307 = vphi 0.0, %v2034
          %v1308 = vphi 0.0, %v2035
          %v1309 = vphi 0.0, %v2036
          %v1310 = vphi 0.0, %v2037
          %v1311 = vphi 0.0, %v2038
          %v1312 = vphi 0.0, %v2039
          %v1313 = vphi 0.0, %v2040
          %v1314 = vphi 0.0, %v2445
          %v1315 = vphi 0.0, %v2446
          %v1316 = vphi 0.0, %v2447
          %v1317 = vphi 0.0, %v2448
          %v1318 = vphi 0.0, %v2449
          %v1319 = vphi 0.0, %v2450
          %v1320 = vphi 0.0, %v2451
          %v1321 = vphi 0.0, %v2452
          %v1322 = vphi 0.0, %v2453
          %v1323 = vphi 0.0, %v2454
          %v1324 = vphi 0.0, %v2455
          %v1325 = vphi 0.0, %v2456
          %v1326 = vphi 0.0, %v2457
          %v1327 = vphi 0.0, %v2458
          %v1328 = vphi 0.0, %v2459
          %v1329 = vphi 0.0, %v2460
        $region79: #{tpu_custom_call.1} parent=59 // loop_header_branch
          %1281 = sbr.rel (%p1278) target = $region83
        $region80: #{tpu_custom_call.1} parent=59 // loop_body
          %s1330 = smul.u32 %s1277, 32
          %s1331 = scalar_lea.vmem [#allocation2], %s1330
          %v1332 = vld [vmem:[%s1331] sm:$0xff]
          %v1333 = vld [vmem:[%s1331 + $0x8] sm:$0xff]
          %v1334 = vld [vmem:[%s1331 + $0x10] sm:$0xff]
          %v1335 = vld [vmem:[%s1331 + $0x18] sm:$0xff]
          %v1336 = vld [vmem:[%s1331 + $0x40] sm:$0xff]
          %v1337 = vld [vmem:[%s1331 + $0x48] sm:$0xff]
          %v1338 = vld [vmem:[%s1331 + $0x50] sm:$0xff]
          %v1339 = vld [vmem:[%s1331 + $0x58] sm:$0xff]
          %v1340 = vld [vmem:[%s1331 + $0x80] sm:$0xff]
          %v1341 = vld [vmem:[%s1331 + $0x88] sm:$0xff]
          %v1342 = vld [vmem:[%s1331 + $0x90] sm:$0xff]
          %v1343 = vld [vmem:[%s1331 + $0x98] sm:$0xff]
          %v1344 = vld [vmem:[%s1331 + $0xc0] sm:$0xff]
          %v1345 = vld [vmem:[%s1331 + $0xc8] sm:$0xff]
          %v1346 = vld [vmem:[%s1331 + $0xd0] sm:$0xff]
          %v1347 = vld [vmem:[%s1331 + $0xd8] sm:$0xff]
          %s1348 = scalar_lea.vmem [#allocation3], %s1330
          %v1349 = vld [vmem:[%s1348] sm:$0xff]
          %v1350 = vld [vmem:[%s1348 + $0x8] sm:$0xff]
          %v1351 = vld [vmem:[%s1348 + $0x10] sm:$0xff]
          %v1352 = vld [vmem:[%s1348 + $0x18] sm:$0xff]
          %v1353 = vld [vmem:[%s1348 + $0x40] sm:$0xff]
          %v1354 = vld [vmem:[%s1348 + $0x48] sm:$0xff]
          %v1355 = vld [vmem:[%s1348 + $0x50] sm:$0xff]
          %v1356 = vld [vmem:[%s1348 + $0x58] sm:$0xff]
          %v1357 = vld [vmem:[%s1348 + $0x80] sm:$0xff]
          %v1358 = vld [vmem:[%s1348 + $0x88] sm:$0xff]
          %v1359 = vld [vmem:[%s1348 + $0x90] sm:$0xff]
          %v1360 = vld [vmem:[%s1348 + $0x98] sm:$0xff]
          %v1361 = vld [vmem:[%s1348 + $0xc0] sm:$0xff]
          %v1362 = vld [vmem:[%s1348 + $0xc8] sm:$0xff]
          %v1363 = vld [vmem:[%s1348 + $0xd0] sm:$0xff]
          %v1364 = vld [vmem:[%s1348 + $0xd8] sm:$0xff]
          %v1366 = vsel %vm1242, %v985, 0
          %v1369 = vsel %vm1242, %v986, 0
          %v1372 = vsel %vm1242, %v987, 0
          %v1375 = vsel %vm1242, %v988, 0
          %v1378 = vsel %vm1242, %v1332, 0
          %v1381 = vsel %vm1242, %v1333, 0
          %v1384 = vsel %vm1242, %v1334, 0
          %v1387 = vsel %vm1242, %v1335, 0
          %1389 = vmatprep.subr.mxu0 0.0
          %1390 = vmatpush1.xpose.msra.mxu0 %v1378
          %1391 = vmatprep.subr.mxu0 0.0
          %1392 = vmatpush1.xpose.msra.mxu0 %v1381
          %1393 = vmatprep.subr.mxu0 0.0
          %1394 = vmatpush1.xpose.msra.mxu0 %v1384
          %1395 = vmatprep.subr.mxu0 0.0
          %1396 = vmatpush1.xpose.msra.mxu0 %v1387
          %1397 = vmatprep.subr.mxu0 0.0
          %1398 = vmatpush1.xpose.msra.mxu0 0.0
          %1399 = vmatprep.subr.mxu0 0.0
          %1400 = vmatpush1.xpose.msra.mxu0 0.0
          %1401 = vmatprep.subr.mxu0 0.0
          %1402 = vmatpush1.xpose.msra.mxu0 0.0
          %1403 = vmatprep.subr.mxu0 0.0
          %1404 = vmatpush1.xpose.msra.mxu0 0.0
          %1405 = vmatprep.subr.mxu0 0.0
          %1406 = vmatpush1.xpose.msra.mxu0 0.0
          %1407 = vmatprep.subr.mxu0 0.0
          %1408 = vmatpush1.xpose.msra.mxu0 0.0
          %1409 = vmatprep.subr.mxu0 0.0
          %1410 = vmatpush1.xpose.msra.mxu0 0.0
          %1411 = vmatprep.subr.mxu0 0.0
          %1412 = vmatpush1.xpose.msra.mxu0 0.0
          %1413 = vmatprep.subr.mxu0 0.0
          %1414 = vmatpush1.xpose.msra.mxu0 0.0
          %1415 = vmatprep.subr.mxu0 0.0
          %1416 = vmatpush1.xpose.msra.mxu0 0.0
          %1417 = vmatprep.subr.mxu0 0.0
          %1418 = vmatpush1.xpose.msra.mxu0 0.0
          %1419 = vmatprep.subr.mxu0 0.0
          %1420 = vmatpush1.xpose.msra.mxu0 0.0
          %1421 = vmatprep.subr.mxu0 0.0
          %1422 = vmatpush1.xpose.msra.mxu0 0.0
          %1423 = vmatprep.subr.mxu0 0.0
          %1424 = vmatpush1.xpose.msra.mxu0 0.0
          %1425 = vmatprep.subr.mxu0 0.0
          %1426 = vmatpush1.xpose.msra.mxu0 0.0
          %1427 = vmatprep.subr.mxu0 0.0
          %1428 = vmatpush1.xpose.msra.mxu0 0.0
          %1429 = vmatprep.subr.mxu0 0.0
          %1430 = vmatpush1.xpose.msra.mxu0 0.0
          %1431 = vmatprep.subr.mxu0 0.0
          %1432 = vmatpush1.xpose.msra.mxu0 0.0
          %1433 = vmatprep.subr.mxu0 0.0
          %1434 = vmatpush1.xpose.msra.mxu0 0.0
          %1435 = vmatprep.subr.mxu0 0.0
          %1436 = vmatpush1.xpose.msra.mxu0 0.0
          %1437 = vmatprep.subr.mxu0 0.0
          %1438 = vmatpush1.xpose.msra.mxu0 0.0
          %1439 = vmatprep.subr.mxu0 0.0
          %1440 = vmatpush1.xpose.msra.mxu0 0.0
          %1441 = vmatprep.subr.mxu0 0.0
          %1442 = vmatpush1.xpose.msra.mxu0 0.0
          %1443 = vmatprep.subr.mxu0 0.0
          %1444 = vmatpush1.xpose.msra.mxu0 0.0
          %1445 = vmatprep.subr.mxu0 0.0
          %1446 = vmatpush1.xpose.msra.mxu0 0.0
          %1447 = vmatprep.subr.mxu0 0.0
          %1448 = vmatpush1.xpose.msra.mxu0 0.0
          %1449 = vmatprep.subr.mxu0 0.0
          %1450 = vmatpush1.xpose.msra.mxu0 0.0
          %1451 = vmatprep.subr.mxu0 0.0
          %1452 = vmatpush1.xpose.msra.mxu0 0.0
          %1453 = vmatprep.mubr.f32.mxu0 0.0
          %1454 = vmatmul.mubr.f32.gmra.mrb[0].mxu0 %v1366
          %v1455 = vpop.f32.mrb[0].mxu0
          %v1456 = vadd.f32 0.0, %v1455
          %v1457 = vpop.f32.mrb[0].mxu0
          %1458 = vmatprep.mubr.f32.mxu0 0.0
          %1459 = vmatmul.mubr.f32.gmra.mrb[0].mxu0 %v1369
          %v1460 = vpop.f32.mrb[0].mxu0
          %v1461 = vadd.f32 0.0, %v1460
          %v1462 = vpop.f32.mrb[0].mxu0
          %1463 = vmatprep.mubr.f32.mxu0 0.0
          %1464 = vmatmul.mubr.f32.gmra.mrb[0].mxu0 %v1372
          %v1465 = vpop.f32.mrb[0].mxu0
          %v1466 = vadd.f32 0.0, %v1465
          %v1467 = vpop.f32.mrb[0].mxu0
          %1468 = vmatprep.mubr.f32.mxu0 0.0
          %1469 = vmatmul.mubr.f32.gmra.mrb[0].mxu0 %v1375
          %v1470 = vpop.f32.mrb[0].mxu0
          %v1471 = vadd.f32 0.0, %v1470
          %v1472 = vpop.f32.mrb[0].mxu0
          %1473 = vdwg.mxu0
          %v1475 = vsel %vm1242, %v989, 0
          %v1478 = vsel %vm1242, %v990, 0
          %v1481 = vsel %vm1242, %v991, 0
          %v1484 = vsel %vm1242, %v992, 0
          %v1487 = vsel %vm1242, %v1336, 0
          %v1490 = vsel %vm1242, %v1337, 0
          %v1493 = vsel %vm1242, %v1338, 0
          %v1496 = vsel %vm1242, %v1339, 0
          %1498 = vmatprep.subr.mxu0 0.0
          %1499 = vmatpush1.xpose.msra.mxu0 %v1487
          %1500 = vmatprep.subr.mxu0 0.0
          %1501 = vmatpush1.xpose.msra.mxu0 %v1490
          %1502 = vmatprep.subr.mxu0 0.0
          %1503 = vmatpush1.xpose.msra.mxu0 %v1493
          %1504 = vmatprep.subr.mxu0 0.0
          %1505 = vmatpush1.xpose.msra.mxu0 %v1496
          %1506 = vmatprep.subr.mxu0 0.0
          %1507 = vmatpush1.xpose.msra.mxu0 0.0
          %1508 = vmatprep.subr.mxu0 0.0
          %1509 = vmatpush1.xpose.msra.mxu0 0.0
          %1510 = vmatprep.subr.mxu0 0.0
          %1511 = vmatpush1.xpose.msra.mxu0 0.0
          %1512 = vmatprep.subr.mxu0 0.0
          %1513 = vmatpush1.xpose.msra.mxu0 0.0
          %1514 = vmatprep.subr.mxu0 0.0
          %1515 = vmatpush1.xpose.msra.mxu0 0.0
          %1516 = vmatprep.subr.mxu0 0.0
          %1517 = vmatpush1.xpose.msra.mxu0 0.0
          %1518 = vmatprep.subr.mxu0 0.0
          %1519 = vmatpush1.xpose.msra.mxu0 0.0
          %1520 = vmatprep.subr.mxu0 0.0
          %1521 = vmatpush1.xpose.msra.mxu0 0.0
          %1522 = vmatprep.subr.mxu0 0.0
          %1523 = vmatpush1.xpose.msra.mxu0 0.0
          %1524 = vmatprep.subr.mxu0 0.0
          %1525 = vmatpush1.xpose.msra.mxu0 0.0
          %1526 = vmatprep.subr.mxu0 0.0
          %1527 = vmatpush1.xpose.msra.mxu0 0.0
          %1528 = vmatprep.subr.mxu0 0.0
          %1529 = vmatpush1.xpose.msra.mxu0 0.0
          %1530 = vmatprep.subr.mxu0 0.0
          %1531 = vmatpush1.xpose.msra.mxu0 0.0
          %1532 = vmatprep.subr.mxu0 0.0
          %1533 = vmatpush1.xpose.msra.mxu0 0.0
          %1534 = vmatprep.subr.mxu0 0.0
          %1535 = vmatpush1.xpose.msra.mxu0 0.0
          %1536 = vmatprep.subr.mxu0 0.0
          %1537 = vmatpush1.xpose.msra.mxu0 0.0
          %1538 = vmatprep.subr.mxu0 0.0
          %1539 = vmatpush1.xpose.msra.mxu0 0.0
          %1540 = vmatprep.subr.mxu0 0.0
          %1541 = vmatpush1.xpose.msra.mxu0 0.0
          %1542 = vmatprep.subr.mxu0 0.0
          %1543 = vmatpush1.xpose.msra.mxu0 0.0
          %1544 = vmatprep.subr.mxu0 0.0
          %1545 = vmatpush1.xpose.msra.mxu0 0.0
          %1546 = vmatprep.subr.mxu0 0.0
          %1547 = vmatpush1.xpose.msra.mxu0 0.0
          %1548 = vmatprep.subr.mxu0 0.0
          %1549 = vmatpush1.xpose.msra.mxu0 0.0
          %1550 = vmatprep.subr.mxu0 0.0
          %1551 = vmatpush1.xpose.msra.mxu0 0.0
          %1552 = vmatprep.subr.mxu0 0.0
          %1553 = vmatpush1.xpose.msra.mxu0 0.0
          %1554 = vmatprep.subr.mxu0 0.0
          %1555 = vmatpush1.xpose.msra.mxu0 0.0
          %1556 = vmatprep.subr.mxu0 0.0
          %1557 = vmatpush1.xpose.msra.mxu0 0.0
          %1558 = vmatprep.subr.mxu0 0.0
          %1559 = vmatpush1.xpose.msra.mxu0 0.0
          %1560 = vmatprep.subr.mxu0 0.0
          %1561 = vmatpush1.xpose.msra.mxu0 0.0
          %1562 = vmatprep.mubr.f32.mxu0 0.0
          %1563 = vmatmul.mubr.f32.gmra.mrb[0].mxu0 %v1475
          %v1564 = vpop.f32.mrb[0].mxu0
          %v1565 = vadd.f32 0.0, %v1564
          %v1566 = vpop.f32.mrb[0].mxu0
          %1567 = vmatprep.mubr.f32.mxu0 0.0
          %1568 = vmatmul.mubr.f32.gmra.mrb[0].mxu0 %v1478
          %v1569 = vpop.f32.mrb[0].mxu0
          %v1570 = vadd.f32 0.0, %v1569
          %v1571 = vpop.f32.mrb[0].mxu0
          %1572 = vmatprep.mubr.f32.mxu0 0.0
          %1573 = vmatmul.mubr.f32.gmra.mrb[0].mxu0 %v1481
          %v1574 = vpop.f32.mrb[0].mxu0
          %v1575 = vadd.f32 0.0, %v1574
          %v1576 = vpop.f32.mrb[0].mxu0
          %1577 = vmatprep.mubr.f32.mxu0 0.0
          %1578 = vmatmul.mubr.f32.gmra.mrb[0].mxu0 %v1484
          %v1579 = vpop.f32.mrb[0].mxu0
          %v1580 = vadd.f32 0.0, %v1579
          %v1581 = vpop.f32.mrb[0].mxu0
          %1582 = vdwg.mxu0
          %v1584 = vsel %vm1242, %v993, 0
          %v1587 = vsel %vm1242, %v994, 0
          %v1590 = vsel %vm1242, %v995, 0
          %v1593 = vsel %vm1242, %v996, 0
          %v1596 = vsel %vm1242, %v1340, 0
          %v1599 = vsel %vm1242, %v1341, 0
          %v1602 = vsel %vm1242, %v1342, 0
          %v1605 = vsel %vm1242, %v1343, 0
          %1607 = vmatprep.subr.mxu0 0.0
          %1608 = vmatpush1.xpose.msra.mxu0 %v1596
          %1609 = vmatprep.subr.mxu0 0.0
          %1610 = vmatpush1.xpose.msra.mxu0 %v1599
          %1611 = vmatprep.subr.mxu0 0.0
          %1612 = vmatpush1.xpose.msra.mxu0 %v1602
          %1613 = vmatprep.subr.mxu0 0.0
          %1614 = vmatpush1.xpose.msra.mxu0 %v1605
          %1615 = vmatprep.subr.mxu0 0.0
          %1616 = vmatpush1.xpose.msra.mxu0 0.0
          %1617 = vmatprep.subr.mxu0 0.0
          %1618 = vmatpush1.xpose.msra.mxu0 0.0
          %1619 = vmatprep.subr.mxu0 0.0
          %1620 = vmatpush1.xpose.msra.mxu0 0.0
          %1621 = vmatprep.subr.mxu0 0.0
          %1622 = vmatpush1.xpose.msra.mxu0 0.0
          %1623 = vmatprep.subr.mxu0 0.0
          %1624 = vmatpush1.xpose.msra.mxu0 0.0
          %1625 = vmatprep.subr.mxu0 0.0
          %1626 = vmatpush1.xpose.msra.mxu0 0.0
          %1627 = vmatprep.subr.mxu0 0.0
          %1628 = vmatpush1.xpose.msra.mxu0 0.0
          %1629 = vmatprep.subr.mxu0 0.0
          %1630 = vmatpush1.xpose.msra.mxu0 0.0
          %1631 = vmatprep.subr.mxu0 0.0
          %1632 = vmatpush1.xpose.msra.mxu0 0.0
          %1633 = vmatprep.subr.mxu0 0.0
          %1634 = vmatpush1.xpose.msra.mxu0 0.0
          %1635 = vmatprep.subr.mxu0 0.0
          %1636 = vmatpush1.xpose.msra.mxu0 0.0
          %1637 = vmatprep.subr.mxu0 0.0
          %1638 = vmatpush1.xpose.msra.mxu0 0.0
          %1639 = vmatprep.subr.mxu0 0.0
          %1640 = vmatpush1.xpose.msra.mxu0 0.0
          %1641 = vmatprep.subr.mxu0 0.0
          %1642 = vmatpush1.xpose.msra.mxu0 0.0
          %1643 = vmatprep.subr.mxu0 0.0
          %1644 = vmatpush1.xpose.msra.mxu0 0.0
          %1645 = vmatprep.subr.mxu0 0.0
          %1646 = vmatpush1.xpose.msra.mxu0 0.0
          %1647 = vmatprep.subr.mxu0 0.0
          %1648 = vmatpush1.xpose.msra.mxu0 0.0
          %1649 = vmatprep.subr.mxu0 0.0
          %1650 = vmatpush1.xpose.msra.mxu0 0.0
          %1651 = vmatprep.subr.mxu0 0.0
          %1652 = vmatpush1.xpose.msra.mxu0 0.0
          %1653 = vmatprep.subr.mxu0 0.0
          %1654 = vmatpush1.xpose.msra.mxu0 0.0
          %1655 = vmatprep.subr.mxu0 0.0
          %1656 = vmatpush1.xpose.msra.mxu0 0.0
          %1657 = vmatprep.subr.mxu0 0.0
          %1658 = vmatpush1.xpose.msra.mxu0 0.0
          %1659 = vmatprep.subr.mxu0 0.0
          %1660 = vmatpush1.xpose.msra.mxu0 0.0
          %1661 = vmatprep.subr.mxu0 0.0
          %1662 = vmatpush1.xpose.msra.mxu0 0.0
          %1663 = vmatprep.subr.mxu0 0.0
          %1664 = vmatpush1.xpose.msra.mxu0 0.0
          %1665 = vmatprep.subr.mxu0 0.0
          %1666 = vmatpush1.xpose.msra.mxu0 0.0
          %1667 = vmatprep.subr.mxu0 0.0
          %1668 = vmatpush1.xpose.msra.mxu0 0.0
          %1669 = vmatprep.subr.mxu0 0.0
          %1670 = vmatpush1.xpose.msra.mxu0 0.0
          %1671 = vmatprep.mubr.f32.mxu0 0.0
          %1672 = vmatmul.mubr.f32.gmra.mrb[0].mxu0 %v1584
          %v1673 = vpop.f32.mrb[0].mxu0
          %v1674 = vadd.f32 0.0, %v1673
          %v1675 = vpop.f32.mrb[0].mxu0
          %1676 = vmatprep.mubr.f32.mxu0 0.0
          %1677 = vmatmul.mubr.f32.gmra.mrb[0].mxu0 %v1587
          %v1678 = vpop.f32.mrb[0].mxu0
          %v1679 = vadd.f32 0.0, %v1678
          %v1680 = vpop.f32.mrb[0].mxu0
          %1681 = vmatprep.mubr.f32.mxu0 0.0
          %1682 = vmatmul.mubr.f32.gmra.mrb[0].mxu0 %v1590
          %v1683 = vpop.f32.mrb[0].mxu0
          %v1684 = vadd.f32 0.0, %v1683
          %v1685 = vpop.f32.mrb[0].mxu0
          %1686 = vmatprep.mubr.f32.mxu0 0.0
          %1687 = vmatmul.mubr.f32.gmra.mrb[0].mxu0 %v1593
          %v1688 = vpop.f32.mrb[0].mxu0
          %v1689 = vadd.f32 0.0, %v1688
          %v1690 = vpop.f32.mrb[0].mxu0
          %1691 = vdwg.mxu0
          %v1693 = vsel %vm1242, %v997, 0
          %v1696 = vsel %vm1242, %v998, 0
          %v1699 = vsel %vm1242, %v999, 0
          %v1702 = vsel %vm1242, %v1000, 0
          %v1705 = vsel %vm1242, %v1344, 0
          %v1708 = vsel %vm1242, %v1345, 0
          %v1711 = vsel %vm1242, %v1346, 0
          %v1714 = vsel %vm1242, %v1347, 0
          %1716 = vmatprep.subr.mxu0 0.0
          %1717 = vmatpush1.xpose.msra.mxu0 %v1705
          %1718 = vmatprep.subr.mxu0 0.0
          %1719 = vmatpush1.xpose.msra.mxu0 %v1708
          %1720 = vmatprep.subr.mxu0 0.0
          %1721 = vmatpush1.xpose.msra.mxu0 %v1711
          %1722 = vmatprep.subr.mxu0 0.0
          %1723 = vmatpush1.xpose.msra.mxu0 %v1714
          %1724 = vmatprep.subr.mxu0 0.0
          %1725 = vmatpush1.xpose.msra.mxu0 0.0
          %1726 = vmatprep.subr.mxu0 0.0
          %1727 = vmatpush1.xpose.msra.mxu0 0.0
          %1728 = vmatprep.subr.mxu0 0.0
          %1729 = vmatpush1.xpose.msra.mxu0 0.0
          %1730 = vmatprep.subr.mxu0 0.0
          %1731 = vmatpush1.xpose.msra.mxu0 0.0
          %1732 = vmatprep.subr.mxu0 0.0
          %1733 = vmatpush1.xpose.msra.mxu0 0.0
          %1734 = vmatprep.subr.mxu0 0.0
          %1735 = vmatpush1.xpose.msra.mxu0 0.0
          %1736 = vmatprep.subr.mxu0 0.0
          %1737 = vmatpush1.xpose.msra.mxu0 0.0
          %1738 = vmatprep.subr.mxu0 0.0
          %1739 = vmatpush1.xpose.msra.mxu0 0.0
          %1740 = vmatprep.subr.mxu0 0.0
          %1741 = vmatpush1.xpose.msra.mxu0 0.0
          %1742 = vmatprep.subr.mxu0 0.0
          %1743 = vmatpush1.xpose.msra.mxu0 0.0
          %1744 = vmatprep.subr.mxu0 0.0
          %1745 = vmatpush1.xpose.msra.mxu0 0.0
          %1746 = vmatprep.subr.mxu0 0.0
          %1747 = vmatpush1.xpose.msra.mxu0 0.0
          %1748 = vmatprep.subr.mxu0 0.0
          %1749 = vmatpush1.xpose.msra.mxu0 0.0
          %1750 = vmatprep.subr.mxu0 0.0
          %1751 = vmatpush1.xpose.msra.mxu0 0.0
          %1752 = vmatprep.subr.mxu0 0.0
          %1753 = vmatpush1.xpose.msra.mxu0 0.0
          %1754 = vmatprep.subr.mxu0 0.0
          %1755 = vmatpush1.xpose.msra.mxu0 0.0
          %1756 = vmatprep.subr.mxu0 0.0
          %1757 = vmatpush1.xpose.msra.mxu0 0.0
          %1758 = vmatprep.subr.mxu0 0.0
          %1759 = vmatpush1.xpose.msra.mxu0 0.0
          %1760 = vmatprep.subr.mxu0 0.0
          %1761 = vmatpush1.xpose.msra.mxu0 0.0
          %1762 = vmatprep.subr.mxu0 0.0
          %1763 = vmatpush1.xpose.msra.mxu0 0.0
          %1764 = vmatprep.subr.mxu0 0.0
          %1765 = vmatpush1.xpose.msra.mxu0 0.0
          %1766 = vmatprep.subr.mxu0 0.0
          %1767 = vmatpush1.xpose.msra.mxu0 0.0
          %1768 = vmatprep.subr.mxu0 0.0
          %1769 = vmatpush1.xpose.msra.mxu0 0.0
          %1770 = vmatprep.subr.mxu0 0.0
          %1771 = vmatpush1.xpose.msra.mxu0 0.0
          %1772 = vmatprep.subr.mxu0 0.0
          %1773 = vmatpush1.xpose.msra.mxu0 0.0
          %1774 = vmatprep.subr.mxu0 0.0
          %1775 = vmatpush1.xpose.msra.mxu0 0.0
          %1776 = vmatprep.subr.mxu0 0.0
          %1777 = vmatpush1.xpose.msra.mxu0 0.0
          %1778 = vmatprep.subr.mxu0 0.0
          %1779 = vmatpush1.xpose.msra.mxu0 0.0
          %1780 = vmatprep.mubr.f32.mxu0 0.0
          %1781 = vmatmul.mubr.f32.gmra.mrb[0].mxu0 %v1693
          %v1782 = vpop.f32.mrb[0].mxu0
          %v1783 = vadd.f32 0.0, %v1782
          %v1784 = vpop.f32.mrb[0].mxu0
          %1785 = vmatprep.mubr.f32.mxu0 0.0
          %1786 = vmatmul.mubr.f32.gmra.mrb[0].mxu0 %v1696
          %v1787 = vpop.f32.mrb[0].mxu0
          %v1788 = vadd.f32 0.0, %v1787
          %v1789 = vpop.f32.mrb[0].mxu0
          %1790 = vmatprep.mubr.f32.mxu0 0.0
          %1791 = vmatmul.mubr.f32.gmra.mrb[0].mxu0 %v1699
          %v1792 = vpop.f32.mrb[0].mxu0
          %v1793 = vadd.f32 0.0, %v1792
          %v1794 = vpop.f32.mrb[0].mxu0
          %1795 = vmatprep.mubr.f32.mxu0 0.0
          %1796 = vmatmul.mubr.f32.gmra.mrb[0].mxu0 %v1702
          %v1797 = vpop.f32.mrb[0].mxu0
          %v1798 = vadd.f32 0.0, %v1797
          %v1799 = vpop.f32.mrb[0].mxu0
          %1800 = vdwg.mxu0
          %v1801 = vsel %vm1242, %v1456, -inf
          %1802 = vmax.xlane.f32.xlu0 %v1801
          %v1803 = vpop.xlane.xlu0 %1802
          %v1804 = vsel %vm1242, %v1461, -inf
          %1805 = vmax.xlane.f32.xlu0 %v1804
          %v1806 = vpop.xlane.xlu0 %1805
          %v1807 = vsel %vm1242, %v1466, -inf
          %1808 = vmax.xlane.f32.xlu0 %v1807
          %v1809 = vpop.xlane.xlu0 %1808
          %v1810 = vsel %vm1242, %v1471, -inf
          %1811 = vmax.xlane.f32.xlu0 %v1810
          %v1812 = vpop.xlane.xlu0 %1811
          %v1813 = vsel %vm1242, %v1565, -inf
          %1814 = vmax.xlane.f32.xlu0 %v1813
          %v1815 = vpop.xlane.xlu0 %1814
          %v1816 = vsel %vm1242, %v1570, -inf
          %1817 = vmax.xlane.f32.xlu0 %v1816
          %v1818 = vpop.xlane.xlu0 %1817
          %v1819 = vsel %vm1242, %v1575, -inf
          %1820 = vmax.xlane.f32.xlu0 %v1819
          %v1821 = vpop.xlane.xlu0 %1820
          %v1822 = vsel %vm1242, %v1580, -inf
          %1823 = vmax.xlane.f32.xlu0 %v1822
          %v1824 = vpop.xlane.xlu0 %1823
          %v1825 = vsel %vm1242, %v1674, -inf
          %1826 = vmax.xlane.f32.xlu0 %v1825
          %v1827 = vpop.xlane.xlu0 %1826
          %v1828 = vsel %vm1242, %v1679, -inf
          %1829 = vmax.xlane.f32.xlu0 %v1828
          %v1830 = vpop.xlane.xlu0 %1829
          %v1831 = vsel %vm1242, %v1684, -inf
          %1832 = vmax.xlane.f32.xlu0 %v1831
          %v1833 = vpop.xlane.xlu0 %1832
          %v1834 = vsel %vm1242, %v1689, -inf
          %1835 = vmax.xlane.f32.xlu0 %v1834
          %v1836 = vpop.xlane.xlu0 %1835
          %v1837 = vsel %vm1242, %v1783, -inf
          %1838 = vmax.xlane.f32.xlu0 %v1837
          %v1839 = vpop.xlane.xlu0 %1838
          %v1840 = vsel %vm1242, %v1788, -inf
          %1841 = vmax.xlane.f32.xlu0 %v1840
          %v1842 = vpop.xlane.xlu0 %1841
          %v1843 = vsel %vm1242, %v1793, -inf
          %1844 = vmax.xlane.f32.xlu0 %v1843
          %v1845 = vpop.xlane.xlu0 %1844
          %v1846 = vsel %vm1242, %v1798, -inf
          %1847 = vmax.xlane.f32.xlu0 %v1846
          %v1848 = vpop.xlane.xlu0 %1847
          %v1849 = vmax.f32 %v1282, %v1803
          %v1850 = vmax.f32 %v1283, %v1806
          %v1851 = vmax.f32 %v1284, %v1809
          %v1852 = vmax.f32 %v1285, %v1812
          %v1853 = vmax.f32 %v1286, %v1815
          %v1854 = vmax.f32 %v1287, %v1818
          %v1855 = vmax.f32 %v1288, %v1821
          %v1856 = vmax.f32 %v1289, %v1824
          %v1857 = vmax.f32 %v1290, %v1827
          %v1858 = vmax.f32 %v1291, %v1830
          %v1859 = vmax.f32 %v1292, %v1833
          %v1860 = vmax.f32 %v1293, %v1836
          %v1861 = vmax.f32 %v1294, %v1839
          %v1862 = vmax.f32 %v1295, %v1842
          %v1863 = vmax.f32 %v1296, %v1845
          %v1864 = vmax.f32 %v1297, %v1848
          %v1865 = vsub.f32 %v1282, %v1849
          %v1866 = vsub.f32 %v1283, %v1850
          %v1867 = vsub.f32 %v1284, %v1851
          %v1868 = vsub.f32 %v1285, %v1852
          %v1869 = vsub.f32 %v1286, %v1853
          %v1870 = vsub.f32 %v1287, %v1854
          %v1871 = vsub.f32 %v1288, %v1855
          %v1872 = vsub.f32 %v1289, %v1856
          %v1873 = vsub.f32 %v1290, %v1857
          %v1874 = vsub.f32 %v1291, %v1858
          %v1875 = vsub.f32 %v1292, %v1859
          %v1876 = vsub.f32 %v1293, %v1860
          %v1877 = vsub.f32 %v1294, %v1861
          %v1878 = vsub.f32 %v1295, %v1862
          %v1879 = vsub.f32 %v1296, %v1863
          %v1880 = vsub.f32 %v1297, %v1864
          %v1881 = vmul.f32 %v1865, 1.442695
          %v1882 = vpow.pop %v1881
          %v1883 = vmul.f32 %v1866, 1.442695
          %v1884 = vpow.pop %v1883
          %v1885 = vmul.f32 %v1867, 1.442695
          %v1886 = vpow.pop %v1885
          %v1887 = vmul.f32 %v1868, 1.442695
          %v1888 = vpow.pop %v1887
          %v1889 = vmul.f32 %v1869, 1.442695
          %v1890 = vpow.pop %v1889
          %v1891 = vmul.f32 %v1870, 1.442695
          %v1892 = vpow.pop %v1891
          %v1893 = vmul.f32 %v1871, 1.442695
          %v1894 = vpow.pop %v1893
          %v1895 = vmul.f32 %v1872, 1.442695
          %v1896 = vpow.pop %v1895
          %v1897 = vmul.f32 %v1873, 1.442695
          %v1898 = vpow.pop %v1897
          %v1899 = vmul.f32 %v1874, 1.442695
          %v1900 = vpow.pop %v1899
          %v1901 = vmul.f32 %v1875, 1.442695
          %v1902 = vpow.pop %v1901
          %v1903 = vmul.f32 %v1876, 1.442695
          %v1904 = vpow.pop %v1903
          %v1905 = vmul.f32 %v1877, 1.442695
          %v1906 = vpow.pop %v1905
          %v1907 = vmul.f32 %v1878, 1.442695
          %v1908 = vpow.pop %v1907
          %v1909 = vmul.f32 %v1879, 1.442695
          %v1910 = vpow.pop %v1909
          %v1911 = vmul.f32 %v1880, 1.442695
          %v1912 = vpow.pop %v1911
          %v1913 = vsub.f32 %v1456, %v1849
          %v1914 = vsub.f32 %v1461, %v1850
          %v1915 = vsub.f32 %v1466, %v1851
          %v1916 = vsub.f32 %v1471, %v1852
          %v1917 = vsub.f32 %v1565, %v1853
          %v1918 = vsub.f32 %v1570, %v1854
          %v1919 = vsub.f32 %v1575, %v1855
          %v1920 = vsub.f32 %v1580, %v1856
          %v1921 = vsub.f32 %v1674, %v1857
          %v1922 = vsub.f32 %v1679, %v1858
          %v1923 = vsub.f32 %v1684, %v1859
          %v1924 = vsub.f32 %v1689, %v1860
          %v1925 = vsub.f32 %v1783, %v1861
          %v1926 = vsub.f32 %v1788, %v1862
          %v1927 = vsub.f32 %v1793, %v1863
          %v1928 = vsub.f32 %v1798, %v1864
          %v1929 = vmul.f32 %v1913, 1.442695
          %v1930 = vpow.pop %v1929
          %v1931 = vmul.f32 %v1914, 1.442695
          %v1932 = vpow.pop %v1931
          %v1933 = vmul.f32 %v1915, 1.442695
          %v1934 = vpow.pop %v1933
          %v1935 = vmul.f32 %v1916, 1.442695
          %v1936 = vpow.pop %v1935
          %v1937 = vmul.f32 %v1917, 1.442695
          %v1938 = vpow.pop %v1937
          %v1939 = vmul.f32 %v1918, 1.442695
          %v1940 = vpow.pop %v1939
          %v1941 = vmul.f32 %v1919, 1.442695
          %v1942 = vpow.pop %v1941
          %v1943 = vmul.f32 %v1920, 1.442695
          %v1944 = vpow.pop %v1943
          %v1945 = vmul.f32 %v1921, 1.442695
          %v1946 = vpow.pop %v1945
          %v1947 = vmul.f32 %v1922, 1.442695
          %v1948 = vpow.pop %v1947
          %v1949 = vmul.f32 %v1923, 1.442695
          %v1950 = vpow.pop %v1949
          %v1951 = vmul.f32 %v1924, 1.442695
          %v1952 = vpow.pop %v1951
          %v1953 = vmul.f32 %v1925, 1.442695
          %v1954 = vpow.pop %v1953
          %v1955 = vmul.f32 %v1926, 1.442695
          %v1956 = vpow.pop %v1955
          %v1957 = vmul.f32 %v1927, 1.442695
          %v1958 = vpow.pop %v1957
          %v1959 = vmul.f32 %v1928, 1.442695
          %v1960 = vpow.pop %v1959
          %v1961 = vmul.f32 %v1882, %v1298
          %v1962 = vmul.f32 %v1884, %v1299
          %v1963 = vmul.f32 %v1886, %v1300
          %v1964 = vmul.f32 %v1888, %v1301
          %v1965 = vmul.f32 %v1890, %v1302
          %v1966 = vmul.f32 %v1892, %v1303
          %v1967 = vmul.f32 %v1894, %v1304
          %v1968 = vmul.f32 %v1896, %v1305
          %v1969 = vmul.f32 %v1898, %v1306
          %v1970 = vmul.f32 %v1900, %v1307
          %v1971 = vmul.f32 %v1902, %v1308
          %v1972 = vmul.f32 %v1904, %v1309
          %v1973 = vmul.f32 %v1906, %v1310
          %v1974 = vmul.f32 %v1908, %v1311
          %v1975 = vmul.f32 %v1910, %v1312
          %v1976 = vmul.f32 %v1912, %v1313
          %v1977 = vsel %vm1242, %v1930, 0.0
          %1978 = vadd.xlane.f32.xlu0 %v1977
          %v1979 = vpop.xlane.xlu0 %1978
          %v1980 = vsel %vm1242, %v1932, 0.0
          %1981 = vadd.xlane.f32.xlu0 %v1980
          %v1982 = vpop.xlane.xlu0 %1981
          %v1983 = vsel %vm1242, %v1934, 0.0
          %1984 = vadd.xlane.f32.xlu0 %v1983
          %v1985 = vpop.xlane.xlu0 %1984
          %v1986 = vsel %vm1242, %v1936, 0.0
          %1987 = vadd.xlane.f32.xlu0 %v1986
          %v1988 = vpop.xlane.xlu0 %1987
          %v1989 = vsel %vm1242, %v1938, 0.0
          %1990 = vadd.xlane.f32.xlu0 %v1989
          %v1991 = vpop.xlane.xlu0 %1990
          %v1992 = vsel %vm1242, %v1940, 0.0
          %1993 = vadd.xlane.f32.xlu0 %v1992
          %v1994 = vpop.xlane.xlu0 %1993
          %v1995 = vsel %vm1242, %v1942, 0.0
          %1996 = vadd.xlane.f32.xlu0 %v1995
          %v1997 = vpop.xlane.xlu0 %1996
          %v1998 = vsel %vm1242, %v1944, 0.0
          %1999 = vadd.xlane.f32.xlu0 %v1998
          %v2000 = vpop.xlane.xlu0 %1999
          %v2001 = vsel %vm1242, %v1946, 0.0
          %2002 = vadd.xlane.f32.xlu0 %v2001
          %v2003 = vpop.xlane.xlu0 %2002
          %v2004 = vsel %vm1242, %v1948, 0.0
          %2005 = vadd.xlane.f32.xlu0 %v2004
          %v2006 = vpop.xlane.xlu0 %2005
          %v2007 = vsel %vm1242, %v1950, 0.0
          %2008 = vadd.xlane.f32.xlu0 %v2007
          %v2009 = vpop.xlane.xlu0 %2008
          %v2010 = vsel %vm1242, %v1952, 0.0
          %2011 = vadd.xlane.f32.xlu0 %v2010
          %v2012 = vpop.xlane.xlu0 %2011
          %v2013 = vsel %vm1242, %v1954, 0.0
          %2014 = vadd.xlane.f32.xlu0 %v2013
          %v2015 = vpop.xlane.xlu0 %2014
          %v2016 = vsel %vm1242, %v1956, 0.0
          %2017 = vadd.xlane.f32.xlu0 %v2016
          %v2018 = vpop.xlane.xlu0 %2017
          %v2019 = vsel %vm1242, %v1958, 0.0
          %2020 = vadd.xlane.f32.xlu0 %v2019
          %v2021 = vpop.xlane.xlu0 %2020
          %v2022 = vsel %vm1242, %v1960, 0.0
          %2023 = vadd.xlane.f32.xlu0 %v2022
          %v2024 = vpop.xlane.xlu0 %2023
          %v2025 = vadd.f32 %v1961, %v1979
          %v2026 = vadd.f32 %v1962, %v1982
          %v2027 = vadd.f32 %v1963, %v1985
          %v2028 = vadd.f32 %v1964, %v1988
          %v2029 = vadd.f32 %v1965, %v1991
          %v2030 = vadd.f32 %v1966, %v1994
          %v2031 = vadd.f32 %v1967, %v1997
          %v2032 = vadd.f32 %v1968, %v2000
          %v2033 = vadd.f32 %v1969, %v2003
          %v2034 = vadd.f32 %v1970, %v2006
          %v2035 = vadd.f32 %v1971, %v2009
          %v2036 = vadd.f32 %v1972, %v2012
          %v2037 = vadd.f32 %v1973, %v2015
          %v2038 = vadd.f32 %v1974, %v2018
          %v2039 = vadd.f32 %v1975, %v2021
          %v2040 = vadd.f32 %v1976, %v2024
          %v2041 = vmul.f32 %v1882, %v1314
          %v2042 = vmul.f32 %v1884, %v1315
          %v2043 = vmul.f32 %v1886, %v1316
          %v2044 = vmul.f32 %v1888, %v1317
          %v2045 = vmul.f32 %v1890, %v1318
          %v2046 = vmul.f32 %v1892, %v1319
          %v2047 = vmul.f32 %v1894, %v1320
          %v2048 = vmul.f32 %v1896, %v1321
          %v2049 = vmul.f32 %v1898, %v1322
          %v2050 = vmul.f32 %v1900, %v1323
          %v2051 = vmul.f32 %v1902, %v1324
          %v2052 = vmul.f32 %v1904, %v1325
          %v2053 = vmul.f32 %v1906, %v1326
          %v2054 = vmul.f32 %v1908, %v1327
          %v2055 = vmul.f32 %v1910, %v1328
          %v2056 = vmul.f32 %v1912, %v1329
          %v2058 = vsel %vm1242, %v1930, 0
          %v2061 = vsel %vm1242, %v1932, 0
          %v2064 = vsel %vm1242, %v1934, 0
          %v2067 = vsel %vm1242, %v1936, 0
          %2069 = vmatprep.subr.mxu0 0.0
          %2070 = vmatpush1.msra.mxu0 %v1349
          %2071 = vmatprep.subr.mxu0 0.0
          %2072 = vmatpush1.msra.mxu0 %v1350
          %2073 = vmatprep.subr.mxu0 0.0
          %2074 = vmatpush1.msra.mxu0 %v1351
          %2075 = vmatprep.subr.mxu0 0.0
          %2076 = vmatpush1.msra.mxu0 %v1352
          %2077 = vmatprep.subr.mxu0 0.0
          %2078 = vmatpush1.msra.mxu0 0.0
          %2079 = vmatprep.subr.mxu0 0.0
          %2080 = vmatpush1.msra.mxu0 0.0
          %2081 = vmatprep.subr.mxu0 0.0
          %2082 = vmatpush1.msra.mxu0 0.0
          %2083 = vmatprep.subr.mxu0 0.0
          %2084 = vmatpush1.msra.mxu0 0.0
          %2085 = vmatprep.subr.mxu0 0.0
          %2086 = vmatpush1.msra.mxu0 0.0
          %2087 = vmatprep.subr.mxu0 0.0
          %2088 = vmatpush1.msra.mxu0 0.0
          %2089 = vmatprep.subr.mxu0 0.0
          %2090 = vmatpush1.msra.mxu0 0.0
          %2091 = vmatprep.subr.mxu0 0.0
          %2092 = vmatpush1.msra.mxu0 0.0
          %2093 = vmatprep.subr.mxu0 0.0
          %2094 = vmatpush1.msra.mxu0 0.0
          %2095 = vmatprep.subr.mxu0 0.0
          %2096 = vmatpush1.msra.mxu0 0.0
          %2097 = vmatprep.subr.mxu0 0.0
          %2098 = vmatpush1.msra.mxu0 0.0
          %2099 = vmatprep.subr.mxu0 0.0
          %2100 = vmatpush1.msra.mxu0 0.0
          %2101 = vmatprep.subr.mxu0 0.0
          %2102 = vmatpush1.msra.mxu0 0.0
          %2103 = vmatprep.subr.mxu0 0.0
          %2104 = vmatpush1.msra.mxu0 0.0
          %2105 = vmatprep.subr.mxu0 0.0
          %2106 = vmatpush1.msra.mxu0 0.0
          %2107 = vmatprep.subr.mxu0 0.0
          %2108 = vmatpush1.msra.mxu0 0.0
          %2109 = vmatprep.subr.mxu0 0.0
          %2110 = vmatpush1.msra.mxu0 0.0
          %2111 = vmatprep.subr.mxu0 0.0
          %2112 = vmatpush1.msra.mxu0 0.0
          %2113 = vmatprep.subr.mxu0 0.0
          %2114 = vmatpush1.msra.mxu0 0.0
          %2115 = vmatprep.subr.mxu0 0.0
          %2116 = vmatpush1.msra.mxu0 0.0
          %2117 = vmatprep.subr.mxu0 0.0
          %2118 = vmatpush1.msra.mxu0 0.0
          %2119 = vmatprep.subr.mxu0 0.0
          %2120 = vmatpush1.msra.mxu0 0.0
          %2121 = vmatprep.subr.mxu0 0.0
          %2122 = vmatpush1.msra.mxu0 0.0
          %2123 = vmatprep.subr.mxu0 0.0
          %2124 = vmatpush1.msra.mxu0 0.0
          %2125 = vmatprep.subr.mxu0 0.0
          %2126 = vmatpush1.msra.mxu0 0.0
          %2127 = vmatprep.subr.mxu0 0.0
          %2128 = vmatpush1.msra.mxu0 0.0
          %2129 = vmatprep.subr.mxu0 0.0
          %2130 = vmatpush1.msra.mxu0 0.0
          %2131 = vmatprep.subr.mxu0 0.0
          %2132 = vmatpush1.msra.mxu0 0.0
          %2133 = vmatprep.mubr.f32.mxu0 0.0
          %2134 = vmatmul.mubr.f32.gmra.mrb[0].mxu0 %v2058
          %v2135 = vpop.f32.mrb[0].mxu0
          %v2136 = vadd.f32 0.0, %v2135
          %v2137 = vpop.f32.mrb[0].mxu0
          %2138 = vmatprep.mubr.f32.mxu0 0.0
          %2139 = vmatmul.mubr.f32.gmra.mrb[0].mxu0 %v2061
          %v2140 = vpop.f32.mrb[0].mxu0
          %v2141 = vadd.f32 0.0, %v2140
          %v2142 = vpop.f32.mrb[0].mxu0
          %2143 = vmatprep.mubr.f32.mxu0 0.0
          %2144 = vmatmul.mubr.f32.gmra.mrb[0].mxu0 %v2064
          %v2145 = vpop.f32.mrb[0].mxu0
          %v2146 = vadd.f32 0.0, %v2145
          %v2147 = vpop.f32.mrb[0].mxu0
          %2148 = vmatprep.mubr.f32.mxu0 0.0
          %2149 = vmatmul.mubr.f32.gmra.mrb[0].mxu0 %v2067
          %v2150 = vpop.f32.mrb[0].mxu0
          %v2151 = vadd.f32 0.0, %v2150
          %v2152 = vpop.f32.mrb[0].mxu0
          %2153 = vdwg.mxu0
          %v2155 = vsel %vm1242, %v1938, 0
          %v2158 = vsel %vm1242, %v1940, 0
          %v2161 = vsel %vm1242, %v1942, 0
          %v2164 = vsel %vm1242, %v1944, 0
          %2166 = vmatprep.subr.mxu0 0.0
          %2167 = vmatpush1.msra.mxu0 %v1353
          %2168 = vmatprep.subr.mxu0 0.0
          %2169 = vmatpush1.msra.mxu0 %v1354
          %2170 = vmatprep.subr.mxu0 0.0
          %2171 = vmatpush1.msra.mxu0 %v1355
          %2172 = vmatprep.subr.mxu0 0.0
          %2173 = vmatpush1.msra.mxu0 %v1356
          %2174 = vmatprep.subr.mxu0 0.0
          %2175 = vmatpush1.msra.mxu0 0.0
          %2176 = vmatprep.subr.mxu0 0.0
          %2177 = vmatpush1.msra.mxu0 0.0
          %2178 = vmatprep.subr.mxu0 0.0
          %2179 = vmatpush1.msra.mxu0 0.0
          %2180 = vmatprep.subr.mxu0 0.0
          %2181 = vmatpush1.msra.mxu0 0.0
          %2182 = vmatprep.subr.mxu0 0.0
          %2183 = vmatpush1.msra.mxu0 0.0
          %2184 = vmatprep.subr.mxu0 0.0
          %2185 = vmatpush1.msra.mxu0 0.0
          %2186 = vmatprep.subr.mxu0 0.0
          %2187 = vmatpush1.msra.mxu0 0.0
          %2188 = vmatprep.subr.mxu0 0.0
          %2189 = vmatpush1.msra.mxu0 0.0
          %2190 = vmatprep.subr.mxu0 0.0
          %2191 = vmatpush1.msra.mxu0 0.0
          %2192 = vmatprep.subr.mxu0 0.0
          %2193 = vmatpush1.msra.mxu0 0.0
          %2194 = vmatprep.subr.mxu0 0.0
          %2195 = vmatpush1.msra.mxu0 0.0
          %2196 = vmatprep.subr.mxu0 0.0
          %2197 = vmatpush1.msra.mxu0 0.0
          %2198 = vmatprep.subr.mxu0 0.0
          %2199 = vmatpush1.msra.mxu0 0.0
          %2200 = vmatprep.subr.mxu0 0.0
          %2201 = vmatpush1.msra.mxu0 0.0
          %2202 = vmatprep.subr.mxu0 0.0
          %2203 = vmatpush1.msra.mxu0 0.0
          %2204 = vmatprep.subr.mxu0 0.0
          %2205 = vmatpush1.msra.mxu0 0.0
          %2206 = vmatprep.subr.mxu0 0.0
          %2207 = vmatpush1.msra.mxu0 0.0
          %2208 = vmatprep.subr.mxu0 0.0
          %2209 = vmatpush1.msra.mxu0 0.0
          %2210 = vmatprep.subr.mxu0 0.0
          %2211 = vmatpush1.msra.mxu0 0.0
          %2212 = vmatprep.subr.mxu0 0.0
          %2213 = vmatpush1.msra.mxu0 0.0
          %2214 = vmatprep.subr.mxu0 0.0
          %2215 = vmatpush1.msra.mxu0 0.0
          %2216 = vmatprep.subr.mxu0 0.0
          %2217 = vmatpush1.msra.mxu0 0.0
          %2218 = vmatprep.subr.mxu0 0.0
          %2219 = vmatpush1.msra.mxu0 0.0
          %2220 = vmatprep.subr.mxu0 0.0
          %2221 = vmatpush1.msra.mxu0 0.0
          %2222 = vmatprep.subr.mxu0 0.0
          %2223 = vmatpush1.msra.mxu0 0.0
          %2224 = vmatprep.subr.mxu0 0.0
          %2225 = vmatpush1.msra.mxu0 0.0
          %2226 = vmatprep.subr.mxu0 0.0
          %2227 = vmatpush1.msra.mxu0 0.0
          %2228 = vmatprep.subr.mxu0 0.0
          %2229 = vmatpush1.msra.mxu0 0.0
          %2230 = vmatprep.mubr.f32.mxu0 0.0
          %2231 = vmatmul.mubr.f32.gmra.mrb[0].mxu0 %v2155
          %v2232 = vpop.f32.mrb[0].mxu0
          %v2233 = vadd.f32 0.0, %v2232
          %v2234 = vpop.f32.mrb[0].mxu0
          %2235 = vmatprep.mubr.f32.mxu0 0.0
          %2236 = vmatmul.mubr.f32.gmra.mrb[0].mxu0 %v2158
          %v2237 = vpop.f32.mrb[0].mxu0
          %v2238 = vadd.f32 0.0, %v2237
          %v2239 = vpop.f32.mrb[0].mxu0
          %2240 = vmatprep.mubr.f32.mxu0 0.0
          %2241 = vmatmul.mubr.f32.gmra.mrb[0].mxu0 %v2161
          %v2242 = vpop.f32.mrb[0].mxu0
          %v2243 = vadd.f32 0.0, %v2242
          %v2244 = vpop.f32.mrb[0].mxu0
          %2245 = vmatprep.mubr.f32.mxu0 0.0
          %2246 = vmatmul.mubr.f32.gmra.mrb[0].mxu0 %v2164
          %v2247 = vpop.f32.mrb[0].mxu0
          %v2248 = vadd.f32 0.0, %v2247
          %v2249 = vpop.f32.mrb[0].mxu0
          %2250 = vdwg.mxu0
          %v2252 = vsel %vm1242, %v1946, 0
          %v2255 = vsel %vm1242, %v1948, 0
          %v2258 = vsel %vm1242, %v1950, 0
          %v2261 = vsel %vm1242, %v1952, 0
          %2263 = vmatprep.subr.mxu0 0.0
          %2264 = vmatpush1.msra.mxu0 %v1357
          %2265 = vmatprep.subr.mxu0 0.0
          %2266 = vmatpush1.msra.mxu0 %v1358
          %2267 = vmatprep.subr.mxu0 0.0
          %2268 = vmatpush1.msra.mxu0 %v1359
          %2269 = vmatprep.subr.mxu0 0.0
          %2270 = vmatpush1.msra.mxu0 %v1360
          %2271 = vmatprep.subr.mxu0 0.0
          %2272 = vmatpush1.msra.mxu0 0.0
          %2273 = vmatprep.subr.mxu0 0.0
          %2274 = vmatpush1.msra.mxu0 0.0
          %2275 = vmatprep.subr.mxu0 0.0
          %2276 = vmatpush1.msra.mxu0 0.0
          %2277 = vmatprep.subr.mxu0 0.0
          %2278 = vmatpush1.msra.mxu0 0.0
          %2279 = vmatprep.subr.mxu0 0.0
          %2280 = vmatpush1.msra.mxu0 0.0
          %2281 = vmatprep.subr.mxu0 0.0
          %2282 = vmatpush1.msra.mxu0 0.0
          %2283 = vmatprep.subr.mxu0 0.0
          %2284 = vmatpush1.msra.mxu0 0.0
          %2285 = vmatprep.subr.mxu0 0.0
          %2286 = vmatpush1.msra.mxu0 0.0
          %2287 = vmatprep.subr.mxu0 0.0
          %2288 = vmatpush1.msra.mxu0 0.0
          %2289 = vmatprep.subr.mxu0 0.0
          %2290 = vmatpush1.msra.mxu0 0.0
          %2291 = vmatprep.subr.mxu0 0.0
          %2292 = vmatpush1.msra.mxu0 0.0
          %2293 = vmatprep.subr.mxu0 0.0
          %2294 = vmatpush1.msra.mxu0 0.0
          %2295 = vmatprep.subr.mxu0 0.0
          %2296 = vmatpush1.msra.mxu0 0.0
          %2297 = vmatprep.subr.mxu0 0.0
          %2298 = vmatpush1.msra.mxu0 0.0
          %2299 = vmatprep.subr.mxu0 0.0
          %2300 = vmatpush1.msra.mxu0 0.0
          %2301 = vmatprep.subr.mxu0 0.0
          %2302 = vmatpush1.msra.mxu0 0.0
          %2303 = vmatprep.subr.mxu0 0.0
          %2304 = vmatpush1.msra.mxu0 0.0
          %2305 = vmatprep.subr.mxu0 0.0
          %2306 = vmatpush1.msra.mxu0 0.0
          %2307 = vmatprep.subr.mxu0 0.0
          %2308 = vmatpush1.msra.mxu0 0.0
          %2309 = vmatprep.subr.mxu0 0.0
          %2310 = vmatpush1.msra.mxu0 0.0
          %2311 = vmatprep.subr.mxu0 0.0
          %2312 = vmatpush1.msra.mxu0 0.0
          %2313 = vmatprep.subr.mxu0 0.0
          %2314 = vmatpush1.msra.mxu0 0.0
          %2315 = vmatprep.subr.mxu0 0.0
          %2316 = vmatpush1.msra.mxu0 0.0
          %2317 = vmatprep.subr.mxu0 0.0
          %2318 = vmatpush1.msra.mxu0 0.0
          %2319 = vmatprep.subr.mxu0 0.0
          %2320 = vmatpush1.msra.mxu0 0.0
          %2321 = vmatprep.subr.mxu0 0.0
          %2322 = vmatpush1.msra.mxu0 0.0
          %2323 = vmatprep.subr.mxu0 0.0
          %2324 = vmatpush1.msra.mxu0 0.0
          %2325 = vmatprep.subr.mxu0 0.0
          %2326 = vmatpush1.msra.mxu0 0.0
          %2327 = vmatprep.mubr.f32.mxu0 0.0
          %2328 = vmatmul.mubr.f32.gmra.mrb[0].mxu0 %v2252
          %v2329 = vpop.f32.mrb[0].mxu0
          %v2330 = vadd.f32 0.0, %v2329
          %v2331 = vpop.f32.mrb[0].mxu0
          %2332 = vmatprep.mubr.f32.mxu0 0.0
          %2333 = vmatmul.mubr.f32.gmra.mrb[0].mxu0 %v2255
          %v2334 = vpop.f32.mrb[0].mxu0
          %v2335 = vadd.f32 0.0, %v2334
          %v2336 = vpop.f32.mrb[0].mxu0
          %2337 = vmatprep.mubr.f32.mxu0 0.0
          %2338 = vmatmul.mubr.f32.gmra.mrb[0].mxu0 %v2258
          %v2339 = vpop.f32.mrb[0].mxu0
          %v2340 = vadd.f32 0.0, %v2339
          %v2341 = vpop.f32.mrb[0].mxu0
          %2342 = vmatprep.mubr.f32.mxu0 0.0
          %2343 = vmatmul.mubr.f32.gmra.mrb[0].mxu0 %v2261
          %v2344 = vpop.f32.mrb[0].mxu0
          %v2345 = vadd.f32 0.0, %v2344
          %v2346 = vpop.f32.mrb[0].mxu0
          %2347 = vdwg.mxu0
          %v2349 = vsel %vm1242, %v1954, 0
          %v2352 = vsel %vm1242, %v1956, 0
          %v2355 = vsel %vm1242, %v1958, 0
          %v2358 = vsel %vm1242, %v1960, 0
          %2360 = vmatprep.subr.mxu0 0.0
          %2361 = vmatpush1.msra.mxu0 %v1361
          %2362 = vmatprep.subr.mxu0 0.0
          %2363 = vmatpush1.msra.mxu0 %v1362
          %2364 = vmatprep.subr.mxu0 0.0
          %2365 = vmatpush1.msra.mxu0 %v1363
          %2366 = vmatprep.subr.mxu0 0.0
          %2367 = vmatpush1.msra.mxu0 %v1364
          %2368 = vmatprep.subr.mxu0 0.0
          %2369 = vmatpush1.msra.mxu0 0.0
          %2370 = vmatprep.subr.mxu0 0.0
          %2371 = vmatpush1.msra.mxu0 0.0
          %2372 = vmatprep.subr.mxu0 0.0
          %2373 = vmatpush1.msra.mxu0 0.0
          %2374 = vmatprep.subr.mxu0 0.0
          %2375 = vmatpush1.msra.mxu0 0.0
          %2376 = vmatprep.subr.mxu0 0.0
          %2377 = vmatpush1.msra.mxu0 0.0
          %2378 = vmatprep.subr.mxu0 0.0
          %2379 = vmatpush1.msra.mxu0 0.0
          %2380 = vmatprep.subr.mxu0 0.0
          %2381 = vmatpush1.msra.mxu0 0.0
          %2382 = vmatprep.subr.mxu0 0.0
          %2383 = vmatpush1.msra.mxu0 0.0
          %2384 = vmatprep.subr.mxu0 0.0
          %2385 = vmatpush1.msra.mxu0 0.0
          %2386 = vmatprep.subr.mxu0 0.0
          %2387 = vmatpush1.msra.mxu0 0.0
          %2388 = vmatprep.subr.mxu0 0.0
          %2389 = vmatpush1.msra.mxu0 0.0
          %2390 = vmatprep.subr.mxu0 0.0
          %2391 = vmatpush1.msra.mxu0 0.0
          %2392 = vmatprep.subr.mxu0 0.0
          %2393 = vmatpush1.msra.mxu0 0.0
          %2394 = vmatprep.subr.mxu0 0.0
          %2395 = vmatpush1.msra.mxu0 0.0
          %2396 = vmatprep.subr.mxu0 0.0
          %2397 = vmatpush1.msra.mxu0 0.0
          %2398 = vmatprep.subr.mxu0 0.0
          %2399 = vmatpush1.msra.mxu0 0.0
          %2400 = vmatprep.subr.mxu0 0.0
          %2401 = vmatpush1.msra.mxu0 0.0
          %2402 = vmatprep.subr.mxu0 0.0
          %2403 = vmatpush1.msra.mxu0 0.0
          %2404 = vmatprep.subr.mxu0 0.0
          %2405 = vmatpush1.msra.mxu0 0.0
          %2406 = vmatprep.subr.mxu0 0.0
          %2407 = vmatpush1.msra.mxu0 0.0
          %2408 = vmatprep.subr.mxu0 0.0
          %2409 = vmatpush1.msra.mxu0 0.0
          %2410 = vmatprep.subr.mxu0 0.0
          %2411 = vmatpush1.msra.mxu0 0.0
          %2412 = vmatprep.subr.mxu0 0.0
          %2413 = vmatpush1.msra.mxu0 0.0
          %2414 = vmatprep.subr.mxu0 0.0
          %2415 = vmatpush1.msra.mxu0 0.0
          %2416 = vmatprep.subr.mxu0 0.0
          %2417 = vmatpush1.msra.mxu0 0.0
          %2418 = vmatprep.subr.mxu0 0.0
          %2419 = vmatpush1.msra.mxu0 0.0
          %2420 = vmatprep.subr.mxu0 0.0
          %2421 = vmatpush1.msra.mxu0 0.0
          %2422 = vmatprep.subr.mxu0 0.0
          %2423 = vmatpush1.msra.mxu0 0.0
          %2424 = vmatprep.mubr.f32.mxu0 0.0
          %2425 = vmatmul.mubr.f32.gmra.mrb[0].mxu0 %v2349
          %v2426 = vpop.f32.mrb[0].mxu0
          %v2427 = vadd.f32 0.0, %v2426
          %v2428 = vpop.f32.mrb[0].mxu0
          %2429 = vmatprep.mubr.f32.mxu0 0.0
          %2430 = vmatmul.mubr.f32.gmra.mrb[0].mxu0 %v2352
          %v2431 = vpop.f32.mrb[0].mxu0
          %v2432 = vadd.f32 0.0, %v2431
          %v2433 = vpop.f32.mrb[0].mxu0
          %2434 = vmatprep.mubr.f32.mxu0 0.0
          %2435 = vmatmul.mubr.f32.gmra.mrb[0].mxu0 %v2355
          %v2436 = vpop.f32.mrb[0].mxu0
          %v2437 = vadd.f32 0.0, %v2436
          %v2438 = vpop.f32.mrb[0].mxu0
          %2439 = vmatprep.mubr.f32.mxu0 0.0
          %2440 = vmatmul.mubr.f32.gmra.mrb[0].mxu0 %v2358
          %v2441 = vpop.f32.mrb[0].mxu0
          %v2442 = vadd.f32 0.0, %v2441
          %v2443 = vpop.f32.mrb[0].mxu0
          %2444 = vdwg.mxu0
          %v2445 = vadd.f32 %v2041, %v2136
          %v2446 = vadd.f32 %v2042, %v2141
          %v2447 = vadd.f32 %v2043, %v2146
          %v2448 = vadd.f32 %v2044, %v2151
          %v2449 = vadd.f32 %v2045, %v2233
          %v2450 = vadd.f32 %v2046, %v2238
          %v2451 = vadd.f32 %v2047, %v2243
          %v2452 = vadd.f32 %v2048, %v2248
          %v2453 = vadd.f32 %v2049, %v2330
          %v2454 = vadd.f32 %v2050, %v2335
          %v2455 = vadd.f32 %v2051, %v2340
          %v2456 = vadd.f32 %v2052, %v2345
          %v2457 = vadd.f32 %v2053, %v2427
          %v2458 = vadd.f32 %v2054, %v2432
          %v2459 = vadd.f32 %v2055, %v2437
          %v2460 = vadd.f32 %v2056, %v2442
        $region81: #{tpu_custom_call.1} parent=59 // loop_footer
          %s1279 = sadd.s32 %s1277, 1
        $region82: #{tpu_custom_call.1} parent=59 // loop_footer_branch
          %1276 = sbr.rel target = $region78
        $region83: #{tpu_custom_call.1} parent=59 // loop_exit
          _
        %v2461 = vlaneseq
        %v2462 = vand.u32 %v2461, 127
        %v2463 = vlaneseq
        %v2464 = vshrl.u32 %v2463, 7
        %v2465 = vadd.s32 %v2464, 8
        %v2466 = vadd.s32 %v2464, 16
        %v2467 = vadd.s32 %v2464, 24
        %vm2468 = vcmp.le.s32.totalorder %v2462, %v2464
        %vm2469 = vcmp.le.s32.totalorder %v2462, %v2465
        %vm2470 = vcmp.le.s32.totalorder %v2462, %v2466
        %vm2471 = vcmp.le.s32.totalorder %v2462, %v2467
        %v2473 = vsel %vm1242, %v985, 0
        %v2476 = vsel %vm1242, %v986, 0
        %v2479 = vsel %vm1242, %v987, 0
        %v2482 = vsel %vm1242, %v988, 0
        %v2485 = vsel %vm1242, %v1185, 0
        %v2488 = vsel %vm1242, %v1186, 0
        %v2491 = vsel %vm1242, %v1187, 0
        %v2494 = vsel %vm1242, %v1188, 0
        %2496 = vmatprep.subr.mxu0 0.0
        %2497 = vmatpush1.xpose.msra.mxu0 %v2485
        %2498 = vmatprep.subr.mxu0 0.0
        %2499 = vmatpush1.xpose.msra.mxu0 %v2488
        %2500 = vmatprep.subr.mxu0 0.0
        %2501 = vmatpush1.xpose.msra.mxu0 %v2491
        %2502 = vmatprep.subr.mxu0 0.0
        %2503 = vmatpush1.xpose.msra.mxu0 %v2494
        %2504 = vmatprep.subr.mxu0 0.0
        %2505 = vmatpush1.xpose.msra.mxu0 0.0
        %2506 = vmatprep.subr.mxu0 0.0
        %2507 = vmatpush1.xpose.msra.mxu0 0.0
        %2508 = vmatprep.subr.mxu0 0.0
        %2509 = vmatpush1.xpose.msra.mxu0 0.0
        %2510 = vmatprep.subr.mxu0 0.0
        %2511 = vmatpush1.xpose.msra.mxu0 0.0
        %2512 = vmatprep.subr.mxu0 0.0
        %2513 = vmatpush1.xpose.msra.mxu0 0.0
        %2514 = vmatprep.subr.mxu0 0.0
        %2515 = vmatpush1.xpose.msra.mxu0 0.0
        %2516 = vmatprep.subr.mxu0 0.0
        %2517 = vmatpush1.xpose.msra.mxu0 0.0
        %2518 = vmatprep.subr.mxu0 0.0
        %2519 = vmatpush1.xpose.msra.mxu0 0.0
        %2520 = vmatprep.subr.mxu0 0.0
        %2521 = vmatpush1.xpose.msra.mxu0 0.0
        %2522 = vmatprep.subr.mxu0 0.0
        %2523 = vmatpush1.xpose.msra.mxu0 0.0
        %2524 = vmatprep.subr.mxu0 0.0
        %2525 = vmatpush1.xpose.msra.mxu0 0.0
        %2526 = vmatprep.subr.mxu0 0.0
        %2527 = vmatpush1.xpose.msra.mxu0 0.0
        %2528 = vmatprep.subr.mxu0 0.0
        %2529 = vmatpush1.xpose.msra.mxu0 0.0
        %2530 = vmatprep.subr.mxu0 0.0
        %2531 = vmatpush1.xpose.msra.mxu0 0.0
        %2532 = vmatprep.subr.mxu0 0.0
        %2533 = vmatpush1.xpose.msra.mxu0 0.0
        %2534 = vmatprep.subr.mxu0 0.0
        %2535 = vmatpush1.xpose.msra.mxu0 0.0
        %2536 = vmatprep.subr.mxu0 0.0
        %2537 = vmatpush1.xpose.msra.mxu0 0.0
        %2538 = vmatprep.subr.mxu0 0.0
        %2539 = vmatpush1.xpose.msra.mxu0 0.0
        %2540 = vmatprep.subr.mxu0 0.0
        %2541 = vmatpush1.xpose.msra.mxu0 0.0
        %2542 = vmatprep.subr.mxu0 0.0
        %2543 = vmatpush1.xpose.msra.mxu0 0.0
        %2544 = vmatprep.subr.mxu0 0.0
        %2545 = vmatpush1.xpose.msra.mxu0 0.0
        %2546 = vmatprep.subr.mxu0 0.0
        %2547 = vmatpush1.xpose.msra.mxu0 0.0
        %2548 = vmatprep.subr.mxu0 0.0
        %2549 = vmatpush1.xpose.msra.mxu0 0.0
        %2550 = vmatprep.subr.mxu0 0.0
        %2551 = vmatpush1.xpose.msra.mxu0 0.0
        %2552 = vmatprep.subr.mxu0 0.0
        %2553 = vmatpush1.xpose.msra.mxu0 0.0
        %2554 = vmatprep.subr.mxu0 0.0
        %2555 = vmatpush1.xpose.msra.mxu0 0.0
        %2556 = vmatprep.subr.mxu0 0.0
        %2557 = vmatpush1.xpose.msra.mxu0 0.0
        %2558 = vmatprep.subr.mxu0 0.0
        %2559 = vmatpush1.xpose.msra.mxu0 0.0
        %2560 = vmatprep.mubr.f32.mxu0 0.0
        %2561 = vmatmul.mubr.f32.gmra.mrb[0].mxu0 %v2473
        %v2562 = vpop.f32.mrb[0].mxu0
        %v2563 = vadd.f32 0.0, %v2562
        %v2564 = vpop.f32.mrb[0].mxu0
        %2565 = vmatprep.mubr.f32.mxu0 0.0
        %2566 = vmatmul.mubr.f32.gmra.mrb[0].mxu0 %v2476
        %v2567 = vpop.f32.mrb[0].mxu0
        %v2568 = vadd.f32 0.0, %v2567
        %v2569 = vpop.f32.mrb[0].mxu0
        %2570 = vmatprep.mubr.f32.mxu0 0.0
        %2571 = vmatmul.mubr.f32.gmra.mrb[0].mxu0 %v2479
        %v2572 = vpop.f32.mrb[0].mxu0
        %v2573 = vadd.f32 0.0, %v2572
        %v2574 = vpop.f32.mrb[0].mxu0
        %2575 = vmatprep.mubr.f32.mxu0 0.0
        %2576 = vmatmul.mubr.f32.gmra.mrb[0].mxu0 %v2482
        %v2577 = vpop.f32.mrb[0].mxu0
        %v2578 = vadd.f32 0.0, %v2577
        %v2579 = vpop.f32.mrb[0].mxu0
        %2580 = vdwg.mxu0
        %v2582 = vsel %vm1242, %v989, 0
        %v2585 = vsel %vm1242, %v990, 0
        %v2588 = vsel %vm1242, %v991, 0
        %v2591 = vsel %vm1242, %v992, 0
        %v2594 = vsel %vm1242, %v1189, 0
        %v2597 = vsel %vm1242, %v1190, 0
        %v2600 = vsel %vm1242, %v1191, 0
        %v2603 = vsel %vm1242, %v1192, 0
        %2605 = vmatprep.subr.mxu0 0.0
        %2606 = vmatpush1.xpose.msra.mxu0 %v2594
        %2607 = vmatprep.subr.mxu0 0.0
        %2608 = vmatpush1.xpose.msra.mxu0 %v2597
        %2609 = vmatprep.subr.mxu0 0.0
        %2610 = vmatpush1.xpose.msra.mxu0 %v2600
        %2611 = vmatprep.subr.mxu0 0.0
        %2612 = vmatpush1.xpose.msra.mxu0 %v2603
        %2613 = vmatprep.subr.mxu0 0.0
        %2614 = vmatpush1.xpose.msra.mxu0 0.0
        %2615 = vmatprep.subr.mxu0 0.0
        %2616 = vmatpush1.xpose.msra.mxu0 0.0
        %2617 = vmatprep.subr.mxu0 0.0
        %2618 = vmatpush1.xpose.msra.mxu0 0.0
        %2619 = vmatprep.subr.mxu0 0.0
        %2620 = vmatpush1.xpose.msra.mxu0 0.0
        %2621 = vmatprep.subr.mxu0 0.0
        %2622 = vmatpush1.xpose.msra.mxu0 0.0
        %2623 = vmatprep.subr.mxu0 0.0
        %2624 = vmatpush1.xpose.msra.mxu0 0.0
        %2625 = vmatprep.subr.mxu0 0.0
        %2626 = vmatpush1.xpose.msra.mxu0 0.0
        %2627 = vmatprep.subr.mxu0 0.0
        %2628 = vmatpush1.xpose.msra.mxu0 0.0
        %2629 = vmatprep.subr.mxu0 0.0
        %2630 = vmatpush1.xpose.msra.mxu0 0.0
        %2631 = vmatprep.subr.mxu0 0.0
        %2632 = vmatpush1.xpose.msra.mxu0 0.0
        %2633 = vmatprep.subr.mxu0 0.0
        %2634 = vmatpush1.xpose.msra.mxu0 0.0
        %2635 = vmatprep.subr.mxu0 0.0
        %2636 = vmatpush1.xpose.msra.mxu0 0.0
        %2637 = vmatprep.subr.mxu0 0.0
        %2638 = vmatpush1.xpose.msra.mxu0 0.0
        %2639 = vmatprep.subr.mxu0 0.0
        %2640 = vmatpush1.xpose.msra.mxu0 0.0
        %2641 = vmatprep.subr.mxu0 0.0
        %2642 = vmatpush1.xpose.msra.mxu0 0.0
        %2643 = vmatprep.subr.mxu0 0.0
        %2644 = vmatpush1.xpose.msra.mxu0 0.0
        %2645 = vmatprep.subr.mxu0 0.0
        %2646 = vmatpush1.xpose.msra.mxu0 0.0
        %2647 = vmatprep.subr.mxu0 0.0
        %2648 = vmatpush1.xpose.msra.mxu0 0.0
        %2649 = vmatprep.subr.mxu0 0.0
        %2650 = vmatpush1.xpose.msra.mxu0 0.0
        %2651 = vmatprep.subr.mxu0 0.0
        %2652 = vmatpush1.xpose.msra.mxu0 0.0
        %2653 = vmatprep.subr.mxu0 0.0
        %2654 = vmatpush1.xpose.msra.mxu0 0.0
        %2655 = vmatprep.subr.mxu0 0.0
        %2656 = vmatpush1.xpose.msra.mxu0 0.0
        %2657 = vmatprep.subr.mxu0 0.0
        %2658 = vmatpush1.xpose.msra.mxu0 0.0
        %2659 = vmatprep.subr.mxu0 0.0
        %2660 = vmatpush1.xpose.msra.mxu0 0.0
        %2661 = vmatprep.subr.mxu0 0.0
        %2662 = vmatpush1.xpose.msra.mxu0 0.0
        %2663 = vmatprep.subr.mxu0 0.0
        %2664 = vmatpush1.xpose.msra.mxu0 0.0
        %2665 = vmatprep.subr.mxu0 0.0
        %2666 = vmatpush1.xpose.msra.mxu0 0.0
        %2667 = vmatprep.subr.mxu0 0.0
        %2668 = vmatpush1.xpose.msra.mxu0 0.0
        %2669 = vmatprep.mubr.f32.mxu0 0.0
        %2670 = vmatmul.mubr.f32.gmra.mrb[0].mxu0 %v2582
        %v2671 = vpop.f32.mrb[0].mxu0
        %v2672 = vadd.f32 0.0, %v2671
        %v2673 = vpop.f32.mrb[0].mxu0
        %2674 = vmatprep.mubr.f32.mxu0 0.0
        %2675 = vmatmul.mubr.f32.gmra.mrb[0].mxu0 %v2585
        %v2676 = vpop.f32.mrb[0].mxu0
        %v2677 = vadd.f32 0.0, %v2676
        %v2678 = vpop.f32.mrb[0].mxu0
        %2679 = vmatprep.mubr.f32.mxu0 0.0
        %2680 = vmatmul.mubr.f32.gmra.mrb[0].mxu0 %v2588
        %v2681 = vpop.f32.mrb[0].mxu0
        %v2682 = vadd.f32 0.0, %v2681
        %v2683 = vpop.f32.mrb[0].mxu0
        %2684 = vmatprep.mubr.f32.mxu0 0.0
        %2685 = vmatmul.mubr.f32.gmra.mrb[0].mxu0 %v2591
        %v2686 = vpop.f32.mrb[0].mxu0
        %v2687 = vadd.f32 0.0, %v2686
        %v2688 = vpop.f32.mrb[0].mxu0
        %2689 = vdwg.mxu0
        %v2691 = vsel %vm1242, %v993, 0
        %v2694 = vsel %vm1242, %v994, 0
        %v2697 = vsel %vm1242, %v995, 0
        %v2700 = vsel %vm1242, %v996, 0
        %v2703 = vsel %vm1242, %v1193, 0
        %v2706 = vsel %vm1242, %v1194, 0
        %v2709 = vsel %vm1242, %v1195, 0
        %v2712 = vsel %vm1242, %v1196, 0
        %2714 = vmatprep.subr.mxu0 0.0
        %2715 = vmatpush1.xpose.msra.mxu0 %v2703
        %2716 = vmatprep.subr.mxu0 0.0
        %2717 = vmatpush1.xpose.msra.mxu0 %v2706
        %2718 = vmatprep.subr.mxu0 0.0
        %2719 = vmatpush1.xpose.msra.mxu0 %v2709
        %2720 = vmatprep.subr.mxu0 0.0
        %2721 = vmatpush1.xpose.msra.mxu0 %v2712
        %2722 = vmatprep.subr.mxu0 0.0
        %2723 = vmatpush1.xpose.msra.mxu0 0.0
        %2724 = vmatprep.subr.mxu0 0.0
        %2725 = vmatpush1.xpose.msra.mxu0 0.0
        %2726 = vmatprep.subr.mxu0 0.0
        %2727 = vmatpush1.xpose.msra.mxu0 0.0
        %2728 = vmatprep.subr.mxu0 0.0
        %2729 = vmatpush1.xpose.msra.mxu0 0.0
        %2730 = vmatprep.subr.mxu0 0.0
        %2731 = vmatpush1.xpose.msra.mxu0 0.0
        %2732 = vmatprep.subr.mxu0 0.0
        %2733 = vmatpush1.xpose.msra.mxu0 0.0
        %2734 = vmatprep.subr.mxu0 0.0
        %2735 = vmatpush1.xpose.msra.mxu0 0.0
        %2736 = vmatprep.subr.mxu0 0.0
        %2737 = vmatpush1.xpose.msra.mxu0 0.0
        %2738 = vmatprep.subr.mxu0 0.0
        %2739 = vmatpush1.xpose.msra.mxu0 0.0
        %2740 = vmatprep.subr.mxu0 0.0
        %2741 = vmatpush1.xpose.msra.mxu0 0.0
        %2742 = vmatprep.subr.mxu0 0.0
        %2743 = vmatpush1.xpose.msra.mxu0 0.0
        %2744 = vmatprep.subr.mxu0 0.0
        %2745 = vmatpush1.xpose.msra.mxu0 0.0
        %2746 = vmatprep.subr.mxu0 0.0
        %2747 = vmatpush1.xpose.msra.mxu0 0.0
        %2748 = vmatprep.subr.mxu0 0.0
        %2749 = vmatpush1.xpose.msra.mxu0 0.0
        %2750 = vmatprep.subr.mxu0 0.0
        %2751 = vmatpush1.xpose.msra.mxu0 0.0
        %2752 = vmatprep.subr.mxu0 0.0
        %2753 = vmatpush1.xpose.msra.mxu0 0.0
        %2754 = vmatprep.subr.mxu0 0.0
        %2755 = vmatpush1.xpose.msra.mxu0 0.0
        %2756 = vmatprep.subr.mxu0 0.0
        %2757 = vmatpush1.xpose.msra.mxu0 0.0
        %2758 = vmatprep.subr.mxu0 0.0
        %2759 = vmatpush1.xpose.msra.mxu0 0.0
        %2760 = vmatprep.subr.mxu0 0.0
        %2761 = vmatpush1.xpose.msra.mxu0 0.0
        %2762 = vmatprep.subr.mxu0 0.0
        %2763 = vmatpush1.xpose.msra.mxu0 0.0
        %2764 = vmatprep.subr.mxu0 0.0
        %2765 = vmatpush1.xpose.msra.mxu0 0.0
        %2766 = vmatprep.subr.mxu0 0.0
        %2767 = vmatpush1.xpose.msra.mxu0 0.0
        %2768 = vmatprep.subr.mxu0 0.0
        %2769 = vmatpush1.xpose.msra.mxu0 0.0
        %2770 = vmatprep.subr.mxu0 0.0
        %2771 = vmatpush1.xpose.msra.mxu0 0.0
        %2772 = vmatprep.subr.mxu0 0.0
        %2773 = vmatpush1.xpose.msra.mxu0 0.0
        %2774 = vmatprep.subr.mxu0 0.0
        %2775 = vmatpush1.xpose.msra.mxu0 0.0
        %2776 = vmatprep.subr.mxu0 0.0
        %2777 = vmatpush1.xpose.msra.mxu0 0.0
        %2778 = vmatprep.mubr.f32.mxu0 0.0
        %2779 = vmatmul.mubr.f32.gmra.mrb[0].mxu0 %v2691
        %v2780 = vpop.f32.mrb[0].mxu0
        %v2781 = vadd.f32 0.0, %v2780
        %v2782 = vpop.f32.mrb[0].mxu0
        %2783 = vmatprep.mubr.f32.mxu0 0.0
        %2784 = vmatmul.mubr.f32.gmra.mrb[0].mxu0 %v2694
        %v2785 = vpop.f32.mrb[0].mxu0
        %v2786 = vadd.f32 0.0, %v2785
        %v2787 = vpop.f32.mrb[0].mxu0
        %2788 = vmatprep.mubr.f32.mxu0 0.0
        %2789 = vmatmul.mubr.f32.gmra.mrb[0].mxu0 %v2697
        %v2790 = vpop.f32.mrb[0].mxu0
        %v2791 = vadd.f32 0.0, %v2790
        %v2792 = vpop.f32.mrb[0].mxu0
        %2793 = vmatprep.mubr.f32.mxu0 0.0
        %2794 = vmatmul.mubr.f32.gmra.mrb[0].mxu0 %v2700
        %v2795 = vpop.f32.mrb[0].mxu0
        %v2796 = vadd.f32 0.0, %v2795
        %v2797 = vpop.f32.mrb[0].mxu0
        %2798 = vdwg.mxu0
        %v2800 = vsel %vm1242, %v997, 0
        %v2803 = vsel %vm1242, %v998, 0
        %v2806 = vsel %vm1242, %v999, 0
        %v2809 = vsel %vm1242, %v1000, 0
        %v2812 = vsel %vm1242, %v1197, 0
        %v2815 = vsel %vm1242, %v1198, 0
        %v2818 = vsel %vm1242, %v1199, 0
        %v2821 = vsel %vm1242, %v1200, 0
        %2823 = vmatprep.subr.mxu0 0.0
        %2824 = vmatpush1.xpose.msra.mxu0 %v2812
        %2825 = vmatprep.subr.mxu0 0.0
        %2826 = vmatpush1.xpose.msra.mxu0 %v2815
        %2827 = vmatprep.subr.mxu0 0.0
        %2828 = vmatpush1.xpose.msra.mxu0 %v2818
        %2829 = vmatprep.subr.mxu0 0.0
        %2830 = vmatpush1.xpose.msra.mxu0 %v2821
        %2831 = vmatprep.subr.mxu0 0.0
        %2832 = vmatpush1.xpose.msra.mxu0 0.0
        %2833 = vmatprep.subr.mxu0 0.0
        %2834 = vmatpush1.xpose.msra.mxu0 0.0
        %2835 = vmatprep.subr.mxu0 0.0
        %2836 = vmatpush1.xpose.msra.mxu0 0.0
        %2837 = vmatprep.subr.mxu0 0.0
        %2838 = vmatpush1.xpose.msra.mxu0 0.0
        %2839 = vmatprep.subr.mxu0 0.0
        %2840 = vmatpush1.xpose.msra.mxu0 0.0
        %2841 = vmatprep.subr.mxu0 0.0
        %2842 = vmatpush1.xpose.msra.mxu0 0.0
        %2843 = vmatprep.subr.mxu0 0.0
        %2844 = vmatpush1.xpose.msra.mxu0 0.0
        %2845 = vmatprep.subr.mxu0 0.0
        %2846 = vmatpush1.xpose.msra.mxu0 0.0
        %2847 = vmatprep.subr.mxu0 0.0
        %2848 = vmatpush1.xpose.msra.mxu0 0.0
        %2849 = vmatprep.subr.mxu0 0.0
        %2850 = vmatpush1.xpose.msra.mxu0 0.0
        %2851 = vmatprep.subr.mxu0 0.0
        %2852 = vmatpush1.xpose.msra.mxu0 0.0
        %2853 = vmatprep.subr.mxu0 0.0
        %2854 = vmatpush1.xpose.msra.mxu0 0.0
        %2855 = vmatprep.subr.mxu0 0.0
        %2856 = vmatpush1.xpose.msra.mxu0 0.0
        %2857 = vmatprep.subr.mxu0 0.0
        %2858 = vmatpush1.xpose.msra.mxu0 0.0
        %2859 = vmatprep.subr.mxu0 0.0
        %2860 = vmatpush1.xpose.msra.mxu0 0.0
        %2861 = vmatprep.subr.mxu0 0.0
        %2862 = vmatpush1.xpose.msra.mxu0 0.0
        %2863 = vmatprep.subr.mxu0 0.0
        %2864 = vmatpush1.xpose.msra.mxu0 0.0
        %2865 = vmatprep.subr.mxu0 0.0
        %2866 = vmatpush1.xpose.msra.mxu0 0.0
        %2867 = vmatprep.subr.mxu0 0.0
        %2868 = vmatpush1.xpose.msra.mxu0 0.0
        %2869 = vmatprep.subr.mxu0 0.0
        %2870 = vmatpush1.xpose.msra.mxu0 0.0
        %2871 = vmatprep.subr.mxu0 0.0
        %2872 = vmatpush1.xpose.msra.mxu0 0.0
        %2873 = vmatprep.subr.mxu0 0.0
        %2874 = vmatpush1.xpose.msra.mxu0 0.0
        %2875 = vmatprep.subr.mxu0 0.0
        %2876 = vmatpush1.xpose.msra.mxu0 0.0
        %2877 = vmatprep.subr.mxu0 0.0
        %2878 = vmatpush1.xpose.msra.mxu0 0.0
        %2879 = vmatprep.subr.mxu0 0.0
        %2880 = vmatpush1.xpose.msra.mxu0 0.0
        %2881 = vmatprep.subr.mxu0 0.0
        %2882 = vmatpush1.xpose.msra.mxu0 0.0
        %2883 = vmatprep.subr.mxu0 0.0
        %2884 = vmatpush1.xpose.msra.mxu0 0.0
        %2885 = vmatprep.subr.mxu0 0.0
        %2886 = vmatpush1.xpose.msra.mxu0 0.0
        %2887 = vmatprep.mubr.f32.mxu0 0.0
        %2888 = vmatmul.mubr.f32.gmra.mrb[0].mxu0 %v2800
        %v2889 = vpop.f32.mrb[0].mxu0
        %v2890 = vadd.f32 0.0, %v2889
        %v2891 = vpop.f32.mrb[0].mxu0
        %2892 = vmatprep.mubr.f32.mxu0 0.0
        %2893 = vmatmul.mubr.f32.gmra.mrb[0].mxu0 %v2803
        %v2894 = vpop.f32.mrb[0].mxu0
        %v2895 = vadd.f32 0.0, %v2894
        %v2896 = vpop.f32.mrb[0].mxu0
        %2897 = vmatprep.mubr.f32.mxu0 0.0
        %2898 = vmatmul.mubr.f32.gmra.mrb[0].mxu0 %v2806
        %v2899 = vpop.f32.mrb[0].mxu0
        %v2900 = vadd.f32 0.0, %v2899
        %v2901 = vpop.f32.mrb[0].mxu0
        %2902 = vmatprep.mubr.f32.mxu0 0.0
        %2903 = vmatmul.mubr.f32.gmra.mrb[0].mxu0 %v2809
        %v2904 = vpop.f32.mrb[0].mxu0
        %v2905 = vadd.f32 0.0, %v2904
        %v2906 = vpop.f32.mrb[0].mxu0
        %2907 = vdwg.mxu0
        %v2908 = vsel %vm2468, 1, 0
        %v2909 = vsel %vm2469, 1, 0
        %v2910 = vsel %vm2470, 1, 0
        %v2911 = vsel %vm2471, 1, 0
        %vm2912 = vcmp.eq.s32.totalorder %v2908, 1
        %vm2913 = vcmp.eq.s32.totalorder %v2909, 1
        %vm2914 = vcmp.eq.s32.totalorder %v2910, 1
        %vm2915 = vcmp.eq.s32.totalorder %v2911, 1
        %v2916 = vsel %vm2912, %v2563, -1e+30
        %v2917 = vsel %vm2913, %v2568, -1e+30
        %v2918 = vsel %vm2914, %v2573, -1e+30
        %v2919 = vsel %vm2915, %v2578, -1e+30
        %v2920 = vsel %vm2912, %v2672, -1e+30
        %v2921 = vsel %vm2913, %v2677, -1e+30
        %v2922 = vsel %vm2914, %v2682, -1e+30
        %v2923 = vsel %vm2915, %v2687, -1e+30
        %v2924 = vsel %vm2912, %v2781, -1e+30
        %v2925 = vsel %vm2913, %v2786, -1e+30
        %v2926 = vsel %vm2914, %v2791, -1e+30
        %v2927 = vsel %vm2915, %v2796, -1e+30
        %v2928 = vsel %vm2912, %v2890, -1e+30
        %v2929 = vsel %vm2913, %v2895, -1e+30
        %v2930 = vsel %vm2914, %v2900, -1e+30
        %v2931 = vsel %vm2915, %v2905, -1e+30
        %v2932 = vsel %vm1242, %v2916, -inf
        %2933 = vmax.xlane.f32.xlu0 %v2932
        %v2934 = vpop.xlane.xlu0 %2933
        %v2935 = vsel %vm1242, %v2917, -inf
        %2936 = vmax.xlane.f32.xlu0 %v2935
        %v2937 = vpop.xlane.xlu0 %2936
        %v2938 = vsel %vm1242, %v2918, -inf
        %2939 = vmax.xlane.f32.xlu0 %v2938
        %v2940 = vpop.xlane.xlu0 %2939
        %v2941 = vsel %vm1242, %v2919, -inf
        %2942 = vmax.xlane.f32.xlu0 %v2941
        %v2943 = vpop.xlane.xlu0 %2942
        %v2944 = vsel %vm1242, %v2920, -inf
        %2945 = vmax.xlane.f32.xlu0 %v2944
        %v2946 = vpop.xlane.xlu0 %2945
        %v2947 = vsel %vm1242, %v2921, -inf
        %2948 = vmax.xlane.f32.xlu0 %v2947
        %v2949 = vpop.xlane.xlu0 %2948
        %v2950 = vsel %vm1242, %v2922, -inf
        %2951 = vmax.xlane.f32.xlu0 %v2950
        %v2952 = vpop.xlane.xlu0 %2951
        %v2953 = vsel %vm1242, %v2923, -inf
        %2954 = vmax.xlane.f32.xlu0 %v2953
        %v2955 = vpop.xlane.xlu0 %2954
        %v2956 = vsel %vm1242, %v2924, -inf
        %2957 = vmax.xlane.f32.xlu0 %v2956
        %v2958 = vpop.xlane.xlu0 %2957
        %v2959 = vsel %vm1242, %v2925, -inf
        %2960 = vmax.xlane.f32.xlu0 %v2959
        %v2961 = vpop.xlane.xlu0 %2960
        %v2962 = vsel %vm1242, %v2926, -inf
        %2963 = vmax.xlane.f32.xlu0 %v2962
        %v2964 = vpop.xlane.xlu0 %2963
        %v2965 = vsel %vm1242, %v2927, -inf
        %2966 = vmax.xlane.f32.xlu0 %v2965
        %v2967 = vpop.xlane.xlu0 %2966
        %v2968 = vsel %vm1242, %v2928, -inf
        %2969 = vmax.xlane.f32.xlu0 %v2968
        %v2970 = vpop.xlane.xlu0 %2969
        %v2971 = vsel %vm1242, %v2929, -inf
        %2972 = vmax.xlane.f32.xlu0 %v2971
        %v2973 = vpop.xlane.xlu0 %2972
        %v2974 = vsel %vm1242, %v2930, -inf
        %2975 = vmax.xlane.f32.xlu0 %v2974
        %v2976 = vpop.xlane.xlu0 %2975
        %v2977 = vsel %vm1242, %v2931, -inf
        %2978 = vmax.xlane.f32.xlu0 %v2977
        %v2979 = vpop.xlane.xlu0 %2978
        %v2980 = vmax.f32 %v1282, %v2934
        %v2981 = vmax.f32 %v1283, %v2937
        %v2982 = vmax.f32 %v1284, %v2940
        %v2983 = vmax.f32 %v1285, %v2943
        %v2984 = vmax.f32 %v1286, %v2946
        %v2985 = vmax.f32 %v1287, %v2949
        %v2986 = vmax.f32 %v1288, %v2952
        %v2987 = vmax.f32 %v1289, %v2955
        %v2988 = vmax.f32 %v1290, %v2958
        %v2989 = vmax.f32 %v1291, %v2961
        %v2990 = vmax.f32 %v1292, %v2964
        %v2991 = vmax.f32 %v1293, %v2967
        %v2992 = vmax.f32 %v1294, %v2970
        %v2993 = vmax.f32 %v1295, %v2973
        %v2994 = vmax.f32 %v1296, %v2976
        %v2995 = vmax.f32 %v1297, %v2979
        %v2996 = vsub.f32 %v1282, %v2980
        %v2997 = vsub.f32 %v1283, %v2981
        %v2998 = vsub.f32 %v1284, %v2982
        %v2999 = vsub.f32 %v1285, %v2983
        %v3000 = vsub.f32 %v1286, %v2984
        %v3001 = vsub.f32 %v1287, %v2985
        %v3002 = vsub.f32 %v1288, %v2986
        %v3003 = vsub.f32 %v1289, %v2987
        %v3004 = vsub.f32 %v1290, %v2988
        %v3005 = vsub.f32 %v1291, %v2989
        %v3006 = vsub.f32 %v1292, %v2990
        %v3007 = vsub.f32 %v1293, %v2991
        %v3008 = vsub.f32 %v1294, %v2992
        %v3009 = vsub.f32 %v1295, %v2993
        %v3010 = vsub.f32 %v1296, %v2994
        %v3011 = vsub.f32 %v1297, %v2995
        %v3012 = vmul.f32 %v2996, 1.442695
        %v3013 = vpow.pop %v3012
        %v3014 = vmul.f32 %v2997, 1.442695
        %v3015 = vpow.pop %v3014
        %v3016 = vmul.f32 %v2998, 1.442695
        %v3017 = vpow.pop %v3016
        %v3018 = vmul.f32 %v2999, 1.442695
        %v3019 = vpow.pop %v3018
        %v3020 = vmul.f32 %v3000, 1.442695
        %v3021 = vpow.pop %v3020
        %v3022 = vmul.f32 %v3001, 1.442695
        %v3023 = vpow.pop %v3022
        %v3024 = vmul.f32 %v3002, 1.442695
        %v3025 = vpow.pop %v3024
        %v3026 = vmul.f32 %v3003, 1.442695
        %v3027 = vpow.pop %v3026
        %v3028 = vmul.f32 %v3004, 1.442695
        %v3029 = vpow.pop %v3028
        %v3030 = vmul.f32 %v3005, 1.442695
        %v3031 = vpow.pop %v3030
        %v3032 = vmul.f32 %v3006, 1.442695
        %v3033 = vpow.pop %v3032
        %v3034 = vmul.f32 %v3007, 1.442695
        %v3035 = vpow.pop %v3034
        %v3036 = vmul.f32 %v3008, 1.442695
        %v3037 = vpow.pop %v3036
        %v3038 = vmul.f32 %v3009, 1.442695
        %v3039 = vpow.pop %v3038
        %v3040 = vmul.f32 %v3010, 1.442695
        %v3041 = vpow.pop %v3040
        %v3042 = vmul.f32 %v3011, 1.442695
        %v3043 = vpow.pop %v3042
        %v3044 = vsub.f32 %v2916, %v2980
        %v3045 = vsub.f32 %v2917, %v2981
        %v3046 = vsub.f32 %v2918, %v2982
        %v3047 = vsub.f32 %v2919, %v2983
        %v3048 = vsub.f32 %v2920, %v2984
        %v3049 = vsub.f32 %v2921, %v2985
        %v3050 = vsub.f32 %v2922, %v2986
        %v3051 = vsub.f32 %v2923, %v2987
        %v3052 = vsub.f32 %v2924, %v2988
        %v3053 = vsub.f32 %v2925, %v2989
        %v3054 = vsub.f32 %v2926, %v2990
        %v3055 = vsub.f32 %v2927, %v2991
        %v3056 = vsub.f32 %v2928, %v2992
        %v3057 = vsub.f32 %v2929, %v2993
        %v3058 = vsub.f32 %v2930, %v2994
        %v3059 = vsub.f32 %v2931, %v2995
        %v3060 = vmul.f32 %v3044, 1.442695
        %v3061 = vpow.pop %v3060
        %v3062 = vmul.f32 %v3045, 1.442695
        %v3063 = vpow.pop %v3062
        %v3064 = vmul.f32 %v3046, 1.442695
        %v3065 = vpow.pop %v3064
        %v3066 = vmul.f32 %v3047, 1.442695
        %v3067 = vpow.pop %v3066
        %v3068 = vmul.f32 %v3048, 1.442695
        %v3069 = vpow.pop %v3068
        %v3070 = vmul.f32 %v3049, 1.442695
        %v3071 = vpow.pop %v3070
        %v3072 = vmul.f32 %v3050, 1.442695
        %v3073 = vpow.pop %v3072
        %v3074 = vmul.f32 %v3051, 1.442695
        %v3075 = vpow.pop %v3074
        %v3076 = vmul.f32 %v3052, 1.442695
        %v3077 = vpow.pop %v3076
        %v3078 = vmul.f32 %v3053, 1.442695
        %v3079 = vpow.pop %v3078
        %v3080 = vmul.f32 %v3054, 1.442695
        %v3081 = vpow.pop %v3080
        %v3082 = vmul.f32 %v3055, 1.442695
        %v3083 = vpow.pop %v3082
        %v3084 = vmul.f32 %v3056, 1.442695
        %v3085 = vpow.pop %v3084
        %v3086 = vmul.f32 %v3057, 1.442695
        %v3087 = vpow.pop %v3086
        %v3088 = vmul.f32 %v3058, 1.442695
        %v3089 = vpow.pop %v3088
        %v3090 = vmul.f32 %v3059, 1.442695
        %v3091 = vpow.pop %v3090
        %v3092 = vmul.f32 %v3013, %v1298
        %v3093 = vmul.f32 %v3015, %v1299
        %v3094 = vmul.f32 %v3017, %v1300
        %v3095 = vmul.f32 %v3019, %v1301
        %v3096 = vmul.f32 %v3021, %v1302
        %v3097 = vmul.f32 %v3023, %v1303
        %v3098 = vmul.f32 %v3025, %v1304
        %v3099 = vmul.f32 %v3027, %v1305
        %v3100 = vmul.f32 %v3029, %v1306
        %v3101 = vmul.f32 %v3031, %v1307
        %v3102 = vmul.f32 %v3033, %v1308
        %v3103 = vmul.f32 %v3035, %v1309
        %v3104 = vmul.f32 %v3037, %v1310
        %v3105 = vmul.f32 %v3039, %v1311
        %v3106 = vmul.f32 %v3041, %v1312
        %v3107 = vmul.f32 %v3043, %v1313
        %v3108 = vsel %vm1242, %v3061, 0.0
        %3109 = vadd.xlane.f32.xlu0 %v3108
        %v3110 = vpop.xlane.xlu0 %3109
        %v3111 = vsel %vm1242, %v3063, 0.0
        %3112 = vadd.xlane.f32.xlu0 %v3111
        %v3113 = vpop.xlane.xlu0 %3112
        %v3114 = vsel %vm1242, %v3065, 0.0
        %3115 = vadd.xlane.f32.xlu0 %v3114
        %v3116 = vpop.xlane.xlu0 %3115
        %v3117 = vsel %vm1242, %v3067, 0.0
        %3118 = vadd.xlane.f32.xlu0 %v3117
        %v3119 = vpop.xlane.xlu0 %3118
        %v3120 = vsel %vm1242, %v3069, 0.0
        %3121 = vadd.xlane.f32.xlu0 %v3120
        %v3122 = vpop.xlane.xlu0 %3121
        %v3123 = vsel %vm1242, %v3071, 0.0
        %3124 = vadd.xlane.f32.xlu0 %v3123
        %v3125 = vpop.xlane.xlu0 %3124
        %v3126 = vsel %vm1242, %v3073, 0.0
        %3127 = vadd.xlane.f32.xlu0 %v3126
        %v3128 = vpop.xlane.xlu0 %3127
        %v3129 = vsel %vm1242, %v3075, 0.0
        %3130 = vadd.xlane.f32.xlu0 %v3129
        %v3131 = vpop.xlane.xlu0 %3130
        %v3132 = vsel %vm1242, %v3077, 0.0
        %3133 = vadd.xlane.f32.xlu0 %v3132
        %v3134 = vpop.xlane.xlu0 %3133
        %v3135 = vsel %vm1242, %v3079, 0.0
        %3136 = vadd.xlane.f32.xlu0 %v3135
        %v3137 = vpop.xlane.xlu0 %3136
        %v3138 = vsel %vm1242, %v3081, 0.0
        %3139 = vadd.xlane.f32.xlu0 %v3138
        %v3140 = vpop.xlane.xlu0 %3139
        %v3141 = vsel %vm1242, %v3083, 0.0
        %3142 = vadd.xlane.f32.xlu0 %v3141
        %v3143 = vpop.xlane.xlu0 %3142
        %v3144 = vsel %vm1242, %v3085, 0.0
        %3145 = vadd.xlane.f32.xlu0 %v3144
        %v3146 = vpop.xlane.xlu0 %3145
        %v3147 = vsel %vm1242, %v3087, 0.0
        %3148 = vadd.xlane.f32.xlu0 %v3147
        %v3149 = vpop.xlane.xlu0 %3148
        %v3150 = vsel %vm1242, %v3089, 0.0
        %3151 = vadd.xlane.f32.xlu0 %v3150
        %v3152 = vpop.xlane.xlu0 %3151
        %v3153 = vsel %vm1242, %v3091, 0.0
        %3154 = vadd.xlane.f32.xlu0 %v3153
        %v3155 = vpop.xlane.xlu0 %3154
        %v3156 = vadd.f32 %v3092, %v3110
        %v3157 = vadd.f32 %v3093, %v3113
        %v3158 = vadd.f32 %v3094, %v3116
        %v3159 = vadd.f32 %v3095, %v3119
        %v3160 = vadd.f32 %v3096, %v3122
        %v3161 = vadd.f32 %v3097, %v3125
        %v3162 = vadd.f32 %v3098, %v3128
        %v3163 = vadd.f32 %v3099, %v3131
        %v3164 = vadd.f32 %v3100, %v3134
        %v3165 = vadd.f32 %v3101, %v3137
        %v3166 = vadd.f32 %v3102, %v3140
        %v3167 = vadd.f32 %v3103, %v3143
        %v3168 = vadd.f32 %v3104, %v3146
        %v3169 = vadd.f32 %v3105, %v3149
        %v3170 = vadd.f32 %v3106, %v3152
        %v3171 = vadd.f32 %v3107, %v3155
        %v3172 = vmul.f32 %v3013, %v1314
        %v3173 = vmul.f32 %v3015, %v1315
        %v3174 = vmul.f32 %v3017, %v1316
        %v3175 = vmul.f32 %v3019, %v1317
        %v3176 = vmul.f32 %v3021, %v1318
        %v3177 = vmul.f32 %v3023, %v1319
        %v3178 = vmul.f32 %v3025, %v1320
        %v3179 = vmul.f32 %v3027, %v1321
        %v3180 = vmul.f32 %v3029, %v1322
        %v3181 = vmul.f32 %v3031, %v1323
        %v3182 = vmul.f32 %v3033, %v1324
        %v3183 = vmul.f32 %v3035, %v1325
        %v3184 = vmul.f32 %v3037, %v1326
        %v3185 = vmul.f32 %v3039, %v1327
        %v3186 = vmul.f32 %v3041, %v1328
        %v3187 = vmul.f32 %v3043, %v1329
        %v3189 = vsel %vm1242, %v3061, 0
        %v3192 = vsel %vm1242, %v3063, 0
        %v3195 = vsel %vm1242, %v3065, 0
        %v3198 = vsel %vm1242, %v3067, 0
        %3200 = vmatprep.subr.mxu0 0.0
        %3201 = vmatpush1.msra.mxu0 %v758
        %3202 = vmatprep.subr.mxu0 0.0
        %3203 = vmatpush1.msra.mxu0 %v763
        %3204 = vmatprep.subr.mxu0 0.0
        %3205 = vmatpush1.msra.mxu0 %v768
        %3206 = vmatprep.subr.mxu0 0.0
        %3207 = vmatpush1.msra.mxu0 %v773
        %3208 = vmatprep.subr.mxu0 0.0
        %3209 = vmatpush1.msra.mxu0 0.0
        %3210 = vmatprep.subr.mxu0 0.0
        %3211 = vmatpush1.msra.mxu0 0.0
        %3212 = vmatprep.subr.mxu0 0.0
        %3213 = vmatpush1.msra.mxu0 0.0
        %3214 = vmatprep.subr.mxu0 0.0
        %3215 = vmatpush1.msra.mxu0 0.0
        %3216 = vmatprep.subr.mxu0 0.0
        %3217 = vmatpush1.msra.mxu0 0.0
        %3218 = vmatprep.subr.mxu0 0.0
        %3219 = vmatpush1.msra.mxu0 0.0
        %3220 = vmatprep.subr.mxu0 0.0
        %3221 = vmatpush1.msra.mxu0 0.0
        %3222 = vmatprep.subr.mxu0 0.0
        %3223 = vmatpush1.msra.mxu0 0.0
        %3224 = vmatprep.subr.mxu0 0.0
        %3225 = vmatpush1.msra.mxu0 0.0
        %3226 = vmatprep.subr.mxu0 0.0
        %3227 = vmatpush1.msra.mxu0 0.0
        %3228 = vmatprep.subr.mxu0 0.0
        %3229 = vmatpush1.msra.mxu0 0.0
        %3230 = vmatprep.subr.mxu0 0.0
        %3231 = vmatpush1.msra.mxu0 0.0
        %3232 = vmatprep.subr.mxu0 0.0
        %3233 = vmatpush1.msra.mxu0 0.0
        %3234 = vmatprep.subr.mxu0 0.0
        %3235 = vmatpush1.msra.mxu0 0.0
        %3236 = vmatprep.subr.mxu0 0.0
        %3237 = vmatpush1.msra.mxu0 0.0
        %3238 = vmatprep.subr.mxu0 0.0
        %3239 = vmatpush1.msra.mxu0 0.0
        %3240 = vmatprep.subr.mxu0 0.0
        %3241 = vmatpush1.msra.mxu0 0.0
        %3242 = vmatprep.subr.mxu0 0.0
        %3243 = vmatpush1.msra.mxu0 0.0
        %3244 = vmatprep.subr.mxu0 0.0
        %3245 = vmatpush1.msra.mxu0 0.0
        %3246 = vmatprep.subr.mxu0 0.0
        %3247 = vmatpush1.msra.mxu0 0.0
        %3248 = vmatprep.subr.mxu0 0.0
        %3249 = vmatpush1.msra.mxu0 0.0
        %3250 = vmatprep.subr.mxu0 0.0
        %3251 = vmatpush1.msra.mxu0 0.0
        %3252 = vmatprep.subr.mxu0 0.0
        %3253 = vmatpush1.msra.mxu0 0.0
        %3254 = vmatprep.subr.mxu0 0.0
        %3255 = vmatpush1.msra.mxu0 0.0
        %3256 = vmatprep.subr.mxu0 0.0
        %3257 = vmatpush1.msra.mxu0 0.0
        %3258 = vmatprep.subr.mxu0 0.0
        %3259 = vmatpush1.msra.mxu0 0.0
        %3260 = vmatprep.subr.mxu0 0.0
        %3261 = vmatpush1.msra.mxu0 0.0
        %3262 = vmatprep.subr.mxu0 0.0
        %3263 = vmatpush1.msra.mxu0 0.0
        %3264 = vmatprep.mubr.f32.mxu0 0.0
        %3265 = vmatmul.mubr.f32.gmra.mrb[0].mxu0 %v3189
        %v3266 = vpop.f32.mrb[0].mxu0
        %v3267 = vadd.f32 0.0, %v3266
        %v3268 = vpop.f32.mrb[0].mxu0
        %3269 = vmatprep.mubr.f32.mxu0 0.0
        %3270 = vmatmul.mubr.f32.gmra.mrb[0].mxu0 %v3192
        %v3271 = vpop.f32.mrb[0].mxu0
        %v3272 = vadd.f32 0.0, %v3271
        %v3273 = vpop.f32.mrb[0].mxu0
        %3274 = vmatprep.mubr.f32.mxu0 0.0
        %3275 = vmatmul.mubr.f32.gmra.mrb[0].mxu0 %v3195
        %v3276 = vpop.f32.mrb[0].mxu0
        %v3277 = vadd.f32 0.0, %v3276
        %v3278 = vpop.f32.mrb[0].mxu0
        %3279 = vmatprep.mubr.f32.mxu0 0.0
        %3280 = vmatmul.mubr.f32.gmra.mrb[0].mxu0 %v3198
        %v3281 = vpop.f32.mrb[0].mxu0
        %v3282 = vadd.f32 0.0, %v3281
        %v3283 = vpop.f32.mrb[0].mxu0
        %3284 = vdwg.mxu0
        %v3286 = vsel %vm1242, %v3069, 0
        %v3289 = vsel %vm1242, %v3071, 0
        %v3292 = vsel %vm1242, %v3073, 0
        %v3295 = vsel %vm1242, %v3075, 0
        %3297 = vmatprep.subr.mxu0 0.0
        %3298 = vmatpush1.msra.mxu0 %v1206
        %3299 = vmatprep.subr.mxu0 0.0
        %3300 = vmatpush1.msra.mxu0 %v1208
        %3301 = vmatprep.subr.mxu0 0.0
        %3302 = vmatpush1.msra.mxu0 %v1210
        %3303 = vmatprep.subr.mxu0 0.0
        %3304 = vmatpush1.msra.mxu0 %v1212
        %3305 = vmatprep.subr.mxu0 0.0
        %3306 = vmatpush1.msra.mxu0 0.0
        %3307 = vmatprep.subr.mxu0 0.0
        %3308 = vmatpush1.msra.mxu0 0.0
        %3309 = vmatprep.subr.mxu0 0.0
        %3310 = vmatpush1.msra.mxu0 0.0
        %3311 = vmatprep.subr.mxu0 0.0
        %3312 = vmatpush1.msra.mxu0 0.0
        %3313 = vmatprep.subr.mxu0 0.0
        %3314 = vmatpush1.msra.mxu0 0.0
        %3315 = vmatprep.subr.mxu0 0.0
        %3316 = vmatpush1.msra.mxu0 0.0
        %3317 = vmatprep.subr.mxu0 0.0
        %3318 = vmatpush1.msra.mxu0 0.0
        %3319 = vmatprep.subr.mxu0 0.0
        %3320 = vmatpush1.msra.mxu0 0.0
        %3321 = vmatprep.subr.mxu0 0.0
        %3322 = vmatpush1.msra.mxu0 0.0
        %3323 = vmatprep.subr.mxu0 0.0
        %3324 = vmatpush1.msra.mxu0 0.0
        %3325 = vmatprep.subr.mxu0 0.0
        %3326 = vmatpush1.msra.mxu0 0.0
        %3327 = vmatprep.subr.mxu0 0.0
        %3328 = vmatpush1.msra.mxu0 0.0
        %3329 = vmatprep.subr.mxu0 0.0
        %3330 = vmatpush1.msra.mxu0 0.0
        %3331 = vmatprep.subr.mxu0 0.0
        %3332 = vmatpush1.msra.mxu0 0.0
        %3333 = vmatprep.subr.mxu0 0.0
        %3334 = vmatpush1.msra.mxu0 0.0
        %3335 = vmatprep.subr.mxu0 0.0
        %3336 = vmatpush1.msra.mxu0 0.0
        %3337 = vmatprep.subr.mxu0 0.0
        %3338 = vmatpush1.msra.mxu0 0.0
        %3339 = vmatprep.subr.mxu0 0.0
        %3340 = vmatpush1.msra.mxu0 0.0
        %3341 = vmatprep.subr.mxu0 0.0
        %3342 = vmatpush1.msra.mxu0 0.0
        %3343 = vmatprep.subr.mxu0 0.0
        %3344 = vmatpush1.msra.mxu0 0.0
        %3345 = vmatprep.subr.mxu0 0.0
        %3346 = vmatpush1.msra.mxu0 0.0
        %3347 = vmatprep.subr.mxu0 0.0
        %3348 = vmatpush1.msra.mxu0 0.0
        %3349 = vmatprep.subr.mxu0 0.0
        %3350 = vmatpush1.msra.mxu0 0.0
        %3351 = vmatprep.subr.mxu0 0.0
        %3352 = vmatpush1.msra.mxu0 0.0
        %3353 = vmatprep.subr.mxu0 0.0
        %3354 = vmatpush1.msra.mxu0 0.0
        %3355 = vmatprep.subr.mxu0 0.0
        %3356 = vmatpush1.msra.mxu0 0.0
        %3357 = vmatprep.subr.mxu0 0.0
        %3358 = vmatpush1.msra.mxu0 0.0
        %3359 = vmatprep.subr.mxu0 0.0
        %3360 = vmatpush1.msra.mxu0 0.0
        %3361 = vmatprep.mubr.f32.mxu0 0.0
        %3362 = vmatmul.mubr.f32.gmra.mrb[0].mxu0 %v3286
        %v3363 = vpop.f32.mrb[0].mxu0
        %v3364 = vadd.f32 0.0, %v3363
        %v3365 = vpop.f32.mrb[0].mxu0
        %3366 = vmatprep.mubr.f32.mxu0 0.0
        %3367 = vmatmul.mubr.f32.gmra.mrb[0].mxu0 %v3289
        %v3368 = vpop.f32.mrb[0].mxu0
        %v3369 = vadd.f32 0.0, %v3368
        %v3370 = vpop.f32.mrb[0].mxu0
        %3371 = vmatprep.mubr.f32.mxu0 0.0
        %3372 = vmatmul.mubr.f32.gmra.mrb[0].mxu0 %v3292
        %v3373 = vpop.f32.mrb[0].mxu0
        %v3374 = vadd.f32 0.0, %v3373
        %v3375 = vpop.f32.mrb[0].mxu0
        %3376 = vmatprep.mubr.f32.mxu0 0.0
        %3377 = vmatmul.mubr.f32.gmra.mrb[0].mxu0 %v3295
        %v3378 = vpop.f32.mrb[0].mxu0
        %v3379 = vadd.f32 0.0, %v3378
        %v3380 = vpop.f32.mrb[0].mxu0
        %3381 = vdwg.mxu0
        %v3383 = vsel %vm1242, %v3077, 0
        %v3386 = vsel %vm1242, %v3079, 0
        %v3389 = vsel %vm1242, %v3081, 0
        %v3392 = vsel %vm1242, %v3083, 0
        %3394 = vmatprep.subr.mxu0 0.0
        %3395 = vmatpush1.msra.mxu0 %v1218
        %3396 = vmatprep.subr.mxu0 0.0
        %3397 = vmatpush1.msra.mxu0 %v1220
        %3398 = vmatprep.subr.mxu0 0.0
        %3399 = vmatpush1.msra.mxu0 %v1222
        %3400 = vmatprep.subr.mxu0 0.0
        %3401 = vmatpush1.msra.mxu0 %v1224
        %3402 = vmatprep.subr.mxu0 0.0
        %3403 = vmatpush1.msra.mxu0 0.0
        %3404 = vmatprep.subr.mxu0 0.0
        %3405 = vmatpush1.msra.mxu0 0.0
        %3406 = vmatprep.subr.mxu0 0.0
        %3407 = vmatpush1.msra.mxu0 0.0
        %3408 = vmatprep.subr.mxu0 0.0
        %3409 = vmatpush1.msra.mxu0 0.0
        %3410 = vmatprep.subr.mxu0 0.0
        %3411 = vmatpush1.msra.mxu0 0.0
        %3412 = vmatprep.subr.mxu0 0.0
        %3413 = vmatpush1.msra.mxu0 0.0
        %3414 = vmatprep.subr.mxu0 0.0
        %3415 = vmatpush1.msra.mxu0 0.0
        %3416 = vmatprep.subr.mxu0 0.0
        %3417 = vmatpush1.msra.mxu0 0.0
        %3418 = vmatprep.subr.mxu0 0.0
        %3419 = vmatpush1.msra.mxu0 0.0
        %3420 = vmatprep.subr.mxu0 0.0
        %3421 = vmatpush1.msra.mxu0 0.0
        %3422 = vmatprep.subr.mxu0 0.0
        %3423 = vmatpush1.msra.mxu0 0.0
        %3424 = vmatprep.subr.mxu0 0.0
        %3425 = vmatpush1.msra.mxu0 0.0
        %3426 = vmatprep.subr.mxu0 0.0
        %3427 = vmatpush1.msra.mxu0 0.0
        %3428 = vmatprep.subr.mxu0 0.0
        %3429 = vmatpush1.msra.mxu0 0.0
        %3430 = vmatprep.subr.mxu0 0.0
        %3431 = vmatpush1.msra.mxu0 0.0
        %3432 = vmatprep.subr.mxu0 0.0
        %3433 = vmatpush1.msra.mxu0 0.0
        %3434 = vmatprep.subr.mxu0 0.0
        %3435 = vmatpush1.msra.mxu0 0.0
        %3436 = vmatprep.subr.mxu0 0.0
        %3437 = vmatpush1.msra.mxu0 0.0
        %3438 = vmatprep.subr.mxu0 0.0
        %3439 = vmatpush1.msra.mxu0 0.0
        %3440 = vmatprep.subr.mxu0 0.0
        %3441 = vmatpush1.msra.mxu0 0.0
        %3442 = vmatprep.subr.mxu0 0.0
        %3443 = vmatpush1.msra.mxu0 0.0
        %3444 = vmatprep.subr.mxu0 0.0
        %3445 = vmatpush1.msra.mxu0 0.0
        %3446 = vmatprep.subr.mxu0 0.0
        %3447 = vmatpush1.msra.mxu0 0.0
        %3448 = vmatprep.subr.mxu0 0.0
        %3449 = vmatpush1.msra.mxu0 0.0
        %3450 = vmatprep.subr.mxu0 0.0
        %3451 = vmatpush1.msra.mxu0 0.0
        %3452 = vmatprep.subr.mxu0 0.0
        %3453 = vmatpush1.msra.mxu0 0.0
        %3454 = vmatprep.subr.mxu0 0.0
        %3455 = vmatpush1.msra.mxu0 0.0
        %3456 = vmatprep.subr.mxu0 0.0
        %3457 = vmatpush1.msra.mxu0 0.0
        %3458 = vmatprep.mubr.f32.mxu0 0.0
        %3459 = vmatmul.mubr.f32.gmra.mrb[0].mxu0 %v3383
        %v3460 = vpop.f32.mrb[0].mxu0
        %v3461 = vadd.f32 0.0, %v3460
        %v3462 = vpop.f32.mrb[0].mxu0
        %3463 = vmatprep.mubr.f32.mxu0 0.0
        %3464 = vmatmul.mubr.f32.gmra.mrb[0].mxu0 %v3386
        %v3465 = vpop.f32.mrb[0].mxu0
        %v3466 = vadd.f32 0.0, %v3465
        %v3467 = vpop.f32.mrb[0].mxu0
        %3468 = vmatprep.mubr.f32.mxu0 0.0
        %3469 = vmatmul.mubr.f32.gmra.mrb[0].mxu0 %v3389
        %v3470 = vpop.f32.mrb[0].mxu0
        %v3471 = vadd.f32 0.0, %v3470
        %v3472 = vpop.f32.mrb[0].mxu0
        %3473 = vmatprep.mubr.f32.mxu0 0.0
        %3474 = vmatmul.mubr.f32.gmra.mrb[0].mxu0 %v3392
        %v3475 = vpop.f32.mrb[0].mxu0
        %v3476 = vadd.f32 0.0, %v3475
        %v3477 = vpop.f32.mrb[0].mxu0
        %3478 = vdwg.mxu0
        %v3480 = vsel %vm1242, %v3085, 0
        %v3483 = vsel %vm1242, %v3087, 0
        %v3486 = vsel %vm1242, %v3089, 0
        %v3489 = vsel %vm1242, %v3091, 0
        %3491 = vmatprep.subr.mxu0 0.0
        %3492 = vmatpush1.msra.mxu0 %v1230
        %3493 = vmatprep.subr.mxu0 0.0
        %3494 = vmatpush1.msra.mxu0 %v1232
        %3495 = vmatprep.subr.mxu0 0.0
        %3496 = vmatpush1.msra.mxu0 %v1234
        %3497 = vmatprep.subr.mxu0 0.0
        %3498 = vmatpush1.msra.mxu0 %v1236
        %3499 = vmatprep.subr.mxu0 0.0
        %3500 = vmatpush1.msra.mxu0 0.0
        %3501 = vmatprep.subr.mxu0 0.0
        %3502 = vmatpush1.msra.mxu0 0.0
        %3503 = vmatprep.subr.mxu0 0.0
        %3504 = vmatpush1.msra.mxu0 0.0
        %3505 = vmatprep.subr.mxu0 0.0
        %3506 = vmatpush1.msra.mxu0 0.0
        %3507 = vmatprep.subr.mxu0 0.0
        %3508 = vmatpush1.msra.mxu0 0.0
        %3509 = vmatprep.subr.mxu0 0.0
        %3510 = vmatpush1.msra.mxu0 0.0
        %3511 = vmatprep.subr.mxu0 0.0
        %3512 = vmatpush1.msra.mxu0 0.0
        %3513 = vmatprep.subr.mxu0 0.0
        %3514 = vmatpush1.msra.mxu0 0.0
        %3515 = vmatprep.subr.mxu0 0.0
        %3516 = vmatpush1.msra.mxu0 0.0
        %3517 = vmatprep.subr.mxu0 0.0
        %3518 = vmatpush1.msra.mxu0 0.0
        %3519 = vmatprep.subr.mxu0 0.0
        %3520 = vmatpush1.msra.mxu0 0.0
        %3521 = vmatprep.subr.mxu0 0.0
        %3522 = vmatpush1.msra.mxu0 0.0
        %3523 = vmatprep.subr.mxu0 0.0
        %3524 = vmatpush1.msra.mxu0 0.0
        %3525 = vmatprep.subr.mxu0 0.0
        %3526 = vmatpush1.msra.mxu0 0.0
        %3527 = vmatprep.subr.mxu0 0.0
        %3528 = vmatpush1.msra.mxu0 0.0
        %3529 = vmatprep.subr.mxu0 0.0
        %3530 = vmatpush1.msra.mxu0 0.0
        %3531 = vmatprep.subr.mxu0 0.0
        %3532 = vmatpush1.msra.mxu0 0.0
        %3533 = vmatprep.subr.mxu0 0.0
        %3534 = vmatpush1.msra.mxu0 0.0
        %3535 = vmatprep.subr.mxu0 0.0
        %3536 = vmatpush1.msra.mxu0 0.0
        %3537 = vmatprep.subr.mxu0 0.0
        %3538 = vmatpush1.msra.mxu0 0.0
        %3539 = vmatprep.subr.mxu0 0.0
        %3540 = vmatpush1.msra.mxu0 0.0
        %3541 = vmatprep.subr.mxu0 0.0
        %3542 = vmatpush1.msra.mxu0 0.0
        %3543 = vmatprep.subr.mxu0 0.0
        %3544 = vmatpush1.msra.mxu0 0.0
        %3545 = vmatprep.subr.mxu0 0.0
        %3546 = vmatpush1.msra.mxu0 0.0
        %3547 = vmatprep.subr.mxu0 0.0
        %3548 = vmatpush1.msra.mxu0 0.0
        %3549 = vmatprep.subr.mxu0 0.0
        %3550 = vmatpush1.msra.mxu0 0.0
        %3551 = vmatprep.subr.mxu0 0.0
        %3552 = vmatpush1.msra.mxu0 0.0
        %3553 = vmatprep.subr.mxu0 0.0
        %3554 = vmatpush1.msra.mxu0 0.0
        %3555 = vmatprep.mubr.f32.mxu0 0.0
        %3556 = vmatmul.mubr.f32.gmra.mrb[0].mxu0 %v3480
        %v3557 = vpop.f32.mrb[0].mxu0
        %v3558 = vadd.f32 0.0, %v3557
        %v3559 = vpop.f32.mrb[0].mxu0
        %3560 = vmatprep.mubr.f32.mxu0 0.0
        %3561 = vmatmul.mubr.f32.gmra.mrb[0].mxu0 %v3483
        %v3562 = vpop.f32.mrb[0].mxu0
        %v3563 = vadd.f32 0.0, %v3562
        %v3564 = vpop.f32.mrb[0].mxu0
        %3565 = vmatprep.mubr.f32.mxu0 0.0
        %3566 = vmatmul.mubr.f32.gmra.mrb[0].mxu0 %v3486
        %v3567 = vpop.f32.mrb[0].mxu0
        %v3568 = vadd.f32 0.0, %v3567
        %v3569 = vpop.f32.mrb[0].mxu0
        %3570 = vmatprep.mubr.f32.mxu0 0.0
        %3571 = vmatmul.mubr.f32.gmra.mrb[0].mxu0 %v3489
        %v3572 = vpop.f32.mrb[0].mxu0
        %v3573 = vadd.f32 0.0, %v3572
        %v3574 = vpop.f32.mrb[0].mxu0
        %3575 = vdwg.mxu0
        %v3576 = vadd.f32 %v3172, %v3267
        %v3577 = vadd.f32 %v3173, %v3272
        %v3578 = vadd.f32 %v3174, %v3277
        %v3579 = vadd.f32 %v3175, %v3282
        %v3580 = vadd.f32 %v3176, %v3364
        %v3581 = vadd.f32 %v3177, %v3369
        %v3582 = vadd.f32 %v3178, %v3374
        %v3583 = vadd.f32 %v3179, %v3379
        %v3584 = vadd.f32 %v3180, %v3461
        %v3585 = vadd.f32 %v3181, %v3466
        %v3586 = vadd.f32 %v3182, %v3471
        %v3587 = vadd.f32 %v3183, %v3476
        %v3588 = vadd.f32 %v3184, %v3558
        %v3589 = vadd.f32 %v3185, %v3563
        %v3590 = vadd.f32 %v3186, %v3568
        %v3591 = vadd.f32 %v3187, %v3573
        %v3592 = vrcp.pop %v3156
        %v3593 = vrcp.pop %v3157
        %v3594 = vrcp.pop %v3158
        %v3595 = vrcp.pop %v3159
        %v3596 = vrcp.pop %v3160
        %v3597 = vrcp.pop %v3161
        %v3598 = vrcp.pop %v3162
        %v3599 = vrcp.pop %v3163
        %v3600 = vrcp.pop %v3164
        %v3601 = vrcp.pop %v3165
        %v3602 = vrcp.pop %v3166
        %v3603 = vrcp.pop %v3167
        %v3604 = vrcp.pop %v3168
        %v3605 = vrcp.pop %v3169
        %v3606 = vrcp.pop %v3170
        %v3607 = vrcp.pop %v3171
        %v3608 = vmul.f32 %v3576, %v3592
        %v3609 = vmul.f32 %v3577, %v3593
        %v3610 = vmul.f32 %v3578, %v3594
        %v3611 = vmul.f32 %v3579, %v3595
        %v3612 = vmul.f32 %v3580, %v3596
        %v3613 = vmul.f32 %v3581, %v3597
        %v3614 = vmul.f32 %v3582, %v3598
        %v3615 = vmul.f32 %v3583, %v3599
        %v3616 = vmul.f32 %v3584, %v3600
        %v3617 = vmul.f32 %v3585, %v3601
        %v3618 = vmul.f32 %v3586, %v3602
        %v3619 = vmul.f32 %v3587, %v3603
        %v3620 = vmul.f32 %v3588, %v3604
        %v3621 = vmul.f32 %v3589, %v3605
        %v3622 = vmul.f32 %v3590, %v3606
        %v3623 = vmul.f32 %v3591, %v3607
        %3628 = vrot.lane.b32.xlu0 %v3612, 32
        %v3629 = vpop.permute.xlu0 %3628
        %3630 = vrot.lane.b32.xlu0 %v3613, 32
        %v3631 = vpop.permute.xlu0 %3630
        %3632 = vrot.lane.b32.xlu0 %v3614, 32
        %v3633 = vpop.permute.xlu0 %3632
        %3634 = vrot.lane.b32.xlu0 %v3615, 32
        %v3635 = vpop.permute.xlu0 %3634
        %3644 = vrot.lane.b32.xlu0 %v3616, 64
        %v3645 = vpop.permute.xlu0 %3644
        %3646 = vrot.lane.b32.xlu0 %v3617, 64
        %v3647 = vpop.permute.xlu0 %3646
        %3648 = vrot.lane.b32.xlu0 %v3618, 64
        %v3649 = vpop.permute.xlu0 %3648
        %3650 = vrot.lane.b32.xlu0 %v3619, 64
        %v3651 = vpop.permute.xlu0 %3650
        %3660 = vrot.lane.b32.xlu0 %v3620, 96
        %v3661 = vpop.permute.xlu0 %3660
        %3662 = vrot.lane.b32.xlu0 %v3621, 96
        %v3663 = vpop.permute.xlu0 %3662
        %3664 = vrot.lane.b32.xlu0 %v3622, 96
        %v3665 = vpop.permute.xlu0 %3664
        %3666 = vrot.lane.b32.xlu0 %v3623, 96
        %v3667 = vpop.permute.xlu0 %3666
        %v3672 = vsel %vm1242, %v3608, %v3629
        %v3673 = vsel %vm1242, %v3609, %v3631
        %v3674 = vsel %vm1242, %v3610, %v3633
        %v3675 = vsel %vm1242, %v3611, %v3635
        %vm3676 = vcmask 523264
        %v3677 = vsel %vm3676, %v3672, %v3645
        %v3678 = vsel %vm3676, %v3673, %v3647
        %v3679 = vsel %vm3676, %v3674, %v3649
        %v3680 = vsel %vm3676, %v3675, %v3651
        %vm3681 = vcmask 785408
        %v3682 = vsel %vm3681, %v3677, %v3661
        %v3683 = vsel %vm3681, %v3678, %v3663
        %v3684 = vsel %vm3681, %v3679, %v3665
        %v3685 = vsel %vm3681, %v3680, %v3667
        %v3686 = vld [vmem:[#allocation7] sm:$0xff]
        %v3687 = vld [vmem:[#allocation7 + $0x8] sm:$0xff]
        %v3688 = vld [vmem:[#allocation7 + $0x10] sm:$0xff]
        %v3689 = vld [vmem:[#allocation7 + $0x18] sm:$0xff]
        %v3690 = vld [vmem:[#allocation7 + $0x20] sm:$0xff]
        %v3691 = vld [vmem:[#allocation7 + $0x28] sm:$0xff]
        %v3692 = vld [vmem:[#allocation7 + $0x30] sm:$0xff]
        %v3693 = vld [vmem:[#allocation7 + $0x38] sm:$0xff]
        %v3694 = vld [vmem:[#allocation7 + $0x40] sm:$0xff]
        %v3695 = vld [vmem:[#allocation7 + $0x48] sm:$0xff]
        %v3696 = vld [vmem:[#allocation7 + $0x50] sm:$0xff]
        %v3697 = vld [vmem:[#allocation7 + $0x58] sm:$0xff]
        %v3698 = vld [vmem:[#allocation7 + $0x60] sm:$0xff]
        %v3699 = vld [vmem:[#allocation7 + $0x68] sm:$0xff]
        %v3700 = vld [vmem:[#allocation7 + $0x70] sm:$0xff]
        %v3701 = vld [vmem:[#allocation7 + $0x78] sm:$0xff]
        %3702 = vmatprep.subr.mxu0 0.0
        %3703 = vmatpush1.msra.mxu0 %v3686
        %3704 = vmatprep.subr.mxu0 0.0
        %3705 = vmatpush1.msra.mxu0 %v3687
        %3706 = vmatprep.subr.mxu0 0.0
        %3707 = vmatpush1.msra.mxu0 %v3688
        %3708 = vmatprep.subr.mxu0 0.0
        %3709 = vmatpush1.msra.mxu0 %v3689
        %3710 = vmatprep.subr.mxu0 0.0
        %3711 = vmatpush1.msra.mxu0 %v3690
        %3712 = vmatprep.subr.mxu0 0.0
        %3713 = vmatpush1.msra.mxu0 %v3691
        %3714 = vmatprep.subr.mxu0 0.0
        %3715 = vmatpush1.msra.mxu0 %v3692
        %3716 = vmatprep.subr.mxu0 0.0
        %3717 = vmatpush1.msra.mxu0 %v3693
        %3718 = vmatprep.subr.mxu0 0.0
        %3719 = vmatpush1.msra.mxu0 %v3694
        %3720 = vmatprep.subr.mxu0 0.0
        %3721 = vmatpush1.msra.mxu0 %v3695
        %3722 = vmatprep.subr.mxu0 0.0
        %3723 = vmatpush1.msra.mxu0 %v3696
        %3724 = vmatprep.subr.mxu0 0.0
        %3725 = vmatpush1.msra.mxu0 %v3697
        %3726 = vmatprep.subr.mxu0 0.0
        %3727 = vmatpush1.msra.mxu0 %v3698
        %3728 = vmatprep.subr.mxu0 0.0
        %3729 = vmatpush1.msra.mxu0 %v3699
        %3730 = vmatprep.subr.mxu0 0.0
        %3731 = vmatpush1.msra.mxu0 %v3700
        %3732 = vmatprep.subr.mxu0 0.0
        %3733 = vmatpush1.msra.mxu0 %v3701
        %3734 = vmatprep.subr.mxu0 0.0
        %3735 = vmatpush1.msra.mxu0 0.0
        %3736 = vmatprep.subr.mxu0 0.0
        %3737 = vmatpush1.msra.mxu0 0.0
        %3738 = vmatprep.subr.mxu0 0.0
        %3739 = vmatpush1.msra.mxu0 0.0
        %3740 = vmatprep.subr.mxu0 0.0
        %3741 = vmatpush1.msra.mxu0 0.0
        %3742 = vmatprep.subr.mxu0 0.0
        %3743 = vmatpush1.msra.mxu0 0.0
        %3744 = vmatprep.subr.mxu0 0.0
        %3745 = vmatpush1.msra.mxu0 0.0
        %3746 = vmatprep.subr.mxu0 0.0
        %3747 = vmatpush1.msra.mxu0 0.0
        %3748 = vmatprep.subr.mxu0 0.0
        %3749 = vmatpush1.msra.mxu0 0.0
        %3750 = vmatprep.subr.mxu0 0.0
        %3751 = vmatpush1.msra.mxu0 0.0
        %3752 = vmatprep.subr.mxu0 0.0
        %3753 = vmatpush1.msra.mxu0 0.0
        %3754 = vmatprep.subr.mxu0 0.0
        %3755 = vmatpush1.msra.mxu0 0.0
        %3756 = vmatprep.subr.mxu0 0.0
        %3757 = vmatpush1.msra.mxu0 0.0
        %3758 = vmatprep.subr.mxu0 0.0
        %3759 = vmatpush1.msra.mxu0 0.0
        %3760 = vmatprep.subr.mxu0 0.0
        %3761 = vmatpush1.msra.mxu0 0.0
        %3762 = vmatprep.subr.mxu0 0.0
        %3763 = vmatpush1.msra.mxu0 0.0
        %3764 = vmatprep.subr.mxu0 0.0
        %3765 = vmatpush1.msra.mxu0 0.0
        %3766 = vmatprep.mubr.f32.mxu0 0.0
        %3767 = vmatmul.mubr.f32.gmra.mrb[0].mxu0 %v3682
        %v3768 = vpop.f32.mrb[0].mxu0
        %v3769 = vadd.f32 0.0, %v3768
        %v3770 = vpop.f32.mrb[0].mxu0
        %3771 = vmatprep.mubr.f32.mxu0 0.0
        %3772 = vmatmul.mubr.f32.gmra.mrb[0].mxu0 %v3683
        %v3773 = vpop.f32.mrb[0].mxu0
        %v3774 = vadd.f32 0.0, %v3773
        %v3775 = vpop.f32.mrb[0].mxu0
        %3776 = vmatprep.mubr.f32.mxu0 0.0
        %3777 = vmatmul.mubr.f32.gmra.mrb[0].mxu0 %v3684
        %v3778 = vpop.f32.mrb[0].mxu0
        %v3779 = vadd.f32 0.0, %v3778
        %v3780 = vpop.f32.mrb[0].mxu0
        %3781 = vmatprep.mubr.f32.mxu0 0.0
        %3782 = vmatmul.mubr.f32.gmra.mrb[0].mxu0 %v3685
        %v3783 = vpop.f32.mrb[0].mxu0
        %v3784 = vadd.f32 0.0, %v3783
        %v3785 = vpop.f32.mrb[0].mxu0
        %3786 = vdwg.mxu0
        %v3787 = vadd.f32 %v493, %v3769
        %v3788 = vadd.f32 %v494, %v3774
        %v3789 = vadd.f32 %v495, %v3779
        %v3790 = vadd.f32 %v496, %v3784
        %v3791 = vld [vmem:[%s5] sm:$0x1]
        %v3792 = vmul.f32 %v3787, %v3787
        %v3793 = vmul.f32 %v3788, %v3788
        %v3794 = vmul.f32 %v3789, %v3789
        %v3795 = vmul.f32 %v3790, %v3790
        %3796 = vadd.xlane.f32.xlu0 %v3792
        %v3797 = vpop.xlane.xlu0 %3796
        %3798 = vadd.xlane.f32.xlu0 %v3793
        %v3799 = vpop.xlane.xlu0 %3798
        %3800 = vadd.xlane.f32.xlu0 %v3794
        %v3801 = vpop.xlane.xlu0 %3800
        %3802 = vadd.xlane.f32.xlu0 %v3795
        %v3803 = vpop.xlane.xlu0 %3802
        %v3804 = vmul.f32 %v3797, %v510
        %v3805 = vmul.f32 %v3799, %v510
        %v3806 = vmul.f32 %v3801, %v510
        %v3807 = vmul.f32 %v3803, %v510
        %v3808 = vadd.f32 %v3804, 1e-06
        %v3809 = vadd.f32 %v3805, 1e-06
        %v3810 = vadd.f32 %v3806, 1e-06
        %v3811 = vadd.f32 %v3807, 1e-06
        %v3812 = vrsqrt.pop %v3808
        %v3813 = vrsqrt.pop %v3809
        %v3814 = vrsqrt.pop %v3810
        %v3815 = vrsqrt.pop %v3811
        %v3816 = vmul.f32 %v3787, %v3812
        %v3817 = vmul.f32 %v3788, %v3813
        %v3818 = vmul.f32 %v3789, %v3814
        %v3819 = vmul.f32 %v3790, %v3815
        %v3821 = vlaneseq
        %v3822 = vshrl.u32 %v3821, 7
        %v3823 = vsub.s32 0, %v3822
        %v3824 = vrot.slane %v3791, %v3823
        %v3826 = vmul.f32 %v3816, %v3824
        %v3827 = vmul.f32 %v3817, %v3824
        %v3828 = vmul.f32 %v3818, %v3824
        %v3829 = vmul.f32 %v3819, %v3824
        %v3830 = vld [vmem:[#allocation9] sm:$0xff]
        %v3831 = vld [vmem:[#allocation9 + $0x8] sm:$0xff]
        %v3832 = vld [vmem:[#allocation9 + $0x10] sm:$0xff]
        %v3833 = vld [vmem:[#allocation9 + $0x18] sm:$0xff]
        %v3834 = vld [vmem:[#allocation9 + $0x20] sm:$0xff]
        %v3835 = vld [vmem:[#allocation9 + $0x28] sm:$0xff]
        %v3836 = vld [vmem:[#allocation9 + $0x30] sm:$0xff]
        %v3837 = vld [vmem:[#allocation9 + $0x38] sm:$0xff]
        %v3838 = vld [vmem:[#allocation9 + $0x40] sm:$0xff]
        %v3839 = vld [vmem:[#allocation9 + $0x48] sm:$0xff]
        %v3840 = vld [vmem:[#allocation9 + $0x50] sm:$0xff]
        %v3841 = vld [vmem:[#allocation9 + $0x58] sm:$0xff]
        %v3842 = vld [vmem:[#allocation9 + $0x60] sm:$0xff]
        %v3843 = vld [vmem:[#allocation9 + $0x68] sm:$0xff]
        %v3844 = vld [vmem:[#allocation9 + $0x70] sm:$0xff]
        %v3845 = vld [vmem:[#allocation9 + $0x78] sm:$0xff]
        %v3846 = vld [vmem:[#allocation9 + $0x80] sm:$0xff]
        %v3847 = vld [vmem:[#allocation9 + $0x88] sm:$0xff]
        %v3848 = vld [vmem:[#allocation9 + $0x90] sm:$0xff]
        %v3849 = vld [vmem:[#allocation9 + $0x98] sm:$0xff]
        %v3850 = vld [vmem:[#allocation9 + $0xa0] sm:$0xff]
        %v3851 = vld [vmem:[#allocation9 + $0xa8] sm:$0xff]
        %v3852 = vld [vmem:[#allocation9 + $0xb0] sm:$0xff]
        %v3853 = vld [vmem:[#allocation9 + $0xb8] sm:$0xff]
        %v3854 = vld [vmem:[#allocation9 + $0xc0] sm:$0xff]
        %v3855 = vld [vmem:[#allocation9 + $0xc8] sm:$0xff]
        %v3856 = vld [vmem:[#allocation9 + $0xd0] sm:$0xff]
        %v3857 = vld [vmem:[#allocation9 + $0xd8] sm:$0xff]
        %v3858 = vld [vmem:[#allocation9 + $0xe0] sm:$0xff]
        %v3859 = vld [vmem:[#allocation9 + $0xe8] sm:$0xff]
        %v3860 = vld [vmem:[#allocation9 + $0xf0] sm:$0xff]
        %v3861 = vld [vmem:[#allocation9 + $0xf8] sm:$0xff]
        %v3862 = vld [vmem:[#allocation9 + $0x100] sm:$0xff]
        %v3863 = vld [vmem:[#allocation9 + $0x108] sm:$0xff]
        %v3864 = vld [vmem:[#allocation9 + $0x110] sm:$0xff]
        %v3865 = vld [vmem:[#allocation9 + $0x118] sm:$0xff]
        %v3866 = vld [vmem:[#allocation9 + $0x120] sm:$0xff]
        %v3867 = vld [vmem:[#allocation9 + $0x128] sm:$0xff]
        %v3868 = vld [vmem:[#allocation9 + $0x130] sm:$0xff]
        %v3869 = vld [vmem:[#allocation9 + $0x138] sm:$0xff]
        %v3870 = vld [vmem:[#allocation9 + $0x140] sm:$0xff]
        %v3871 = vld [vmem:[#allocation9 + $0x148] sm:$0xff]
        %v3872 = vld [vmem:[#allocation9 + $0x150] sm:$0xff]
        %v3873 = vld [vmem:[#allocation9 + $0x158] sm:$0xff]
        %v3874 = vld [vmem:[#allocation9 + $0x160] sm:$0xff]
        %v3875 = vld [vmem:[#allocation9 + $0x168] sm:$0xff]
        %v3876 = vld [vmem:[#allocation9 + $0x170] sm:$0xff]
        %v3877 = vld [vmem:[#allocation9 + $0x178] sm:$0xff]
        %v3878 = vld [vmem:[#allocation9 + $0x180] sm:$0xff]
        %v3879 = vld [vmem:[#allocation9 + $0x188] sm:$0xff]
        %v3880 = vld [vmem:[#allocation9 + $0x190] sm:$0xff]
        %v3881 = vld [vmem:[#allocation9 + $0x198] sm:$0xff]
        %v3882 = vld [vmem:[#allocation9 + $0x1a0] sm:$0xff]
        %v3883 = vld [vmem:[#allocation9 + $0x1a8] sm:$0xff]
        %v3884 = vld [vmem:[#allocation9 + $0x1b0] sm:$0xff]
        %v3885 = vld [vmem:[#allocation9 + $0x1b8] sm:$0xff]
        %v3886 = vld [vmem:[#allocation9 + $0x1c0] sm:$0xff]
        %v3887 = vld [vmem:[#allocation9 + $0x1c8] sm:$0xff]
        %v3888 = vld [vmem:[#allocation9 + $0x1d0] sm:$0xff]
        %v3889 = vld [vmem:[#allocation9 + $0x1d8] sm:$0xff]
        %v3890 = vld [vmem:[#allocation9 + $0x1e0] sm:$0xff]
        %v3891 = vld [vmem:[#allocation9 + $0x1e8] sm:$0xff]
        %v3892 = vld [vmem:[#allocation9 + $0x1f0] sm:$0xff]
        %v3893 = vld [vmem:[#allocation9 + $0x1f8] sm:$0xff]
        %3894 = vmatprep.subr.mxu0 %v3831
        %3895 = vmatpush1.msra.mxu0 %v3830
        %3896 = vmatprep.subr.mxu0 %v3835
        %3897 = vmatpush1.msra.mxu0 %v3834
        %3898 = vmatprep.subr.mxu0 %v3839
        %3899 = vmatpush1.msra.mxu0 %v3838
        %3900 = vmatprep.subr.mxu0 %v3843
        %3901 = vmatpush1.msra.mxu0 %v3842
        %3902 = vmatprep.subr.mxu0 %v3847
        %3903 = vmatpush1.msra.mxu0 %v3846
        %3904 = vmatprep.subr.mxu0 %v3851
        %3905 = vmatpush1.msra.mxu0 %v3850
        %3906 = vmatprep.subr.mxu0 %v3855
        %3907 = vmatpush1.msra.mxu0 %v3854
        %3908 = vmatprep.subr.mxu0 %v3859
        %3909 = vmatpush1.msra.mxu0 %v3858
        %3910 = vmatprep.subr.mxu0 %v3863
        %3911 = vmatpush1.msra.mxu0 %v3862
        %3912 = vmatprep.subr.mxu0 %v3867
        %3913 = vmatpush1.msra.mxu0 %v3866
        %3914 = vmatprep.subr.mxu0 %v3871
        %3915 = vmatpush1.msra.mxu0 %v3870
        %3916 = vmatprep.subr.mxu0 %v3875
        %3917 = vmatpush1.msra.mxu0 %v3874
        %3918 = vmatprep.subr.mxu0 %v3879
        %3919 = vmatpush1.msra.mxu0 %v3878
        %3920 = vmatprep.subr.mxu0 %v3883
        %3921 = vmatpush1.msra.mxu0 %v3882
        %3922 = vmatprep.subr.mxu0 %v3887
        %3923 = vmatpush1.msra.mxu0 %v3886
        %3924 = vmatprep.subr.mxu0 %v3891
        %3925 = vmatpush1.msra.mxu0 %v3890
        %3926 = vmatprep.subr.mxu0 0.0
        %3927 = vmatpush1.msra.mxu0 0.0
        %3928 = vmatprep.subr.mxu0 0.0
        %3929 = vmatpush1.msra.mxu0 0.0
        %3930 = vmatprep.subr.mxu0 0.0
        %3931 = vmatpush1.msra.mxu0 0.0
        %3932 = vmatprep.subr.mxu0 0.0
        %3933 = vmatpush1.msra.mxu0 0.0
        %3934 = vmatprep.subr.mxu0 0.0
        %3935 = vmatpush1.msra.mxu0 0.0
        %3936 = vmatprep.subr.mxu0 0.0
        %3937 = vmatpush1.msra.mxu0 0.0
        %3938 = vmatprep.subr.mxu0 0.0
        %3939 = vmatpush1.msra.mxu0 0.0
        %3940 = vmatprep.subr.mxu0 0.0
        %3941 = vmatpush1.msra.mxu0 0.0
        %3942 = vmatprep.subr.mxu0 0.0
        %3943 = vmatpush1.msra.mxu0 0.0
        %3944 = vmatprep.subr.mxu0 0.0
        %3945 = vmatpush1.msra.mxu0 0.0
        %3946 = vmatprep.subr.mxu0 0.0
        %3947 = vmatpush1.msra.mxu0 0.0
        %3948 = vmatprep.subr.mxu0 0.0
        %3949 = vmatpush1.msra.mxu0 0.0
        %3950 = vmatprep.subr.mxu0 0.0
        %3951 = vmatpush1.msra.mxu0 0.0
        %3952 = vmatprep.subr.mxu0 0.0
        %3953 = vmatpush1.msra.mxu0 0.0
        %3954 = vmatprep.subr.mxu0 0.0
        %3955 = vmatpush1.msra.mxu0 0.0
        %3956 = vmatprep.subr.mxu0 0.0
        %3957 = vmatpush1.msra.mxu0 0.0
        %3958 = vmatprep.mubr.f32.mxu0 0.0
        %3959 = vmatmul.mubr.f32.gmra.mrb[0].mxu0 %v3826
        %v3960 = vpop.f32.mrb[0].mxu0
        %v3961 = vadd.f32 0.0, %v3960
        %v3962 = vpop.f32.mrb[0].mxu0
        %v3963 = vadd.f32 0.0, %v3962
        %3964 = vmatprep.mubr.f32.mxu0 0.0
        %3965 = vmatmul.mubr.f32.gmra.mrb[0].mxu0 %v3827
        %v3966 = vpop.f32.mrb[0].mxu0
        %v3967 = vadd.f32 0.0, %v3966
        %v3968 = vpop.f32.mrb[0].mxu0
        %v3969 = vadd.f32 0.0, %v3968
        %3970 = vmatprep.mubr.f32.mxu0 0.0
        %3971 = vmatmul.mubr.f32.gmra.mrb[0].mxu0 %v3828
        %v3972 = vpop.f32.mrb[0].mxu0
        %v3973 = vadd.f32 0.0, %v3972
        %v3974 = vpop.f32.mrb[0].mxu0
        %v3975 = vadd.f32 0.0, %v3974
        %3976 = vmatprep.mubr.f32.mxu0 0.0
        %3977 = vmatmul.mubr.f32.gmra.mrb[0].mxu0 %v3829
        %v3978 = vpop.f32.mrb[0].mxu0
        %v3979 = vadd.f32 0.0, %v3978
        %v3980 = vpop.f32.mrb[0].mxu0
        %v3981 = vadd.f32 0.0, %v3980
        %3982 = vdwg.mxu0
        %3983 = vmatprep.subr.mxu0 %v3833
        %3984 = vmatpush1.msra.mxu0 %v3832
        %3985 = vmatprep.subr.mxu0 %v3837
        %3986 = vmatpush1.msra.mxu0 %v3836
        %3987 = vmatprep.subr.mxu0 %v3841
        %3988 = vmatpush1.msra.mxu0 %v3840
        %3989 = vmatprep.subr.mxu0 %v3845
        %3990 = vmatpush1.msra.mxu0 %v3844
        %3991 = vmatprep.subr.mxu0 %v3849
        %3992 = vmatpush1.msra.mxu0 %v3848
        %3993 = vmatprep.subr.mxu0 %v3853
        %3994 = vmatpush1.msra.mxu0 %v3852
        %3995 = vmatprep.subr.mxu0 %v3857
        %3996 = vmatpush1.msra.mxu0 %v3856
        %3997 = vmatprep.subr.mxu0 %v3861
        %3998 = vmatpush1.msra.mxu0 %v3860
        %3999 = vmatprep.subr.mxu0 %v3865
        %4000 = vmatpush1.msra.mxu0 %v3864
        %4001 = vmatprep.subr.mxu0 %v3869
        %4002 = vmatpush1.msra.mxu0 %v3868
        %4003 = vmatprep.subr.mxu0 %v3873
        %4004 = vmatpush1.msra.mxu0 %v3872
        %4005 = vmatprep.subr.mxu0 %v3877
        %4006 = vmatpush1.msra.mxu0 %v3876
        %4007 = vmatprep.subr.mxu0 %v3881
        %4008 = vmatpush1.msra.mxu0 %v3880
        %4009 = vmatprep.subr.mxu0 %v3885
        %4010 = vmatpush1.msra.mxu0 %v3884
        %4011 = vmatprep.subr.mxu0 %v3889
        %4012 = vmatpush1.msra.mxu0 %v3888
        %4013 = vmatprep.subr.mxu0 %v3893
        %4014 = vmatpush1.msra.mxu0 %v3892
        %4015 = vmatprep.subr.mxu0 0.0
        %4016 = vmatpush1.msra.mxu0 0.0
        %4017 = vmatprep.subr.mxu0 0.0
        %4018 = vmatpush1.msra.mxu0 0.0
        %4019 = vmatprep.subr.mxu0 0.0
        %4020 = vmatpush1.msra.mxu0 0.0
        %4021 = vmatprep.subr.mxu0 0.0
        %4022 = vmatpush1.msra.mxu0 0.0
        %4023 = vmatprep.subr.mxu0 0.0
        %4024 = vmatpush1.msra.mxu0 0.0
        %4025 = vmatprep.subr.mxu0 0.0
        %4026 = vmatpush1.msra.mxu0 0.0
        %4027 = vmatprep.subr.mxu0 0.0
        %4028 = vmatpush1.msra.mxu0 0.0
        %4029 = vmatprep.subr.mxu0 0.0
        %4030 = vmatpush1.msra.mxu0 0.0
        %4031 = vmatprep.subr.mxu0 0.0
        %4032 = vmatpush1.msra.mxu0 0.0
        %4033 = vmatprep.subr.mxu0 0.0
        %4034 = vmatpush1.msra.mxu0 0.0
        %4035 = vmatprep.subr.mxu0 0.0
        %4036 = vmatpush1.msra.mxu0 0.0
        %4037 = vmatprep.subr.mxu0 0.0
        %4038 = vmatpush1.msra.mxu0 0.0
        %4039 = vmatprep.subr.mxu0 0.0
        %4040 = vmatpush1.msra.mxu0 0.0
        %4041 = vmatprep.subr.mxu0 0.0
        %4042 = vmatpush1.msra.mxu0 0.0
        %4043 = vmatprep.subr.mxu0 0.0
        %4044 = vmatpush1.msra.mxu0 0.0
        %4045 = vmatprep.subr.mxu0 0.0
        %4046 = vmatpush1.msra.mxu0 0.0
        %4047 = vmatprep.mubr.f32.mxu0 0.0
        %4048 = vmatmul.mubr.f32.gmra.mrb[0].mxu0 %v3826
        %v4049 = vpop.f32.mrb[0].mxu0
        %v4050 = vadd.f32 0.0, %v4049
        %v4051 = vpop.f32.mrb[0].mxu0
        %v4052 = vadd.f32 0.0, %v4051
        %4053 = vmatprep.mubr.f32.mxu0 0.0
        %4054 = vmatmul.mubr.f32.gmra.mrb[0].mxu0 %v3827
        %v4055 = vpop.f32.mrb[0].mxu0
        %v4056 = vadd.f32 0.0, %v4055
        %v4057 = vpop.f32.mrb[0].mxu0
        %v4058 = vadd.f32 0.0, %v4057
        %4059 = vmatprep.mubr.f32.mxu0 0.0
        %4060 = vmatmul.mubr.f32.gmra.mrb[0].mxu0 %v3828
        %v4061 = vpop.f32.mrb[0].mxu0
        %v4062 = vadd.f32 0.0, %v4061
        %v4063 = vpop.f32.mrb[0].mxu0
        %v4064 = vadd.f32 0.0, %v4063
        %4065 = vmatprep.mubr.f32.mxu0 0.0
        %4066 = vmatmul.mubr.f32.gmra.mrb[0].mxu0 %v3829
        %v4067 = vpop.f32.mrb[0].mxu0
        %v4068 = vadd.f32 0.0, %v4067
        %v4069 = vpop.f32.mrb[0].mxu0
        %v4070 = vadd.f32 0.0, %v4069
        %4071 = vdwg.mxu0
        %v4072 = vxor.u32 %v4050, 2147483648
        %v4073 = vxor.u32 %v4052, 2147483648
        %v4074 = vxor.u32 %v4056, 2147483648
        %v4075 = vxor.u32 %v4058, 2147483648
        %v4076 = vxor.u32 %v4062, 2147483648
        %v4077 = vxor.u32 %v4064, 2147483648
        %v4078 = vxor.u32 %v4068, 2147483648
        %v4079 = vxor.u32 %v4070, 2147483648
        %v4080 = vmul.f32 %v4072, 1.442695
        %v4081 = vpow.pop %v4080
        %v4082 = vmul.f32 %v4073, 1.442695
        %v4083 = vpow.pop %v4082
        %v4084 = vmul.f32 %v4074, 1.442695
        %v4085 = vpow.pop %v4084
        %v4086 = vmul.f32 %v4075, 1.442695
        %v4087 = vpow.pop %v4086
        %v4088 = vmul.f32 %v4076, 1.442695
        %v4089 = vpow.pop %v4088
        %v4090 = vmul.f32 %v4077, 1.442695
        %v4091 = vpow.pop %v4090
        %v4092 = vmul.f32 %v4078, 1.442695
        %v4093 = vpow.pop %v4092
        %v4094 = vmul.f32 %v4079, 1.442695
        %v4095 = vpow.pop %v4094
        %v4096 = vadd.f32 %v4081, 1.0
        %v4097 = vadd.f32 %v4083, 1.0
        %v4098 = vadd.f32 %v4085, 1.0
        %v4099 = vadd.f32 %v4087, 1.0
        %v4100 = vadd.f32 %v4089, 1.0
        %v4101 = vadd.f32 %v4091, 1.0
        %v4102 = vadd.f32 %v4093, 1.0
        %v4103 = vadd.f32 %v4095, 1.0
        %v4104 = vrcp.pop %v4096
        %v4105 = vmul.f32 1.0, %v4104
        %v4106 = vrcp.pop %v4097
        %v4107 = vmul.f32 1.0, %v4106
        %v4108 = vrcp.pop %v4098
        %v4109 = vmul.f32 1.0, %v4108
        %v4110 = vrcp.pop %v4099
        %v4111 = vmul.f32 1.0, %v4110
        %v4112 = vrcp.pop %v4100
        %v4113 = vmul.f32 1.0, %v4112
        %v4114 = vrcp.pop %v4101
        %v4115 = vmul.f32 1.0, %v4114
        %v4116 = vrcp.pop %v4102
        %v4117 = vmul.f32 1.0, %v4116
        %v4118 = vrcp.pop %v4103
        %v4119 = vmul.f32 1.0, %v4118
        %v4120 = vmul.f32 %v4050, %v4105
        %v4121 = vmul.f32 %v4052, %v4107
        %v4122 = vmul.f32 %v4056, %v4109
        %v4123 = vmul.f32 %v4058, %v4111
        %v4124 = vmul.f32 %v4062, %v4113
        %v4125 = vmul.f32 %v4064, %v4115
        %v4126 = vmul.f32 %v4068, %v4117
        %v4127 = vmul.f32 %v4070, %v4119
        %v4128 = vmul.f32 %v3961, %v4120
        %v4129 = vmul.f32 %v3963, %v4121
        %v4130 = vmul.f32 %v3967, %v4122
        %v4131 = vmul.f32 %v3969, %v4123
        %v4132 = vmul.f32 %v3973, %v4124
        %v4133 = vmul.f32 %v3975, %v4125
        %v4134 = vmul.f32 %v3979, %v4126
        %v4135 = vmul.f32 %v3981, %v4127
        %v4136 = vld [vmem:[#allocation10] sm:$0xff]
        %v4137 = vld [vmem:[#allocation10 + $0x8] sm:$0xff]
        %v4138 = vld [vmem:[#allocation10 + $0x10] sm:$0xff]
        %v4139 = vld [vmem:[#allocation10 + $0x18] sm:$0xff]
        %v4140 = vld [vmem:[#allocation10 + $0x20] sm:$0xff]
        %v4141 = vld [vmem:[#allocation10 + $0x28] sm:$0xff]
        %v4142 = vld [vmem:[#allocation10 + $0x30] sm:$0xff]
        %v4143 = vld [vmem:[#allocation10 + $0x38] sm:$0xff]
        %v4144 = vld [vmem:[#allocation10 + $0x40] sm:$0xff]
        %v4145 = vld [vmem:[#allocation10 + $0x48] sm:$0xff]
        %v4146 = vld [vmem:[#allocation10 + $0x50] sm:$0xff]
        %v4147 = vld [vmem:[#allocation10 + $0x58] sm:$0xff]
        %v4148 = vld [vmem:[#allocation10 + $0x60] sm:$0xff]
        %v4149 = vld [vmem:[#allocation10 + $0x68] sm:$0xff]
        %v4150 = vld [vmem:[#allocation10 + $0x70] sm:$0xff]
        %v4151 = vld [vmem:[#allocation10 + $0x78] sm:$0xff]
        %v4152 = vld [vmem:[#allocation10 + $0x80] sm:$0xff]
        %v4153 = vld [vmem:[#allocation10 + $0x88] sm:$0xff]
        %v4154 = vld [vmem:[#allocation10 + $0x90] sm:$0xff]
        %v4155 = vld [vmem:[#allocation10 + $0x98] sm:$0xff]
        %v4156 = vld [vmem:[#allocation10 + $0xa0] sm:$0xff]
        %v4157 = vld [vmem:[#allocation10 + $0xa8] sm:$0xff]
        %v4158 = vld [vmem:[#allocation10 + $0xb0] sm:$0xff]
        %v4159 = vld [vmem:[#allocation10 + $0xb8] sm:$0xff]
        %v4160 = vld [vmem:[#allocation10 + $0xc0] sm:$0xff]
        %v4161 = vld [vmem:[#allocation10 + $0xc8] sm:$0xff]
        %v4162 = vld [vmem:[#allocation10 + $0xd0] sm:$0xff]
        %v4163 = vld [vmem:[#allocation10 + $0xd8] sm:$0xff]
        %v4164 = vld [vmem:[#allocation10 + $0xe0] sm:$0xff]
        %v4165 = vld [vmem:[#allocation10 + $0xe8] sm:$0xff]
        %v4166 = vld [vmem:[#allocation10 + $0xf0] sm:$0xff]
        %v4167 = vld [vmem:[#allocation10 + $0xf8] sm:$0xff]
        %4168 = vmatprep.subr.mxu0 0.0
        %4169 = vmatpush1.msra.mxu0 %v4136
        %4170 = vmatprep.subr.mxu0 0.0
        %4171 = vmatpush1.msra.mxu0 %v4137
        %4172 = vmatprep.subr.mxu0 0.0
        %4173 = vmatpush1.msra.mxu0 %v4138
        %4174 = vmatprep.subr.mxu0 0.0
        %4175 = vmatpush1.msra.mxu0 %v4139
        %4176 = vmatprep.subr.mxu0 0.0
        %4177 = vmatpush1.msra.mxu0 %v4140
        %4178 = vmatprep.subr.mxu0 0.0
        %4179 = vmatpush1.msra.mxu0 %v4141
        %4180 = vmatprep.subr.mxu0 0.0
        %4181 = vmatpush1.msra.mxu0 %v4142
        %4182 = vmatprep.subr.mxu0 0.0
        %4183 = vmatpush1.msra.mxu0 %v4143
        %4184 = vmatprep.subr.mxu0 0.0
        %4185 = vmatpush1.msra.mxu0 %v4144
        %4186 = vmatprep.subr.mxu0 0.0
        %4187 = vmatpush1.msra.mxu0 %v4145
        %4188 = vmatprep.subr.mxu0 0.0
        %4189 = vmatpush1.msra.mxu0 %v4146
        %4190 = vmatprep.subr.mxu0 0.0
        %4191 = vmatpush1.msra.mxu0 %v4147
        %4192 = vmatprep.subr.mxu0 0.0
        %4193 = vmatpush1.msra.mxu0 %v4148
        %4194 = vmatprep.subr.mxu0 0.0
        %4195 = vmatpush1.msra.mxu0 %v4149
        %4196 = vmatprep.subr.mxu0 0.0
        %4197 = vmatpush1.msra.mxu0 %v4150
        %4198 = vmatprep.subr.mxu0 0.0
        %4199 = vmatpush1.msra.mxu0 %v4151
        %4200 = vmatprep.subr.mxu0 0.0
        %4201 = vmatpush1.msra.mxu0 %v4152
        %4202 = vmatprep.subr.mxu0 0.0
        %4203 = vmatpush1.msra.mxu0 %v4153
        %4204 = vmatprep.subr.mxu0 0.0
        %4205 = vmatpush1.msra.mxu0 %v4154
        %4206 = vmatprep.subr.mxu0 0.0
        %4207 = vmatpush1.msra.mxu0 %v4155
        %4208 = vmatprep.subr.mxu0 0.0
        %4209 = vmatpush1.msra.mxu0 %v4156
        %4210 = vmatprep.subr.mxu0 0.0
        %4211 = vmatpush1.msra.mxu0 %v4157
        %4212 = vmatprep.subr.mxu0 0.0
        %4213 = vmatpush1.msra.mxu0 %v4158
        %4214 = vmatprep.subr.mxu0 0.0
        %4215 = vmatpush1.msra.mxu0 %v4159
        %4216 = vmatprep.subr.mxu0 0.0
        %4217 = vmatpush1.msra.mxu0 %v4160
        %4218 = vmatprep.subr.mxu0 0.0
        %4219 = vmatpush1.msra.mxu0 %v4161
        %4220 = vmatprep.subr.mxu0 0.0
        %4221 = vmatpush1.msra.mxu0 %v4162
        %4222 = vmatprep.subr.mxu0 0.0
        %4223 = vmatpush1.msra.mxu0 %v4163
        %4224 = vmatprep.subr.mxu0 0.0
        %4225 = vmatpush1.msra.mxu0 %v4164
        %4226 = vmatprep.subr.mxu0 0.0
        %4227 = vmatpush1.msra.mxu0 %v4165
        %4228 = vmatprep.subr.mxu0 0.0
        %4229 = vmatpush1.msra.mxu0 %v4166
        %4230 = vmatprep.subr.mxu0 0.0
        %4231 = vmatpush1.msra.mxu0 %v4167
        %4232 = vmatprep.mubr.f32.mxu0 %v4129
        %4233 = vmatmul.mubr.f32.gmra.mrb[0].mxu0 %v4128
        %v4234 = vpop.f32.mrb[0].mxu0
        %v4235 = vadd.f32 0.0, %v4234
        %v4236 = vpop.f32.mrb[0].mxu0
        %4237 = vmatprep.mubr.f32.mxu0 %v4131
        %4238 = vmatmul.mubr.f32.gmra.mrb[0].mxu0 %v4130
        %v4239 = vpop.f32.mrb[0].mxu0
        %v4240 = vadd.f32 0.0, %v4239
        %v4241 = vpop.f32.mrb[0].mxu0
        %4242 = vmatprep.mubr.f32.mxu0 %v4133
        %4243 = vmatmul.mubr.f32.gmra.mrb[0].mxu0 %v4132
        %v4244 = vpop.f32.mrb[0].mxu0
        %v4245 = vadd.f32 0.0, %v4244
        %v4246 = vpop.f32.mrb[0].mxu0
        %4247 = vmatprep.mubr.f32.mxu0 %v4135
        %4248 = vmatmul.mubr.f32.gmra.mrb[0].mxu0 %v4134
        %v4249 = vpop.f32.mrb[0].mxu0
        %v4250 = vadd.f32 0.0, %v4249
        %v4251 = vpop.f32.mrb[0].mxu0
        %4252 = vdwg.mxu0
        %v4253 = vadd.f32 %v3787, %v4235
        %v4254 = vadd.f32 %v3788, %v4240
        %v4255 = vadd.f32 %v3789, %v4245
        %v4256 = vadd.f32 %v3790, %v4250
        %4257 = vst [vmem:[%s468] sm:$0xff] %v4253
        %4258 = vst [vmem:[%s468 + $0x8] sm:$0xff] %v4254
        %4259 = vst [vmem:[%s468 + $0x10] sm:$0xff] %v4255
        %4260 = vst [vmem:[%s468 + $0x18] sm:$0xff] %v4256
        %s4261 = sand.u32 %s276, 1
        %s4262 = scalar_lea.sflag [#allocation6], %s4261
        %s4263 = sand.u32 %s276, 1
        %s4264 = smul.addr %s4263, 32
        %s4265 = scalar_lea.vmem [#allocation12], %s4264
        // Predicated region
        $region84: #{tpu_custom_call.1} parent=59 // pred_check
          %p4266 = pneg %p286
        $region85: #{tpu_custom_call.1} parent=59 // pred_check_branch
          %4268 = sbr.rel (%p4266) target = $region87
        $region86: #{tpu_custom_call.1} parent=59 // pred_region
          %s4269 = smul.u32 4, %s32
          %s4271 = ssub.s32 512, 512
          %4272 = vsyncadd %s4262, %s4271
          %s4273 = smul.addr %s31, 8
          %s4274 = sadd.s32 %s4269, %s4273
          %s4275 = smul.addr %s4274, 128
          %s4276 = scalar_lea.hbm %s10, %s4275
          %s4277 = sshll.u32 %s4265, 4
          %s4278 = int_to_ptr.vmem [resolvable:$true] %s4277
          %4283 = dma.vmem_to_hbm [thread:$0]  %s4278, 512, %s4276, %s4262, 128, 128, 8
        $region87: #{tpu_custom_call.1} parent=59 // pred_fallthru
          _
      $region60: #{tpu_custom_call.1} parent=5 // pred_fallthru
        _
      %p4284 = scmp.le.s32.totalorder 2, %s22
      // Predicated region
      $region88: #{tpu_custom_call.1} parent=5 // pred_check
        %p4285 = pneg %p4284
      $region89: #{tpu_custom_call.1} parent=5 // pred_check_branch
        %4287 = sbr.rel (%p4285) target = $region91
      $region90: #{tpu_custom_call.1} parent=5 // pred_region
        %s4288 = ssub.s32 %s22, 2
        // Predicated region
        $region92: #{tpu_custom_call.1} parent=90 // pred_check
          %p4289 = pneg %p292
        $region93: #{tpu_custom_call.1} parent=90 // pred_check_branch
          %4291 = sbr.rel (%p4289) target = $region95
        $region94: #{tpu_custom_call.1} parent=90 // pred_region
          %s4292 = sand.u32 %s277, 1
          %s4293 = scalar_lea.sflag [#allocation6], %s4292
          %s4294 = sand.u32 %s277, 1
          %s4295 = smul.addr %s4294, 32
          %s4296 = scalar_lea.vmem [#allocation12], %s4295
          %4297 = dma.done %s4293, 512
        $region95: #{tpu_custom_call.1} parent=90 // pred_fallthru
          _
      $region91: #{tpu_custom_call.1} parent=5 // pred_fallthru
        _
    $region6: #{tpu_custom_call.1} parent=1 // loop_footer
      %s26 = sadd.s32 1, %s22
    $region7: #{tpu_custom_call.1} parent=1 // loop_footer_branch
      %21 = sbr.rel target = $region3
    $region8: #{tpu_custom_call.1} parent=1 // loop_exit
      _
    %4298 = vsyncpa [#allocation5], 1
    %s4299 = scalar_lea.sflag [#allocation5], 1
    %4300 = vsyncpa %s4299, 1
    %4301 = vsyncpa [#allocation8], 1
    %4302 = vsyncpa [#allocation11], 1
    %4303 = vsyncpa [#allocation6], 1
    %s4304 = scalar_lea.sflag [#allocation6], 1
    %4305 = vsyncpa %s4304, 1

</llo_original>
